<compile_context>
chip_gen: v5e
topology: v5e:2x2
jax: 0.10.0
libtpu: 0.0.40
codegen_flags: <defaults>
</compile_context>

<pallas_src>
import math
import jax
import jax.numpy as jnp
from jax import lax
from jax.experimental import pallas as pl
from jax.experimental.pallas import tpu as pltpu

K = 5      # conv kernel size
PAD = 2    # 'same' padding


def _fused_kernel(x_ref, t_ref, g_ref, b_ref, a_ref, o_ref):
    # x_ref : (1, D+4, H+4, (W+4)*Cin) bf16  zero-padded sample, (w, ci) flattened in lanes
    # t_ref : (K*K*(W+4)*Cin, W*CP)    bf16  block-Toeplitz weight slab (kw, ci folded in)
    # g_ref : (1, CP) f32   InstanceNorm gamma (zero-padded to CP)
    # b_ref : (1, CP) f32   InstanceNorm beta  (zero-padded to CP)
    # a_ref : (1, 1)  f32   shared PReLU alpha
    # o_ref : (1, D*H, W*CP) f32             output lane index = w*CP + co
    _, Dp, Hp, WpC = x_ref.shape
    D = Dp - 2 * PAD
    H = Hp - 2 * PAD
    CP = g_ref.shape[-1]
    W = o_ref.shape[-1] // CP
    inv_n = 1.0 / float(D * H * W)

    # Build the matmul LHS from 25 lane-dense (kd, kh)-shifted slabs (fully unrolled,
    # static offsets).  The kw / Cin contraction lives inside the banded weight slab, so
    # a single large MXU matmul replaces 125 tiny (DHW, Cin) x (Cin, Cout) products.
    kd_parts = []
    for kd in range(K):
        kh_parts = [x_ref[0, kd:kd + D, kh:kh + H, :] for kh in range(K)]
        kd_parts.append(jnp.concatenate(kh_parts, axis=-1))            # (D, H, K*WpC)
    lhs = jnp.concatenate(kd_parts, axis=-1).reshape(D * H, K * K * WpC)

    acc = jnp.dot(lhs, t_ref[...], preferred_element_type=jnp.float32)  # (D*H, W*CP) f32

    # InstanceNorm3d: per-channel stats over all spatial positions (rows + W lane groups),
    # biased variance, eps=1e-5, single pass (sum / sum-of-squares).  The conv bias is a
    # per-channel constant and cancels exactly under the mean subtraction -> omitted.
    s1 = jnp.sum(acc, axis=0, keepdims=True)              # (1, W*CP)
    s2 = jnp.sum(acc * acc, axis=0, keepdims=True)        # (1, W*CP)
    s1c = s1[:, 0:CP]
    s2c = s2[:, 0:CP]
    for wv in range(1, W):                                 # 128-aligned lane slices
        s1c = s1c + s1[:, wv * CP:(wv + 1) * CP]
        s2c = s2c + s2[:, wv * CP:(wv + 1) * CP]
    mean = s1c * inv_n                                     # (1, CP)
    var = jnp.maximum(s2c * inv_n - mean * mean, 0.0)
    rstd = lax.rsqrt(var + 1e-5)
    scale = g_ref[...] * rstd                              # (1, CP)
    shift = b_ref[...] - mean * scale                      # (1, CP)
    scale = jnp.concatenate([scale] * W, axis=-1)          # (1, W*CP)
    shift = jnp.concatenate([shift] * W, axis=-1)
    y = acc * scale + shift

    # PReLU with a single shared alpha
    alpha = a_ref[...]                                     # (1, 1) broadcasts
    y = jnp.where(y >= 0.0, y, alpha * y)

    o_ref[0, :, :] = y


def conv3d_block(x, w, b, gamma, beta, alpha):
    """x: (N, Cin, D, H, W) f32 (NCDHW); returns (N, Cout, D, H, W) f32."""
    del b  # conv bias is eliminated exactly by InstanceNorm's mean subtraction
    N, Cin, D, H, W = x.shape
    Cout = w.shape[0]
    CP = pl.cdiv(Cout, 128) * 128                      # lane-dense channel padding
    Dp, Hp, Wp = D + 2 * PAD, H + 2 * PAD, W + 2 * PAD

    # Input: NCDHW -> NDHWC, zero-pad halos, flatten (w, ci) into the lane axis, cast bf16.
    xt = jnp.transpose(x, (0, 2, 3, 4, 1))
    xt = jnp.pad(xt, ((0, 0), (PAD, PAD), (PAD, PAD), (PAD, PAD), (0, 0)))
    xt = xt.reshape(N, Dp, Hp, Wp * Cin).astype(jnp.bfloat16)

    # Weight: single 2-D block-Toeplitz slab
    #   T[(kd, kh, w_pad, ci), (w, co)] = w[co, ci, kd, kh, w_pad - w]  if 0 <= w_pad-w < K
    wt = jnp.transpose(w, (2, 3, 4, 1, 0))             # (kd, kh, kw, ci, co)
    t6 = jnp.zeros((K, K, Wp, Cin, W, CP), jnp.float32)
    for kw in range(K):
        for wi in range(W):
            t6 = t6.at[:, :, wi + kw, :, wi, :Cout].set(wt[:, :, kw, :, :])
    t2 = t6.reshape(K * K * Wp * Cin, W * CP).astype(jnp.bfloat16)

    g2 = jnp.pad(gamma.astype(jnp.float32), (0, CP - Cout)).reshape(1, CP)
    b2 = jnp.pad(beta.astype(jnp.float32), (0, CP - Cout)).reshape(1, CP)
    a2 = jnp.asarray(alpha, jnp.float32).reshape(1, 1)

    out2d = pl.pallas_call(
        _fused_kernel,
        out_shape=jax.ShapeDtypeStruct((N, D * H, W * CP), jnp.float32),
        grid_spec=pltpu.PrefetchScalarGridSpec(
            num_scalar_prefetch=0,
            grid=(N,),
            in_specs=[
                pl.BlockSpec((1, Dp, Hp, Wp * Cin), lambda n: (n, 0, 0, 0)),
                pl.BlockSpec((K * K * Wp * Cin, W * CP), lambda n: (0, 0)),
                pl.BlockSpec((1, CP), lambda n: (0, 0)),
                pl.BlockSpec((1, CP), lambda n: (0, 0)),
                pl.BlockSpec((1, 1), lambda n: (0, 0)),
            ],
            out_specs=pl.BlockSpec((1, D * H, W * CP), lambda n: (n, 0, 0)),
        ),
        compiler_params=pltpu.CompilerParams(
            dimension_semantics=("parallel",),
            vmem_limit_bytes=32 * 1024 * 1024,
        ),
    )(xt, t2, g2, b2, a2)

    out = out2d.reshape(N, D, H, W, CP)[..., :Cout]
    return jnp.transpose(out, (0, 4, 1, 2, 3))         # back to NCDHW


def _reference(x, w, b, gamma, beta, alpha):
    y = lax.conv_general_dilated(
        x, w, window_strides=(1, 1, 1), padding=[(PAD, PAD)] * 3,
        dimension_numbers=("NCDHW", "OIDHW", "NCDHW"))
    y = y + b[None, :, None, None, None]
    mean = jnp.mean(y, axis=(2, 3, 4), keepdims=True)
    var = jnp.mean((y - mean) ** 2, axis=(2, 3, 4), keepdims=True)
    y = (y - mean) * lax.rsqrt(var + 1e-5)
    y = y * gamma[None, :, None, None, None] + beta[None, :, None, None, None]
    return jnp.where(y >= 0, y, alpha * y)


if __name__ == "__main__":
    N, Cin, Cout = 2, 4, 8
    D = H = W = 8

    key = jax.random.PRNGKey(0)
    kx, k_w, kb = jax.random.split(key, 3)
    fan_in = Cin * K * K * K
    bound = 1.0 / math.sqrt(fan_in)
    x = jax.random.normal(kx, (N, Cin, D, H, W), jnp.float32)
    w = jax.random.uniform(k_w, (Cout, Cin, K, K, K), jnp.float32, -bound, bound)
    b = jax.random.uniform(kb, (Cout,), jnp.float32, -bound, bound)
    gamma = jnp.ones((Cout,), jnp.float32)     # InstanceNorm3d(affine=True) default init
    beta = jnp.zeros((Cout,), jnp.float32)
    alpha = jnp.float32(0.25)                  # PReLU default init (single shared param)

    conv3d_fn = jax.jit(conv3d_block)
    out = jax.block_until_ready(conv3d_fn(x, w, b, gamma, beta, alpha))
    ref = jax.block_until_ready(_reference(x, w, b, gamma, beta, alpha))

    assert out.shape == (N, Cout, D, H, W), out.shape
    # bf16 conv inputs/weights with f32 accumulation: expected max |err| ~1e-2 on the
    # unit-scale (instance-normalized) outputs.
    max_err = float(jnp.max(jnp.abs(out - ref)))
    assert max_err < 5e-2, f"max abs err {max_err}"
    print("KERNEL_OK")
</pallas_src>

<mosaic_0001>
module attributes {stable_mosaic.version = 11 : i64} {
  func.func @_fused_kernel(%arg0: i32, %arg1: memref<1x12x12x48xbf16, #tpu.memory_space<vmem>>, %arg2: memref<1200x1024xbf16, #tpu.memory_space<vmem>>, %arg3: memref<1x128xf32, #tpu.memory_space<vmem>>, %arg4: memref<1x128xf32, #tpu.memory_space<vmem>>, %arg5: memref<1x1xf32, #tpu.memory_space<vmem>>, %arg6: memref<1x64x1024xf32, #tpu.memory_space<vmem>>) attributes {dimension_semantics = [#tpu.dimension_semantics<parallel>], iteration_bounds = array<i64: 2>, scalar_prefetch = 0 : i64, scratch_operands = 0 : i64, tpu.core_type = #tpu.core_type<tc>, window_params = [{transform_indices = @transform_0, window_bounds = array<i64: 1, 12, 12, 48>}, {pipeline_mode = #tpu.pipeline_mode<synchronous>, transform_indices = @transform_1, window_bounds = array<i64: 1200, 1024>}, {pipeline_mode = #tpu.pipeline_mode<synchronous>, transform_indices = @transform_2, window_bounds = array<i64: 1, 128>}, {pipeline_mode = #tpu.pipeline_mode<synchronous>, transform_indices = @transform_3, window_bounds = array<i64: 1, 128>}, {pipeline_mode = #tpu.pipeline_mode<synchronous>, transform_indices = @transform_4, window_bounds = array<i64: 1, 1>}, {transform_indices = @transform_5, window_bounds = array<i64: 1, 64, 1024>}]} {
    %c0 = arith.constant 0 : index
    %c0_0 = arith.constant 0 : index
    %c0_1 = arith.constant 0 : index
    %c0_2 = arith.constant 0 : index
    %0 = vector.load %arg1[%c0, %c0_0, %c0_1, %c0_2] : memref<1x12x12x48xbf16, #tpu.memory_space<vmem>>, vector<1x8x8x48xbf16>
    %1 = vector.shape_cast %0 : vector<1x8x8x48xbf16> to vector<8x8x48xbf16>
    %c0_3 = arith.constant 0 : index
    %c0_4 = arith.constant 0 : index
    %c1 = arith.constant 1 : index
    %c0_5 = arith.constant 0 : index
    %2 = vector.load %arg1[%c0_3, %c0_4, %c1, %c0_5] : memref<1x12x12x48xbf16, #tpu.memory_space<vmem>>, vector<1x8x8x48xbf16>
    %3 = vector.shape_cast %2 : vector<1x8x8x48xbf16> to vector<8x8x48xbf16>
    %c0_6 = arith.constant 0 : index
    %c0_7 = arith.constant 0 : index
    %c2 = arith.constant 2 : index
    %c0_8 = arith.constant 0 : index
    %4 = vector.load %arg1[%c0_6, %c0_7, %c2, %c0_8] : memref<1x12x12x48xbf16, #tpu.memory_space<vmem>>, vector<1x8x8x48xbf16>
    %5 = vector.shape_cast %4 : vector<1x8x8x48xbf16> to vector<8x8x48xbf16>
    %c0_9 = arith.constant 0 : index
    %c0_10 = arith.constant 0 : index
    %c3 = arith.constant 3 : index
    %c0_11 = arith.constant 0 : index
    %6 = vector.load %arg1[%c0_9, %c0_10, %c3, %c0_11] : memref<1x12x12x48xbf16, #tpu.memory_space<vmem>>, vector<1x8x8x48xbf16>
    %7 = vector.shape_cast %6 : vector<1x8x8x48xbf16> to vector<8x8x48xbf16>
    %c0_12 = arith.constant 0 : index
    %c0_13 = arith.constant 0 : index
    %c4 = arith.constant 4 : index
    %c0_14 = arith.constant 0 : index
    %8 = vector.load %arg1[%c0_12, %c0_13, %c4, %c0_14] : memref<1x12x12x48xbf16, #tpu.memory_space<vmem>>, vector<1x8x8x48xbf16>
    %9 = vector.shape_cast %8 : vector<1x8x8x48xbf16> to vector<8x8x48xbf16>
    %10 = tpu.concatenate %1, %3, %5, %7, %9 in 2 : vector<8x8x48xbf16>, vector<8x8x48xbf16>, vector<8x8x48xbf16>, vector<8x8x48xbf16>, vector<8x8x48xbf16> -> vector<8x8x240xbf16>
    %c0_15 = arith.constant 0 : index
    %c1_16 = arith.constant 1 : index
    %c0_17 = arith.constant 0 : index
    %c0_18 = arith.constant 0 : index
    %11 = vector.load %arg1[%c0_15, %c1_16, %c0_17, %c0_18] : memref<1x12x12x48xbf16, #tpu.memory_space<vmem>>, vector<1x8x8x48xbf16>
    %12 = vector.shape_cast %11 : vector<1x8x8x48xbf16> to vector<8x8x48xbf16>
    %c0_19 = arith.constant 0 : index
    %c1_20 = arith.constant 1 : index
    %c1_21 = arith.constant 1 : index
    %c0_22 = arith.constant 0 : index
    %13 = vector.load %arg1[%c0_19, %c1_20, %c1_21, %c0_22] : memref<1x12x12x48xbf16, #tpu.memory_space<vmem>>, vector<1x8x8x48xbf16>
    %14 = vector.shape_cast %13 : vector<1x8x8x48xbf16> to vector<8x8x48xbf16>
    %c0_23 = arith.constant 0 : index
    %c1_24 = arith.constant 1 : index
    %c2_25 = arith.constant 2 : index
    %c0_26 = arith.constant 0 : index
    %15 = vector.load %arg1[%c0_23, %c1_24, %c2_25, %c0_26] : memref<1x12x12x48xbf16, #tpu.memory_space<vmem>>, vector<1x8x8x48xbf16>
    %16 = vector.shape_cast %15 : vector<1x8x8x48xbf16> to vector<8x8x48xbf16>
    %c0_27 = arith.constant 0 : index
    %c1_28 = arith.constant 1 : index
    %c3_29 = arith.constant 3 : index
    %c0_30 = arith.constant 0 : index
    %17 = vector.load %arg1[%c0_27, %c1_28, %c3_29, %c0_30] : memref<1x12x12x48xbf16, #tpu.memory_space<vmem>>, vector<1x8x8x48xbf16>
    %18 = vector.shape_cast %17 : vector<1x8x8x48xbf16> to vector<8x8x48xbf16>
    %c0_31 = arith.constant 0 : index
    %c1_32 = arith.constant 1 : index
    %c4_33 = arith.constant 4 : index
    %c0_34 = arith.constant 0 : index
    %19 = vector.load %arg1[%c0_31, %c1_32, %c4_33, %c0_34] : memref<1x12x12x48xbf16, #tpu.memory_space<vmem>>, vector<1x8x8x48xbf16>
    %20 = vector.shape_cast %19 : vector<1x8x8x48xbf16> to vector<8x8x48xbf16>
    %21 = tpu.concatenate %12, %14, %16, %18, %20 in 2 : vector<8x8x48xbf16>, vector<8x8x48xbf16>, vector<8x8x48xbf16>, vector<8x8x48xbf16>, vector<8x8x48xbf16> -> vector<8x8x240xbf16>
    %c0_35 = arith.constant 0 : index
    %c2_36 = arith.constant 2 : index
    %c0_37 = arith.constant 0 : index
    %c0_38 = arith.constant 0 : index
    %22 = vector.load %arg1[%c0_35, %c2_36, %c0_37, %c0_38] : memref<1x12x12x48xbf16, #tpu.memory_space<vmem>>, vector<1x8x8x48xbf16>
    %23 = vector.shape_cast %22 : vector<1x8x8x48xbf16> to vector<8x8x48xbf16>
    %c0_39 = arith.constant 0 : index
    %c2_40 = arith.constant 2 : index
    %c1_41 = arith.constant 1 : index
    %c0_42 = arith.constant 0 : index
    %24 = vector.load %arg1[%c0_39, %c2_40, %c1_41, %c0_42] : memref<1x12x12x48xbf16, #tpu.memory_space<vmem>>, vector<1x8x8x48xbf16>
    %25 = vector.shape_cast %24 : vector<1x8x8x48xbf16> to vector<8x8x48xbf16>
    %c0_43 = arith.constant 0 : index
    %c2_44 = arith.constant 2 : index
    %c2_45 = arith.constant 2 : index
    %c0_46 = arith.constant 0 : index
    %26 = vector.load %arg1[%c0_43, %c2_44, %c2_45, %c0_46] : memref<1x12x12x48xbf16, #tpu.memory_space<vmem>>, vector<1x8x8x48xbf16>
    %27 = vector.shape_cast %26 : vector<1x8x8x48xbf16> to vector<8x8x48xbf16>
    %c0_47 = arith.constant 0 : index
    %c2_48 = arith.constant 2 : index
    %c3_49 = arith.constant 3 : index
    %c0_50 = arith.constant 0 : index
    %28 = vector.load %arg1[%c0_47, %c2_48, %c3_49, %c0_50] : memref<1x12x12x48xbf16, #tpu.memory_space<vmem>>, vector<1x8x8x48xbf16>
    %29 = vector.shape_cast %28 : vector<1x8x8x48xbf16> to vector<8x8x48xbf16>
    %c0_51 = arith.constant 0 : index
    %c2_52 = arith.constant 2 : index
    %c4_53 = arith.constant 4 : index
    %c0_54 = arith.constant 0 : index
    %30 = vector.load %arg1[%c0_51, %c2_52, %c4_53, %c0_54] : memref<1x12x12x48xbf16, #tpu.memory_space<vmem>>, vector<1x8x8x48xbf16>
    %31 = vector.shape_cast %30 : vector<1x8x8x48xbf16> to vector<8x8x48xbf16>
    %32 = tpu.concatenate %23, %25, %27, %29, %31 in 2 : vector<8x8x48xbf16>, vector<8x8x48xbf16>, vector<8x8x48xbf16>, vector<8x8x48xbf16>, vector<8x8x48xbf16> -> vector<8x8x240xbf16>
    %c0_55 = arith.constant 0 : index
    %c3_56 = arith.constant 3 : index
    %c0_57 = arith.constant 0 : index
    %c0_58 = arith.constant 0 : index
    %33 = vector.load %arg1[%c0_55, %c3_56, %c0_57, %c0_58] : memref<1x12x12x48xbf16, #tpu.memory_space<vmem>>, vector<1x8x8x48xbf16>
    %34 = vector.shape_cast %33 : vector<1x8x8x48xbf16> to vector<8x8x48xbf16>
    %c0_59 = arith.constant 0 : index
    %c3_60 = arith.constant 3 : index
    %c1_61 = arith.constant 1 : index
    %c0_62 = arith.constant 0 : index
    %35 = vector.load %arg1[%c0_59, %c3_60, %c1_61, %c0_62] : memref<1x12x12x48xbf16, #tpu.memory_space<vmem>>, vector<1x8x8x48xbf16>
    %36 = vector.shape_cast %35 : vector<1x8x8x48xbf16> to vector<8x8x48xbf16>
    %c0_63 = arith.constant 0 : index
    %c3_64 = arith.constant 3 : index
    %c2_65 = arith.constant 2 : index
    %c0_66 = arith.constant 0 : index
    %37 = vector.load %arg1[%c0_63, %c3_64, %c2_65, %c0_66] : memref<1x12x12x48xbf16, #tpu.memory_space<vmem>>, vector<1x8x8x48xbf16>
    %38 = vector.shape_cast %37 : vector<1x8x8x48xbf16> to vector<8x8x48xbf16>
    %c0_67 = arith.constant 0 : index
    %c3_68 = arith.constant 3 : index
    %c3_69 = arith.constant 3 : index
    %c0_70 = arith.constant 0 : index
    %39 = vector.load %arg1[%c0_67, %c3_68, %c3_69, %c0_70] : memref<1x12x12x48xbf16, #tpu.memory_space<vmem>>, vector<1x8x8x48xbf16>
    %40 = vector.shape_cast %39 : vector<1x8x8x48xbf16> to vector<8x8x48xbf16>
    %c0_71 = arith.constant 0 : index
    %c3_72 = arith.constant 3 : index
    %c4_73 = arith.constant 4 : index
    %c0_74 = arith.constant 0 : index
    %41 = vector.load %arg1[%c0_71, %c3_72, %c4_73, %c0_74] : memref<1x12x12x48xbf16, #tpu.memory_space<vmem>>, vector<1x8x8x48xbf16>
    %42 = vector.shape_cast %41 : vector<1x8x8x48xbf16> to vector<8x8x48xbf16>
    %43 = tpu.concatenate %34, %36, %38, %40, %42 in 2 : vector<8x8x48xbf16>, vector<8x8x48xbf16>, vector<8x8x48xbf16>, vector<8x8x48xbf16>, vector<8x8x48xbf16> -> vector<8x8x240xbf16>
    %c0_75 = arith.constant 0 : index
    %c4_76 = arith.constant 4 : index
    %c0_77 = arith.constant 0 : index
    %c0_78 = arith.constant 0 : index
    %44 = vector.load %arg1[%c0_75, %c4_76, %c0_77, %c0_78] : memref<1x12x12x48xbf16, #tpu.memory_space<vmem>>, vector<1x8x8x48xbf16>
    %45 = vector.shape_cast %44 : vector<1x8x8x48xbf16> to vector<8x8x48xbf16>
    %c0_79 = arith.constant 0 : index
    %c4_80 = arith.constant 4 : index
    %c1_81 = arith.constant 1 : index
    %c0_82 = arith.constant 0 : index
    %46 = vector.load %arg1[%c0_79, %c4_80, %c1_81, %c0_82] : memref<1x12x12x48xbf16, #tpu.memory_space<vmem>>, vector<1x8x8x48xbf16>
    %47 = vector.shape_cast %46 : vector<1x8x8x48xbf16> to vector<8x8x48xbf16>
    %c0_83 = arith.constant 0 : index
    %c4_84 = arith.constant 4 : index
    %c2_85 = arith.constant 2 : index
    %c0_86 = arith.constant 0 : index
    %48 = vector.load %arg1[%c0_83, %c4_84, %c2_85, %c0_86] : memref<1x12x12x48xbf16, #tpu.memory_space<vmem>>, vector<1x8x8x48xbf16>
    %49 = vector.shape_cast %48 : vector<1x8x8x48xbf16> to vector<8x8x48xbf16>
    %c0_87 = arith.constant 0 : index
    %c4_88 = arith.constant 4 : index
    %c3_89 = arith.constant 3 : index
    %c0_90 = arith.constant 0 : index
    %50 = vector.load %arg1[%c0_87, %c4_88, %c3_89, %c0_90] : memref<1x12x12x48xbf16, #tpu.memory_space<vmem>>, vector<1x8x8x48xbf16>
    %51 = vector.shape_cast %50 : vector<1x8x8x48xbf16> to vector<8x8x48xbf16>
    %c0_91 = arith.constant 0 : index
    %c4_92 = arith.constant 4 : index
    %c4_93 = arith.constant 4 : index
    %c0_94 = arith.constant 0 : index
    %52 = vector.load %arg1[%c0_91, %c4_92, %c4_93, %c0_94] : memref<1x12x12x48xbf16, #tpu.memory_space<vmem>>, vector<1x8x8x48xbf16>
    %53 = vector.shape_cast %52 : vector<1x8x8x48xbf16> to vector<8x8x48xbf16>
    %54 = tpu.concatenate %45, %47, %49, %51, %53 in 2 : vector<8x8x48xbf16>, vector<8x8x48xbf16>, vector<8x8x48xbf16>, vector<8x8x48xbf16>, vector<8x8x48xbf16> -> vector<8x8x240xbf16>
    %55 = tpu.concatenate %10, %21, %32, %43, %54 in 2 : vector<8x8x240xbf16>, vector<8x8x240xbf16>, vector<8x8x240xbf16>, vector<8x8x240xbf16>, vector<8x8x240xbf16> -> vector<8x8x1200xbf16>
    %56 = vector.shape_cast %55 : vector<8x8x1200xbf16> to vector<64x1200xbf16>
    %c0_95 = arith.constant 0 : index
    %c0_96 = arith.constant 0 : index
    %57 = vector.load %arg2[%c0_95, %c0_96] : memref<1200x1024xbf16, #tpu.memory_space<vmem>>, vector<1200x1024xbf16>
    %cst = arith.constant dense<0.000000e+00> : vector<64x1024xf32>
    %58 = tpu.matmul %56, %57, %cst {dimension_numbers = #tpu.dot_dimension_numbers<[1], [0], [0], [1], [0, 0, 1, 1], [], []>} : vector<64x1200xbf16>, vector<1200x1024xbf16>, vector<64x1024xf32> -> vector<64x1024xf32>
    %cst_97 = arith.constant dense<0.000000e+00> : vector<1024xf32>
    %59 = vector.multi_reduction <add>, %58, %cst_97 [0] : vector<64x1024xf32> to vector<1024xf32>
    %60 = vector.shape_cast %59 : vector<1024xf32> to vector<1x1024xf32>
    %61 = arith.mulf %58, %58 : vector<64x1024xf32>
    %cst_98 = arith.constant dense<0.000000e+00> : vector<1024xf32>
    %62 = vector.multi_reduction <add>, %61, %cst_98 [0] : vector<64x1024xf32> to vector<1024xf32>
    %63 = vector.shape_cast %62 : vector<1024xf32> to vector<1x1024xf32>
    %64 = vector.extract_strided_slice %60 {offsets = [0, 0], sizes = [1, 128], strides = [1, 1]} : vector<1x1024xf32> to vector<1x128xf32>
    %65 = vector.extract_strided_slice %63 {offsets = [0, 0], sizes = [1, 128], strides = [1, 1]} : vector<1x1024xf32> to vector<1x128xf32>
    %66 = vector.extract_strided_slice %60 {offsets = [0, 128], sizes = [1, 128], strides = [1, 1]} : vector<1x1024xf32> to vector<1x128xf32>
    %67 = arith.addf %64, %66 : vector<1x128xf32>
    %68 = vector.extract_strided_slice %63 {offsets = [0, 128], sizes = [1, 128], strides = [1, 1]} : vector<1x1024xf32> to vector<1x128xf32>
    %69 = arith.addf %65, %68 : vector<1x128xf32>
    %70 = vector.extract_strided_slice %60 {offsets = [0, 256], sizes = [1, 128], strides = [1, 1]} : vector<1x1024xf32> to vector<1x128xf32>
    %71 = arith.addf %67, %70 : vector<1x128xf32>
    %72 = vector.extract_strided_slice %63 {offsets = [0, 256], sizes = [1, 128], strides = [1, 1]} : vector<1x1024xf32> to vector<1x128xf32>
    %73 = arith.addf %69, %72 : vector<1x128xf32>
    %74 = vector.extract_strided_slice %60 {offsets = [0, 384], sizes = [1, 128], strides = [1, 1]} : vector<1x1024xf32> to vector<1x128xf32>
    %75 = arith.addf %71, %74 : vector<1x128xf32>
    %76 = vector.extract_strided_slice %63 {offsets = [0, 384], sizes = [1, 128], strides = [1, 1]} : vector<1x1024xf32> to vector<1x128xf32>
    %77 = arith.addf %73, %76 : vector<1x128xf32>
    %78 = vector.extract_strided_slice %60 {offsets = [0, 512], sizes = [1, 128], strides = [1, 1]} : vector<1x1024xf32> to vector<1x128xf32>
    %79 = arith.addf %75, %78 : vector<1x128xf32>
    %80 = vector.extract_strided_slice %63 {offsets = [0, 512], sizes = [1, 128], strides = [1, 1]} : vector<1x1024xf32> to vector<1x128xf32>
    %81 = arith.addf %77, %80 : vector<1x128xf32>
    %82 = vector.extract_strided_slice %60 {offsets = [0, 640], sizes = [1, 128], strides = [1, 1]} : vector<1x1024xf32> to vector<1x128xf32>
    %83 = arith.addf %79, %82 : vector<1x128xf32>
    %84 = vector.extract_strided_slice %63 {offsets = [0, 640], sizes = [1, 128], strides = [1, 1]} : vector<1x1024xf32> to vector<1x128xf32>
    %85 = arith.addf %81, %84 : vector<1x128xf32>
    %86 = vector.extract_strided_slice %60 {offsets = [0, 768], sizes = [1, 128], strides = [1, 1]} : vector<1x1024xf32> to vector<1x128xf32>
    %87 = arith.addf %83, %86 : vector<1x128xf32>
    %88 = vector.extract_strided_slice %63 {offsets = [0, 768], sizes = [1, 128], strides = [1, 1]} : vector<1x1024xf32> to vector<1x128xf32>
    %89 = arith.addf %85, %88 : vector<1x128xf32>
    %90 = vector.extract_strided_slice %60 {offsets = [0, 896], sizes = [1, 128], strides = [1, 1]} : vector<1x1024xf32> to vector<1x128xf32>
    %91 = arith.addf %87, %90 : vector<1x128xf32>
    %92 = vector.extract_strided_slice %63 {offsets = [0, 896], sizes = [1, 128], strides = [1, 1]} : vector<1x1024xf32> to vector<1x128xf32>
    %93 = arith.addf %89, %92 : vector<1x128xf32>
    %cst_99 = arith.constant 0.001953125 : f32
    %94 = vector.broadcast %cst_99 : f32 to vector<1x128xf32>
    %95 = arith.mulf %91, %94 : vector<1x128xf32>
    %cst_100 = arith.constant 0.001953125 : f32
    %96 = vector.broadcast %cst_100 : f32 to vector<1x128xf32>
    %97 = arith.mulf %93, %96 : vector<1x128xf32>
    %98 = arith.mulf %95, %95 : vector<1x128xf32>
    %99 = arith.subf %97, %98 : vector<1x128xf32>
    %cst_101 = arith.constant 0.000000e+00 : f32
    %100 = vector.broadcast %cst_101 : f32 to vector<1x128xf32>
    %101 = arith.maximumf %99, %100 : vector<1x128xf32>
    %cst_102 = arith.constant 9.99999974E-6 : f32
    %102 = vector.broadcast %cst_102 : f32 to vector<1x128xf32>
    %103 = arith.addf %101, %102 : vector<1x128xf32>
    %104 = math.rsqrt %103 : vector<1x128xf32>
    %c0_103 = arith.constant 0 : index
    %c0_104 = arith.constant 0 : index
    %105 = vector.load %arg3[%c0_103, %c0_104] : memref<1x128xf32, #tpu.memory_space<vmem>>, vector<1x128xf32>
    %106 = arith.mulf %105, %104 : vector<1x128xf32>
    %c0_105 = arith.constant 0 : index
    %c0_106 = arith.constant 0 : index
    %107 = vector.load %arg4[%c0_105, %c0_106] : memref<1x128xf32, #tpu.memory_space<vmem>>, vector<1x128xf32>
    %108 = arith.mulf %95, %106 : vector<1x128xf32>
    %109 = arith.subf %107, %108 : vector<1x128xf32>
    %110 = tpu.concatenate %106, %106, %106, %106, %106, %106, %106, %106 in 1 : vector<1x128xf32>, vector<1x128xf32>, vector<1x128xf32>, vector<1x128xf32>, vector<1x128xf32>, vector<1x128xf32>, vector<1x128xf32>, vector<1x128xf32> -> vector<1x1024xf32>
    %111 = tpu.concatenate %109, %109, %109, %109, %109, %109, %109, %109 in 1 : vector<1x128xf32>, vector<1x128xf32>, vector<1x128xf32>, vector<1x128xf32>, vector<1x128xf32>, vector<1x128xf32>, vector<1x128xf32>, vector<1x128xf32> -> vector<1x1024xf32>
    %112 = vector.broadcast %110 : vector<1x1024xf32> to vector<64x1024xf32>
    %113 = arith.mulf %58, %112 : vector<64x1024xf32>
    %114 = vector.broadcast %111 : vector<1x1024xf32> to vector<64x1024xf32>
    %115 = arith.addf %113, %114 : vector<64x1024xf32>
    %c0_107 = arith.constant 0 : index
    %c0_108 = arith.constant 0 : index
    %116 = vector.load %arg5[%c0_107, %c0_108] : memref<1x1xf32, #tpu.memory_space<vmem>>, vector<1x1xf32>
    %cst_109 = arith.constant 0.000000e+00 : f32
    %117 = vector.broadcast %cst_109 : f32 to vector<64x1024xf32>
    %118 = arith.cmpf oge, %115, %117 : vector<64x1024xf32>
    %119 = vector.broadcast %116 : vector<1x1xf32> to vector<64x1024xf32>
    %120 = arith.mulf %119, %115 : vector<64x1024xf32>
    %121 = arith.select %118, %115, %120 : vector<64x1024xi1>, vector<64x1024xf32>
    %c0_110 = arith.constant 0 : index
    %c0_111 = arith.constant 0 : index
    %c0_112 = arith.constant 0 : index
    %122 = vector.load %arg6[%c0_110, %c0_111, %c0_112] : memref<1x64x1024xf32, #tpu.memory_space<vmem>>, vector<1x64x1024xf32>
    %123 = vector.shape_cast %122 : vector<1x64x1024xf32> to vector<64x1024xf32>
    %124 = vector.shape_cast %121 : vector<64x1024xf32> to vector<1x64x1024xf32>
    tpu.vector_store %arg6[%c0_110, %c0_111, %c0_112], %124 {strides = array<i32>} : memref<1x64x1024xf32, #tpu.memory_space<vmem>>, vector<1x64x1024xf32>,
    return
  }
  func.func @transform_0(%arg0: i32) -> (i32, i32, i32, i32) {
    %c0_i32 = arith.constant 0 : i32
    %c0_i32_0 = arith.constant 0 : i32
    %c0_i32_1 = arith.constant 0 : i32
    %c0_i32_2 = arith.constant 0 : i32
    return %arg0, %c0_i32, %c0_i32_0, %c0_i32_1 : i32, i32, i32, i32
  }
  func.func @transform_1(%arg0: i32) -> (i32, i32) {
    %c0_i32 = arith.constant 0 : i32
    %c0_i32_0 = arith.constant 0 : i32
    %c0_i32_1 = arith.constant 0 : i32
    return %c0_i32, %c0_i32_0 : i32, i32
  }
  func.func @transform_2(%arg0: i32) -> (i32, i32) {
    %c0_i32 = arith.constant 0 : i32
    %c0_i32_0 = arith.constant 0 : i32
    %c0_i32_1 = arith.constant 0 : i32
    return %c0_i32, %c0_i32_0 : i32, i32
  }
  func.func @transform_3(%arg0: i32) -> (i32, i32) {
    %c0_i32 = arith.constant 0 : i32
    %c0_i32_0 = arith.constant 0 : i32
    %c0_i32_1 = arith.constant 0 : i32
    return %c0_i32, %c0_i32_0 : i32, i32
  }
  func.func @transform_4(%arg0: i32) -> (i32, i32) {
    %c0_i32 = arith.constant 0 : i32
    %c0_i32_0 = arith.constant 0 : i32
    %c0_i32_1 = arith.constant 0 : i32
    return %c0_i32, %c0_i32_0 : i32, i32
  }
  func.func @transform_5(%arg0: i32) -> (i32, i32, i32) {
    %c0_i32 = arith.constant 0 : i32
    %c0_i32_0 = arith.constant 0 : i32
    %c0_i32_1 = arith.constant 0 : i32
    return %arg0, %c0_i32, %c0_i32_0 : i32, i32, i32
  }
}

</mosaic_0001>

<llo_original>
// kernel: conv3d_block.1
$region0: #{conv3d_block.1}
  #allocation0 [shape = 'u32[]', space=smem, size = 0x4, offset = 0x4, fixed_abs, tag = 'smem constant byte address 0x4 - core index']
  #allocation1 [shape = 'u32[72,128]{1,0:T(1,128)}', space=vmem, size = 0x9000, scoped, tag = 'internal scratch']
  #allocation2 [shape = 'f32[1,1]{1,0:T(1,128)S(1)}', space=vmem, size = 0x200, scoped, tag = 'scoped memory for conv3d_block.1']
  %s0 = inlined_call_operand.vmem [shape: bf16[2,12,12,48], index: 0, kind: input, shape index: {}]
  %s1 = inlined_call_operand.vmem [shape: bf16[1200,1024], index: 1, kind: input, shape index: {}]
  %s2 = inlined_call_operand.vmem [shape: f32[1,128], index: 2, kind: input, shape index: {}]
  %s3 = inlined_call_operand.vmem [shape: f32[1,128], index: 3, kind: input, shape index: {}]
  %s4 = inlined_call_operand.<no memory space> [shape: f32[1,1], index: 4, kind: input, shape index: {}]
  %s5 = inlined_call_operand.vmem [shape: f32[2,64,1024], index: 5, kind: output, shape index: {}]
  %s6 = sld [smem:[#allocation0]]
  $region53: #{conv3d_block.1} parent=0
    _
  %s8 = ssub.s32 1, %s6
  %s9 = scalar_select 0, %s8, %s6
  %v10 = vstv %s4
  %11 = vst [vmem:[#allocation2] sm:$0x1] %v10
  loop: start=0, step=1, limit=4
  $region2: #{conv3d_block.1} parent=0 // loop_pre_header
    _
  $region3: #{conv3d_block.1} parent=0 // loop_header
    %s13 = sphi 0, %s17
    %p14 = scmp.ge.s32.totalorder %s13, 4
    %s23 = sphi 0, %s25
    %s26 = sphi 0, %s23
    %s27 = sphi 0, %s26
    %s43 = sphi 0, %s27
    %s47 = sphi 0, %s47
    %s49 = sphi 0, %s47
    %s50 = sphi 0, %s49
    %s64 = sphi 0, %s50
    %s68 = sphi 0, %s68
    %s70 = sphi 0, %s68
    %s71 = sphi 0, %s70
    %s85 = sphi 0, %s71
    %s89 = sphi 0, %s89
    %s91 = sphi 0, %s89
    %s92 = sphi 0, %s91
    %s106 = sphi 0, %s92
    %s110 = sphi 0, %s110
    %s112 = sphi 0, %s110
    %s113 = sphi 0, %s112
    %s127 = sphi 0, %s113
    %s133 = sphi 0, %s135
    %s136 = sphi 0, %s133
    %s137 = sphi 0, %s136
    %s153 = sphi 0, %s137
  $region4: #{conv3d_block.1} parent=0 // loop_header_branch
    %16 = sbr.rel (%p14) target = $region8
  $region5: #{conv3d_block.1} parent=0 // loop_body
    %s18 = ssub.s32 %s13, 1
    %s19 = ssub.s32 %s13, 2
    %s20 = sadd.s32 %s13, 1
    %s21 = ssub.s32 %s13, %s20
    %p22 = scmp.eq.s32.totalorder %s21, 0
    %s24 = sadd.s32 %s23, 1
    %s25 = scalar_select %p22, %s23, %s24
    %p28 = pneg %p22
    %p29 = scmp.eq.s32.totalorder %s13, 1
    %p30 = por %p28, %p29
    %p31 = scmp.ne.s32.totalorder %s23, %s26
    %p32 = scmp.eq.s32.totalorder %s13, 0
    %p33 = por %p31, %p32
    %p34 = scmp.ne.s32.totalorder %s23, %s26
    %p35 = scmp.eq.s32.totalorder %s18, 1
    %p36 = por %p34, %p35
    %p37 = scmp.ne.s32.totalorder %s26, %s27
    %p38 = scmp.eq.s32.totalorder %s18, 0
    %p39 = por %p37, %p38
    %p40 = scmp.ne.s32.totalorder %s26, %s27
    %p41 = scmp.eq.s32.totalorder %s19, 1
    %p42 = por %p40, %p41
    %p44 = scmp.ne.s32.totalorder %s27, %s43
    %p45 = scmp.eq.s32.totalorder %s19, 0
    %p46 = por %p44, %p45
    %s48 = sadd.s32 %s47, 1
    %p51 = scmp.eq.s32.totalorder %s13, 1
    %p52 = scmp.ne.s32.totalorder %s47, %s49
    %p53 = scmp.eq.s32.totalorder %s13, 0
    %p54 = por %p52, %p53
    %p55 = scmp.ne.s32.totalorder %s47, %s49
    %p56 = scmp.eq.s32.totalorder %s18, 1
    %p57 = por %p55, %p56
    %p58 = scmp.ne.s32.totalorder %s49, %s50
    %p59 = scmp.eq.s32.totalorder %s18, 0
    %p60 = por %p58, %p59
    %p61 = scmp.ne.s32.totalorder %s49, %s50
    %p62 = scmp.eq.s32.totalorder %s19, 1
    %p63 = por %p61, %p62
    %p65 = scmp.ne.s32.totalorder %s50, %s64
    %p66 = scmp.eq.s32.totalorder %s19, 0
    %p67 = por %p65, %p66
    %s69 = sadd.s32 %s68, 1
    %p72 = scmp.eq.s32.totalorder %s13, 1
    %p73 = scmp.ne.s32.totalorder %s68, %s70
    %p74 = scmp.eq.s32.totalorder %s13, 0
    %p75 = por %p73, %p74
    %p76 = scmp.ne.s32.totalorder %s68, %s70
    %p77 = scmp.eq.s32.totalorder %s18, 1
    %p78 = por %p76, %p77
    %p79 = scmp.ne.s32.totalorder %s70, %s71
    %p80 = scmp.eq.s32.totalorder %s18, 0
    %p81 = por %p79, %p80
    %p82 = scmp.ne.s32.totalorder %s70, %s71
    %p83 = scmp.eq.s32.totalorder %s19, 1
    %p84 = por %p82, %p83
    %p86 = scmp.ne.s32.totalorder %s71, %s85
    %p87 = scmp.eq.s32.totalorder %s19, 0
    %p88 = por %p86, %p87
    %s90 = sadd.s32 %s89, 1
    %p93 = scmp.eq.s32.totalorder %s13, 1
    %p94 = scmp.ne.s32.totalorder %s89, %s91
    %p95 = scmp.eq.s32.totalorder %s13, 0
    %p96 = por %p94, %p95
    %p97 = scmp.ne.s32.totalorder %s89, %s91
    %p98 = scmp.eq.s32.totalorder %s18, 1
    %p99 = por %p97, %p98
    %p100 = scmp.ne.s32.totalorder %s91, %s92
    %p101 = scmp.eq.s32.totalorder %s18, 0
    %p102 = por %p100, %p101
    %p103 = scmp.ne.s32.totalorder %s91, %s92
    %p104 = scmp.eq.s32.totalorder %s19, 1
    %p105 = por %p103, %p104
    %p107 = scmp.ne.s32.totalorder %s92, %s106
    %p108 = scmp.eq.s32.totalorder %s19, 0
    %p109 = por %p107, %p108
    %s111 = sadd.s32 %s110, 1
    %p114 = scmp.eq.s32.totalorder %s13, 1
    %p115 = scmp.ne.s32.totalorder %s110, %s112
    %p116 = scmp.eq.s32.totalorder %s13, 0
    %p117 = por %p115, %p116
    %p118 = scmp.ne.s32.totalorder %s110, %s112
    %p119 = scmp.eq.s32.totalorder %s18, 1
    %p120 = por %p118, %p119
    %p121 = scmp.ne.s32.totalorder %s112, %s113
    %p122 = scmp.eq.s32.totalorder %s18, 0
    %p123 = por %p121, %p122
    %p124 = scmp.ne.s32.totalorder %s112, %s113
    %p125 = scmp.eq.s32.totalorder %s19, 1
    %p126 = por %p124, %p125
    %p128 = scmp.ne.s32.totalorder %s113, %s127
    %p129 = scmp.eq.s32.totalorder %s19, 0
    %p130 = por %p128, %p129
    %s131 = ssub.s32 %s13, %s20
    %p132 = scmp.eq.s32.totalorder %s131, 0
    %s134 = sadd.s32 %s133, 1
    %s135 = scalar_select %p132, %s133, %s134
    %p138 = pneg %p132
    %p139 = scmp.eq.s32.totalorder %s13, 1
    %p140 = por %p138, %p139
    %p141 = scmp.ne.s32.totalorder %s133, %s136
    %p142 = scmp.eq.s32.totalorder %s13, 0
    %p143 = por %p141, %p142
    %p144 = scmp.ne.s32.totalorder %s133, %s136
    %p145 = scmp.eq.s32.totalorder %s18, 1
    %p146 = por %p144, %p145
    %p147 = scmp.ne.s32.totalorder %s136, %s137
    %p148 = scmp.eq.s32.totalorder %s18, 0
    %p149 = por %p147, %p148
    %p150 = scmp.ne.s32.totalorder %s136, %s137
    %p151 = scmp.eq.s32.totalorder %s19, 1
    %p152 = por %p150, %p151
    %p154 = scmp.ne.s32.totalorder %s137, %s153
    %p155 = scmp.eq.s32.totalorder %s19, 0
    %p156 = por %p154, %p155
    %p157 = scmp.le.s32.totalorder 1, %s13
    %p158 = scmp.lt.s32.totalorder %s13, 3
    %p159 = pnand %p157, %p158
    %p160 = pneg %p159
    // Predicated region
    $region9: #{conv3d_block.1} parent=5 // pred_check
      _
    $region10: #{conv3d_block.1} parent=5 // pred_check_branch
      %162 = sbr.rel (%p159) target = $region12
    $region11: #{conv3d_block.1} parent=5 // pred_region
      %s163 = ssub.s32 %s13, 1
      // Predicated region
      $region13: #{conv3d_block.1} parent=11 // pred_check
        %p164 = pneg %p60
      $region14: #{conv3d_block.1} parent=11 // pred_check_branch
        %166 = sbr.rel (%p164) target = $region16
      $region15: #{conv3d_block.1} parent=11 // pred_region
        _
      $region16: #{conv3d_block.1} parent=11 // pred_fallthru
        _
      // Predicated region
      $region17: #{conv3d_block.1} parent=11 // pred_check
        %p167 = pneg %p81
      $region18: #{conv3d_block.1} parent=11 // pred_check_branch
        %169 = sbr.rel (%p167) target = $region20
      $region19: #{conv3d_block.1} parent=11 // pred_region
        _
      $region20: #{conv3d_block.1} parent=11 // pred_fallthru
        _
      // Predicated region
      $region21: #{conv3d_block.1} parent=11 // pred_check
        %p170 = pneg %p102
      $region22: #{conv3d_block.1} parent=11 // pred_check_branch
        %172 = sbr.rel (%p170) target = $region24
      $region23: #{conv3d_block.1} parent=11 // pred_region
        _
      $region24: #{conv3d_block.1} parent=11 // pred_fallthru
        _
      // Predicated region
      $region25: #{conv3d_block.1} parent=11 // pred_check
        %p173 = pneg %p123
      $region26: #{conv3d_block.1} parent=11 // pred_check_branch
        %175 = sbr.rel (%p173) target = $region28
      $region27: #{conv3d_block.1} parent=11 // pred_region
        _
      $region28: #{conv3d_block.1} parent=11 // pred_fallthru
        _
    $region12: #{conv3d_block.1} parent=5 // pred_fallthru
      _
    %p176 = scmp.lt.s32.totalorder %s13, 2
    // Predicated region
    $region29: #{conv3d_block.1} parent=5 // pred_check
      %p177 = pneg %p176
    $region30: #{conv3d_block.1} parent=5 // pred_check_branch
      %179 = sbr.rel (%p177) target = $region32
    $region31: #{conv3d_block.1} parent=5 // pred_region
      // Predicated region
      $region33: #{conv3d_block.1} parent=31 // pred_check
        %p180 = pneg %p33
      $region34: #{conv3d_block.1} parent=31 // pred_check_branch
        %182 = sbr.rel (%p180) target = $region36
      $region35: #{conv3d_block.1} parent=31 // pred_region
        %p183 = scmp.lt.s32.totalorder %s13, 1
        %s184 = scalar_select %p183, %s13, 1
        %s185 = smul.addr %s184, 24
        %s186 = smul.addr %s185, 4
        %s187 = scalar_lea.vmem %s0, %s186
      $region36: #{conv3d_block.1} parent=31 // pred_fallthru
        _
    $region32: #{conv3d_block.1} parent=5 // pred_fallthru
      _
    %p188 = scmp.le.s32.totalorder 1, %s13
    %p189 = scmp.lt.s32.totalorder %s13, 3
    %p190 = pnand %p188, %p189
    %p191 = pneg %p190
    // Predicated region
    $region37: #{conv3d_block.1} parent=5 // pred_check
      _
    $region38: #{conv3d_block.1} parent=5 // pred_check_branch
      %193 = sbr.rel (%p190) target = $region40
    $region39: #{conv3d_block.1} parent=5 // pred_region
      %s194 = ssub.s32 %s13, 1
      %p195 = scmp.lt.s32.totalorder %s18, 1
      %s196 = scalar_select %p195, %s18, 1
      %s197 = smul.addr %s196, 24
      %s198 = smul.addr %s197, 4
      %s199 = scalar_lea.vmem %s0, %s198
      %p200 = pneg %p39
      %p201 = pneg %p36
      %p202 = pneg %p60
      %p203 = pneg %p57
      %p204 = pneg %p81
      %p205 = pneg %p78
      %p206 = pneg %p102
      %p207 = pneg %p99
      %p208 = pneg %p123
      %p209 = pneg %p120
      %p210 = pneg %p149
      %p211 = pneg %p146
      %p212 = scmp.lt.s32.totalorder %s18, 1
      %s213 = scalar_select %p212, %s18, 1
      %s214 = smul.addr %s213, 64
      %s215 = smul.addr %s214, 8
      %s216 = scalar_lea.vmem %s5, %s215
      %p217 = scmp.lt.s32.totalorder %s18, 1
      %s218 = scalar_select %p217, %s18, 1
      %s219 = smul.addr %s218, 24
      %s220 = smul.addr %s219, 4
      %s221 = scalar_lea.vmem %s0, %s220
      %p222 = scmp.lt.s32.totalorder %s18, 1
      %s223 = scalar_select %p222, %s18, 1
      %s224 = smul.addr %s223, 64
      %s225 = smul.addr %s224, 8
      %s226 = scalar_lea.vmem %s5, %s225
      %v228 = vld [vmem:[%s221] sm:$0xf]
      %v229 = vld [vmem:[%s221 + $0x8] sm:$0xf]
      %v230 = vld [vmem:[%s221 + $0x10] sm:$0xf]
      %v231 = vld [vmem:[%s221 + $0x18] sm:$0xf]
      %v232 = vld [vmem:[%s221 + $0x20] sm:$0xf]
      %v233 = vld [vmem:[%s221 + $0x28] sm:$0xf]
      %v234 = vld [vmem:[%s221 + $0x30] sm:$0xf]
      %v235 = vld [vmem:[%s221 + $0x38] sm:$0xf]
      %v236 = vld [vmem:[%s221 + $0x4] sm:$0x1]
      %v237 = vld [vmem:[%s221 + $0xc] sm:$0x1]
      %v238 = vld [vmem:[%s221 + $0x14] sm:$0x1]
      %v239 = vld [vmem:[%s221 + $0x1c] sm:$0x1]
      %v240 = vld [vmem:[%s221 + $0x24] sm:$0x1]
      %v241 = vld [vmem:[%s221 + $0x2c] sm:$0x1]
      %v242 = vld [vmem:[%s221 + $0x34] sm:$0x1]
      %v243 = vld [vmem:[%s221 + $0x3c] sm:$0x1]
      %v244 = vld [vmem:[%s221] sm:$0xe]
      %v245 = vld [vmem:[%s221 + $0x8] sm:$0xe]
      %v246 = vld [vmem:[%s221 + $0x10] sm:$0xe]
      %v247 = vld [vmem:[%s221 + $0x18] sm:$0xe]
      %v248 = vld [vmem:[%s221 + $0x20] sm:$0xe]
      %v249 = vld [vmem:[%s221 + $0x28] sm:$0xe]
      %v250 = vld [vmem:[%s221 + $0x30] sm:$0xe]
      %v251 = vld [vmem:[%s221 + $0x38] sm:$0xe]
      %v252 = vld [vmem:[%s221 + $0x4] sm:$0x3]
      %v253 = vld [vmem:[%s221 + $0xc] sm:$0x3]
      %v254 = vld [vmem:[%s221 + $0x14] sm:$0x3]
      %v255 = vld [vmem:[%s221 + $0x1c] sm:$0x3]
      %v256 = vld [vmem:[%s221 + $0x24] sm:$0x3]
      %v257 = vld [vmem:[%s221 + $0x2c] sm:$0x3]
      %v258 = vld [vmem:[%s221 + $0x34] sm:$0x3]
      %v259 = vld [vmem:[%s221 + $0x3c] sm:$0x3]
      %v260 = vld [vmem:[%s221] sm:$0xc]
      %v261 = vld [vmem:[%s221 + $0x8] sm:$0xc]
      %v262 = vld [vmem:[%s221 + $0x10] sm:$0xc]
      %v263 = vld [vmem:[%s221 + $0x18] sm:$0xc]
      %v264 = vld [vmem:[%s221 + $0x20] sm:$0xc]
      %v265 = vld [vmem:[%s221 + $0x28] sm:$0xc]
      %v266 = vld [vmem:[%s221 + $0x30] sm:$0xc]
      %v267 = vld [vmem:[%s221 + $0x38] sm:$0xc]
      %v284 = vunpack.c.l.b16 %v228
      %v285 = vunpack.c.l.b16 %v236
      %v286 = vunpack.c.l.b16 %v229
      %v287 = vunpack.c.l.b16 %v237
      %v288 = vunpack.c.l.b16 %v230
      %v289 = vunpack.c.l.b16 %v238
      %v290 = vunpack.c.l.b16 %v231
      %v291 = vunpack.c.l.b16 %v239
      %v292 = vunpack.c.l.b16 %v232
      %v293 = vunpack.c.l.b16 %v240
      %v294 = vunpack.c.l.b16 %v233
      %v295 = vunpack.c.l.b16 %v241
      %v296 = vunpack.c.l.b16 %v234
      %v297 = vunpack.c.l.b16 %v242
      %v298 = vunpack.c.l.b16 %v235
      %v299 = vunpack.c.l.b16 %v243
      %v300 = vpack.c.b16 %v285, %v284
      %v301 = vpack.c.b16 %v287, %v286
      %v302 = vpack.c.b16 %v289, %v288
      %v303 = vpack.c.b16 %v291, %v290
      %v304 = vpack.c.b16 %v293, %v292
      %v305 = vpack.c.b16 %v295, %v294
      %v306 = vpack.c.b16 %v297, %v296
      %v307 = vpack.c.b16 %v299, %v298
      %v309 = vshrl.u32 %v300, 16
      %v311 = vshll.u32 %v300, 16
      %v313 = vrot.slane %v311, 1
      %v314 = vor.u32 %v309, %v313
      %v316 = vshrl.u32 %v301, 16
      %v318 = vshll.u32 %v301, 16
      %v320 = vrot.slane %v318, 1
      %v321 = vor.u32 %v316, %v320
      %v323 = vshrl.u32 %v302, 16
      %v325 = vshll.u32 %v302, 16
      %v327 = vrot.slane %v325, 1
      %v328 = vor.u32 %v323, %v327
      %v330 = vshrl.u32 %v303, 16
      %v332 = vshll.u32 %v303, 16
      %v334 = vrot.slane %v332, 1
      %v335 = vor.u32 %v330, %v334
      %v337 = vshrl.u32 %v304, 16
      %v339 = vshll.u32 %v304, 16
      %v341 = vrot.slane %v339, 1
      %v342 = vor.u32 %v337, %v341
      %v344 = vshrl.u32 %v305, 16
      %v346 = vshll.u32 %v305, 16
      %v348 = vrot.slane %v346, 1
      %v349 = vor.u32 %v344, %v348
      %v351 = vshrl.u32 %v306, 16
      %v353 = vshll.u32 %v306, 16
      %v355 = vrot.slane %v353, 1
      %v356 = vor.u32 %v351, %v355
      %v358 = vshrl.u32 %v307, 16
      %v360 = vshll.u32 %v307, 16
      %v362 = vrot.slane %v360, 1
      %v363 = vor.u32 %v358, %v362
      %364 = vrot.lane.b32.xlu0 %v314, 48
      %v365 = vpop.permute.xlu0 %364
      %366 = vrot.lane.b32.xlu0 %v321, 48
      %v367 = vpop.permute.xlu0 %366
      %368 = vrot.lane.b32.xlu0 %v328, 48
      %v369 = vpop.permute.xlu0 %368
      %370 = vrot.lane.b32.xlu0 %v335, 48
      %v371 = vpop.permute.xlu0 %370
      %372 = vrot.lane.b32.xlu0 %v342, 48
      %v373 = vpop.permute.xlu0 %372
      %374 = vrot.lane.b32.xlu0 %v349, 48
      %v375 = vpop.permute.xlu0 %374
      %376 = vrot.lane.b32.xlu0 %v356, 48
      %v377 = vpop.permute.xlu0 %376
      %378 = vrot.lane.b32.xlu0 %v363, 48
      %v379 = vpop.permute.xlu0 %378
      %v388 = vunpack.c.l.b16 %v244
      %v389 = vunpack.c.l.b16 %v245
      %v390 = vunpack.c.l.b16 %v246
      %v391 = vunpack.c.l.b16 %v247
      %v392 = vunpack.c.l.b16 %v248
      %v393 = vunpack.c.l.b16 %v249
      %v394 = vunpack.c.l.b16 %v250
      %v395 = vunpack.c.l.b16 %v251
      %v396 = vpack.c.b16 %v285, %v388
      %v397 = vpack.c.b16 %v287, %v389
      %v398 = vpack.c.b16 %v289, %v390
      %v399 = vpack.c.b16 %v291, %v391
      %v400 = vpack.c.b16 %v293, %v392
      %v401 = vpack.c.b16 %v295, %v393
      %v402 = vpack.c.b16 %v297, %v394
      %v403 = vpack.c.b16 %v299, %v395
      %v404 = vrot.slane %v396, 1
      %v405 = vrot.slane %v397, 1
      %v406 = vrot.slane %v398, 1
      %v407 = vrot.slane %v399, 1
      %v408 = vrot.slane %v400, 1
      %v409 = vrot.slane %v401, 1
      %v410 = vrot.slane %v402, 1
      %v411 = vrot.slane %v403, 1
      %412 = vrot.lane.b32.xlu0 %v404, 96
      %v413 = vpop.permute.xlu0 %412
      %414 = vrot.lane.b32.xlu0 %v405, 96
      %v415 = vpop.permute.xlu0 %414
      %416 = vrot.lane.b32.xlu0 %v406, 96
      %v417 = vpop.permute.xlu0 %416
      %418 = vrot.lane.b32.xlu0 %v407, 96
      %v419 = vpop.permute.xlu0 %418
      %420 = vrot.lane.b32.xlu0 %v408, 96
      %v421 = vpop.permute.xlu0 %420
      %422 = vrot.lane.b32.xlu0 %v409, 96
      %v423 = vpop.permute.xlu0 %422
      %424 = vrot.lane.b32.xlu0 %v410, 96
      %v425 = vpop.permute.xlu0 %424
      %426 = vrot.lane.b32.xlu0 %v411, 96
      %v427 = vpop.permute.xlu0 %426
      %v436 = vunpack.c.l.b16 %v252
      %v437 = vunpack.c.l.b16 %v253
      %v438 = vunpack.c.l.b16 %v254
      %v439 = vunpack.c.l.b16 %v255
      %v440 = vunpack.c.l.b16 %v256
      %v441 = vunpack.c.l.b16 %v257
      %v442 = vunpack.c.l.b16 %v258
      %v443 = vunpack.c.l.b16 %v259
      %v444 = vpack.c.b16 %v436, %v388
      %v445 = vpack.c.b16 %v437, %v389
      %v446 = vpack.c.b16 %v438, %v390
      %v447 = vpack.c.b16 %v439, %v391
      %v448 = vpack.c.b16 %v440, %v392
      %v449 = vpack.c.b16 %v441, %v393
      %v450 = vpack.c.b16 %v442, %v394
      %v451 = vpack.c.b16 %v443, %v395
      %v453 = vshrl.u32 %v444, 16
      %v455 = vrot.slane %v453, 1
      %v456 = vshll.u32 %v444, 16
      %v458 = vrot.slane %v456, 2
      %v459 = vor.u32 %v455, %v458
      %v461 = vshrl.u32 %v445, 16
      %v463 = vrot.slane %v461, 1
      %v464 = vshll.u32 %v445, 16
      %v466 = vrot.slane %v464, 2
      %v467 = vor.u32 %v463, %v466
      %v469 = vshrl.u32 %v446, 16
      %v471 = vrot.slane %v469, 1
      %v472 = vshll.u32 %v446, 16
      %v474 = vrot.slane %v472, 2
      %v475 = vor.u32 %v471, %v474
      %v477 = vshrl.u32 %v447, 16
      %v479 = vrot.slane %v477, 1
      %v480 = vshll.u32 %v447, 16
      %v482 = vrot.slane %v480, 2
      %v483 = vor.u32 %v479, %v482
      %v485 = vshrl.u32 %v448, 16
      %v487 = vrot.slane %v485, 1
      %v488 = vshll.u32 %v448, 16
      %v490 = vrot.slane %v488, 2
      %v491 = vor.u32 %v487, %v490
      %v493 = vshrl.u32 %v449, 16
      %v495 = vrot.slane %v493, 1
      %v496 = vshll.u32 %v449, 16
      %v498 = vrot.slane %v496, 2
      %v499 = vor.u32 %v495, %v498
      %v501 = vshrl.u32 %v450, 16
      %v503 = vrot.slane %v501, 1
      %v504 = vshll.u32 %v450, 16
      %v506 = vrot.slane %v504, 2
      %v507 = vor.u32 %v503, %v506
      %v509 = vshrl.u32 %v451, 16
      %v511 = vrot.slane %v509, 1
      %v512 = vshll.u32 %v451, 16
      %v514 = vrot.slane %v512, 2
      %v515 = vor.u32 %v511, %v514
      %516 = vrot.lane.b32.xlu0 %v459, 16
      %v517 = vpop.permute.xlu0 %516
      %518 = vrot.lane.b32.xlu0 %v467, 16
      %v519 = vpop.permute.xlu0 %518
      %520 = vrot.lane.b32.xlu0 %v475, 16
      %v521 = vpop.permute.xlu0 %520
      %522 = vrot.lane.b32.xlu0 %v483, 16
      %v523 = vpop.permute.xlu0 %522
      %524 = vrot.lane.b32.xlu0 %v491, 16
      %v525 = vpop.permute.xlu0 %524
      %526 = vrot.lane.b32.xlu0 %v499, 16
      %v527 = vpop.permute.xlu0 %526
      %528 = vrot.lane.b32.xlu0 %v507, 16
      %v529 = vpop.permute.xlu0 %528
      %530 = vrot.lane.b32.xlu0 %v515, 16
      %v531 = vpop.permute.xlu0 %530
      %v540 = vunpack.c.l.b16 %v260
      %v541 = vunpack.c.l.b16 %v261
      %v542 = vunpack.c.l.b16 %v262
      %v543 = vunpack.c.l.b16 %v263
      %v544 = vunpack.c.l.b16 %v264
      %v545 = vunpack.c.l.b16 %v265
      %v546 = vunpack.c.l.b16 %v266
      %v547 = vunpack.c.l.b16 %v267
      %v548 = vpack.c.b16 %v436, %v540
      %v549 = vpack.c.b16 %v437, %v541
      %v550 = vpack.c.b16 %v438, %v542
      %v551 = vpack.c.b16 %v439, %v543
      %v552 = vpack.c.b16 %v440, %v544
      %v553 = vpack.c.b16 %v441, %v545
      %v554 = vpack.c.b16 %v442, %v546
      %v555 = vpack.c.b16 %v443, %v547
      %v556 = vrot.slane %v548, 2
      %v557 = vrot.slane %v549, 2
      %v558 = vrot.slane %v550, 2
      %v559 = vrot.slane %v551, 2
      %v560 = vrot.slane %v552, 2
      %v561 = vrot.slane %v553, 2
      %v562 = vrot.slane %v554, 2
      %v563 = vrot.slane %v555, 2
      %564 = vrot.lane.b32.xlu0 %v556, 64
      %v565 = vpop.permute.xlu0 %564
      %566 = vrot.lane.b32.xlu0 %v557, 64
      %v567 = vpop.permute.xlu0 %566
      %568 = vrot.lane.b32.xlu0 %v558, 64
      %v569 = vpop.permute.xlu0 %568
      %570 = vrot.lane.b32.xlu0 %v559, 64
      %v571 = vpop.permute.xlu0 %570
      %572 = vrot.lane.b32.xlu0 %v560, 64
      %v573 = vpop.permute.xlu0 %572
      %574 = vrot.lane.b32.xlu0 %v561, 64
      %v575 = vpop.permute.xlu0 %574
      %576 = vrot.lane.b32.xlu0 %v562, 64
      %v577 = vpop.permute.xlu0 %576
      %578 = vrot.lane.b32.xlu0 %v563, 64
      %v579 = vpop.permute.xlu0 %578
      %vm580 = vcmask 392192
      %v583 = vsel %vm580, %v228, %v365
      %v586 = vsel %vm580, %v229, %v367
      %v589 = vsel %vm580, %v230, %v369
      %v592 = vsel %vm580, %v231, %v371
      %v595 = vsel %vm580, %v232, %v373
      %v598 = vsel %vm580, %v233, %v375
      %v601 = vsel %vm580, %v234, %v377
      %v604 = vsel %vm580, %v235, %v379
      %vm605 = vcmask 785408
      %v607 = vsel %vm605, %v583, %v413
      %v609 = vsel %vm605, %v586, %v415
      %v611 = vsel %vm605, %v589, %v417
      %v613 = vsel %vm605, %v592, %v419
      %v615 = vsel %vm605, %v595, %v421
      %v617 = vsel %vm605, %v598, %v423
      %v619 = vsel %vm605, %v601, %v425
      %v621 = vsel %vm605, %v604, %v427
      %vm622 = vcmask 130048
      %v624 = vsel %vm622, %v413, %v517
      %v626 = vsel %vm622, %v415, %v519
      %v628 = vsel %vm622, %v417, %v521
      %v630 = vsel %vm622, %v419, %v523
      %v632 = vsel %vm622, %v421, %v525
      %v634 = vsel %vm622, %v423, %v527
      %v636 = vsel %vm622, %v425, %v529
      %v638 = vsel %vm622, %v427, %v531
      %vm639 = vcmask 523264
      %v641 = vsel %vm639, %v624, %v565
      %v643 = vsel %vm639, %v626, %v567
      %v645 = vsel %vm639, %v628, %v569
      %v647 = vsel %vm639, %v630, %v571
      %v649 = vsel %vm639, %v632, %v573
      %v651 = vsel %vm639, %v634, %v575
      %v653 = vsel %vm639, %v636, %v577
      %v655 = vsel %vm639, %v638, %v579
      %s656 = scalar_lea.vmem %s221, 8
      %v657 = vld [vmem:[%s656] sm:$0xf]
      %v658 = vld [vmem:[%s656 + $0x8] sm:$0xf]
      %v659 = vld [vmem:[%s656 + $0x10] sm:$0xf]
      %v660 = vld [vmem:[%s656 + $0x18] sm:$0xf]
      %v661 = vld [vmem:[%s656 + $0x20] sm:$0xf]
      %v662 = vld [vmem:[%s656 + $0x28] sm:$0xf]
      %v663 = vld [vmem:[%s656 + $0x30] sm:$0xf]
      %v664 = vld [vmem:[%s656 + $0x38] sm:$0xf]
      %v665 = vld [vmem:[%s656 + $0x4] sm:$0x1]
      %v666 = vld [vmem:[%s656 + $0xc] sm:$0x1]
      %v667 = vld [vmem:[%s656 + $0x14] sm:$0x1]
      %v668 = vld [vmem:[%s656 + $0x1c] sm:$0x1]
      %v669 = vld [vmem:[%s656 + $0x24] sm:$0x1]
      %v670 = vld [vmem:[%s656 + $0x2c] sm:$0x1]
      %v671 = vld [vmem:[%s656 + $0x34] sm:$0x1]
      %v672 = vld [vmem:[%s656 + $0x3c] sm:$0x1]
      %v673 = vld [vmem:[%s656] sm:$0xe]
      %v674 = vld [vmem:[%s656 + $0x8] sm:$0xe]
      %v675 = vld [vmem:[%s656 + $0x10] sm:$0xe]
      %v676 = vld [vmem:[%s656 + $0x18] sm:$0xe]
      %v677 = vld [vmem:[%s656 + $0x20] sm:$0xe]
      %v678 = vld [vmem:[%s656 + $0x28] sm:$0xe]
      %v679 = vld [vmem:[%s656 + $0x30] sm:$0xe]
      %v680 = vld [vmem:[%s656 + $0x38] sm:$0xe]
      %v681 = vld [vmem:[%s656 + $0x4] sm:$0x3]
      %v682 = vld [vmem:[%s656 + $0xc] sm:$0x3]
      %v683 = vld [vmem:[%s656 + $0x14] sm:$0x3]
      %v684 = vld [vmem:[%s656 + $0x1c] sm:$0x3]
      %v685 = vld [vmem:[%s656 + $0x24] sm:$0x3]
      %v686 = vld [vmem:[%s656 + $0x2c] sm:$0x3]
      %v687 = vld [vmem:[%s656 + $0x34] sm:$0x3]
      %v688 = vld [vmem:[%s656 + $0x3c] sm:$0x3]
      %v689 = vld [vmem:[%s656] sm:$0xc]
      %v690 = vld [vmem:[%s656 + $0x8] sm:$0xc]
      %v691 = vld [vmem:[%s656 + $0x10] sm:$0xc]
      %v692 = vld [vmem:[%s656 + $0x18] sm:$0xc]
      %v693 = vld [vmem:[%s656 + $0x20] sm:$0xc]
      %v694 = vld [vmem:[%s656 + $0x28] sm:$0xc]
      %v695 = vld [vmem:[%s656 + $0x30] sm:$0xc]
      %v696 = vld [vmem:[%s656 + $0x38] sm:$0xc]
      %v713 = vunpack.c.l.b16 %v657
      %v714 = vunpack.c.l.b16 %v665
      %v715 = vunpack.c.l.b16 %v658
      %v716 = vunpack.c.l.b16 %v666
      %v717 = vunpack.c.l.b16 %v659
      %v718 = vunpack.c.l.b16 %v667
      %v719 = vunpack.c.l.b16 %v660
      %v720 = vunpack.c.l.b16 %v668
      %v721 = vunpack.c.l.b16 %v661
      %v722 = vunpack.c.l.b16 %v669
      %v723 = vunpack.c.l.b16 %v662
      %v724 = vunpack.c.l.b16 %v670
      %v725 = vunpack.c.l.b16 %v663
      %v726 = vunpack.c.l.b16 %v671
      %v727 = vunpack.c.l.b16 %v664
      %v728 = vunpack.c.l.b16 %v672
      %v729 = vpack.c.b16 %v714, %v713
      %v730 = vpack.c.b16 %v716, %v715
      %v731 = vpack.c.b16 %v718, %v717
      %v732 = vpack.c.b16 %v720, %v719
      %v733 = vpack.c.b16 %v722, %v721
      %v734 = vpack.c.b16 %v724, %v723
      %v735 = vpack.c.b16 %v726, %v725
      %v736 = vpack.c.b16 %v728, %v727
      %v738 = vshrl.u32 %v729, 16
      %v740 = vshll.u32 %v729, 16
      %v742 = vrot.slane %v740, 1
      %v743 = vor.u32 %v738, %v742
      %v745 = vshrl.u32 %v730, 16
      %v747 = vshll.u32 %v730, 16
      %v749 = vrot.slane %v747, 1
      %v750 = vor.u32 %v745, %v749
      %v752 = vshrl.u32 %v731, 16
      %v754 = vshll.u32 %v731, 16
      %v756 = vrot.slane %v754, 1
      %v757 = vor.u32 %v752, %v756
      %v759 = vshrl.u32 %v732, 16
      %v761 = vshll.u32 %v732, 16
      %v763 = vrot.slane %v761, 1
      %v764 = vor.u32 %v759, %v763
      %v766 = vshrl.u32 %v733, 16
      %v768 = vshll.u32 %v733, 16
      %v770 = vrot.slane %v768, 1
      %v771 = vor.u32 %v766, %v770
      %v773 = vshrl.u32 %v734, 16
      %v775 = vshll.u32 %v734, 16
      %v777 = vrot.slane %v775, 1
      %v778 = vor.u32 %v773, %v777
      %v780 = vshrl.u32 %v735, 16
      %v782 = vshll.u32 %v735, 16
      %v784 = vrot.slane %v782, 1
      %v785 = vor.u32 %v780, %v784
      %v787 = vshrl.u32 %v736, 16
      %v789 = vshll.u32 %v736, 16
      %v791 = vrot.slane %v789, 1
      %v792 = vor.u32 %v787, %v791
      %793 = vrot.lane.b32.xlu0 %v743, 48
      %v794 = vpop.permute.xlu0 %793
      %795 = vrot.lane.b32.xlu0 %v750, 48
      %v796 = vpop.permute.xlu0 %795
      %797 = vrot.lane.b32.xlu0 %v757, 48
      %v798 = vpop.permute.xlu0 %797
      %799 = vrot.lane.b32.xlu0 %v764, 48
      %v800 = vpop.permute.xlu0 %799
      %801 = vrot.lane.b32.xlu0 %v771, 48
      %v802 = vpop.permute.xlu0 %801
      %803 = vrot.lane.b32.xlu0 %v778, 48
      %v804 = vpop.permute.xlu0 %803
      %805 = vrot.lane.b32.xlu0 %v785, 48
      %v806 = vpop.permute.xlu0 %805
      %807 = vrot.lane.b32.xlu0 %v792, 48
      %v808 = vpop.permute.xlu0 %807
      %v817 = vunpack.c.l.b16 %v673
      %v818 = vunpack.c.l.b16 %v674
      %v819 = vunpack.c.l.b16 %v675
      %v820 = vunpack.c.l.b16 %v676
      %v821 = vunpack.c.l.b16 %v677
      %v822 = vunpack.c.l.b16 %v678
      %v823 = vunpack.c.l.b16 %v679
      %v824 = vunpack.c.l.b16 %v680
      %v825 = vpack.c.b16 %v714, %v817
      %v826 = vpack.c.b16 %v716, %v818
      %v827 = vpack.c.b16 %v718, %v819
      %v828 = vpack.c.b16 %v720, %v820
      %v829 = vpack.c.b16 %v722, %v821
      %v830 = vpack.c.b16 %v724, %v822
      %v831 = vpack.c.b16 %v726, %v823
      %v832 = vpack.c.b16 %v728, %v824
      %v833 = vrot.slane %v825, 1
      %v834 = vrot.slane %v826, 1
      %v835 = vrot.slane %v827, 1
      %v836 = vrot.slane %v828, 1
      %v837 = vrot.slane %v829, 1
      %v838 = vrot.slane %v830, 1
      %v839 = vrot.slane %v831, 1
      %v840 = vrot.slane %v832, 1
      %841 = vrot.lane.b32.xlu0 %v833, 96
      %v842 = vpop.permute.xlu0 %841
      %843 = vrot.lane.b32.xlu0 %v834, 96
      %v844 = vpop.permute.xlu0 %843
      %845 = vrot.lane.b32.xlu0 %v835, 96
      %v846 = vpop.permute.xlu0 %845
      %847 = vrot.lane.b32.xlu0 %v836, 96
      %v848 = vpop.permute.xlu0 %847
      %849 = vrot.lane.b32.xlu0 %v837, 96
      %v850 = vpop.permute.xlu0 %849
      %851 = vrot.lane.b32.xlu0 %v838, 96
      %v852 = vpop.permute.xlu0 %851
      %853 = vrot.lane.b32.xlu0 %v839, 96
      %v854 = vpop.permute.xlu0 %853
      %855 = vrot.lane.b32.xlu0 %v840, 96
      %v856 = vpop.permute.xlu0 %855
      %v865 = vunpack.c.l.b16 %v681
      %v866 = vunpack.c.l.b16 %v682
      %v867 = vunpack.c.l.b16 %v683
      %v868 = vunpack.c.l.b16 %v684
      %v869 = vunpack.c.l.b16 %v685
      %v870 = vunpack.c.l.b16 %v686
      %v871 = vunpack.c.l.b16 %v687
      %v872 = vunpack.c.l.b16 %v688
      %v873 = vpack.c.b16 %v865, %v817
      %v874 = vpack.c.b16 %v866, %v818
      %v875 = vpack.c.b16 %v867, %v819
      %v876 = vpack.c.b16 %v868, %v820
      %v877 = vpack.c.b16 %v869, %v821
      %v878 = vpack.c.b16 %v870, %v822
      %v879 = vpack.c.b16 %v871, %v823
      %v880 = vpack.c.b16 %v872, %v824
      %v882 = vshrl.u32 %v873, 16
      %v884 = vrot.slane %v882, 1
      %v885 = vshll.u32 %v873, 16
      %v887 = vrot.slane %v885, 2
      %v888 = vor.u32 %v884, %v887
      %v890 = vshrl.u32 %v874, 16
      %v892 = vrot.slane %v890, 1
      %v893 = vshll.u32 %v874, 16
      %v895 = vrot.slane %v893, 2
      %v896 = vor.u32 %v892, %v895
      %v898 = vshrl.u32 %v875, 16
      %v900 = vrot.slane %v898, 1
      %v901 = vshll.u32 %v875, 16
      %v903 = vrot.slane %v901, 2
      %v904 = vor.u32 %v900, %v903
      %v906 = vshrl.u32 %v876, 16
      %v908 = vrot.slane %v906, 1
      %v909 = vshll.u32 %v876, 16
      %v911 = vrot.slane %v909, 2
      %v912 = vor.u32 %v908, %v911
      %v914 = vshrl.u32 %v877, 16
      %v916 = vrot.slane %v914, 1
      %v917 = vshll.u32 %v877, 16
      %v919 = vrot.slane %v917, 2
      %v920 = vor.u32 %v916, %v919
      %v922 = vshrl.u32 %v878, 16
      %v924 = vrot.slane %v922, 1
      %v925 = vshll.u32 %v878, 16
      %v927 = vrot.slane %v925, 2
      %v928 = vor.u32 %v924, %v927
      %v930 = vshrl.u32 %v879, 16
      %v932 = vrot.slane %v930, 1
      %v933 = vshll.u32 %v879, 16
      %v935 = vrot.slane %v933, 2
      %v936 = vor.u32 %v932, %v935
      %v938 = vshrl.u32 %v880, 16
      %v940 = vrot.slane %v938, 1
      %v941 = vshll.u32 %v880, 16
      %v943 = vrot.slane %v941, 2
      %v944 = vor.u32 %v940, %v943
      %945 = vrot.lane.b32.xlu0 %v888, 16
      %v946 = vpop.permute.xlu0 %945
      %947 = vrot.lane.b32.xlu0 %v896, 16
      %v948 = vpop.permute.xlu0 %947
      %949 = vrot.lane.b32.xlu0 %v904, 16
      %v950 = vpop.permute.xlu0 %949
      %951 = vrot.lane.b32.xlu0 %v912, 16
      %v952 = vpop.permute.xlu0 %951
      %953 = vrot.lane.b32.xlu0 %v920, 16
      %v954 = vpop.permute.xlu0 %953
      %955 = vrot.lane.b32.xlu0 %v928, 16
      %v956 = vpop.permute.xlu0 %955
      %957 = vrot.lane.b32.xlu0 %v936, 16
      %v958 = vpop.permute.xlu0 %957
      %959 = vrot.lane.b32.xlu0 %v944, 16
      %v960 = vpop.permute.xlu0 %959
      %v969 = vunpack.c.l.b16 %v689
      %v970 = vunpack.c.l.b16 %v690
      %v971 = vunpack.c.l.b16 %v691
      %v972 = vunpack.c.l.b16 %v692
      %v973 = vunpack.c.l.b16 %v693
      %v974 = vunpack.c.l.b16 %v694
      %v975 = vunpack.c.l.b16 %v695
      %v976 = vunpack.c.l.b16 %v696
      %v977 = vpack.c.b16 %v865, %v969
      %v978 = vpack.c.b16 %v866, %v970
      %v979 = vpack.c.b16 %v867, %v971
      %v980 = vpack.c.b16 %v868, %v972
      %v981 = vpack.c.b16 %v869, %v973
      %v982 = vpack.c.b16 %v870, %v974
      %v983 = vpack.c.b16 %v871, %v975
      %v984 = vpack.c.b16 %v872, %v976
      %v985 = vrot.slane %v977, 2
      %v986 = vrot.slane %v978, 2
      %v987 = vrot.slane %v979, 2
      %v988 = vrot.slane %v980, 2
      %v989 = vrot.slane %v981, 2
      %v990 = vrot.slane %v982, 2
      %v991 = vrot.slane %v983, 2
      %v992 = vrot.slane %v984, 2
      %993 = vrot.lane.b32.xlu0 %v985, 64
      %v994 = vpop.permute.xlu0 %993
      %995 = vrot.lane.b32.xlu0 %v986, 64
      %v996 = vpop.permute.xlu0 %995
      %997 = vrot.lane.b32.xlu0 %v987, 64
      %v998 = vpop.permute.xlu0 %997
      %999 = vrot.lane.b32.xlu0 %v988, 64
      %v1000 = vpop.permute.xlu0 %999
      %1001 = vrot.lane.b32.xlu0 %v989, 64
      %v1002 = vpop.permute.xlu0 %1001
      %1003 = vrot.lane.b32.xlu0 %v990, 64
      %v1004 = vpop.permute.xlu0 %1003
      %1005 = vrot.lane.b32.xlu0 %v991, 64
      %v1006 = vpop.permute.xlu0 %1005
      %1007 = vrot.lane.b32.xlu0 %v992, 64
      %v1008 = vpop.permute.xlu0 %1007
      %v1011 = vsel %vm580, %v657, %v794
      %v1014 = vsel %vm580, %v658, %v796
      %v1017 = vsel %vm580, %v659, %v798
      %v1020 = vsel %vm580, %v660, %v800
      %v1023 = vsel %vm580, %v661, %v802
      %v1026 = vsel %vm580, %v662, %v804
      %v1029 = vsel %vm580, %v663, %v806
      %v1032 = vsel %vm580, %v664, %v808
      %v1034 = vsel %vm605, %v1011, %v842
      %v1036 = vsel %vm605, %v1014, %v844
      %v1038 = vsel %vm605, %v1017, %v846
      %v1040 = vsel %vm605, %v1020, %v848
      %v1042 = vsel %vm605, %v1023, %v850
      %v1044 = vsel %vm605, %v1026, %v852
      %v1046 = vsel %vm605, %v1029, %v854
      %v1048 = vsel %vm605, %v1032, %v856
      %v1050 = vsel %vm622, %v842, %v946
      %v1052 = vsel %vm622, %v844, %v948
      %v1054 = vsel %vm622, %v846, %v950
      %v1056 = vsel %vm622, %v848, %v952
      %v1058 = vsel %vm622, %v850, %v954
      %v1060 = vsel %vm622, %v852, %v956
      %v1062 = vsel %vm622, %v854, %v958
      %v1064 = vsel %vm622, %v856, %v960
      %v1066 = vsel %vm639, %v1050, %v994
      %v1068 = vsel %vm639, %v1052, %v996
      %v1070 = vsel %vm639, %v1054, %v998
      %v1072 = vsel %vm639, %v1056, %v1000
      %v1074 = vsel %vm639, %v1058, %v1002
      %v1076 = vsel %vm639, %v1060, %v1004
      %v1078 = vsel %vm639, %v1062, %v1006
      %v1080 = vsel %vm639, %v1064, %v1008
      %s1081 = scalar_lea.vmem %s221, 16
      %v1082 = vld [vmem:[%s1081] sm:$0xf]
      %v1083 = vld [vmem:[%s1081 + $0x8] sm:$0xf]
      %v1084 = vld [vmem:[%s1081 + $0x10] sm:$0xf]
      %v1085 = vld [vmem:[%s1081 + $0x18] sm:$0xf]
      %v1086 = vld [vmem:[%s1081 + $0x20] sm:$0xf]
      %v1087 = vld [vmem:[%s1081 + $0x28] sm:$0xf]
      %v1088 = vld [vmem:[%s1081 + $0x30] sm:$0xf]
      %v1089 = vld [vmem:[%s1081 + $0x38] sm:$0xf]
      %v1090 = vld [vmem:[%s1081 + $0x4] sm:$0x1]
      %v1091 = vld [vmem:[%s1081 + $0xc] sm:$0x1]
      %v1092 = vld [vmem:[%s1081 + $0x14] sm:$0x1]
      %v1093 = vld [vmem:[%s1081 + $0x1c] sm:$0x1]
      %v1094 = vld [vmem:[%s1081 + $0x24] sm:$0x1]
      %v1095 = vld [vmem:[%s1081 + $0x2c] sm:$0x1]
      %v1096 = vld [vmem:[%s1081 + $0x34] sm:$0x1]
      %v1097 = vld [vmem:[%s1081 + $0x3c] sm:$0x1]
      %v1098 = vld [vmem:[%s1081] sm:$0xe]
      %v1099 = vld [vmem:[%s1081 + $0x8] sm:$0xe]
      %v1100 = vld [vmem:[%s1081 + $0x10] sm:$0xe]
      %v1101 = vld [vmem:[%s1081 + $0x18] sm:$0xe]
      %v1102 = vld [vmem:[%s1081 + $0x20] sm:$0xe]
      %v1103 = vld [vmem:[%s1081 + $0x28] sm:$0xe]
      %v1104 = vld [vmem:[%s1081 + $0x30] sm:$0xe]
      %v1105 = vld [vmem:[%s1081 + $0x38] sm:$0xe]
      %v1106 = vld [vmem:[%s1081 + $0x4] sm:$0x3]
      %v1107 = vld [vmem:[%s1081 + $0xc] sm:$0x3]
      %v1108 = vld [vmem:[%s1081 + $0x14] sm:$0x3]
      %v1109 = vld [vmem:[%s1081 + $0x1c] sm:$0x3]
      %v1110 = vld [vmem:[%s1081 + $0x24] sm:$0x3]
      %v1111 = vld [vmem:[%s1081 + $0x2c] sm:$0x3]
      %v1112 = vld [vmem:[%s1081 + $0x34] sm:$0x3]
      %v1113 = vld [vmem:[%s1081 + $0x3c] sm:$0x3]
      %v1114 = vld [vmem:[%s1081] sm:$0xc]
      %v1115 = vld [vmem:[%s1081 + $0x8] sm:$0xc]
      %v1116 = vld [vmem:[%s1081 + $0x10] sm:$0xc]
      %v1117 = vld [vmem:[%s1081 + $0x18] sm:$0xc]
      %v1118 = vld [vmem:[%s1081 + $0x20] sm:$0xc]
      %v1119 = vld [vmem:[%s1081 + $0x28] sm:$0xc]
      %v1120 = vld [vmem:[%s1081 + $0x30] sm:$0xc]
      %v1121 = vld [vmem:[%s1081 + $0x38] sm:$0xc]
      %v1138 = vunpack.c.l.b16 %v1082
      %v1139 = vunpack.c.l.b16 %v1090
      %v1140 = vunpack.c.l.b16 %v1083
      %v1141 = vunpack.c.l.b16 %v1091
      %v1142 = vunpack.c.l.b16 %v1084
      %v1143 = vunpack.c.l.b16 %v1092
      %v1144 = vunpack.c.l.b16 %v1085
      %v1145 = vunpack.c.l.b16 %v1093
      %v1146 = vunpack.c.l.b16 %v1086
      %v1147 = vunpack.c.l.b16 %v1094
      %v1148 = vunpack.c.l.b16 %v1087
      %v1149 = vunpack.c.l.b16 %v1095
      %v1150 = vunpack.c.l.b16 %v1088
      %v1151 = vunpack.c.l.b16 %v1096
      %v1152 = vunpack.c.l.b16 %v1089
      %v1153 = vunpack.c.l.b16 %v1097
      %v1154 = vpack.c.b16 %v1139, %v1138
      %v1155 = vpack.c.b16 %v1141, %v1140
      %v1156 = vpack.c.b16 %v1143, %v1142
      %v1157 = vpack.c.b16 %v1145, %v1144
      %v1158 = vpack.c.b16 %v1147, %v1146
      %v1159 = vpack.c.b16 %v1149, %v1148
      %v1160 = vpack.c.b16 %v1151, %v1150
      %v1161 = vpack.c.b16 %v1153, %v1152
      %v1163 = vshrl.u32 %v1154, 16
      %v1165 = vshll.u32 %v1154, 16
      %v1167 = vrot.slane %v1165, 1
      %v1168 = vor.u32 %v1163, %v1167
      %v1170 = vshrl.u32 %v1155, 16
      %v1172 = vshll.u32 %v1155, 16
      %v1174 = vrot.slane %v1172, 1
      %v1175 = vor.u32 %v1170, %v1174
      %v1177 = vshrl.u32 %v1156, 16
      %v1179 = vshll.u32 %v1156, 16
      %v1181 = vrot.slane %v1179, 1
      %v1182 = vor.u32 %v1177, %v1181
      %v1184 = vshrl.u32 %v1157, 16
      %v1186 = vshll.u32 %v1157, 16
      %v1188 = vrot.slane %v1186, 1
      %v1189 = vor.u32 %v1184, %v1188
      %v1191 = vshrl.u32 %v1158, 16
      %v1193 = vshll.u32 %v1158, 16
      %v1195 = vrot.slane %v1193, 1
      %v1196 = vor.u32 %v1191, %v1195
      %v1198 = vshrl.u32 %v1159, 16
      %v1200 = vshll.u32 %v1159, 16
      %v1202 = vrot.slane %v1200, 1
      %v1203 = vor.u32 %v1198, %v1202
      %v1205 = vshrl.u32 %v1160, 16
      %v1207 = vshll.u32 %v1160, 16
      %v1209 = vrot.slane %v1207, 1
      %v1210 = vor.u32 %v1205, %v1209
      %v1212 = vshrl.u32 %v1161, 16
      %v1214 = vshll.u32 %v1161, 16
      %v1216 = vrot.slane %v1214, 1
      %v1217 = vor.u32 %v1212, %v1216
      %1218 = vrot.lane.b32.xlu0 %v1168, 48
      %v1219 = vpop.permute.xlu0 %1218
      %1220 = vrot.lane.b32.xlu0 %v1175, 48
      %v1221 = vpop.permute.xlu0 %1220
      %1222 = vrot.lane.b32.xlu0 %v1182, 48
      %v1223 = vpop.permute.xlu0 %1222
      %1224 = vrot.lane.b32.xlu0 %v1189, 48
      %v1225 = vpop.permute.xlu0 %1224
      %1226 = vrot.lane.b32.xlu0 %v1196, 48
      %v1227 = vpop.permute.xlu0 %1226
      %1228 = vrot.lane.b32.xlu0 %v1203, 48
      %v1229 = vpop.permute.xlu0 %1228
      %1230 = vrot.lane.b32.xlu0 %v1210, 48
      %v1231 = vpop.permute.xlu0 %1230
      %1232 = vrot.lane.b32.xlu0 %v1217, 48
      %v1233 = vpop.permute.xlu0 %1232
      %v1242 = vunpack.c.l.b16 %v1098
      %v1243 = vunpack.c.l.b16 %v1099
      %v1244 = vunpack.c.l.b16 %v1100
      %v1245 = vunpack.c.l.b16 %v1101
      %v1246 = vunpack.c.l.b16 %v1102
      %v1247 = vunpack.c.l.b16 %v1103
      %v1248 = vunpack.c.l.b16 %v1104
      %v1249 = vunpack.c.l.b16 %v1105
      %v1250 = vpack.c.b16 %v1139, %v1242
      %v1251 = vpack.c.b16 %v1141, %v1243
      %v1252 = vpack.c.b16 %v1143, %v1244
      %v1253 = vpack.c.b16 %v1145, %v1245
      %v1254 = vpack.c.b16 %v1147, %v1246
      %v1255 = vpack.c.b16 %v1149, %v1247
      %v1256 = vpack.c.b16 %v1151, %v1248
      %v1257 = vpack.c.b16 %v1153, %v1249
      %v1258 = vrot.slane %v1250, 1
      %v1259 = vrot.slane %v1251, 1
      %v1260 = vrot.slane %v1252, 1
      %v1261 = vrot.slane %v1253, 1
      %v1262 = vrot.slane %v1254, 1
      %v1263 = vrot.slane %v1255, 1
      %v1264 = vrot.slane %v1256, 1
      %v1265 = vrot.slane %v1257, 1
      %1266 = vrot.lane.b32.xlu0 %v1258, 96
      %v1267 = vpop.permute.xlu0 %1266
      %1268 = vrot.lane.b32.xlu0 %v1259, 96
      %v1269 = vpop.permute.xlu0 %1268
      %1270 = vrot.lane.b32.xlu0 %v1260, 96
      %v1271 = vpop.permute.xlu0 %1270
      %1272 = vrot.lane.b32.xlu0 %v1261, 96
      %v1273 = vpop.permute.xlu0 %1272
      %1274 = vrot.lane.b32.xlu0 %v1262, 96
      %v1275 = vpop.permute.xlu0 %1274
      %1276 = vrot.lane.b32.xlu0 %v1263, 96
      %v1277 = vpop.permute.xlu0 %1276
      %1278 = vrot.lane.b32.xlu0 %v1264, 96
      %v1279 = vpop.permute.xlu0 %1278
      %1280 = vrot.lane.b32.xlu0 %v1265, 96
      %v1281 = vpop.permute.xlu0 %1280
      %v1290 = vunpack.c.l.b16 %v1106
      %v1291 = vunpack.c.l.b16 %v1107
      %v1292 = vunpack.c.l.b16 %v1108
      %v1293 = vunpack.c.l.b16 %v1109
      %v1294 = vunpack.c.l.b16 %v1110
      %v1295 = vunpack.c.l.b16 %v1111
      %v1296 = vunpack.c.l.b16 %v1112
      %v1297 = vunpack.c.l.b16 %v1113
      %v1298 = vpack.c.b16 %v1290, %v1242
      %v1299 = vpack.c.b16 %v1291, %v1243
      %v1300 = vpack.c.b16 %v1292, %v1244
      %v1301 = vpack.c.b16 %v1293, %v1245
      %v1302 = vpack.c.b16 %v1294, %v1246
      %v1303 = vpack.c.b16 %v1295, %v1247
      %v1304 = vpack.c.b16 %v1296, %v1248
      %v1305 = vpack.c.b16 %v1297, %v1249
      %v1307 = vshrl.u32 %v1298, 16
      %v1309 = vrot.slane %v1307, 1
      %v1310 = vshll.u32 %v1298, 16
      %v1312 = vrot.slane %v1310, 2
      %v1313 = vor.u32 %v1309, %v1312
      %v1315 = vshrl.u32 %v1299, 16
      %v1317 = vrot.slane %v1315, 1
      %v1318 = vshll.u32 %v1299, 16
      %v1320 = vrot.slane %v1318, 2
      %v1321 = vor.u32 %v1317, %v1320
      %v1323 = vshrl.u32 %v1300, 16
      %v1325 = vrot.slane %v1323, 1
      %v1326 = vshll.u32 %v1300, 16
      %v1328 = vrot.slane %v1326, 2
      %v1329 = vor.u32 %v1325, %v1328
      %v1331 = vshrl.u32 %v1301, 16
      %v1333 = vrot.slane %v1331, 1
      %v1334 = vshll.u32 %v1301, 16
      %v1336 = vrot.slane %v1334, 2
      %v1337 = vor.u32 %v1333, %v1336
      %v1339 = vshrl.u32 %v1302, 16
      %v1341 = vrot.slane %v1339, 1
      %v1342 = vshll.u32 %v1302, 16
      %v1344 = vrot.slane %v1342, 2
      %v1345 = vor.u32 %v1341, %v1344
      %v1347 = vshrl.u32 %v1303, 16
      %v1349 = vrot.slane %v1347, 1
      %v1350 = vshll.u32 %v1303, 16
      %v1352 = vrot.slane %v1350, 2
      %v1353 = vor.u32 %v1349, %v1352
      %v1355 = vshrl.u32 %v1304, 16
      %v1357 = vrot.slane %v1355, 1
      %v1358 = vshll.u32 %v1304, 16
      %v1360 = vrot.slane %v1358, 2
      %v1361 = vor.u32 %v1357, %v1360
      %v1363 = vshrl.u32 %v1305, 16
      %v1365 = vrot.slane %v1363, 1
      %v1366 = vshll.u32 %v1305, 16
      %v1368 = vrot.slane %v1366, 2
      %v1369 = vor.u32 %v1365, %v1368
      %1370 = vrot.lane.b32.xlu0 %v1313, 16
      %v1371 = vpop.permute.xlu0 %1370
      %1372 = vrot.lane.b32.xlu0 %v1321, 16
      %v1373 = vpop.permute.xlu0 %1372
      %1374 = vrot.lane.b32.xlu0 %v1329, 16
      %v1375 = vpop.permute.xlu0 %1374
      %1376 = vrot.lane.b32.xlu0 %v1337, 16
      %v1377 = vpop.permute.xlu0 %1376
      %1378 = vrot.lane.b32.xlu0 %v1345, 16
      %v1379 = vpop.permute.xlu0 %1378
      %1380 = vrot.lane.b32.xlu0 %v1353, 16
      %v1381 = vpop.permute.xlu0 %1380
      %1382 = vrot.lane.b32.xlu0 %v1361, 16
      %v1383 = vpop.permute.xlu0 %1382
      %1384 = vrot.lane.b32.xlu0 %v1369, 16
      %v1385 = vpop.permute.xlu0 %1384
      %v1394 = vunpack.c.l.b16 %v1114
      %v1395 = vunpack.c.l.b16 %v1115
      %v1396 = vunpack.c.l.b16 %v1116
      %v1397 = vunpack.c.l.b16 %v1117
      %v1398 = vunpack.c.l.b16 %v1118
      %v1399 = vunpack.c.l.b16 %v1119
      %v1400 = vunpack.c.l.b16 %v1120
      %v1401 = vunpack.c.l.b16 %v1121
      %v1402 = vpack.c.b16 %v1290, %v1394
      %v1403 = vpack.c.b16 %v1291, %v1395
      %v1404 = vpack.c.b16 %v1292, %v1396
      %v1405 = vpack.c.b16 %v1293, %v1397
      %v1406 = vpack.c.b16 %v1294, %v1398
      %v1407 = vpack.c.b16 %v1295, %v1399
      %v1408 = vpack.c.b16 %v1296, %v1400
      %v1409 = vpack.c.b16 %v1297, %v1401
      %v1410 = vrot.slane %v1402, 2
      %v1411 = vrot.slane %v1403, 2
      %v1412 = vrot.slane %v1404, 2
      %v1413 = vrot.slane %v1405, 2
      %v1414 = vrot.slane %v1406, 2
      %v1415 = vrot.slane %v1407, 2
      %v1416 = vrot.slane %v1408, 2
      %v1417 = vrot.slane %v1409, 2
      %1418 = vrot.lane.b32.xlu0 %v1410, 64
      %v1419 = vpop.permute.xlu0 %1418
      %1420 = vrot.lane.b32.xlu0 %v1411, 64
      %v1421 = vpop.permute.xlu0 %1420
      %1422 = vrot.lane.b32.xlu0 %v1412, 64
      %v1423 = vpop.permute.xlu0 %1422
      %1424 = vrot.lane.b32.xlu0 %v1413, 64
      %v1425 = vpop.permute.xlu0 %1424
      %1426 = vrot.lane.b32.xlu0 %v1414, 64
      %v1427 = vpop.permute.xlu0 %1426
      %1428 = vrot.lane.b32.xlu0 %v1415, 64
      %v1429 = vpop.permute.xlu0 %1428
      %1430 = vrot.lane.b32.xlu0 %v1416, 64
      %v1431 = vpop.permute.xlu0 %1430
      %1432 = vrot.lane.b32.xlu0 %v1417, 64
      %v1433 = vpop.permute.xlu0 %1432
      %v1436 = vsel %vm580, %v1082, %v1219
      %v1439 = vsel %vm580, %v1083, %v1221
      %v1442 = vsel %vm580, %v1084, %v1223
      %v1445 = vsel %vm580, %v1085, %v1225
      %v1448 = vsel %vm580, %v1086, %v1227
      %v1451 = vsel %vm580, %v1087, %v1229
      %v1454 = vsel %vm580, %v1088, %v1231
      %v1457 = vsel %vm580, %v1089, %v1233
      %v1459 = vsel %vm605, %v1436, %v1267
      %v1461 = vsel %vm605, %v1439, %v1269
      %v1463 = vsel %vm605, %v1442, %v1271
      %v1465 = vsel %vm605, %v1445, %v1273
      %v1467 = vsel %vm605, %v1448, %v1275
      %v1469 = vsel %vm605, %v1451, %v1277
      %v1471 = vsel %vm605, %v1454, %v1279
      %v1473 = vsel %vm605, %v1457, %v1281
      %v1475 = vsel %vm622, %v1267, %v1371
      %v1477 = vsel %vm622, %v1269, %v1373
      %v1479 = vsel %vm622, %v1271, %v1375
      %v1481 = vsel %vm622, %v1273, %v1377
      %v1483 = vsel %vm622, %v1275, %v1379
      %v1485 = vsel %vm622, %v1277, %v1381
      %v1487 = vsel %vm622, %v1279, %v1383
      %v1489 = vsel %vm622, %v1281, %v1385
      %v1491 = vsel %vm639, %v1475, %v1419
      %v1493 = vsel %vm639, %v1477, %v1421
      %v1495 = vsel %vm639, %v1479, %v1423
      %v1497 = vsel %vm639, %v1481, %v1425
      %v1499 = vsel %vm639, %v1483, %v1427
      %v1501 = vsel %vm639, %v1485, %v1429
      %v1503 = vsel %vm639, %v1487, %v1431
      %v1505 = vsel %vm639, %v1489, %v1433
      %s1506 = scalar_lea.vmem %s221, 24
      %v1507 = vld [vmem:[%s1506] sm:$0xf]
      %v1508 = vld [vmem:[%s1506 + $0x8] sm:$0xf]
      %v1509 = vld [vmem:[%s1506 + $0x10] sm:$0xf]
      %v1510 = vld [vmem:[%s1506 + $0x18] sm:$0xf]
      %v1511 = vld [vmem:[%s1506 + $0x20] sm:$0xf]
      %v1512 = vld [vmem:[%s1506 + $0x28] sm:$0xf]
      %v1513 = vld [vmem:[%s1506 + $0x30] sm:$0xf]
      %v1514 = vld [vmem:[%s1506 + $0x38] sm:$0xf]
      %v1515 = vld [vmem:[%s1506 + $0x4] sm:$0x1]
      %v1516 = vld [vmem:[%s1506 + $0xc] sm:$0x1]
      %v1517 = vld [vmem:[%s1506 + $0x14] sm:$0x1]
      %v1518 = vld [vmem:[%s1506 + $0x1c] sm:$0x1]
      %v1519 = vld [vmem:[%s1506 + $0x24] sm:$0x1]
      %v1520 = vld [vmem:[%s1506 + $0x2c] sm:$0x1]
      %v1521 = vld [vmem:[%s1506 + $0x34] sm:$0x1]
      %v1522 = vld [vmem:[%s1506 + $0x3c] sm:$0x1]
      %v1523 = vld [vmem:[%s1506] sm:$0xe]
      %v1524 = vld [vmem:[%s1506 + $0x8] sm:$0xe]
      %v1525 = vld [vmem:[%s1506 + $0x10] sm:$0xe]
      %v1526 = vld [vmem:[%s1506 + $0x18] sm:$0xe]
      %v1527 = vld [vmem:[%s1506 + $0x20] sm:$0xe]
      %v1528 = vld [vmem:[%s1506 + $0x28] sm:$0xe]
      %v1529 = vld [vmem:[%s1506 + $0x30] sm:$0xe]
      %v1530 = vld [vmem:[%s1506 + $0x38] sm:$0xe]
      %v1531 = vld [vmem:[%s1506 + $0x4] sm:$0x3]
      %v1532 = vld [vmem:[%s1506 + $0xc] sm:$0x3]
      %v1533 = vld [vmem:[%s1506 + $0x14] sm:$0x3]
      %v1534 = vld [vmem:[%s1506 + $0x1c] sm:$0x3]
      %v1535 = vld [vmem:[%s1506 + $0x24] sm:$0x3]
      %v1536 = vld [vmem:[%s1506 + $0x2c] sm:$0x3]
      %v1537 = vld [vmem:[%s1506 + $0x34] sm:$0x3]
      %v1538 = vld [vmem:[%s1506 + $0x3c] sm:$0x3]
      %v1539 = vld [vmem:[%s1506] sm:$0xc]
      %v1540 = vld [vmem:[%s1506 + $0x8] sm:$0xc]
      %v1541 = vld [vmem:[%s1506 + $0x10] sm:$0xc]
      %v1542 = vld [vmem:[%s1506 + $0x18] sm:$0xc]
      %v1543 = vld [vmem:[%s1506 + $0x20] sm:$0xc]
      %v1544 = vld [vmem:[%s1506 + $0x28] sm:$0xc]
      %v1545 = vld [vmem:[%s1506 + $0x30] sm:$0xc]
      %v1546 = vld [vmem:[%s1506 + $0x38] sm:$0xc]
      %v1563 = vunpack.c.l.b16 %v1507
      %v1564 = vunpack.c.l.b16 %v1515
      %v1565 = vunpack.c.l.b16 %v1508
      %v1566 = vunpack.c.l.b16 %v1516
      %v1567 = vunpack.c.l.b16 %v1509
      %v1568 = vunpack.c.l.b16 %v1517
      %v1569 = vunpack.c.l.b16 %v1510
      %v1570 = vunpack.c.l.b16 %v1518
      %v1571 = vunpack.c.l.b16 %v1511
      %v1572 = vunpack.c.l.b16 %v1519
      %v1573 = vunpack.c.l.b16 %v1512
      %v1574 = vunpack.c.l.b16 %v1520
      %v1575 = vunpack.c.l.b16 %v1513
      %v1576 = vunpack.c.l.b16 %v1521
      %v1577 = vunpack.c.l.b16 %v1514
      %v1578 = vunpack.c.l.b16 %v1522
      %v1579 = vpack.c.b16 %v1564, %v1563
      %v1580 = vpack.c.b16 %v1566, %v1565
      %v1581 = vpack.c.b16 %v1568, %v1567
      %v1582 = vpack.c.b16 %v1570, %v1569
      %v1583 = vpack.c.b16 %v1572, %v1571
      %v1584 = vpack.c.b16 %v1574, %v1573
      %v1585 = vpack.c.b16 %v1576, %v1575
      %v1586 = vpack.c.b16 %v1578, %v1577
      %v1588 = vshrl.u32 %v1579, 16
      %v1590 = vshll.u32 %v1579, 16
      %v1592 = vrot.slane %v1590, 1
      %v1593 = vor.u32 %v1588, %v1592
      %v1595 = vshrl.u32 %v1580, 16
      %v1597 = vshll.u32 %v1580, 16
      %v1599 = vrot.slane %v1597, 1
      %v1600 = vor.u32 %v1595, %v1599
      %v1602 = vshrl.u32 %v1581, 16
      %v1604 = vshll.u32 %v1581, 16
      %v1606 = vrot.slane %v1604, 1
      %v1607 = vor.u32 %v1602, %v1606
      %v1609 = vshrl.u32 %v1582, 16
      %v1611 = vshll.u32 %v1582, 16
      %v1613 = vrot.slane %v1611, 1
      %v1614 = vor.u32 %v1609, %v1613
      %v1616 = vshrl.u32 %v1583, 16
      %v1618 = vshll.u32 %v1583, 16
      %v1620 = vrot.slane %v1618, 1
      %v1621 = vor.u32 %v1616, %v1620
      %v1623 = vshrl.u32 %v1584, 16
      %v1625 = vshll.u32 %v1584, 16
      %v1627 = vrot.slane %v1625, 1
      %v1628 = vor.u32 %v1623, %v1627
      %v1630 = vshrl.u32 %v1585, 16
      %v1632 = vshll.u32 %v1585, 16
      %v1634 = vrot.slane %v1632, 1
      %v1635 = vor.u32 %v1630, %v1634
      %v1637 = vshrl.u32 %v1586, 16
      %v1639 = vshll.u32 %v1586, 16
      %v1641 = vrot.slane %v1639, 1
      %v1642 = vor.u32 %v1637, %v1641
      %1643 = vrot.lane.b32.xlu0 %v1593, 48
      %v1644 = vpop.permute.xlu0 %1643
      %1645 = vrot.lane.b32.xlu0 %v1600, 48
      %v1646 = vpop.permute.xlu0 %1645
      %1647 = vrot.lane.b32.xlu0 %v1607, 48
      %v1648 = vpop.permute.xlu0 %1647
      %1649 = vrot.lane.b32.xlu0 %v1614, 48
      %v1650 = vpop.permute.xlu0 %1649
      %1651 = vrot.lane.b32.xlu0 %v1621, 48
      %v1652 = vpop.permute.xlu0 %1651
      %1653 = vrot.lane.b32.xlu0 %v1628, 48
      %v1654 = vpop.permute.xlu0 %1653
      %1655 = vrot.lane.b32.xlu0 %v1635, 48
      %v1656 = vpop.permute.xlu0 %1655
      %1657 = vrot.lane.b32.xlu0 %v1642, 48
      %v1658 = vpop.permute.xlu0 %1657
      %v1667 = vunpack.c.l.b16 %v1523
      %v1668 = vunpack.c.l.b16 %v1524
      %v1669 = vunpack.c.l.b16 %v1525
      %v1670 = vunpack.c.l.b16 %v1526
      %v1671 = vunpack.c.l.b16 %v1527
      %v1672 = vunpack.c.l.b16 %v1528
      %v1673 = vunpack.c.l.b16 %v1529
      %v1674 = vunpack.c.l.b16 %v1530
      %v1675 = vpack.c.b16 %v1564, %v1667
      %v1676 = vpack.c.b16 %v1566, %v1668
      %v1677 = vpack.c.b16 %v1568, %v1669
      %v1678 = vpack.c.b16 %v1570, %v1670
      %v1679 = vpack.c.b16 %v1572, %v1671
      %v1680 = vpack.c.b16 %v1574, %v1672
      %v1681 = vpack.c.b16 %v1576, %v1673
      %v1682 = vpack.c.b16 %v1578, %v1674
      %v1683 = vrot.slane %v1675, 1
      %v1684 = vrot.slane %v1676, 1
      %v1685 = vrot.slane %v1677, 1
      %v1686 = vrot.slane %v1678, 1
      %v1687 = vrot.slane %v1679, 1
      %v1688 = vrot.slane %v1680, 1
      %v1689 = vrot.slane %v1681, 1
      %v1690 = vrot.slane %v1682, 1
      %1691 = vrot.lane.b32.xlu0 %v1683, 96
      %v1692 = vpop.permute.xlu0 %1691
      %1693 = vrot.lane.b32.xlu0 %v1684, 96
      %v1694 = vpop.permute.xlu0 %1693
      %1695 = vrot.lane.b32.xlu0 %v1685, 96
      %v1696 = vpop.permute.xlu0 %1695
      %1697 = vrot.lane.b32.xlu0 %v1686, 96
      %v1698 = vpop.permute.xlu0 %1697
      %1699 = vrot.lane.b32.xlu0 %v1687, 96
      %v1700 = vpop.permute.xlu0 %1699
      %1701 = vrot.lane.b32.xlu0 %v1688, 96
      %v1702 = vpop.permute.xlu0 %1701
      %1703 = vrot.lane.b32.xlu0 %v1689, 96
      %v1704 = vpop.permute.xlu0 %1703
      %1705 = vrot.lane.b32.xlu0 %v1690, 96
      %v1706 = vpop.permute.xlu0 %1705
      %v1715 = vunpack.c.l.b16 %v1531
      %v1716 = vunpack.c.l.b16 %v1532
      %v1717 = vunpack.c.l.b16 %v1533
      %v1718 = vunpack.c.l.b16 %v1534
      %v1719 = vunpack.c.l.b16 %v1535
      %v1720 = vunpack.c.l.b16 %v1536
      %v1721 = vunpack.c.l.b16 %v1537
      %v1722 = vunpack.c.l.b16 %v1538
      %v1723 = vpack.c.b16 %v1715, %v1667
      %v1724 = vpack.c.b16 %v1716, %v1668
      %v1725 = vpack.c.b16 %v1717, %v1669
      %v1726 = vpack.c.b16 %v1718, %v1670
      %v1727 = vpack.c.b16 %v1719, %v1671
      %v1728 = vpack.c.b16 %v1720, %v1672
      %v1729 = vpack.c.b16 %v1721, %v1673
      %v1730 = vpack.c.b16 %v1722, %v1674
      %v1732 = vshrl.u32 %v1723, 16
      %v1734 = vrot.slane %v1732, 1
      %v1735 = vshll.u32 %v1723, 16
      %v1737 = vrot.slane %v1735, 2
      %v1738 = vor.u32 %v1734, %v1737
      %v1740 = vshrl.u32 %v1724, 16
      %v1742 = vrot.slane %v1740, 1
      %v1743 = vshll.u32 %v1724, 16
      %v1745 = vrot.slane %v1743, 2
      %v1746 = vor.u32 %v1742, %v1745
      %v1748 = vshrl.u32 %v1725, 16
      %v1750 = vrot.slane %v1748, 1
      %v1751 = vshll.u32 %v1725, 16
      %v1753 = vrot.slane %v1751, 2
      %v1754 = vor.u32 %v1750, %v1753
      %v1756 = vshrl.u32 %v1726, 16
      %v1758 = vrot.slane %v1756, 1
      %v1759 = vshll.u32 %v1726, 16
      %v1761 = vrot.slane %v1759, 2
      %v1762 = vor.u32 %v1758, %v1761
      %v1764 = vshrl.u32 %v1727, 16
      %v1766 = vrot.slane %v1764, 1
      %v1767 = vshll.u32 %v1727, 16
      %v1769 = vrot.slane %v1767, 2
      %v1770 = vor.u32 %v1766, %v1769
      %v1772 = vshrl.u32 %v1728, 16
      %v1774 = vrot.slane %v1772, 1
      %v1775 = vshll.u32 %v1728, 16
      %v1777 = vrot.slane %v1775, 2
      %v1778 = vor.u32 %v1774, %v1777
      %v1780 = vshrl.u32 %v1729, 16
      %v1782 = vrot.slane %v1780, 1
      %v1783 = vshll.u32 %v1729, 16
      %v1785 = vrot.slane %v1783, 2
      %v1786 = vor.u32 %v1782, %v1785
      %v1788 = vshrl.u32 %v1730, 16
      %v1790 = vrot.slane %v1788, 1
      %v1791 = vshll.u32 %v1730, 16
      %v1793 = vrot.slane %v1791, 2
      %v1794 = vor.u32 %v1790, %v1793
      %1795 = vrot.lane.b32.xlu0 %v1738, 16
      %v1796 = vpop.permute.xlu0 %1795
      %1797 = vrot.lane.b32.xlu0 %v1746, 16
      %v1798 = vpop.permute.xlu0 %1797
      %1799 = vrot.lane.b32.xlu0 %v1754, 16
      %v1800 = vpop.permute.xlu0 %1799
      %1801 = vrot.lane.b32.xlu0 %v1762, 16
      %v1802 = vpop.permute.xlu0 %1801
      %1803 = vrot.lane.b32.xlu0 %v1770, 16
      %v1804 = vpop.permute.xlu0 %1803
      %1805 = vrot.lane.b32.xlu0 %v1778, 16
      %v1806 = vpop.permute.xlu0 %1805
      %1807 = vrot.lane.b32.xlu0 %v1786, 16
      %v1808 = vpop.permute.xlu0 %1807
      %1809 = vrot.lane.b32.xlu0 %v1794, 16
      %v1810 = vpop.permute.xlu0 %1809
      %v1819 = vunpack.c.l.b16 %v1539
      %v1820 = vunpack.c.l.b16 %v1540
      %v1821 = vunpack.c.l.b16 %v1541
      %v1822 = vunpack.c.l.b16 %v1542
      %v1823 = vunpack.c.l.b16 %v1543
      %v1824 = vunpack.c.l.b16 %v1544
      %v1825 = vunpack.c.l.b16 %v1545
      %v1826 = vunpack.c.l.b16 %v1546
      %v1827 = vpack.c.b16 %v1715, %v1819
      %v1828 = vpack.c.b16 %v1716, %v1820
      %v1829 = vpack.c.b16 %v1717, %v1821
      %v1830 = vpack.c.b16 %v1718, %v1822
      %v1831 = vpack.c.b16 %v1719, %v1823
      %v1832 = vpack.c.b16 %v1720, %v1824
      %v1833 = vpack.c.b16 %v1721, %v1825
      %v1834 = vpack.c.b16 %v1722, %v1826
      %v1835 = vrot.slane %v1827, 2
      %v1836 = vrot.slane %v1828, 2
      %v1837 = vrot.slane %v1829, 2
      %v1838 = vrot.slane %v1830, 2
      %v1839 = vrot.slane %v1831, 2
      %v1840 = vrot.slane %v1832, 2
      %v1841 = vrot.slane %v1833, 2
      %v1842 = vrot.slane %v1834, 2
      %1843 = vrot.lane.b32.xlu0 %v1835, 64
      %v1844 = vpop.permute.xlu0 %1843
      %1845 = vrot.lane.b32.xlu0 %v1836, 64
      %v1846 = vpop.permute.xlu0 %1845
      %1847 = vrot.lane.b32.xlu0 %v1837, 64
      %v1848 = vpop.permute.xlu0 %1847
      %1849 = vrot.lane.b32.xlu0 %v1838, 64
      %v1850 = vpop.permute.xlu0 %1849
      %1851 = vrot.lane.b32.xlu0 %v1839, 64
      %v1852 = vpop.permute.xlu0 %1851
      %1853 = vrot.lane.b32.xlu0 %v1840, 64
      %v1854 = vpop.permute.xlu0 %1853
      %1855 = vrot.lane.b32.xlu0 %v1841, 64
      %v1856 = vpop.permute.xlu0 %1855
      %1857 = vrot.lane.b32.xlu0 %v1842, 64
      %v1858 = vpop.permute.xlu0 %1857
      %v1861 = vsel %vm580, %v1507, %v1644
      %v1864 = vsel %vm580, %v1508, %v1646
      %v1867 = vsel %vm580, %v1509, %v1648
      %v1870 = vsel %vm580, %v1510, %v1650
      %v1873 = vsel %vm580, %v1511, %v1652
      %v1876 = vsel %vm580, %v1512, %v1654
      %v1879 = vsel %vm580, %v1513, %v1656
      %v1882 = vsel %vm580, %v1514, %v1658
      %v1884 = vsel %vm605, %v1861, %v1692
      %v1886 = vsel %vm605, %v1864, %v1694
      %v1888 = vsel %vm605, %v1867, %v1696
      %v1890 = vsel %vm605, %v1870, %v1698
      %v1892 = vsel %vm605, %v1873, %v1700
      %v1894 = vsel %vm605, %v1876, %v1702
      %v1896 = vsel %vm605, %v1879, %v1704
      %v1898 = vsel %vm605, %v1882, %v1706
      %v1900 = vsel %vm622, %v1692, %v1796
      %v1902 = vsel %vm622, %v1694, %v1798
      %v1904 = vsel %vm622, %v1696, %v1800
      %v1906 = vsel %vm622, %v1698, %v1802
      %v1908 = vsel %vm622, %v1700, %v1804
      %v1910 = vsel %vm622, %v1702, %v1806
      %v1912 = vsel %vm622, %v1704, %v1808
      %v1914 = vsel %vm622, %v1706, %v1810
      %v1916 = vsel %vm639, %v1900, %v1844
      %v1918 = vsel %vm639, %v1902, %v1846
      %v1920 = vsel %vm639, %v1904, %v1848
      %v1922 = vsel %vm639, %v1906, %v1850
      %v1924 = vsel %vm639, %v1908, %v1852
      %v1926 = vsel %vm639, %v1910, %v1854
      %v1928 = vsel %vm639, %v1912, %v1856
      %v1930 = vsel %vm639, %v1914, %v1858
      %s1931 = scalar_lea.vmem %s221, 32
      %v1932 = vld [vmem:[%s1931] sm:$0xf]
      %v1933 = vld [vmem:[%s1931 + $0x8] sm:$0xf]
      %v1934 = vld [vmem:[%s1931 + $0x10] sm:$0xf]
      %v1935 = vld [vmem:[%s1931 + $0x18] sm:$0xf]
      %v1936 = vld [vmem:[%s1931 + $0x20] sm:$0xf]
      %v1937 = vld [vmem:[%s1931 + $0x28] sm:$0xf]
      %v1938 = vld [vmem:[%s1931 + $0x30] sm:$0xf]
      %v1939 = vld [vmem:[%s1931 + $0x38] sm:$0xf]
      %v1940 = vld [vmem:[%s1931 + $0x4] sm:$0x1]
      %v1941 = vld [vmem:[%s1931 + $0xc] sm:$0x1]
      %v1942 = vld [vmem:[%s1931 + $0x14] sm:$0x1]
      %v1943 = vld [vmem:[%s1931 + $0x1c] sm:$0x1]
      %v1944 = vld [vmem:[%s1931 + $0x24] sm:$0x1]
      %v1945 = vld [vmem:[%s1931 + $0x2c] sm:$0x1]
      %v1946 = vld [vmem:[%s1931 + $0x34] sm:$0x1]
      %v1947 = vld [vmem:[%s1931 + $0x3c] sm:$0x1]
      %v1948 = vld [vmem:[%s1931] sm:$0xe]
      %v1949 = vld [vmem:[%s1931 + $0x8] sm:$0xe]
      %v1950 = vld [vmem:[%s1931 + $0x10] sm:$0xe]
      %v1951 = vld [vmem:[%s1931 + $0x18] sm:$0xe]
      %v1952 = vld [vmem:[%s1931 + $0x20] sm:$0xe]
      %v1953 = vld [vmem:[%s1931 + $0x28] sm:$0xe]
      %v1954 = vld [vmem:[%s1931 + $0x30] sm:$0xe]
      %v1955 = vld [vmem:[%s1931 + $0x38] sm:$0xe]
      %v1956 = vld [vmem:[%s1931 + $0x4] sm:$0x3]
      %v1957 = vld [vmem:[%s1931 + $0xc] sm:$0x3]
      %v1958 = vld [vmem:[%s1931 + $0x14] sm:$0x3]
      %v1959 = vld [vmem:[%s1931 + $0x1c] sm:$0x3]
      %v1960 = vld [vmem:[%s1931 + $0x24] sm:$0x3]
      %v1961 = vld [vmem:[%s1931 + $0x2c] sm:$0x3]
      %v1962 = vld [vmem:[%s1931 + $0x34] sm:$0x3]
      %v1963 = vld [vmem:[%s1931 + $0x3c] sm:$0x3]
      %v1964 = vld [vmem:[%s1931] sm:$0xc]
      %v1965 = vld [vmem:[%s1931 + $0x8] sm:$0xc]
      %v1966 = vld [vmem:[%s1931 + $0x10] sm:$0xc]
      %v1967 = vld [vmem:[%s1931 + $0x18] sm:$0xc]
      %v1968 = vld [vmem:[%s1931 + $0x20] sm:$0xc]
      %v1969 = vld [vmem:[%s1931 + $0x28] sm:$0xc]
      %v1970 = vld [vmem:[%s1931 + $0x30] sm:$0xc]
      %v1971 = vld [vmem:[%s1931 + $0x38] sm:$0xc]
      %v1988 = vunpack.c.l.b16 %v1932
      %v1989 = vunpack.c.l.b16 %v1940
      %v1990 = vunpack.c.l.b16 %v1933
      %v1991 = vunpack.c.l.b16 %v1941
      %v1992 = vunpack.c.l.b16 %v1934
      %v1993 = vunpack.c.l.b16 %v1942
      %v1994 = vunpack.c.l.b16 %v1935
      %v1995 = vunpack.c.l.b16 %v1943
      %v1996 = vunpack.c.l.b16 %v1936
      %v1997 = vunpack.c.l.b16 %v1944
      %v1998 = vunpack.c.l.b16 %v1937
      %v1999 = vunpack.c.l.b16 %v1945
      %v2000 = vunpack.c.l.b16 %v1938
      %v2001 = vunpack.c.l.b16 %v1946
      %v2002 = vunpack.c.l.b16 %v1939
      %v2003 = vunpack.c.l.b16 %v1947
      %v2004 = vpack.c.b16 %v1989, %v1988
      %v2005 = vpack.c.b16 %v1991, %v1990
      %v2006 = vpack.c.b16 %v1993, %v1992
      %v2007 = vpack.c.b16 %v1995, %v1994
      %v2008 = vpack.c.b16 %v1997, %v1996
      %v2009 = vpack.c.b16 %v1999, %v1998
      %v2010 = vpack.c.b16 %v2001, %v2000
      %v2011 = vpack.c.b16 %v2003, %v2002
      %v2013 = vshrl.u32 %v2004, 16
      %v2015 = vshll.u32 %v2004, 16
      %v2017 = vrot.slane %v2015, 1
      %v2018 = vor.u32 %v2013, %v2017
      %v2020 = vshrl.u32 %v2005, 16
      %v2022 = vshll.u32 %v2005, 16
      %v2024 = vrot.slane %v2022, 1
      %v2025 = vor.u32 %v2020, %v2024
      %v2027 = vshrl.u32 %v2006, 16
      %v2029 = vshll.u32 %v2006, 16
      %v2031 = vrot.slane %v2029, 1
      %v2032 = vor.u32 %v2027, %v2031
      %v2034 = vshrl.u32 %v2007, 16
      %v2036 = vshll.u32 %v2007, 16
      %v2038 = vrot.slane %v2036, 1
      %v2039 = vor.u32 %v2034, %v2038
      %v2041 = vshrl.u32 %v2008, 16
      %v2043 = vshll.u32 %v2008, 16
      %v2045 = vrot.slane %v2043, 1
      %v2046 = vor.u32 %v2041, %v2045
      %v2048 = vshrl.u32 %v2009, 16
      %v2050 = vshll.u32 %v2009, 16
      %v2052 = vrot.slane %v2050, 1
      %v2053 = vor.u32 %v2048, %v2052
      %v2055 = vshrl.u32 %v2010, 16
      %v2057 = vshll.u32 %v2010, 16
      %v2059 = vrot.slane %v2057, 1
      %v2060 = vor.u32 %v2055, %v2059
      %v2062 = vshrl.u32 %v2011, 16
      %v2064 = vshll.u32 %v2011, 16
      %v2066 = vrot.slane %v2064, 1
      %v2067 = vor.u32 %v2062, %v2066
      %2068 = vrot.lane.b32.xlu0 %v2018, 48
      %v2069 = vpop.permute.xlu0 %2068
      %2070 = vrot.lane.b32.xlu0 %v2025, 48
      %v2071 = vpop.permute.xlu0 %2070
      %2072 = vrot.lane.b32.xlu0 %v2032, 48
      %v2073 = vpop.permute.xlu0 %2072
      %2074 = vrot.lane.b32.xlu0 %v2039, 48
      %v2075 = vpop.permute.xlu0 %2074
      %2076 = vrot.lane.b32.xlu0 %v2046, 48
      %v2077 = vpop.permute.xlu0 %2076
      %2078 = vrot.lane.b32.xlu0 %v2053, 48
      %v2079 = vpop.permute.xlu0 %2078
      %2080 = vrot.lane.b32.xlu0 %v2060, 48
      %v2081 = vpop.permute.xlu0 %2080
      %2082 = vrot.lane.b32.xlu0 %v2067, 48
      %v2083 = vpop.permute.xlu0 %2082
      %v2092 = vunpack.c.l.b16 %v1948
      %v2093 = vunpack.c.l.b16 %v1949
      %v2094 = vunpack.c.l.b16 %v1950
      %v2095 = vunpack.c.l.b16 %v1951
      %v2096 = vunpack.c.l.b16 %v1952
      %v2097 = vunpack.c.l.b16 %v1953
      %v2098 = vunpack.c.l.b16 %v1954
      %v2099 = vunpack.c.l.b16 %v1955
      %v2100 = vpack.c.b16 %v1989, %v2092
      %v2101 = vpack.c.b16 %v1991, %v2093
      %v2102 = vpack.c.b16 %v1993, %v2094
      %v2103 = vpack.c.b16 %v1995, %v2095
      %v2104 = vpack.c.b16 %v1997, %v2096
      %v2105 = vpack.c.b16 %v1999, %v2097
      %v2106 = vpack.c.b16 %v2001, %v2098
      %v2107 = vpack.c.b16 %v2003, %v2099
      %v2108 = vrot.slane %v2100, 1
      %v2109 = vrot.slane %v2101, 1
      %v2110 = vrot.slane %v2102, 1
      %v2111 = vrot.slane %v2103, 1
      %v2112 = vrot.slane %v2104, 1
      %v2113 = vrot.slane %v2105, 1
      %v2114 = vrot.slane %v2106, 1
      %v2115 = vrot.slane %v2107, 1
      %2116 = vrot.lane.b32.xlu0 %v2108, 96
      %v2117 = vpop.permute.xlu0 %2116
      %2118 = vrot.lane.b32.xlu0 %v2109, 96
      %v2119 = vpop.permute.xlu0 %2118
      %2120 = vrot.lane.b32.xlu0 %v2110, 96
      %v2121 = vpop.permute.xlu0 %2120
      %2122 = vrot.lane.b32.xlu0 %v2111, 96
      %v2123 = vpop.permute.xlu0 %2122
      %2124 = vrot.lane.b32.xlu0 %v2112, 96
      %v2125 = vpop.permute.xlu0 %2124
      %2126 = vrot.lane.b32.xlu0 %v2113, 96
      %v2127 = vpop.permute.xlu0 %2126
      %2128 = vrot.lane.b32.xlu0 %v2114, 96
      %v2129 = vpop.permute.xlu0 %2128
      %2130 = vrot.lane.b32.xlu0 %v2115, 96
      %v2131 = vpop.permute.xlu0 %2130
      %v2140 = vunpack.c.l.b16 %v1956
      %v2141 = vunpack.c.l.b16 %v1957
      %v2142 = vunpack.c.l.b16 %v1958
      %v2143 = vunpack.c.l.b16 %v1959
      %v2144 = vunpack.c.l.b16 %v1960
      %v2145 = vunpack.c.l.b16 %v1961
      %v2146 = vunpack.c.l.b16 %v1962
      %v2147 = vunpack.c.l.b16 %v1963
      %v2148 = vpack.c.b16 %v2140, %v2092
      %v2149 = vpack.c.b16 %v2141, %v2093
      %v2150 = vpack.c.b16 %v2142, %v2094
      %v2151 = vpack.c.b16 %v2143, %v2095
      %v2152 = vpack.c.b16 %v2144, %v2096
      %v2153 = vpack.c.b16 %v2145, %v2097
      %v2154 = vpack.c.b16 %v2146, %v2098
      %v2155 = vpack.c.b16 %v2147, %v2099
      %v2157 = vshrl.u32 %v2148, 16
      %v2159 = vrot.slane %v2157, 1
      %v2160 = vshll.u32 %v2148, 16
      %v2162 = vrot.slane %v2160, 2
      %v2163 = vor.u32 %v2159, %v2162
      %v2165 = vshrl.u32 %v2149, 16
      %v2167 = vrot.slane %v2165, 1
      %v2168 = vshll.u32 %v2149, 16
      %v2170 = vrot.slane %v2168, 2
      %v2171 = vor.u32 %v2167, %v2170
      %v2173 = vshrl.u32 %v2150, 16
      %v2175 = vrot.slane %v2173, 1
      %v2176 = vshll.u32 %v2150, 16
      %v2178 = vrot.slane %v2176, 2
      %v2179 = vor.u32 %v2175, %v2178
      %v2181 = vshrl.u32 %v2151, 16
      %v2183 = vrot.slane %v2181, 1
      %v2184 = vshll.u32 %v2151, 16
      %v2186 = vrot.slane %v2184, 2
      %v2187 = vor.u32 %v2183, %v2186
      %v2189 = vshrl.u32 %v2152, 16
      %v2191 = vrot.slane %v2189, 1
      %v2192 = vshll.u32 %v2152, 16
      %v2194 = vrot.slane %v2192, 2
      %v2195 = vor.u32 %v2191, %v2194
      %v2197 = vshrl.u32 %v2153, 16
      %v2199 = vrot.slane %v2197, 1
      %v2200 = vshll.u32 %v2153, 16
      %v2202 = vrot.slane %v2200, 2
      %v2203 = vor.u32 %v2199, %v2202
      %v2205 = vshrl.u32 %v2154, 16
      %v2207 = vrot.slane %v2205, 1
      %v2208 = vshll.u32 %v2154, 16
      %v2210 = vrot.slane %v2208, 2
      %v2211 = vor.u32 %v2207, %v2210
      %v2213 = vshrl.u32 %v2155, 16
      %v2215 = vrot.slane %v2213, 1
      %v2216 = vshll.u32 %v2155, 16
      %v2218 = vrot.slane %v2216, 2
      %v2219 = vor.u32 %v2215, %v2218
      %2220 = vrot.lane.b32.xlu0 %v2163, 16
      %v2221 = vpop.permute.xlu0 %2220
      %2222 = vrot.lane.b32.xlu0 %v2171, 16
      %v2223 = vpop.permute.xlu0 %2222
      %2224 = vrot.lane.b32.xlu0 %v2179, 16
      %v2225 = vpop.permute.xlu0 %2224
      %2226 = vrot.lane.b32.xlu0 %v2187, 16
      %v2227 = vpop.permute.xlu0 %2226
      %2228 = vrot.lane.b32.xlu0 %v2195, 16
      %v2229 = vpop.permute.xlu0 %2228
      %2230 = vrot.lane.b32.xlu0 %v2203, 16
      %v2231 = vpop.permute.xlu0 %2230
      %2232 = vrot.lane.b32.xlu0 %v2211, 16
      %v2233 = vpop.permute.xlu0 %2232
      %2234 = vrot.lane.b32.xlu0 %v2219, 16
      %v2235 = vpop.permute.xlu0 %2234
      %v2244 = vunpack.c.l.b16 %v1964
      %v2245 = vunpack.c.l.b16 %v1965
      %v2246 = vunpack.c.l.b16 %v1966
      %v2247 = vunpack.c.l.b16 %v1967
      %v2248 = vunpack.c.l.b16 %v1968
      %v2249 = vunpack.c.l.b16 %v1969
      %v2250 = vunpack.c.l.b16 %v1970
      %v2251 = vunpack.c.l.b16 %v1971
      %v2252 = vpack.c.b16 %v2140, %v2244
      %v2253 = vpack.c.b16 %v2141, %v2245
      %v2254 = vpack.c.b16 %v2142, %v2246
      %v2255 = vpack.c.b16 %v2143, %v2247
      %v2256 = vpack.c.b16 %v2144, %v2248
      %v2257 = vpack.c.b16 %v2145, %v2249
      %v2258 = vpack.c.b16 %v2146, %v2250
      %v2259 = vpack.c.b16 %v2147, %v2251
      %v2260 = vrot.slane %v2252, 2
      %v2261 = vrot.slane %v2253, 2
      %v2262 = vrot.slane %v2254, 2
      %v2263 = vrot.slane %v2255, 2
      %v2264 = vrot.slane %v2256, 2
      %v2265 = vrot.slane %v2257, 2
      %v2266 = vrot.slane %v2258, 2
      %v2267 = vrot.slane %v2259, 2
      %2268 = vrot.lane.b32.xlu0 %v2260, 64
      %v2269 = vpop.permute.xlu0 %2268
      %2270 = vrot.lane.b32.xlu0 %v2261, 64
      %v2271 = vpop.permute.xlu0 %2270
      %2272 = vrot.lane.b32.xlu0 %v2262, 64
      %v2273 = vpop.permute.xlu0 %2272
      %2274 = vrot.lane.b32.xlu0 %v2263, 64
      %v2275 = vpop.permute.xlu0 %2274
      %2276 = vrot.lane.b32.xlu0 %v2264, 64
      %v2277 = vpop.permute.xlu0 %2276
      %2278 = vrot.lane.b32.xlu0 %v2265, 64
      %v2279 = vpop.permute.xlu0 %2278
      %2280 = vrot.lane.b32.xlu0 %v2266, 64
      %v2281 = vpop.permute.xlu0 %2280
      %2282 = vrot.lane.b32.xlu0 %v2267, 64
      %v2283 = vpop.permute.xlu0 %2282
      %v2286 = vsel %vm580, %v1932, %v2069
      %v2289 = vsel %vm580, %v1933, %v2071
      %v2292 = vsel %vm580, %v1934, %v2073
      %v2295 = vsel %vm580, %v1935, %v2075
      %v2298 = vsel %vm580, %v1936, %v2077
      %v2301 = vsel %vm580, %v1937, %v2079
      %v2304 = vsel %vm580, %v1938, %v2081
      %v2307 = vsel %vm580, %v1939, %v2083
      %v2309 = vsel %vm605, %v2286, %v2117
      %v2311 = vsel %vm605, %v2289, %v2119
      %v2313 = vsel %vm605, %v2292, %v2121
      %v2315 = vsel %vm605, %v2295, %v2123
      %v2317 = vsel %vm605, %v2298, %v2125
      %v2319 = vsel %vm605, %v2301, %v2127
      %v2321 = vsel %vm605, %v2304, %v2129
      %v2323 = vsel %vm605, %v2307, %v2131
      %v2325 = vsel %vm622, %v2117, %v2221
      %v2327 = vsel %vm622, %v2119, %v2223
      %v2329 = vsel %vm622, %v2121, %v2225
      %v2331 = vsel %vm622, %v2123, %v2227
      %v2333 = vsel %vm622, %v2125, %v2229
      %v2335 = vsel %vm622, %v2127, %v2231
      %v2337 = vsel %vm622, %v2129, %v2233
      %v2339 = vsel %vm622, %v2131, %v2235
      %v2341 = vsel %vm639, %v2325, %v2269
      %v2343 = vsel %vm639, %v2327, %v2271
      %v2345 = vsel %vm639, %v2329, %v2273
      %v2347 = vsel %vm639, %v2331, %v2275
      %v2349 = vsel %vm639, %v2333, %v2277
      %v2351 = vsel %vm639, %v2335, %v2279
      %v2353 = vsel %vm639, %v2337, %v2281
      %v2355 = vsel %vm639, %v2339, %v2283
      %2372 = vrot.lane.b32.xlu0 %v1034, 112
      %v2373 = vpop.permute.xlu0 %2372
      %2374 = vrot.lane.b32.xlu0 %v1066, 112
      %v2375 = vpop.permute.xlu0 %2374
      %2376 = vrot.lane.b32.xlu0 %v1036, 112
      %v2377 = vpop.permute.xlu0 %2376
      %2378 = vrot.lane.b32.xlu0 %v1068, 112
      %v2379 = vpop.permute.xlu0 %2378
      %2380 = vrot.lane.b32.xlu0 %v1038, 112
      %v2381 = vpop.permute.xlu0 %2380
      %2382 = vrot.lane.b32.xlu0 %v1070, 112
      %v2383 = vpop.permute.xlu0 %2382
      %2384 = vrot.lane.b32.xlu0 %v1040, 112
      %v2385 = vpop.permute.xlu0 %2384
      %2386 = vrot.lane.b32.xlu0 %v1072, 112
      %v2387 = vpop.permute.xlu0 %2386
      %2388 = vrot.lane.b32.xlu0 %v1042, 112
      %v2389 = vpop.permute.xlu0 %2388
      %2390 = vrot.lane.b32.xlu0 %v1074, 112
      %v2391 = vpop.permute.xlu0 %2390
      %2392 = vrot.lane.b32.xlu0 %v1044, 112
      %v2393 = vpop.permute.xlu0 %2392
      %2394 = vrot.lane.b32.xlu0 %v1076, 112
      %v2395 = vpop.permute.xlu0 %2394
      %2396 = vrot.lane.b32.xlu0 %v1046, 112
      %v2397 = vpop.permute.xlu0 %2396
      %2398 = vrot.lane.b32.xlu0 %v1078, 112
      %v2399 = vpop.permute.xlu0 %2398
      %2400 = vrot.lane.b32.xlu0 %v1048, 112
      %v2401 = vpop.permute.xlu0 %2400
      %2402 = vrot.lane.b32.xlu0 %v1080, 112
      %v2403 = vpop.permute.xlu0 %2402
      %vm2404 = vcmask 916480
      %v2405 = vsel %vm2404, %v2373, %v2375
      %v2406 = vsel %vm2404, %v2377, %v2379
      %v2407 = vsel %vm2404, %v2381, %v2383
      %v2408 = vsel %vm2404, %v2385, %v2387
      %v2409 = vsel %vm2404, %v2389, %v2391
      %v2410 = vsel %vm2404, %v2393, %v2395
      %v2411 = vsel %vm2404, %v2397, %v2399
      %v2412 = vsel %vm2404, %v2401, %v2403
      %2429 = vrot.lane.b32.xlu0 %v1459, 96
      %v2430 = vpop.permute.xlu0 %2429
      %2431 = vrot.lane.b32.xlu0 %v1491, 96
      %v2432 = vpop.permute.xlu0 %2431
      %2433 = vrot.lane.b32.xlu0 %v1461, 96
      %v2434 = vpop.permute.xlu0 %2433
      %2435 = vrot.lane.b32.xlu0 %v1493, 96
      %v2436 = vpop.permute.xlu0 %2435
      %2437 = vrot.lane.b32.xlu0 %v1463, 96
      %v2438 = vpop.permute.xlu0 %2437
      %2439 = vrot.lane.b32.xlu0 %v1495, 96
      %v2440 = vpop.permute.xlu0 %2439
      %2441 = vrot.lane.b32.xlu0 %v1465, 96
      %v2442 = vpop.permute.xlu0 %2441
      %2443 = vrot.lane.b32.xlu0 %v1497, 96
      %v2444 = vpop.permute.xlu0 %2443
      %2445 = vrot.lane.b32.xlu0 %v1467, 96
      %v2446 = vpop.permute.xlu0 %2445
      %2447 = vrot.lane.b32.xlu0 %v1499, 96
      %v2448 = vpop.permute.xlu0 %2447
      %2449 = vrot.lane.b32.xlu0 %v1469, 96
      %v2450 = vpop.permute.xlu0 %2449
      %2451 = vrot.lane.b32.xlu0 %v1501, 96
      %v2452 = vpop.permute.xlu0 %2451
      %2453 = vrot.lane.b32.xlu0 %v1471, 96
      %v2454 = vpop.permute.xlu0 %2453
      %2455 = vrot.lane.b32.xlu0 %v1503, 96
      %v2456 = vpop.permute.xlu0 %2455
      %2457 = vrot.lane.b32.xlu0 %v1473, 96
      %v2458 = vpop.permute.xlu0 %2457
      %2459 = vrot.lane.b32.xlu0 %v1505, 96
      %v2460 = vpop.permute.xlu0 %2459
      %vm2461 = vcmask 785408
      %v2462 = vsel %vm2461, %v2430, %v2432
      %v2463 = vsel %vm2461, %v2434, %v2436
      %v2464 = vsel %vm2461, %v2438, %v2440
      %v2465 = vsel %vm2461, %v2442, %v2444
      %v2466 = vsel %vm2461, %v2446, %v2448
      %v2467 = vsel %vm2461, %v2450, %v2452
      %v2468 = vsel %vm2461, %v2454, %v2456
      %v2469 = vsel %vm2461, %v2458, %v2460
      %2486 = vrot.lane.b32.xlu0 %v1884, 80
      %v2487 = vpop.permute.xlu0 %2486
      %2488 = vrot.lane.b32.xlu0 %v1916, 80
      %v2489 = vpop.permute.xlu0 %2488
      %2490 = vrot.lane.b32.xlu0 %v1886, 80
      %v2491 = vpop.permute.xlu0 %2490
      %2492 = vrot.lane.b32.xlu0 %v1918, 80
      %v2493 = vpop.permute.xlu0 %2492
      %2494 = vrot.lane.b32.xlu0 %v1888, 80
      %v2495 = vpop.permute.xlu0 %2494
      %2496 = vrot.lane.b32.xlu0 %v1920, 80
      %v2497 = vpop.permute.xlu0 %2496
      %2498 = vrot.lane.b32.xlu0 %v1890, 80
      %v2499 = vpop.permute.xlu0 %2498
      %2500 = vrot.lane.b32.xlu0 %v1922, 80
      %v2501 = vpop.permute.xlu0 %2500
      %2502 = vrot.lane.b32.xlu0 %v1892, 80
      %v2503 = vpop.permute.xlu0 %2502
      %2504 = vrot.lane.b32.xlu0 %v1924, 80
      %v2505 = vpop.permute.xlu0 %2504
      %2506 = vrot.lane.b32.xlu0 %v1894, 80
      %v2507 = vpop.permute.xlu0 %2506
      %2508 = vrot.lane.b32.xlu0 %v1926, 80
      %v2509 = vpop.permute.xlu0 %2508
      %2510 = vrot.lane.b32.xlu0 %v1896, 80
      %v2511 = vpop.permute.xlu0 %2510
      %2512 = vrot.lane.b32.xlu0 %v1928, 80
      %v2513 = vpop.permute.xlu0 %2512
      %2514 = vrot.lane.b32.xlu0 %v1898, 80
      %v2515 = vpop.permute.xlu0 %2514
      %2516 = vrot.lane.b32.xlu0 %v1930, 80
      %v2517 = vpop.permute.xlu0 %2516
      %vm2518 = vcmask 654336
      %v2519 = vsel %vm2518, %v2487, %v2489
      %v2520 = vsel %vm2518, %v2491, %v2493
      %v2521 = vsel %vm2518, %v2495, %v2497
      %v2522 = vsel %vm2518, %v2499, %v2501
      %v2523 = vsel %vm2518, %v2503, %v2505
      %v2524 = vsel %vm2518, %v2507, %v2509
      %v2525 = vsel %vm2518, %v2511, %v2513
      %v2526 = vsel %vm2518, %v2515, %v2517
      %2543 = vrot.lane.b32.xlu0 %v2309, 64
      %v2544 = vpop.permute.xlu0 %2543
      %2545 = vrot.lane.b32.xlu0 %v2341, 64
      %v2546 = vpop.permute.xlu0 %2545
      %2547 = vrot.lane.b32.xlu0 %v2311, 64
      %v2548 = vpop.permute.xlu0 %2547
      %2549 = vrot.lane.b32.xlu0 %v2343, 64
      %v2550 = vpop.permute.xlu0 %2549
      %2551 = vrot.lane.b32.xlu0 %v2313, 64
      %v2552 = vpop.permute.xlu0 %2551
      %2553 = vrot.lane.b32.xlu0 %v2345, 64
      %v2554 = vpop.permute.xlu0 %2553
      %2555 = vrot.lane.b32.xlu0 %v2315, 64
      %v2556 = vpop.permute.xlu0 %2555
      %2557 = vrot.lane.b32.xlu0 %v2347, 64
      %v2558 = vpop.permute.xlu0 %2557
      %2559 = vrot.lane.b32.xlu0 %v2317, 64
      %v2560 = vpop.permute.xlu0 %2559
      %2561 = vrot.lane.b32.xlu0 %v2349, 64
      %v2562 = vpop.permute.xlu0 %2561
      %2563 = vrot.lane.b32.xlu0 %v2319, 64
      %v2564 = vpop.permute.xlu0 %2563
      %2565 = vrot.lane.b32.xlu0 %v2351, 64
      %v2566 = vpop.permute.xlu0 %2565
      %2567 = vrot.lane.b32.xlu0 %v2321, 64
      %v2568 = vpop.permute.xlu0 %2567
      %2569 = vrot.lane.b32.xlu0 %v2353, 64
      %v2570 = vpop.permute.xlu0 %2569
      %2571 = vrot.lane.b32.xlu0 %v2323, 64
      %v2572 = vpop.permute.xlu0 %2571
      %2573 = vrot.lane.b32.xlu0 %v2355, 64
      %v2574 = vpop.permute.xlu0 %2573
      %vm2575 = vcmask 523264
      %v2576 = vsel %vm2575, %v2544, %v2546
      %v2577 = vsel %vm2575, %v2548, %v2550
      %v2578 = vsel %vm2575, %v2552, %v2554
      %v2579 = vsel %vm2575, %v2556, %v2558
      %v2580 = vsel %vm2575, %v2560, %v2562
      %v2581 = vsel %vm2575, %v2564, %v2566
      %v2582 = vsel %vm2575, %v2568, %v2570
      %v2583 = vsel %vm2575, %v2572, %v2574
      %vm2584 = vcmask 916480
      %v2586 = vsel %vm2584, %v641, %v2373
      %v2588 = vsel %vm2584, %v643, %v2377
      %v2590 = vsel %vm2584, %v645, %v2381
      %v2592 = vsel %vm2584, %v647, %v2385
      %v2594 = vsel %vm2584, %v649, %v2389
      %v2596 = vsel %vm2584, %v651, %v2393
      %v2598 = vsel %vm2584, %v653, %v2397
      %v2600 = vsel %vm2584, %v655, %v2401
      %v2603 = vsel %vm605, %v2375, %v2430
      %v2606 = vsel %vm605, %v2379, %v2434
      %v2609 = vsel %vm605, %v2383, %v2438
      %v2612 = vsel %vm605, %v2387, %v2442
      %v2615 = vsel %vm605, %v2391, %v2446
      %v2618 = vsel %vm605, %v2395, %v2450
      %v2621 = vsel %vm605, %v2399, %v2454
      %v2624 = vsel %vm605, %v2403, %v2458
      %vm2625 = vcmask 654336
      %v2628 = vsel %vm2625, %v2432, %v2487
      %v2631 = vsel %vm2625, %v2436, %v2491
      %v2634 = vsel %vm2625, %v2440, %v2495
      %v2637 = vsel %vm2625, %v2444, %v2499
      %v2640 = vsel %vm2625, %v2448, %v2503
      %v2643 = vsel %vm2625, %v2452, %v2507
      %v2646 = vsel %vm2625, %v2456, %v2511
      %v2649 = vsel %vm2625, %v2460, %v2515
      %v2652 = vsel %vm639, %v2489, %v2544
      %v2655 = vsel %vm639, %v2493, %v2548
      %v2658 = vsel %vm639, %v2497, %v2552
      %v2661 = vsel %vm639, %v2501, %v2556
      %v2664 = vsel %vm639, %v2505, %v2560
      %v2667 = vsel %vm639, %v2509, %v2564
      %v2670 = vsel %vm639, %v2513, %v2568
      %v2673 = vsel %vm639, %v2517, %v2572
      %v2714 = vunpack.c.l.b16 %v607
      %v2715 = vunpack.c.l.b16 %v2586
      %v2716 = vunpack.c.l.b16 %v2405
      %v2717 = vunpack.c.l.b16 %v2603
      %v2718 = vunpack.c.l.b16 %v2462
      %v2719 = vunpack.c.l.b16 %v2628
      %v2720 = vunpack.c.l.b16 %v2519
      %v2721 = vunpack.c.l.b16 %v2652
      %v2722 = vunpack.c.l.b16 %v2576
      %v2723 = vunpack.c.l.b16 %v2546
      %v2724 = vunpack.c.l.b16 %v609
      %v2725 = vunpack.c.l.b16 %v2588
      %v2726 = vunpack.c.l.b16 %v2406
      %v2727 = vunpack.c.l.b16 %v2606
      %v2728 = vunpack.c.l.b16 %v2463
      %v2729 = vunpack.c.l.b16 %v2631
      %v2730 = vunpack.c.l.b16 %v2520
      %v2731 = vunpack.c.l.b16 %v2655
      %v2732 = vunpack.c.l.b16 %v2577
      %v2733 = vunpack.c.l.b16 %v2550
      %v2734 = vunpack.c.l.b16 %v611
      %v2735 = vunpack.c.l.b16 %v2590
      %v2736 = vunpack.c.l.b16 %v2407
      %v2737 = vunpack.c.l.b16 %v2609
      %v2738 = vunpack.c.l.b16 %v2464
      %v2739 = vunpack.c.l.b16 %v2634
      %v2740 = vunpack.c.l.b16 %v2521
      %v2741 = vunpack.c.l.b16 %v2658
      %v2742 = vunpack.c.l.b16 %v2578
      %v2743 = vunpack.c.l.b16 %v2554
      %v2744 = vunpack.c.l.b16 %v613
      %v2745 = vunpack.c.l.b16 %v2592
      %v2746 = vunpack.c.l.b16 %v2408
      %v2747 = vunpack.c.l.b16 %v2612
      %v2748 = vunpack.c.l.b16 %v2465
      %v2749 = vunpack.c.l.b16 %v2637
      %v2750 = vunpack.c.l.b16 %v2522
      %v2751 = vunpack.c.l.b16 %v2661
      %v2752 = vunpack.c.l.b16 %v2579
      %v2753 = vunpack.c.l.b16 %v2558
      %v2754 = vunpack.c.l.b16 %v615
      %v2755 = vunpack.c.l.b16 %v2594
      %v2756 = vunpack.c.l.b16 %v2409
      %v2757 = vunpack.c.l.b16 %v2615
      %v2758 = vunpack.c.l.b16 %v2466
      %v2759 = vunpack.c.l.b16 %v2640
      %v2760 = vunpack.c.l.b16 %v2523
      %v2761 = vunpack.c.l.b16 %v2664
      %v2762 = vunpack.c.l.b16 %v2580
      %v2763 = vunpack.c.l.b16 %v2562
      %v2764 = vunpack.c.l.b16 %v617
      %v2765 = vunpack.c.l.b16 %v2596
      %v2766 = vunpack.c.l.b16 %v2410
      %v2767 = vunpack.c.l.b16 %v2618
      %v2768 = vunpack.c.l.b16 %v2467
      %v2769 = vunpack.c.l.b16 %v2643
      %v2770 = vunpack.c.l.b16 %v2524
      %v2771 = vunpack.c.l.b16 %v2667
      %v2772 = vunpack.c.l.b16 %v2581
      %v2773 = vunpack.c.l.b16 %v2566
      %v2774 = vunpack.c.l.b16 %v619
      %v2775 = vunpack.c.l.b16 %v2598
      %v2776 = vunpack.c.l.b16 %v2411
      %v2777 = vunpack.c.l.b16 %v2621
      %v2778 = vunpack.c.l.b16 %v2468
      %v2779 = vunpack.c.l.b16 %v2646
      %v2780 = vunpack.c.l.b16 %v2525
      %v2781 = vunpack.c.l.b16 %v2670
      %v2782 = vunpack.c.l.b16 %v2582
      %v2783 = vunpack.c.l.b16 %v2570
      %v2784 = vunpack.c.l.b16 %v621
      %v2785 = vunpack.c.l.b16 %v2600
      %v2786 = vunpack.c.l.b16 %v2412
      %v2787 = vunpack.c.l.b16 %v2624
      %v2788 = vunpack.c.l.b16 %v2469
      %v2789 = vunpack.c.l.b16 %v2649
      %v2790 = vunpack.c.l.b16 %v2526
      %v2791 = vunpack.c.l.b16 %v2673
      %v2792 = vunpack.c.l.b16 %v2583
      %v2793 = vunpack.c.l.b16 %v2574
      %v2794 = vld [vmem:[%s1] sm:$0xff]
      %v2795 = vld [vmem:[%s1 + $0x8] sm:$0xff]
      %v2796 = vld [vmem:[%s1 + $0x10] sm:$0xff]
      %v2797 = vld [vmem:[%s1 + $0x18] sm:$0xff]
      %v2798 = vld [vmem:[%s1 + $0x20] sm:$0xff]
      %v2799 = vld [vmem:[%s1 + $0x28] sm:$0xff]
      %v2800 = vld [vmem:[%s1 + $0x30] sm:$0xff]
      %v2801 = vld [vmem:[%s1 + $0x38] sm:$0xff]
      %v2802 = vld [vmem:[%s1 + $0x40] sm:$0xff]
      %v2803 = vld [vmem:[%s1 + $0x48] sm:$0xff]
      %v2804 = vld [vmem:[%s1 + $0x50] sm:$0xff]
      %v2805 = vld [vmem:[%s1 + $0x58] sm:$0xff]
      %v2806 = vld [vmem:[%s1 + $0x60] sm:$0xff]
      %v2807 = vld [vmem:[%s1 + $0x68] sm:$0xff]
      %v2808 = vld [vmem:[%s1 + $0x70] sm:$0xff]
      %v2809 = vld [vmem:[%s1 + $0x78] sm:$0xff]
      %v2810 = vld [vmem:[%s1 + $0x80] sm:$0xff]
      %v2811 = vld [vmem:[%s1 + $0x88] sm:$0xff]
      %v2812 = vld [vmem:[%s1 + $0x90] sm:$0xff]
      %v2813 = vld [vmem:[%s1 + $0x98] sm:$0xff]
      %v2814 = vld [vmem:[%s1 + $0xa0] sm:$0xff]
      %v2815 = vld [vmem:[%s1 + $0xa8] sm:$0xff]
      %v2816 = vld [vmem:[%s1 + $0xb0] sm:$0xff]
      %v2817 = vld [vmem:[%s1 + $0xb8] sm:$0xff]
      %v2818 = vld [vmem:[%s1 + $0xc0] sm:$0xff]
      %v2819 = vld [vmem:[%s1 + $0xc8] sm:$0xff]
      %v2820 = vld [vmem:[%s1 + $0xd0] sm:$0xff]
      %v2821 = vld [vmem:[%s1 + $0xd8] sm:$0xff]
      %v2822 = vld [vmem:[%s1 + $0xe0] sm:$0xff]
      %v2823 = vld [vmem:[%s1 + $0xe8] sm:$0xff]
      %v2824 = vld [vmem:[%s1 + $0xf0] sm:$0xff]
      %v2825 = vld [vmem:[%s1 + $0xf8] sm:$0xff]
      %v2826 = vld [vmem:[%s1 + $0x100] sm:$0xff]
      %v2827 = vld [vmem:[%s1 + $0x108] sm:$0xff]
      %v2828 = vld [vmem:[%s1 + $0x110] sm:$0xff]
      %v2829 = vld [vmem:[%s1 + $0x118] sm:$0xff]
      %v2830 = vld [vmem:[%s1 + $0x120] sm:$0xff]
      %v2831 = vld [vmem:[%s1 + $0x128] sm:$0xff]
      %v2832 = vld [vmem:[%s1 + $0x130] sm:$0xff]
      %v2833 = vld [vmem:[%s1 + $0x138] sm:$0xff]
      %v2834 = vld [vmem:[%s1 + $0x140] sm:$0xff]
      %v2835 = vld [vmem:[%s1 + $0x148] sm:$0xff]
      %v2836 = vld [vmem:[%s1 + $0x150] sm:$0xff]
      %v2837 = vld [vmem:[%s1 + $0x158] sm:$0xff]
      %v2838 = vld [vmem:[%s1 + $0x160] sm:$0xff]
      %v2839 = vld [vmem:[%s1 + $0x168] sm:$0xff]
      %v2840 = vld [vmem:[%s1 + $0x170] sm:$0xff]
      %v2841 = vld [vmem:[%s1 + $0x178] sm:$0xff]
      %v2842 = vld [vmem:[%s1 + $0x180] sm:$0xff]
      %v2843 = vld [vmem:[%s1 + $0x188] sm:$0xff]
      %v2844 = vld [vmem:[%s1 + $0x190] sm:$0xff]
      %v2845 = vld [vmem:[%s1 + $0x198] sm:$0xff]
      %v2846 = vld [vmem:[%s1 + $0x1a0] sm:$0xff]
      %v2847 = vld [vmem:[%s1 + $0x1a8] sm:$0xff]
      %v2848 = vld [vmem:[%s1 + $0x1b0] sm:$0xff]
      %v2849 = vld [vmem:[%s1 + $0x1b8] sm:$0xff]
      %v2850 = vld [vmem:[%s1 + $0x1c0] sm:$0xff]
      %v2851 = vld [vmem:[%s1 + $0x1c8] sm:$0xff]
      %v2852 = vld [vmem:[%s1 + $0x1d0] sm:$0xff]
      %v2853 = vld [vmem:[%s1 + $0x1d8] sm:$0xff]
      %v2854 = vld [vmem:[%s1 + $0x1e0] sm:$0xff]
      %v2855 = vld [vmem:[%s1 + $0x1e8] sm:$0xff]
      %v2856 = vld [vmem:[%s1 + $0x1f0] sm:$0xff]
      %v2857 = vld [vmem:[%s1 + $0x1f8] sm:$0xff]
      %v2858 = vld [vmem:[%s1 + $0x200] sm:$0xff]
      %v2859 = vld [vmem:[%s1 + $0x208] sm:$0xff]
      %v2860 = vld [vmem:[%s1 + $0x210] sm:$0xff]
      %v2861 = vld [vmem:[%s1 + $0x218] sm:$0xff]
      %v2862 = vld [vmem:[%s1 + $0x220] sm:$0xff]
      %v2863 = vld [vmem:[%s1 + $0x228] sm:$0xff]
      %v2864 = vld [vmem:[%s1 + $0x230] sm:$0xff]
      %v2865 = vld [vmem:[%s1 + $0x238] sm:$0xff]
      %v2866 = vld [vmem:[%s1 + $0x240] sm:$0xff]
      %v2867 = vld [vmem:[%s1 + $0x248] sm:$0xff]
      %v2868 = vld [vmem:[%s1 + $0x250] sm:$0xff]
      %v2869 = vld [vmem:[%s1 + $0x258] sm:$0xff]
      %v2870 = vld [vmem:[%s1 + $0x260] sm:$0xff]
      %v2871 = vld [vmem:[%s1 + $0x268] sm:$0xff]
      %v2872 = vld [vmem:[%s1 + $0x270] sm:$0xff]
      %v2873 = vld [vmem:[%s1 + $0x278] sm:$0xff]
      %v2874 = vld [vmem:[%s1 + $0x280] sm:$0xff]
      %v2875 = vld [vmem:[%s1 + $0x288] sm:$0xff]
      %v2876 = vld [vmem:[%s1 + $0x290] sm:$0xff]
      %v2877 = vld [vmem:[%s1 + $0x298] sm:$0xff]
      %v2878 = vld [vmem:[%s1 + $0x2a0] sm:$0xff]
      %v2879 = vld [vmem:[%s1 + $0x2a8] sm:$0xff]
      %v2880 = vld [vmem:[%s1 + $0x2b0] sm:$0xff]
      %v2881 = vld [vmem:[%s1 + $0x2b8] sm:$0xff]
      %v2882 = vld [vmem:[%s1 + $0x2c0] sm:$0xff]
      %v2883 = vld [vmem:[%s1 + $0x2c8] sm:$0xff]
      %v2884 = vld [vmem:[%s1 + $0x2d0] sm:$0xff]
      %v2885 = vld [vmem:[%s1 + $0x2d8] sm:$0xff]
      %v2886 = vld [vmem:[%s1 + $0x2e0] sm:$0xff]
      %v2887 = vld [vmem:[%s1 + $0x2e8] sm:$0xff]
      %v2888 = vld [vmem:[%s1 + $0x2f0] sm:$0xff]
      %v2889 = vld [vmem:[%s1 + $0x2f8] sm:$0xff]
      %v2890 = vld [vmem:[%s1 + $0x300] sm:$0xff]
      %v2891 = vld [vmem:[%s1 + $0x308] sm:$0xff]
      %v2892 = vld [vmem:[%s1 + $0x310] sm:$0xff]
      %v2893 = vld [vmem:[%s1 + $0x318] sm:$0xff]
      %v2894 = vld [vmem:[%s1 + $0x320] sm:$0xff]
      %v2895 = vld [vmem:[%s1 + $0x328] sm:$0xff]
      %v2896 = vld [vmem:[%s1 + $0x330] sm:$0xff]
      %v2897 = vld [vmem:[%s1 + $0x338] sm:$0xff]
      %v2898 = vld [vmem:[%s1 + $0x340] sm:$0xff]
      %v2899 = vld [vmem:[%s1 + $0x348] sm:$0xff]
      %v2900 = vld [vmem:[%s1 + $0x350] sm:$0xff]
      %v2901 = vld [vmem:[%s1 + $0x358] sm:$0xff]
      %v2902 = vld [vmem:[%s1 + $0x360] sm:$0xff]
      %v2903 = vld [vmem:[%s1 + $0x368] sm:$0xff]
      %v2904 = vld [vmem:[%s1 + $0x370] sm:$0xff]
      %v2905 = vld [vmem:[%s1 + $0x378] sm:$0xff]
      %v2906 = vld [vmem:[%s1 + $0x380] sm:$0xff]
      %v2907 = vld [vmem:[%s1 + $0x388] sm:$0xff]
      %v2908 = vld [vmem:[%s1 + $0x390] sm:$0xff]
      %v2909 = vld [vmem:[%s1 + $0x398] sm:$0xff]
      %v2910 = vld [vmem:[%s1 + $0x3a0] sm:$0xff]
      %v2911 = vld [vmem:[%s1 + $0x3a8] sm:$0xff]
      %v2912 = vld [vmem:[%s1 + $0x3b0] sm:$0xff]
      %v2913 = vld [vmem:[%s1 + $0x3b8] sm:$0xff]
      %v2914 = vld [vmem:[%s1 + $0x3c0] sm:$0xff]
      %v2915 = vld [vmem:[%s1 + $0x3c8] sm:$0xff]
      %v2916 = vld [vmem:[%s1 + $0x3d0] sm:$0xff]
      %v2917 = vld [vmem:[%s1 + $0x3d8] sm:$0xff]
      %v2918 = vld [vmem:[%s1 + $0x3e0] sm:$0xff]
      %v2919 = vld [vmem:[%s1 + $0x3e8] sm:$0xff]
      %v2920 = vld [vmem:[%s1 + $0x3f0] sm:$0xff]
      %v2921 = vld [vmem:[%s1 + $0x3f8] sm:$0xff]
      %v2922 = vld [vmem:[%s1 + $0x400] sm:$0xff]
      %v2923 = vld [vmem:[%s1 + $0x408] sm:$0xff]
      %v2924 = vld [vmem:[%s1 + $0x410] sm:$0xff]
      %v2925 = vld [vmem:[%s1 + $0x418] sm:$0xff]
      %v2926 = vld [vmem:[%s1 + $0x420] sm:$0xff]
      %v2927 = vld [vmem:[%s1 + $0x428] sm:$0xff]
      %v2928 = vld [vmem:[%s1 + $0x430] sm:$0xff]
      %v2929 = vld [vmem:[%s1 + $0x438] sm:$0xff]
      %v2930 = vld [vmem:[%s1 + $0x440] sm:$0xff]
      %v2931 = vld [vmem:[%s1 + $0x448] sm:$0xff]
      %v2932 = vld [vmem:[%s1 + $0x450] sm:$0xff]
      %v2933 = vld [vmem:[%s1 + $0x458] sm:$0xff]
      %v2934 = vld [vmem:[%s1 + $0x460] sm:$0xff]
      %v2935 = vld [vmem:[%s1 + $0x468] sm:$0xff]
      %v2936 = vld [vmem:[%s1 + $0x470] sm:$0xff]
      %v2937 = vld [vmem:[%s1 + $0x478] sm:$0xff]
      %v2938 = vld [vmem:[%s1 + $0x480] sm:$0xff]
      %v2939 = vld [vmem:[%s1 + $0x488] sm:$0xff]
      %v2940 = vld [vmem:[%s1 + $0x490] sm:$0xff]
      %v2941 = vld [vmem:[%s1 + $0x498] sm:$0xff]
      %v2942 = vld [vmem:[%s1 + $0x4a0] sm:$0xff]
      %v2943 = vld [vmem:[%s1 + $0x4a8] sm:$0xff]
      %v2944 = vld [vmem:[%s1 + $0x4b0] sm:$0xff]
      %v2945 = vld [vmem:[%s1 + $0x4b8] sm:$0xff]
      %v2946 = vld [vmem:[%s1 + $0x4c0] sm:$0xff]
      %v2947 = vld [vmem:[%s1 + $0x4c8] sm:$0xff]
      %v2948 = vld [vmem:[%s1 + $0x4d0] sm:$0xff]
      %v2949 = vld [vmem:[%s1 + $0x4d8] sm:$0xff]
      %v2950 = vld [vmem:[%s1 + $0x4e0] sm:$0xff]
      %v2951 = vld [vmem:[%s1 + $0x4e8] sm:$0xff]
      %v2952 = vld [vmem:[%s1 + $0x4f0] sm:$0xff]
      %v2953 = vld [vmem:[%s1 + $0x4f8] sm:$0xff]
      %v2954 = vld [vmem:[%s1 + $0x500] sm:$0xff]
      %v2955 = vld [vmem:[%s1 + $0x508] sm:$0xff]
      %v2956 = vld [vmem:[%s1 + $0x510] sm:$0xff]
      %v2957 = vld [vmem:[%s1 + $0x518] sm:$0xff]
      %v2958 = vld [vmem:[%s1 + $0x520] sm:$0xff]
      %v2959 = vld [vmem:[%s1 + $0x528] sm:$0xff]
      %v2960 = vld [vmem:[%s1 + $0x530] sm:$0xff]
      %v2961 = vld [vmem:[%s1 + $0x538] sm:$0xff]
      %v2962 = vld [vmem:[%s1 + $0x540] sm:$0xff]
      %v2963 = vld [vmem:[%s1 + $0x548] sm:$0xff]
      %v2964 = vld [vmem:[%s1 + $0x550] sm:$0xff]
      %v2965 = vld [vmem:[%s1 + $0x558] sm:$0xff]
      %v2966 = vld [vmem:[%s1 + $0x560] sm:$0xff]
      %v2967 = vld [vmem:[%s1 + $0x568] sm:$0xff]
      %v2968 = vld [vmem:[%s1 + $0x570] sm:$0xff]
      %v2969 = vld [vmem:[%s1 + $0x578] sm:$0xff]
      %v2970 = vld [vmem:[%s1 + $0x580] sm:$0xff]
      %v2971 = vld [vmem:[%s1 + $0x588] sm:$0xff]
      %v2972 = vld [vmem:[%s1 + $0x590] sm:$0xff]
      %v2973 = vld [vmem:[%s1 + $0x598] sm:$0xff]
      %v2974 = vld [vmem:[%s1 + $0x5a0] sm:$0xff]
      %v2975 = vld [vmem:[%s1 + $0x5a8] sm:$0xff]
      %v2976 = vld [vmem:[%s1 + $0x5b0] sm:$0xff]
      %v2977 = vld [vmem:[%s1 + $0x5b8] sm:$0xff]
      %v2978 = vld [vmem:[%s1 + $0x5c0] sm:$0xff]
      %v2979 = vld [vmem:[%s1 + $0x5c8] sm:$0xff]
      %v2980 = vld [vmem:[%s1 + $0x5d0] sm:$0xff]
      %v2981 = vld [vmem:[%s1 + $0x5d8] sm:$0xff]
      %v2982 = vld [vmem:[%s1 + $0x5e0] sm:$0xff]
      %v2983 = vld [vmem:[%s1 + $0x5e8] sm:$0xff]
      %v2984 = vld [vmem:[%s1 + $0x5f0] sm:$0xff]
      %v2985 = vld [vmem:[%s1 + $0x5f8] sm:$0xff]
      %v2986 = vld [vmem:[%s1 + $0x600] sm:$0xff]
      %v2987 = vld [vmem:[%s1 + $0x608] sm:$0xff]
      %v2988 = vld [vmem:[%s1 + $0x610] sm:$0xff]
      %v2989 = vld [vmem:[%s1 + $0x618] sm:$0xff]
      %v2990 = vld [vmem:[%s1 + $0x620] sm:$0xff]
      %v2991 = vld [vmem:[%s1 + $0x628] sm:$0xff]
      %v2992 = vld [vmem:[%s1 + $0x630] sm:$0xff]
      %v2993 = vld [vmem:[%s1 + $0x638] sm:$0xff]
      %v2994 = vld [vmem:[%s1 + $0x640] sm:$0xff]
      %v2995 = vld [vmem:[%s1 + $0x648] sm:$0xff]
      %v2996 = vld [vmem:[%s1 + $0x650] sm:$0xff]
      %v2997 = vld [vmem:[%s1 + $0x658] sm:$0xff]
      %v2998 = vld [vmem:[%s1 + $0x660] sm:$0xff]
      %v2999 = vld [vmem:[%s1 + $0x668] sm:$0xff]
      %v3000 = vld [vmem:[%s1 + $0x670] sm:$0xff]
      %v3001 = vld [vmem:[%s1 + $0x678] sm:$0xff]
      %v3002 = vld [vmem:[%s1 + $0x680] sm:$0xff]
      %v3003 = vld [vmem:[%s1 + $0x688] sm:$0xff]
      %v3004 = vld [vmem:[%s1 + $0x690] sm:$0xff]
      %v3005 = vld [vmem:[%s1 + $0x698] sm:$0xff]
      %v3006 = vld [vmem:[%s1 + $0x6a0] sm:$0xff]
      %v3007 = vld [vmem:[%s1 + $0x6a8] sm:$0xff]
      %v3008 = vld [vmem:[%s1 + $0x6b0] sm:$0xff]
      %v3009 = vld [vmem:[%s1 + $0x6b8] sm:$0xff]
      %v3010 = vld [vmem:[%s1 + $0x6c0] sm:$0xff]
      %v3011 = vld [vmem:[%s1 + $0x6c8] sm:$0xff]
      %v3012 = vld [vmem:[%s1 + $0x6d0] sm:$0xff]
      %v3013 = vld [vmem:[%s1 + $0x6d8] sm:$0xff]
      %v3014 = vld [vmem:[%s1 + $0x6e0] sm:$0xff]
      %v3015 = vld [vmem:[%s1 + $0x6e8] sm:$0xff]
      %v3016 = vld [vmem:[%s1 + $0x6f0] sm:$0xff]
      %v3017 = vld [vmem:[%s1 + $0x6f8] sm:$0xff]
      %v3018 = vld [vmem:[%s1 + $0x700] sm:$0xff]
      %v3019 = vld [vmem:[%s1 + $0x708] sm:$0xff]
      %v3020 = vld [vmem:[%s1 + $0x710] sm:$0xff]
      %v3021 = vld [vmem:[%s1 + $0x718] sm:$0xff]
      %v3022 = vld [vmem:[%s1 + $0x720] sm:$0xff]
      %v3023 = vld [vmem:[%s1 + $0x728] sm:$0xff]
      %v3024 = vld [vmem:[%s1 + $0x730] sm:$0xff]
      %v3025 = vld [vmem:[%s1 + $0x738] sm:$0xff]
      %v3026 = vld [vmem:[%s1 + $0x740] sm:$0xff]
      %v3027 = vld [vmem:[%s1 + $0x748] sm:$0xff]
      %v3028 = vld [vmem:[%s1 + $0x750] sm:$0xff]
      %v3029 = vld [vmem:[%s1 + $0x758] sm:$0xff]
      %v3030 = vld [vmem:[%s1 + $0x760] sm:$0xff]
      %v3031 = vld [vmem:[%s1 + $0x768] sm:$0xff]
      %v3032 = vld [vmem:[%s1 + $0x770] sm:$0xff]
      %v3033 = vld [vmem:[%s1 + $0x778] sm:$0xff]
      %v3034 = vld [vmem:[%s1 + $0x780] sm:$0xff]
      %v3035 = vld [vmem:[%s1 + $0x788] sm:$0xff]
      %v3036 = vld [vmem:[%s1 + $0x790] sm:$0xff]
      %v3037 = vld [vmem:[%s1 + $0x798] sm:$0xff]
      %v3038 = vld [vmem:[%s1 + $0x7a0] sm:$0xff]
      %v3039 = vld [vmem:[%s1 + $0x7a8] sm:$0xff]
      %v3040 = vld [vmem:[%s1 + $0x7b0] sm:$0xff]
      %v3041 = vld [vmem:[%s1 + $0x7b8] sm:$0xff]
      %v3042 = vld [vmem:[%s1 + $0x7c0] sm:$0xff]
      %v3043 = vld [vmem:[%s1 + $0x7c8] sm:$0xff]
      %v3044 = vld [vmem:[%s1 + $0x7d0] sm:$0xff]
      %v3045 = vld [vmem:[%s1 + $0x7d8] sm:$0xff]
      %v3046 = vld [vmem:[%s1 + $0x7e0] sm:$0xff]
      %v3047 = vld [vmem:[%s1 + $0x7e8] sm:$0xff]
      %v3048 = vld [vmem:[%s1 + $0x7f0] sm:$0xff]
      %v3049 = vld [vmem:[%s1 + $0x7f8] sm:$0xff]
      %v3050 = vld [vmem:[%s1 + $0x800] sm:$0xff]
      %v3051 = vld [vmem:[%s1 + $0x808] sm:$0xff]
      %v3052 = vld [vmem:[%s1 + $0x810] sm:$0xff]
      %v3053 = vld [vmem:[%s1 + $0x818] sm:$0xff]
      %v3054 = vld [vmem:[%s1 + $0x820] sm:$0xff]
      %v3055 = vld [vmem:[%s1 + $0x828] sm:$0xff]
      %v3056 = vld [vmem:[%s1 + $0x830] sm:$0xff]
      %v3057 = vld [vmem:[%s1 + $0x838] sm:$0xff]
      %v3058 = vld [vmem:[%s1 + $0x840] sm:$0xff]
      %v3059 = vld [vmem:[%s1 + $0x848] sm:$0xff]
      %v3060 = vld [vmem:[%s1 + $0x850] sm:$0xff]
      %v3061 = vld [vmem:[%s1 + $0x858] sm:$0xff]
      %v3062 = vld [vmem:[%s1 + $0x860] sm:$0xff]
      %v3063 = vld [vmem:[%s1 + $0x868] sm:$0xff]
      %v3064 = vld [vmem:[%s1 + $0x870] sm:$0xff]
      %v3065 = vld [vmem:[%s1 + $0x878] sm:$0xff]
      %v3066 = vld [vmem:[%s1 + $0x880] sm:$0xff]
      %v3067 = vld [vmem:[%s1 + $0x888] sm:$0xff]
      %v3068 = vld [vmem:[%s1 + $0x890] sm:$0xff]
      %v3069 = vld [vmem:[%s1 + $0x898] sm:$0xff]
      %v3070 = vld [vmem:[%s1 + $0x8a0] sm:$0xff]
      %v3071 = vld [vmem:[%s1 + $0x8a8] sm:$0xff]
      %v3072 = vld [vmem:[%s1 + $0x8b0] sm:$0xff]
      %v3073 = vld [vmem:[%s1 + $0x8b8] sm:$0xff]
      %v3074 = vld [vmem:[%s1 + $0x8c0] sm:$0xff]
      %v3075 = vld [vmem:[%s1 + $0x8c8] sm:$0xff]
      %v3076 = vld [vmem:[%s1 + $0x8d0] sm:$0xff]
      %v3077 = vld [vmem:[%s1 + $0x8d8] sm:$0xff]
      %v3078 = vld [vmem:[%s1 + $0x8e0] sm:$0xff]
      %v3079 = vld [vmem:[%s1 + $0x8e8] sm:$0xff]
      %v3080 = vld [vmem:[%s1 + $0x8f0] sm:$0xff]
      %v3081 = vld [vmem:[%s1 + $0x8f8] sm:$0xff]
      %v3082 = vld [vmem:[%s1 + $0x900] sm:$0xff]
      %v3083 = vld [vmem:[%s1 + $0x908] sm:$0xff]
      %v3084 = vld [vmem:[%s1 + $0x910] sm:$0xff]
      %v3085 = vld [vmem:[%s1 + $0x918] sm:$0xff]
      %v3086 = vld [vmem:[%s1 + $0x920] sm:$0xff]
      %v3087 = vld [vmem:[%s1 + $0x928] sm:$0xff]
      %v3088 = vld [vmem:[%s1 + $0x930] sm:$0xff]
      %v3089 = vld [vmem:[%s1 + $0x938] sm:$0xff]
      %v3090 = vld [vmem:[%s1 + $0x940] sm:$0xff]
      %v3091 = vld [vmem:[%s1 + $0x948] sm:$0xff]
      %v3092 = vld [vmem:[%s1 + $0x950] sm:$0xff]
      %v3093 = vld [vmem:[%s1 + $0x958] sm:$0xff]
      %v3094 = vld [vmem:[%s1 + $0x960] sm:$0xff]
      %v3095 = vld [vmem:[%s1 + $0x968] sm:$0xff]
      %v3096 = vld [vmem:[%s1 + $0x970] sm:$0xff]
      %v3097 = vld [vmem:[%s1 + $0x978] sm:$0xff]
      %v3098 = vld [vmem:[%s1 + $0x980] sm:$0xff]
      %v3099 = vld [vmem:[%s1 + $0x988] sm:$0xff]
      %v3100 = vld [vmem:[%s1 + $0x990] sm:$0xff]
      %v3101 = vld [vmem:[%s1 + $0x998] sm:$0xff]
      %v3102 = vld [vmem:[%s1 + $0x9a0] sm:$0xff]
      %v3103 = vld [vmem:[%s1 + $0x9a8] sm:$0xff]
      %v3104 = vld [vmem:[%s1 + $0x9b0] sm:$0xff]
      %v3105 = vld [vmem:[%s1 + $0x9b8] sm:$0xff]
      %v3106 = vld [vmem:[%s1 + $0x9c0] sm:$0xff]
      %v3107 = vld [vmem:[%s1 + $0x9c8] sm:$0xff]
      %v3108 = vld [vmem:[%s1 + $0x9d0] sm:$0xff]
      %v3109 = vld [vmem:[%s1 + $0x9d8] sm:$0xff]
      %v3110 = vld [vmem:[%s1 + $0x9e0] sm:$0xff]
      %v3111 = vld [vmem:[%s1 + $0x9e8] sm:$0xff]
      %v3112 = vld [vmem:[%s1 + $0x9f0] sm:$0xff]
      %v3113 = vld [vmem:[%s1 + $0x9f8] sm:$0xff]
      %v3114 = vld [vmem:[%s1 + $0xa00] sm:$0xff]
      %v3115 = vld [vmem:[%s1 + $0xa08] sm:$0xff]
      %v3116 = vld [vmem:[%s1 + $0xa10] sm:$0xff]
      %v3117 = vld [vmem:[%s1 + $0xa18] sm:$0xff]
      %v3118 = vld [vmem:[%s1 + $0xa20] sm:$0xff]
      %v3119 = vld [vmem:[%s1 + $0xa28] sm:$0xff]
      %v3120 = vld [vmem:[%s1 + $0xa30] sm:$0xff]
      %v3121 = vld [vmem:[%s1 + $0xa38] sm:$0xff]
      %v3122 = vld [vmem:[%s1 + $0xa40] sm:$0xff]
      %v3123 = vld [vmem:[%s1 + $0xa48] sm:$0xff]
      %v3124 = vld [vmem:[%s1 + $0xa50] sm:$0xff]
      %v3125 = vld [vmem:[%s1 + $0xa58] sm:$0xff]
      %v3126 = vld [vmem:[%s1 + $0xa60] sm:$0xff]
      %v3127 = vld [vmem:[%s1 + $0xa68] sm:$0xff]
      %v3128 = vld [vmem:[%s1 + $0xa70] sm:$0xff]
      %v3129 = vld [vmem:[%s1 + $0xa78] sm:$0xff]
      %v3130 = vld [vmem:[%s1 + $0xa80] sm:$0xff]
      %v3131 = vld [vmem:[%s1 + $0xa88] sm:$0xff]
      %v3132 = vld [vmem:[%s1 + $0xa90] sm:$0xff]
      %v3133 = vld [vmem:[%s1 + $0xa98] sm:$0xff]
      %v3134 = vld [vmem:[%s1 + $0xaa0] sm:$0xff]
      %v3135 = vld [vmem:[%s1 + $0xaa8] sm:$0xff]
      %v3136 = vld [vmem:[%s1 + $0xab0] sm:$0xff]
      %v3137 = vld [vmem:[%s1 + $0xab8] sm:$0xff]
      %v3138 = vld [vmem:[%s1 + $0xac0] sm:$0xff]
      %v3139 = vld [vmem:[%s1 + $0xac8] sm:$0xff]
      %v3140 = vld [vmem:[%s1 + $0xad0] sm:$0xff]
      %v3141 = vld [vmem:[%s1 + $0xad8] sm:$0xff]
      %v3142 = vld [vmem:[%s1 + $0xae0] sm:$0xff]
      %v3143 = vld [vmem:[%s1 + $0xae8] sm:$0xff]
      %v3144 = vld [vmem:[%s1 + $0xaf0] sm:$0xff]
      %v3145 = vld [vmem:[%s1 + $0xaf8] sm:$0xff]
      %v3146 = vld [vmem:[%s1 + $0xb00] sm:$0xff]
      %v3147 = vld [vmem:[%s1 + $0xb08] sm:$0xff]
      %v3148 = vld [vmem:[%s1 + $0xb10] sm:$0xff]
      %v3149 = vld [vmem:[%s1 + $0xb18] sm:$0xff]
      %v3150 = vld [vmem:[%s1 + $0xb20] sm:$0xff]
      %v3151 = vld [vmem:[%s1 + $0xb28] sm:$0xff]
      %v3152 = vld [vmem:[%s1 + $0xb30] sm:$0xff]
      %v3153 = vld [vmem:[%s1 + $0xb38] sm:$0xff]
      %v3154 = vld [vmem:[%s1 + $0xb40] sm:$0xff]
      %v3155 = vld [vmem:[%s1 + $0xb48] sm:$0xff]
      %v3156 = vld [vmem:[%s1 + $0xb50] sm:$0xff]
      %v3157 = vld [vmem:[%s1 + $0xb58] sm:$0xff]
      %v3158 = vld [vmem:[%s1 + $0xb60] sm:$0xff]
      %v3159 = vld [vmem:[%s1 + $0xb68] sm:$0xff]
      %v3160 = vld [vmem:[%s1 + $0xb70] sm:$0xff]
      %v3161 = vld [vmem:[%s1 + $0xb78] sm:$0xff]
      %v3162 = vld [vmem:[%s1 + $0xb80] sm:$0xff]
      %v3163 = vld [vmem:[%s1 + $0xb88] sm:$0xff]
      %v3164 = vld [vmem:[%s1 + $0xb90] sm:$0xff]
      %v3165 = vld [vmem:[%s1 + $0xb98] sm:$0xff]
      %v3166 = vld [vmem:[%s1 + $0xba0] sm:$0xff]
      %v3167 = vld [vmem:[%s1 + $0xba8] sm:$0xff]
      %v3168 = vld [vmem:[%s1 + $0xbb0] sm:$0xff]
      %v3169 = vld [vmem:[%s1 + $0xbb8] sm:$0xff]
      %v3170 = vld [vmem:[%s1 + $0xbc0] sm:$0xff]
      %v3171 = vld [vmem:[%s1 + $0xbc8] sm:$0xff]
      %v3172 = vld [vmem:[%s1 + $0xbd0] sm:$0xff]
      %v3173 = vld [vmem:[%s1 + $0xbd8] sm:$0xff]
      %v3174 = vld [vmem:[%s1 + $0xbe0] sm:$0xff]
      %v3175 = vld [vmem:[%s1 + $0xbe8] sm:$0xff]
      %v3176 = vld [vmem:[%s1 + $0xbf0] sm:$0xff]
      %v3177 = vld [vmem:[%s1 + $0xbf8] sm:$0xff]
      %v3178 = vld [vmem:[%s1 + $0xc00] sm:$0xff]
      %v3179 = vld [vmem:[%s1 + $0xc08] sm:$0xff]
      %v3180 = vld [vmem:[%s1 + $0xc10] sm:$0xff]
      %v3181 = vld [vmem:[%s1 + $0xc18] sm:$0xff]
      %v3182 = vld [vmem:[%s1 + $0xc20] sm:$0xff]
      %v3183 = vld [vmem:[%s1 + $0xc28] sm:$0xff]
      %v3184 = vld [vmem:[%s1 + $0xc30] sm:$0xff]
      %v3185 = vld [vmem:[%s1 + $0xc38] sm:$0xff]
      %v3186 = vld [vmem:[%s1 + $0xc40] sm:$0xff]
      %v3187 = vld [vmem:[%s1 + $0xc48] sm:$0xff]
      %v3188 = vld [vmem:[%s1 + $0xc50] sm:$0xff]
      %v3189 = vld [vmem:[%s1 + $0xc58] sm:$0xff]
      %v3190 = vld [vmem:[%s1 + $0xc60] sm:$0xff]
      %v3191 = vld [vmem:[%s1 + $0xc68] sm:$0xff]
      %v3192 = vld [vmem:[%s1 + $0xc70] sm:$0xff]
      %v3193 = vld [vmem:[%s1 + $0xc78] sm:$0xff]
      %v3194 = vld [vmem:[%s1 + $0xc80] sm:$0xff]
      %v3195 = vld [vmem:[%s1 + $0xc88] sm:$0xff]
      %v3196 = vld [vmem:[%s1 + $0xc90] sm:$0xff]
      %v3197 = vld [vmem:[%s1 + $0xc98] sm:$0xff]
      %v3198 = vld [vmem:[%s1 + $0xca0] sm:$0xff]
      %v3199 = vld [vmem:[%s1 + $0xca8] sm:$0xff]
      %v3200 = vld [vmem:[%s1 + $0xcb0] sm:$0xff]
      %v3201 = vld [vmem:[%s1 + $0xcb8] sm:$0xff]
      %v3202 = vld [vmem:[%s1 + $0xcc0] sm:$0xff]
      %v3203 = vld [vmem:[%s1 + $0xcc8] sm:$0xff]
      %v3204 = vld [vmem:[%s1 + $0xcd0] sm:$0xff]
      %v3205 = vld [vmem:[%s1 + $0xcd8] sm:$0xff]
      %v3206 = vld [vmem:[%s1 + $0xce0] sm:$0xff]
      %v3207 = vld [vmem:[%s1 + $0xce8] sm:$0xff]
      %v3208 = vld [vmem:[%s1 + $0xcf0] sm:$0xff]
      %v3209 = vld [vmem:[%s1 + $0xcf8] sm:$0xff]
      %v3210 = vld [vmem:[%s1 + $0xd00] sm:$0xff]
      %v3211 = vld [vmem:[%s1 + $0xd08] sm:$0xff]
      %v3212 = vld [vmem:[%s1 + $0xd10] sm:$0xff]
      %v3213 = vld [vmem:[%s1 + $0xd18] sm:$0xff]
      %v3214 = vld [vmem:[%s1 + $0xd20] sm:$0xff]
      %v3215 = vld [vmem:[%s1 + $0xd28] sm:$0xff]
      %v3216 = vld [vmem:[%s1 + $0xd30] sm:$0xff]
      %v3217 = vld [vmem:[%s1 + $0xd38] sm:$0xff]
      %v3218 = vld [vmem:[%s1 + $0xd40] sm:$0xff]
      %v3219 = vld [vmem:[%s1 + $0xd48] sm:$0xff]
      %v3220 = vld [vmem:[%s1 + $0xd50] sm:$0xff]
      %v3221 = vld [vmem:[%s1 + $0xd58] sm:$0xff]
      %v3222 = vld [vmem:[%s1 + $0xd60] sm:$0xff]
      %v3223 = vld [vmem:[%s1 + $0xd68] sm:$0xff]
      %v3224 = vld [vmem:[%s1 + $0xd70] sm:$0xff]
      %v3225 = vld [vmem:[%s1 + $0xd78] sm:$0xff]
      %v3226 = vld [vmem:[%s1 + $0xd80] sm:$0xff]
      %v3227 = vld [vmem:[%s1 + $0xd88] sm:$0xff]
      %v3228 = vld [vmem:[%s1 + $0xd90] sm:$0xff]
      %v3229 = vld [vmem:[%s1 + $0xd98] sm:$0xff]
      %v3230 = vld [vmem:[%s1 + $0xda0] sm:$0xff]
      %v3231 = vld [vmem:[%s1 + $0xda8] sm:$0xff]
      %v3232 = vld [vmem:[%s1 + $0xdb0] sm:$0xff]
      %v3233 = vld [vmem:[%s1 + $0xdb8] sm:$0xff]
      %v3234 = vld [vmem:[%s1 + $0xdc0] sm:$0xff]
      %v3235 = vld [vmem:[%s1 + $0xdc8] sm:$0xff]
      %v3236 = vld [vmem:[%s1 + $0xdd0] sm:$0xff]
      %v3237 = vld [vmem:[%s1 + $0xdd8] sm:$0xff]
      %v3238 = vld [vmem:[%s1 + $0xde0] sm:$0xff]
      %v3239 = vld [vmem:[%s1 + $0xde8] sm:$0xff]
      %v3240 = vld [vmem:[%s1 + $0xdf0] sm:$0xff]
      %v3241 = vld [vmem:[%s1 + $0xdf8] sm:$0xff]
      %v3242 = vld [vmem:[%s1 + $0xe00] sm:$0xff]
      %v3243 = vld [vmem:[%s1 + $0xe08] sm:$0xff]
      %v3244 = vld [vmem:[%s1 + $0xe10] sm:$0xff]
      %v3245 = vld [vmem:[%s1 + $0xe18] sm:$0xff]
      %v3246 = vld [vmem:[%s1 + $0xe20] sm:$0xff]
      %v3247 = vld [vmem:[%s1 + $0xe28] sm:$0xff]
      %v3248 = vld [vmem:[%s1 + $0xe30] sm:$0xff]
      %v3249 = vld [vmem:[%s1 + $0xe38] sm:$0xff]
      %v3250 = vld [vmem:[%s1 + $0xe40] sm:$0xff]
      %v3251 = vld [vmem:[%s1 + $0xe48] sm:$0xff]
      %v3252 = vld [vmem:[%s1 + $0xe50] sm:$0xff]
      %v3253 = vld [vmem:[%s1 + $0xe58] sm:$0xff]
      %v3254 = vld [vmem:[%s1 + $0xe60] sm:$0xff]
      %v3255 = vld [vmem:[%s1 + $0xe68] sm:$0xff]
      %v3256 = vld [vmem:[%s1 + $0xe70] sm:$0xff]
      %v3257 = vld [vmem:[%s1 + $0xe78] sm:$0xff]
      %v3258 = vld [vmem:[%s1 + $0xe80] sm:$0xff]
      %v3259 = vld [vmem:[%s1 + $0xe88] sm:$0xff]
      %v3260 = vld [vmem:[%s1 + $0xe90] sm:$0xff]
      %v3261 = vld [vmem:[%s1 + $0xe98] sm:$0xff]
      %v3262 = vld [vmem:[%s1 + $0xea0] sm:$0xff]
      %v3263 = vld [vmem:[%s1 + $0xea8] sm:$0xff]
      %v3264 = vld [vmem:[%s1 + $0xeb0] sm:$0xff]
      %v3265 = vld [vmem:[%s1 + $0xeb8] sm:$0xff]
      %v3266 = vld [vmem:[%s1 + $0xec0] sm:$0xff]
      %v3267 = vld [vmem:[%s1 + $0xec8] sm:$0xff]
      %v3268 = vld [vmem:[%s1 + $0xed0] sm:$0xff]
      %v3269 = vld [vmem:[%s1 + $0xed8] sm:$0xff]
      %v3270 = vld [vmem:[%s1 + $0xee0] sm:$0xff]
      %v3271 = vld [vmem:[%s1 + $0xee8] sm:$0xff]
      %v3272 = vld [vmem:[%s1 + $0xef0] sm:$0xff]
      %v3273 = vld [vmem:[%s1 + $0xef8] sm:$0xff]
      %v3274 = vld [vmem:[%s1 + $0xf00] sm:$0xff]
      %v3275 = vld [vmem:[%s1 + $0xf08] sm:$0xff]
      %v3276 = vld [vmem:[%s1 + $0xf10] sm:$0xff]
      %v3277 = vld [vmem:[%s1 + $0xf18] sm:$0xff]
      %v3278 = vld [vmem:[%s1 + $0xf20] sm:$0xff]
      %v3279 = vld [vmem:[%s1 + $0xf28] sm:$0xff]
      %v3280 = vld [vmem:[%s1 + $0xf30] sm:$0xff]
      %v3281 = vld [vmem:[%s1 + $0xf38] sm:$0xff]
      %v3282 = vld [vmem:[%s1 + $0xf40] sm:$0xff]
      %v3283 = vld [vmem:[%s1 + $0xf48] sm:$0xff]
      %v3284 = vld [vmem:[%s1 + $0xf50] sm:$0xff]
      %v3285 = vld [vmem:[%s1 + $0xf58] sm:$0xff]
      %v3286 = vld [vmem:[%s1 + $0xf60] sm:$0xff]
      %v3287 = vld [vmem:[%s1 + $0xf68] sm:$0xff]
      %v3288 = vld [vmem:[%s1 + $0xf70] sm:$0xff]
      %v3289 = vld [vmem:[%s1 + $0xf78] sm:$0xff]
      %v3290 = vld [vmem:[%s1 + $0xf80] sm:$0xff]
      %v3291 = vld [vmem:[%s1 + $0xf88] sm:$0xff]
      %v3292 = vld [vmem:[%s1 + $0xf90] sm:$0xff]
      %v3293 = vld [vmem:[%s1 + $0xf98] sm:$0xff]
      %v3294 = vld [vmem:[%s1 + $0xfa0] sm:$0xff]
      %v3295 = vld [vmem:[%s1 + $0xfa8] sm:$0xff]
      %v3296 = vld [vmem:[%s1 + $0xfb0] sm:$0xff]
      %v3297 = vld [vmem:[%s1 + $0xfb8] sm:$0xff]
      %v3298 = vld [vmem:[%s1 + $0xfc0] sm:$0xff]
      %v3299 = vld [vmem:[%s1 + $0xfc8] sm:$0xff]
      %v3300 = vld [vmem:[%s1 + $0xfd0] sm:$0xff]
      %v3301 = vld [vmem:[%s1 + $0xfd8] sm:$0xff]
      %v3302 = vld [vmem:[%s1 + $0xfe0] sm:$0xff]
      %v3303 = vld [vmem:[%s1 + $0xfe8] sm:$0xff]
      %v3304 = vld [vmem:[%s1 + $0xff0] sm:$0xff]
      %v3305 = vld [vmem:[%s1 + $0xff8] sm:$0xff]
      %v3306 = vld [vmem:[%s1 + $0x1000] sm:$0xff]
      %v3307 = vld [vmem:[%s1 + $0x1008] sm:$0xff]
      %v3308 = vld [vmem:[%s1 + $0x1010] sm:$0xff]
      %v3309 = vld [vmem:[%s1 + $0x1018] sm:$0xff]
      %v3310 = vld [vmem:[%s1 + $0x1020] sm:$0xff]
      %v3311 = vld [vmem:[%s1 + $0x1028] sm:$0xff]
      %v3312 = vld [vmem:[%s1 + $0x1030] sm:$0xff]
      %v3313 = vld [vmem:[%s1 + $0x1038] sm:$0xff]
      %v3314 = vld [vmem:[%s1 + $0x1040] sm:$0xff]
      %v3315 = vld [vmem:[%s1 + $0x1048] sm:$0xff]
      %v3316 = vld [vmem:[%s1 + $0x1050] sm:$0xff]
      %v3317 = vld [vmem:[%s1 + $0x1058] sm:$0xff]
      %v3318 = vld [vmem:[%s1 + $0x1060] sm:$0xff]
      %v3319 = vld [vmem:[%s1 + $0x1068] sm:$0xff]
      %v3320 = vld [vmem:[%s1 + $0x1070] sm:$0xff]
      %v3321 = vld [vmem:[%s1 + $0x1078] sm:$0xff]
      %v3322 = vld [vmem:[%s1 + $0x1080] sm:$0xff]
      %v3323 = vld [vmem:[%s1 + $0x1088] sm:$0xff]
      %v3324 = vld [vmem:[%s1 + $0x1090] sm:$0xff]
      %v3325 = vld [vmem:[%s1 + $0x1098] sm:$0xff]
      %v3326 = vld [vmem:[%s1 + $0x10a0] sm:$0xff]
      %v3327 = vld [vmem:[%s1 + $0x10a8] sm:$0xff]
      %v3328 = vld [vmem:[%s1 + $0x10b0] sm:$0xff]
      %v3329 = vld [vmem:[%s1 + $0x10b8] sm:$0xff]
      %v3330 = vld [vmem:[%s1 + $0x10c0] sm:$0xff]
      %v3331 = vld [vmem:[%s1 + $0x10c8] sm:$0xff]
      %v3332 = vld [vmem:[%s1 + $0x10d0] sm:$0xff]
      %v3333 = vld [vmem:[%s1 + $0x10d8] sm:$0xff]
      %v3334 = vld [vmem:[%s1 + $0x10e0] sm:$0xff]
      %v3335 = vld [vmem:[%s1 + $0x10e8] sm:$0xff]
      %v3336 = vld [vmem:[%s1 + $0x10f0] sm:$0xff]
      %v3337 = vld [vmem:[%s1 + $0x10f8] sm:$0xff]
      %v3338 = vld [vmem:[%s1 + $0x1100] sm:$0xff]
      %v3339 = vld [vmem:[%s1 + $0x1108] sm:$0xff]
      %v3340 = vld [vmem:[%s1 + $0x1110] sm:$0xff]
      %v3341 = vld [vmem:[%s1 + $0x1118] sm:$0xff]
      %v3342 = vld [vmem:[%s1 + $0x1120] sm:$0xff]
      %v3343 = vld [vmem:[%s1 + $0x1128] sm:$0xff]
      %v3344 = vld [vmem:[%s1 + $0x1130] sm:$0xff]
      %v3345 = vld [vmem:[%s1 + $0x1138] sm:$0xff]
      %v3346 = vld [vmem:[%s1 + $0x1140] sm:$0xff]
      %v3347 = vld [vmem:[%s1 + $0x1148] sm:$0xff]
      %v3348 = vld [vmem:[%s1 + $0x1150] sm:$0xff]
      %v3349 = vld [vmem:[%s1 + $0x1158] sm:$0xff]
      %v3350 = vld [vmem:[%s1 + $0x1160] sm:$0xff]
      %v3351 = vld [vmem:[%s1 + $0x1168] sm:$0xff]
      %v3352 = vld [vmem:[%s1 + $0x1170] sm:$0xff]
      %v3353 = vld [vmem:[%s1 + $0x1178] sm:$0xff]
      %v3354 = vld [vmem:[%s1 + $0x1180] sm:$0xff]
      %v3355 = vld [vmem:[%s1 + $0x1188] sm:$0xff]
      %v3356 = vld [vmem:[%s1 + $0x1190] sm:$0xff]
      %v3357 = vld [vmem:[%s1 + $0x1198] sm:$0xff]
      %v3358 = vld [vmem:[%s1 + $0x11a0] sm:$0xff]
      %v3359 = vld [vmem:[%s1 + $0x11a8] sm:$0xff]
      %v3360 = vld [vmem:[%s1 + $0x11b0] sm:$0xff]
      %v3361 = vld [vmem:[%s1 + $0x11b8] sm:$0xff]
      %v3362 = vld [vmem:[%s1 + $0x11c0] sm:$0xff]
      %v3363 = vld [vmem:[%s1 + $0x11c8] sm:$0xff]
      %v3364 = vld [vmem:[%s1 + $0x11d0] sm:$0xff]
      %v3365 = vld [vmem:[%s1 + $0x11d8] sm:$0xff]
      %v3366 = vld [vmem:[%s1 + $0x11e0] sm:$0xff]
      %v3367 = vld [vmem:[%s1 + $0x11e8] sm:$0xff]
      %v3368 = vld [vmem:[%s1 + $0x11f0] sm:$0xff]
      %v3369 = vld [vmem:[%s1 + $0x11f8] sm:$0xff]
      %v3370 = vld [vmem:[%s1 + $0x1200] sm:$0xff]
      %v3371 = vld [vmem:[%s1 + $0x1208] sm:$0xff]
      %v3372 = vld [vmem:[%s1 + $0x1210] sm:$0xff]
      %v3373 = vld [vmem:[%s1 + $0x1218] sm:$0xff]
      %v3374 = vld [vmem:[%s1 + $0x1220] sm:$0xff]
      %v3375 = vld [vmem:[%s1 + $0x1228] sm:$0xff]
      %v3376 = vld [vmem:[%s1 + $0x1230] sm:$0xff]
      %v3377 = vld [vmem:[%s1 + $0x1238] sm:$0xff]
      %v3378 = vld [vmem:[%s1 + $0x1240] sm:$0xff]
      %v3379 = vld [vmem:[%s1 + $0x1248] sm:$0xff]
      %v3380 = vld [vmem:[%s1 + $0x1250] sm:$0xff]
      %v3381 = vld [vmem:[%s1 + $0x1258] sm:$0xff]
      %v3382 = vld [vmem:[%s1 + $0x1260] sm:$0xff]
      %v3383 = vld [vmem:[%s1 + $0x1268] sm:$0xff]
      %v3384 = vld [vmem:[%s1 + $0x1270] sm:$0xff]
      %v3385 = vld [vmem:[%s1 + $0x1278] sm:$0xff]
      %v3386 = vld [vmem:[%s1 + $0x1280] sm:$0xff]
      %v3387 = vld [vmem:[%s1 + $0x1288] sm:$0xff]
      %v3388 = vld [vmem:[%s1 + $0x1290] sm:$0xff]
      %v3389 = vld [vmem:[%s1 + $0x1298] sm:$0xff]
      %v3390 = vld [vmem:[%s1 + $0x12a0] sm:$0xff]
      %v3391 = vld [vmem:[%s1 + $0x12a8] sm:$0xff]
      %v3392 = vld [vmem:[%s1 + $0x12b0] sm:$0xff]
      %v3393 = vld [vmem:[%s1 + $0x12b8] sm:$0xff]
      %v3394 = vpack.c.b16 %v2724, %v2714
      %v3395 = vpack.c.b16 %v2725, %v2715
      %v3396 = vpack.c.b16 %v2726, %v2716
      %v3397 = vpack.c.b16 %v2727, %v2717
      %v3398 = vpack.c.b16 %v2728, %v2718
      %v3399 = vpack.c.b16 %v2729, %v2719
      %v3400 = vpack.c.b16 %v2730, %v2720
      %v3401 = vpack.c.b16 %v2731, %v2721
      %v3402 = vpack.c.b16 %v2732, %v2722
      %v3403 = vpack.c.b16 %v2733, %v2723
      %v3404 = vpack.c.b16 %v2744, %v2734
      %v3405 = vpack.c.b16 %v2745, %v2735
      %v3406 = vpack.c.b16 %v2746, %v2736
      %v3407 = vpack.c.b16 %v2747, %v2737
      %v3408 = vpack.c.b16 %v2748, %v2738
      %v3409 = vpack.c.b16 %v2749, %v2739
      %v3410 = vpack.c.b16 %v2750, %v2740
      %v3411 = vpack.c.b16 %v2751, %v2741
      %v3412 = vpack.c.b16 %v2752, %v2742
      %v3413 = vpack.c.b16 %v2753, %v2743
      %v3414 = vpack.c.b16 %v2764, %v2754
      %v3415 = vpack.c.b16 %v2765, %v2755
      %v3416 = vpack.c.b16 %v2766, %v2756
      %v3417 = vpack.c.b16 %v2767, %v2757
      %v3418 = vpack.c.b16 %v2768, %v2758
      %v3419 = vpack.c.b16 %v2769, %v2759
      %v3420 = vpack.c.b16 %v2770, %v2760
      %v3421 = vpack.c.b16 %v2771, %v2761
      %v3422 = vpack.c.b16 %v2772, %v2762
      %v3423 = vpack.c.b16 %v2773, %v2763
      %v3424 = vpack.c.b16 %v2784, %v2774
      %v3425 = vpack.c.b16 %v2785, %v2775
      %v3426 = vpack.c.b16 %v2786, %v2776
      %v3427 = vpack.c.b16 %v2787, %v2777
      %v3428 = vpack.c.b16 %v2788, %v2778
      %v3429 = vpack.c.b16 %v2789, %v2779
      %v3430 = vpack.c.b16 %v2790, %v2780
      %v3431 = vpack.c.b16 %v2791, %v2781
      %v3432 = vpack.c.b16 %v2792, %v2782
      %v3433 = vpack.c.b16 %v2793, %v2783
      %v4070 = vunpack.c.l.b16 %v2794
      %v4071 = vunpack.c.h.b16 %v2794
      %v4072 = vunpack.c.l.b16 %v2795
      %v4073 = vunpack.c.h.b16 %v2795
      %v4074 = vunpack.c.l.b16 %v2796
      %v4075 = vunpack.c.h.b16 %v2796
      %v4076 = vunpack.c.l.b16 %v2797
      %v4077 = vunpack.c.h.b16 %v2797
      %v4078 = vunpack.c.l.b16 %v2798
      %v4079 = vunpack.c.h.b16 %v2798
      %v4080 = vunpack.c.l.b16 %v2799
      %v4081 = vunpack.c.h.b16 %v2799
      %v4082 = vunpack.c.l.b16 %v2800
      %v4083 = vunpack.c.h.b16 %v2800
      %v4084 = vunpack.c.l.b16 %v2801
      %v4085 = vunpack.c.h.b16 %v2801
      %v4086 = vunpack.c.l.b16 %v2802
      %v4087 = vunpack.c.h.b16 %v2802
      %v4088 = vunpack.c.l.b16 %v2803
      %v4089 = vunpack.c.h.b16 %v2803
      %v4090 = vunpack.c.l.b16 %v2804
      %v4091 = vunpack.c.h.b16 %v2804
      %v4092 = vunpack.c.l.b16 %v2805
      %v4093 = vunpack.c.h.b16 %v2805
      %v4094 = vunpack.c.l.b16 %v2806
      %v4095 = vunpack.c.h.b16 %v2806
      %v4096 = vunpack.c.l.b16 %v2807
      %v4097 = vunpack.c.h.b16 %v2807
      %v4098 = vunpack.c.l.b16 %v2808
      %v4099 = vunpack.c.h.b16 %v2808
      %v4100 = vunpack.c.l.b16 %v2809
      %v4101 = vunpack.c.h.b16 %v2809
      %v4102 = vunpack.c.l.b16 %v2810
      %v4103 = vunpack.c.h.b16 %v2810
      %v4104 = vunpack.c.l.b16 %v2811
      %v4105 = vunpack.c.h.b16 %v2811
      %v4106 = vunpack.c.l.b16 %v2812
      %v4107 = vunpack.c.h.b16 %v2812
      %v4108 = vunpack.c.l.b16 %v2813
      %v4109 = vunpack.c.h.b16 %v2813
      %v4110 = vunpack.c.l.b16 %v2814
      %v4111 = vunpack.c.h.b16 %v2814
      %v4112 = vunpack.c.l.b16 %v2815
      %v4113 = vunpack.c.h.b16 %v2815
      %v4114 = vunpack.c.l.b16 %v2816
      %v4115 = vunpack.c.h.b16 %v2816
      %v4116 = vunpack.c.l.b16 %v2817
      %v4117 = vunpack.c.h.b16 %v2817
      %v4118 = vunpack.c.l.b16 %v2818
      %v4119 = vunpack.c.h.b16 %v2818
      %v4120 = vunpack.c.l.b16 %v2819
      %v4121 = vunpack.c.h.b16 %v2819
      %v4122 = vunpack.c.l.b16 %v2820
      %v4123 = vunpack.c.h.b16 %v2820
      %v4124 = vunpack.c.l.b16 %v2821
      %v4125 = vunpack.c.h.b16 %v2821
      %v4126 = vunpack.c.l.b16 %v2822
      %v4127 = vunpack.c.h.b16 %v2822
      %v4128 = vunpack.c.l.b16 %v2823
      %v4129 = vunpack.c.h.b16 %v2823
      %v4130 = vunpack.c.l.b16 %v2824
      %v4131 = vunpack.c.h.b16 %v2824
      %v4132 = vunpack.c.l.b16 %v2825
      %v4133 = vunpack.c.h.b16 %v2825
      %v4134 = vunpack.c.l.b16 %v2826
      %v4135 = vunpack.c.h.b16 %v2826
      %v4136 = vunpack.c.l.b16 %v2827
      %v4137 = vunpack.c.h.b16 %v2827
      %v4138 = vunpack.c.l.b16 %v2828
      %v4139 = vunpack.c.h.b16 %v2828
      %v4140 = vunpack.c.l.b16 %v2829
      %v4141 = vunpack.c.h.b16 %v2829
      %v4142 = vunpack.c.l.b16 %v2830
      %v4143 = vunpack.c.h.b16 %v2830
      %v4144 = vunpack.c.l.b16 %v2831
      %v4145 = vunpack.c.h.b16 %v2831
      %v4146 = vunpack.c.l.b16 %v2832
      %v4147 = vunpack.c.h.b16 %v2832
      %v4148 = vunpack.c.l.b16 %v2833
      %v4149 = vunpack.c.h.b16 %v2833
      %v4150 = vunpack.c.l.b16 %v2834
      %v4151 = vunpack.c.h.b16 %v2834
      %v4152 = vunpack.c.l.b16 %v2835
      %v4153 = vunpack.c.h.b16 %v2835
      %v4154 = vunpack.c.l.b16 %v2836
      %v4155 = vunpack.c.h.b16 %v2836
      %v4156 = vunpack.c.l.b16 %v2837
      %v4157 = vunpack.c.h.b16 %v2837
      %v4158 = vunpack.c.l.b16 %v2838
      %v4159 = vunpack.c.h.b16 %v2838
      %v4160 = vunpack.c.l.b16 %v2839
      %v4161 = vunpack.c.h.b16 %v2839
      %v4162 = vunpack.c.l.b16 %v2840
      %v4163 = vunpack.c.h.b16 %v2840
      %v4164 = vunpack.c.l.b16 %v2841
      %v4165 = vunpack.c.h.b16 %v2841
      %v4166 = vunpack.c.l.b16 %v2842
      %v4167 = vunpack.c.h.b16 %v2842
      %v4168 = vunpack.c.l.b16 %v2843
      %v4169 = vunpack.c.h.b16 %v2843
      %v4170 = vunpack.c.l.b16 %v2844
      %v4171 = vunpack.c.h.b16 %v2844
      %v4172 = vunpack.c.l.b16 %v2845
      %v4173 = vunpack.c.h.b16 %v2845
      %v4174 = vunpack.c.l.b16 %v2846
      %v4175 = vunpack.c.h.b16 %v2846
      %v4176 = vunpack.c.l.b16 %v2847
      %v4177 = vunpack.c.h.b16 %v2847
      %v4178 = vunpack.c.l.b16 %v2848
      %v4179 = vunpack.c.h.b16 %v2848
      %v4180 = vunpack.c.l.b16 %v2849
      %v4181 = vunpack.c.h.b16 %v2849
      %v4182 = vunpack.c.l.b16 %v2850
      %v4183 = vunpack.c.h.b16 %v2850
      %v4184 = vunpack.c.l.b16 %v2851
      %v4185 = vunpack.c.h.b16 %v2851
      %v4186 = vunpack.c.l.b16 %v2852
      %v4187 = vunpack.c.h.b16 %v2852
      %v4188 = vunpack.c.l.b16 %v2853
      %v4189 = vunpack.c.h.b16 %v2853
      %v4190 = vunpack.c.l.b16 %v2854
      %v4191 = vunpack.c.h.b16 %v2854
      %v4192 = vunpack.c.l.b16 %v2855
      %v4193 = vunpack.c.h.b16 %v2855
      %v4194 = vunpack.c.l.b16 %v2856
      %v4195 = vunpack.c.h.b16 %v2856
      %v4196 = vunpack.c.l.b16 %v2857
      %v4197 = vunpack.c.h.b16 %v2857
      %v4198 = vunpack.c.l.b16 %v2858
      %v4199 = vunpack.c.h.b16 %v2858
      %v4200 = vunpack.c.l.b16 %v2859
      %v4201 = vunpack.c.h.b16 %v2859
      %v4202 = vunpack.c.l.b16 %v2860
      %v4203 = vunpack.c.h.b16 %v2860
      %v4204 = vunpack.c.l.b16 %v2861
      %v4205 = vunpack.c.h.b16 %v2861
      %v4206 = vunpack.c.l.b16 %v2862
      %v4207 = vunpack.c.h.b16 %v2862
      %v4208 = vunpack.c.l.b16 %v2863
      %v4209 = vunpack.c.h.b16 %v2863
      %v4210 = vunpack.c.l.b16 %v2864
      %v4211 = vunpack.c.h.b16 %v2864
      %v4212 = vunpack.c.l.b16 %v2865
      %v4213 = vunpack.c.h.b16 %v2865
      %v4214 = vunpack.c.l.b16 %v2866
      %v4215 = vunpack.c.h.b16 %v2866
      %v4216 = vunpack.c.l.b16 %v2867
      %v4217 = vunpack.c.h.b16 %v2867
      %v4218 = vunpack.c.l.b16 %v2868
      %v4219 = vunpack.c.h.b16 %v2868
      %v4220 = vunpack.c.l.b16 %v2869
      %v4221 = vunpack.c.h.b16 %v2869
      %v4222 = vunpack.c.l.b16 %v2870
      %v4223 = vunpack.c.h.b16 %v2870
      %v4224 = vunpack.c.l.b16 %v2871
      %v4225 = vunpack.c.h.b16 %v2871
      %v4226 = vunpack.c.l.b16 %v2872
      %v4227 = vunpack.c.h.b16 %v2872
      %v4228 = vunpack.c.l.b16 %v2873
      %v4229 = vunpack.c.h.b16 %v2873
      %v4230 = vunpack.c.l.b16 %v2874
      %v4231 = vunpack.c.h.b16 %v2874
      %v4232 = vunpack.c.l.b16 %v2875
      %v4233 = vunpack.c.h.b16 %v2875
      %v4234 = vunpack.c.l.b16 %v2876
      %v4235 = vunpack.c.h.b16 %v2876
      %v4236 = vunpack.c.l.b16 %v2877
      %v4237 = vunpack.c.h.b16 %v2877
      %v4238 = vunpack.c.l.b16 %v2878
      %v4239 = vunpack.c.h.b16 %v2878
      %v4240 = vunpack.c.l.b16 %v2879
      %v4241 = vunpack.c.h.b16 %v2879
      %v4242 = vunpack.c.l.b16 %v2880
      %v4243 = vunpack.c.h.b16 %v2880
      %v4244 = vunpack.c.l.b16 %v2881
      %v4245 = vunpack.c.h.b16 %v2881
      %v4246 = vunpack.c.l.b16 %v2882
      %v4247 = vunpack.c.h.b16 %v2882
      %v4248 = vunpack.c.l.b16 %v2883
      %v4249 = vunpack.c.h.b16 %v2883
      %v4250 = vunpack.c.l.b16 %v2884
      %v4251 = vunpack.c.h.b16 %v2884
      %v4252 = vunpack.c.l.b16 %v2885
      %v4253 = vunpack.c.h.b16 %v2885
      %v4254 = vunpack.c.l.b16 %v2886
      %v4255 = vunpack.c.h.b16 %v2886
      %v4256 = vunpack.c.l.b16 %v2887
      %v4257 = vunpack.c.h.b16 %v2887
      %v4258 = vunpack.c.l.b16 %v2888
      %v4259 = vunpack.c.h.b16 %v2888
      %v4260 = vunpack.c.l.b16 %v2889
      %v4261 = vunpack.c.h.b16 %v2889
      %v4262 = vunpack.c.l.b16 %v2890
      %v4263 = vunpack.c.h.b16 %v2890
      %v4264 = vunpack.c.l.b16 %v2891
      %v4265 = vunpack.c.h.b16 %v2891
      %v4266 = vunpack.c.l.b16 %v2892
      %v4267 = vunpack.c.h.b16 %v2892
      %v4268 = vunpack.c.l.b16 %v2893
      %v4269 = vunpack.c.h.b16 %v2893
      %v4270 = vunpack.c.l.b16 %v2894
      %v4271 = vunpack.c.h.b16 %v2894
      %v4272 = vunpack.c.l.b16 %v2895
      %v4273 = vunpack.c.h.b16 %v2895
      %v4274 = vunpack.c.l.b16 %v2896
      %v4275 = vunpack.c.h.b16 %v2896
      %v4276 = vunpack.c.l.b16 %v2897
      %v4277 = vunpack.c.h.b16 %v2897
      %v4278 = vunpack.c.l.b16 %v2898
      %v4279 = vunpack.c.h.b16 %v2898
      %v4280 = vunpack.c.l.b16 %v2899
      %v4281 = vunpack.c.h.b16 %v2899
      %v4282 = vunpack.c.l.b16 %v2900
      %v4283 = vunpack.c.h.b16 %v2900
      %v4284 = vunpack.c.l.b16 %v2901
      %v4285 = vunpack.c.h.b16 %v2901
      %v4286 = vunpack.c.l.b16 %v2902
      %v4287 = vunpack.c.h.b16 %v2902
      %v4288 = vunpack.c.l.b16 %v2903
      %v4289 = vunpack.c.h.b16 %v2903
      %v4290 = vunpack.c.l.b16 %v2904
      %v4291 = vunpack.c.h.b16 %v2904
      %v4292 = vunpack.c.l.b16 %v2905
      %v4293 = vunpack.c.h.b16 %v2905
      %v4294 = vunpack.c.l.b16 %v2906
      %v4295 = vunpack.c.h.b16 %v2906
      %v4296 = vunpack.c.l.b16 %v2907
      %v4297 = vunpack.c.h.b16 %v2907
      %v4298 = vunpack.c.l.b16 %v2908
      %v4299 = vunpack.c.h.b16 %v2908
      %v4300 = vunpack.c.l.b16 %v2909
      %v4301 = vunpack.c.h.b16 %v2909
      %v4302 = vunpack.c.l.b16 %v2910
      %v4303 = vunpack.c.h.b16 %v2910
      %v4304 = vunpack.c.l.b16 %v2911
      %v4305 = vunpack.c.h.b16 %v2911
      %v4306 = vunpack.c.l.b16 %v2912
      %v4307 = vunpack.c.h.b16 %v2912
      %v4308 = vunpack.c.l.b16 %v2913
      %v4309 = vunpack.c.h.b16 %v2913
      %v4310 = vunpack.c.l.b16 %v2914
      %v4311 = vunpack.c.h.b16 %v2914
      %v4312 = vunpack.c.l.b16 %v2915
      %v4313 = vunpack.c.h.b16 %v2915
      %v4314 = vunpack.c.l.b16 %v2916
      %v4315 = vunpack.c.h.b16 %v2916
      %v4316 = vunpack.c.l.b16 %v2917
      %v4317 = vunpack.c.h.b16 %v2917
      %v4318 = vunpack.c.l.b16 %v2918
      %v4319 = vunpack.c.h.b16 %v2918
      %v4320 = vunpack.c.l.b16 %v2919
      %v4321 = vunpack.c.h.b16 %v2919
      %v4322 = vunpack.c.l.b16 %v2920
      %v4323 = vunpack.c.h.b16 %v2920
      %v4324 = vunpack.c.l.b16 %v2921
      %v4325 = vunpack.c.h.b16 %v2921
      %v4326 = vunpack.c.l.b16 %v2922
      %v4327 = vunpack.c.h.b16 %v2922
      %v4328 = vunpack.c.l.b16 %v2923
      %v4329 = vunpack.c.h.b16 %v2923
      %v4330 = vunpack.c.l.b16 %v2924
      %v4331 = vunpack.c.h.b16 %v2924
      %v4332 = vunpack.c.l.b16 %v2925
      %v4333 = vunpack.c.h.b16 %v2925
      %v4334 = vunpack.c.l.b16 %v2926
      %v4335 = vunpack.c.h.b16 %v2926
      %v4336 = vunpack.c.l.b16 %v2927
      %v4337 = vunpack.c.h.b16 %v2927
      %v4338 = vunpack.c.l.b16 %v2928
      %v4339 = vunpack.c.h.b16 %v2928
      %v4340 = vunpack.c.l.b16 %v2929
      %v4341 = vunpack.c.h.b16 %v2929
      %v4342 = vunpack.c.l.b16 %v2930
      %v4343 = vunpack.c.h.b16 %v2930
      %v4344 = vunpack.c.l.b16 %v2931
      %v4345 = vunpack.c.h.b16 %v2931
      %v4346 = vunpack.c.l.b16 %v2932
      %v4347 = vunpack.c.h.b16 %v2932
      %v4348 = vunpack.c.l.b16 %v2933
      %v4349 = vunpack.c.h.b16 %v2933
      %v4350 = vunpack.c.l.b16 %v2934
      %v4351 = vunpack.c.h.b16 %v2934
      %v4352 = vunpack.c.l.b16 %v2935
      %v4353 = vunpack.c.h.b16 %v2935
      %v4354 = vunpack.c.l.b16 %v2936
      %v4355 = vunpack.c.h.b16 %v2936
      %v4356 = vunpack.c.l.b16 %v2937
      %v4357 = vunpack.c.h.b16 %v2937
      %v4358 = vunpack.c.l.b16 %v2938
      %v4359 = vunpack.c.h.b16 %v2938
      %v4360 = vunpack.c.l.b16 %v2939
      %v4361 = vunpack.c.h.b16 %v2939
      %v4362 = vunpack.c.l.b16 %v2940
      %v4363 = vunpack.c.h.b16 %v2940
      %v4364 = vunpack.c.l.b16 %v2941
      %v4365 = vunpack.c.h.b16 %v2941
      %v4366 = vunpack.c.l.b16 %v2942
      %v4367 = vunpack.c.h.b16 %v2942
      %v4368 = vunpack.c.l.b16 %v2943
      %v4369 = vunpack.c.h.b16 %v2943
      %v4370 = vunpack.c.l.b16 %v2944
      %v4371 = vunpack.c.h.b16 %v2944
      %v4372 = vunpack.c.l.b16 %v2945
      %v4373 = vunpack.c.h.b16 %v2945
      %v4374 = vunpack.c.l.b16 %v2946
      %v4375 = vunpack.c.h.b16 %v2946
      %v4376 = vunpack.c.l.b16 %v2947
      %v4377 = vunpack.c.h.b16 %v2947
      %v4378 = vunpack.c.l.b16 %v2948
      %v4379 = vunpack.c.h.b16 %v2948
      %v4380 = vunpack.c.l.b16 %v2949
      %v4381 = vunpack.c.h.b16 %v2949
      %v4382 = vunpack.c.l.b16 %v2950
      %v4383 = vunpack.c.h.b16 %v2950
      %v4384 = vunpack.c.l.b16 %v2951
      %v4385 = vunpack.c.h.b16 %v2951
      %v4386 = vunpack.c.l.b16 %v2952
      %v4387 = vunpack.c.h.b16 %v2952
      %v4388 = vunpack.c.l.b16 %v2953
      %v4389 = vunpack.c.h.b16 %v2953
      %v4390 = vunpack.c.l.b16 %v2954
      %v4391 = vunpack.c.h.b16 %v2954
      %v4392 = vunpack.c.l.b16 %v2955
      %v4393 = vunpack.c.h.b16 %v2955
      %v4394 = vunpack.c.l.b16 %v2956
      %v4395 = vunpack.c.h.b16 %v2956
      %v4396 = vunpack.c.l.b16 %v2957
      %v4397 = vunpack.c.h.b16 %v2957
      %v4398 = vunpack.c.l.b16 %v2958
      %v4399 = vunpack.c.h.b16 %v2958
      %v4400 = vunpack.c.l.b16 %v2959
      %v4401 = vunpack.c.h.b16 %v2959
      %v4402 = vunpack.c.l.b16 %v2960
      %v4403 = vunpack.c.h.b16 %v2960
      %v4404 = vunpack.c.l.b16 %v2961
      %v4405 = vunpack.c.h.b16 %v2961
      %v4406 = vunpack.c.l.b16 %v2962
      %v4407 = vunpack.c.h.b16 %v2962
      %v4408 = vunpack.c.l.b16 %v2963
      %v4409 = vunpack.c.h.b16 %v2963
      %v4410 = vunpack.c.l.b16 %v2964
      %v4411 = vunpack.c.h.b16 %v2964
      %v4412 = vunpack.c.l.b16 %v2965
      %v4413 = vunpack.c.h.b16 %v2965
      %v4414 = vunpack.c.l.b16 %v2966
      %v4415 = vunpack.c.h.b16 %v2966
      %v4416 = vunpack.c.l.b16 %v2967
      %v4417 = vunpack.c.h.b16 %v2967
      %v4418 = vunpack.c.l.b16 %v2968
      %v4419 = vunpack.c.h.b16 %v2968
      %v4420 = vunpack.c.l.b16 %v2969
      %v4421 = vunpack.c.h.b16 %v2969
      %v4422 = vunpack.c.l.b16 %v2970
      %v4423 = vunpack.c.h.b16 %v2970
      %v4424 = vunpack.c.l.b16 %v2971
      %v4425 = vunpack.c.h.b16 %v2971
      %v4426 = vunpack.c.l.b16 %v2972
      %v4427 = vunpack.c.h.b16 %v2972
      %v4428 = vunpack.c.l.b16 %v2973
      %v4429 = vunpack.c.h.b16 %v2973
      %v4430 = vunpack.c.l.b16 %v2974
      %v4431 = vunpack.c.h.b16 %v2974
      %v4432 = vunpack.c.l.b16 %v2975
      %v4433 = vunpack.c.h.b16 %v2975
      %v4434 = vunpack.c.l.b16 %v2976
      %v4435 = vunpack.c.h.b16 %v2976
      %v4436 = vunpack.c.l.b16 %v2977
      %v4437 = vunpack.c.h.b16 %v2977
      %v4438 = vunpack.c.l.b16 %v2978
      %v4439 = vunpack.c.h.b16 %v2978
      %v4440 = vunpack.c.l.b16 %v2979
      %v4441 = vunpack.c.h.b16 %v2979
      %v4442 = vunpack.c.l.b16 %v2980
      %v4443 = vunpack.c.h.b16 %v2980
      %v4444 = vunpack.c.l.b16 %v2981
      %v4445 = vunpack.c.h.b16 %v2981
      %v4446 = vunpack.c.l.b16 %v2982
      %v4447 = vunpack.c.h.b16 %v2982
      %v4448 = vunpack.c.l.b16 %v2983
      %v4449 = vunpack.c.h.b16 %v2983
      %v4450 = vunpack.c.l.b16 %v2984
      %v4451 = vunpack.c.h.b16 %v2984
      %v4452 = vunpack.c.l.b16 %v2985
      %v4453 = vunpack.c.h.b16 %v2985
      %v4454 = vunpack.c.l.b16 %v2986
      %v4455 = vunpack.c.h.b16 %v2986
      %v4456 = vunpack.c.l.b16 %v2987
      %v4457 = vunpack.c.h.b16 %v2987
      %v4458 = vunpack.c.l.b16 %v2988
      %v4459 = vunpack.c.h.b16 %v2988
      %v4460 = vunpack.c.l.b16 %v2989
      %v4461 = vunpack.c.h.b16 %v2989
      %v4462 = vunpack.c.l.b16 %v2990
      %v4463 = vunpack.c.h.b16 %v2990
      %v4464 = vunpack.c.l.b16 %v2991
      %v4465 = vunpack.c.h.b16 %v2991
      %v4466 = vunpack.c.l.b16 %v2992
      %v4467 = vunpack.c.h.b16 %v2992
      %v4468 = vunpack.c.l.b16 %v2993
      %v4469 = vunpack.c.h.b16 %v2993
      %v4470 = vunpack.c.l.b16 %v2994
      %v4471 = vunpack.c.h.b16 %v2994
      %v4472 = vunpack.c.l.b16 %v2995
      %v4473 = vunpack.c.h.b16 %v2995
      %v4474 = vunpack.c.l.b16 %v2996
      %v4475 = vunpack.c.h.b16 %v2996
      %v4476 = vunpack.c.l.b16 %v2997
      %v4477 = vunpack.c.h.b16 %v2997
      %v4478 = vunpack.c.l.b16 %v2998
      %v4479 = vunpack.c.h.b16 %v2998
      %v4480 = vunpack.c.l.b16 %v2999
      %v4481 = vunpack.c.h.b16 %v2999
      %v4482 = vunpack.c.l.b16 %v3000
      %v4483 = vunpack.c.h.b16 %v3000
      %v4484 = vunpack.c.l.b16 %v3001
      %v4485 = vunpack.c.h.b16 %v3001
      %v4486 = vunpack.c.l.b16 %v3002
      %v4487 = vunpack.c.h.b16 %v3002
      %v4488 = vunpack.c.l.b16 %v3003
      %v4489 = vunpack.c.h.b16 %v3003
      %v4490 = vunpack.c.l.b16 %v3004
      %v4491 = vunpack.c.h.b16 %v3004
      %v4492 = vunpack.c.l.b16 %v3005
      %v4493 = vunpack.c.h.b16 %v3005
      %v4494 = vunpack.c.l.b16 %v3006
      %v4495 = vunpack.c.h.b16 %v3006
      %v4496 = vunpack.c.l.b16 %v3007
      %v4497 = vunpack.c.h.b16 %v3007
      %v4498 = vunpack.c.l.b16 %v3008
      %v4499 = vunpack.c.h.b16 %v3008
      %v4500 = vunpack.c.l.b16 %v3009
      %v4501 = vunpack.c.h.b16 %v3009
      %v4502 = vunpack.c.l.b16 %v3010
      %v4503 = vunpack.c.h.b16 %v3010
      %v4504 = vunpack.c.l.b16 %v3011
      %v4505 = vunpack.c.h.b16 %v3011
      %v4506 = vunpack.c.l.b16 %v3012
      %v4507 = vunpack.c.h.b16 %v3012
      %v4508 = vunpack.c.l.b16 %v3013
      %v4509 = vunpack.c.h.b16 %v3013
      %v4510 = vunpack.c.l.b16 %v3014
      %v4511 = vunpack.c.h.b16 %v3014
      %v4512 = vunpack.c.l.b16 %v3015
      %v4513 = vunpack.c.h.b16 %v3015
      %v4514 = vunpack.c.l.b16 %v3016
      %v4515 = vunpack.c.h.b16 %v3016
      %v4516 = vunpack.c.l.b16 %v3017
      %v4517 = vunpack.c.h.b16 %v3017
      %v4518 = vunpack.c.l.b16 %v3018
      %v4519 = vunpack.c.h.b16 %v3018
      %v4520 = vunpack.c.l.b16 %v3019
      %v4521 = vunpack.c.h.b16 %v3019
      %v4522 = vunpack.c.l.b16 %v3020
      %v4523 = vunpack.c.h.b16 %v3020
      %v4524 = vunpack.c.l.b16 %v3021
      %v4525 = vunpack.c.h.b16 %v3021
      %v4526 = vunpack.c.l.b16 %v3022
      %v4527 = vunpack.c.h.b16 %v3022
      %v4528 = vunpack.c.l.b16 %v3023
      %v4529 = vunpack.c.h.b16 %v3023
      %v4530 = vunpack.c.l.b16 %v3024
      %v4531 = vunpack.c.h.b16 %v3024
      %v4532 = vunpack.c.l.b16 %v3025
      %v4533 = vunpack.c.h.b16 %v3025
      %v4534 = vunpack.c.l.b16 %v3026
      %v4535 = vunpack.c.h.b16 %v3026
      %v4536 = vunpack.c.l.b16 %v3027
      %v4537 = vunpack.c.h.b16 %v3027
      %v4538 = vunpack.c.l.b16 %v3028
      %v4539 = vunpack.c.h.b16 %v3028
      %v4540 = vunpack.c.l.b16 %v3029
      %v4541 = vunpack.c.h.b16 %v3029
      %v4542 = vunpack.c.l.b16 %v3030
      %v4543 = vunpack.c.h.b16 %v3030
      %v4544 = vunpack.c.l.b16 %v3031
      %v4545 = vunpack.c.h.b16 %v3031
      %v4546 = vunpack.c.l.b16 %v3032
      %v4547 = vunpack.c.h.b16 %v3032
      %v4548 = vunpack.c.l.b16 %v3033
      %v4549 = vunpack.c.h.b16 %v3033
      %v4550 = vunpack.c.l.b16 %v3034
      %v4551 = vunpack.c.h.b16 %v3034
      %v4552 = vunpack.c.l.b16 %v3035
      %v4553 = vunpack.c.h.b16 %v3035
      %v4554 = vunpack.c.l.b16 %v3036
      %v4555 = vunpack.c.h.b16 %v3036
      %v4556 = vunpack.c.l.b16 %v3037
      %v4557 = vunpack.c.h.b16 %v3037
      %v4558 = vunpack.c.l.b16 %v3038
      %v4559 = vunpack.c.h.b16 %v3038
      %v4560 = vunpack.c.l.b16 %v3039
      %v4561 = vunpack.c.h.b16 %v3039
      %v4562 = vunpack.c.l.b16 %v3040
      %v4563 = vunpack.c.h.b16 %v3040
      %v4564 = vunpack.c.l.b16 %v3041
      %v4565 = vunpack.c.h.b16 %v3041
      %v4566 = vunpack.c.l.b16 %v3042
      %v4567 = vunpack.c.h.b16 %v3042
      %v4568 = vunpack.c.l.b16 %v3043
      %v4569 = vunpack.c.h.b16 %v3043
      %v4570 = vunpack.c.l.b16 %v3044
      %v4571 = vunpack.c.h.b16 %v3044
      %v4572 = vunpack.c.l.b16 %v3045
      %v4573 = vunpack.c.h.b16 %v3045
      %v4574 = vunpack.c.l.b16 %v3046
      %v4575 = vunpack.c.h.b16 %v3046
      %v4576 = vunpack.c.l.b16 %v3047
      %v4577 = vunpack.c.h.b16 %v3047
      %v4578 = vunpack.c.l.b16 %v3048
      %v4579 = vunpack.c.h.b16 %v3048
      %v4580 = vunpack.c.l.b16 %v3049
      %v4581 = vunpack.c.h.b16 %v3049
      %v4582 = vunpack.c.l.b16 %v3050
      %v4583 = vunpack.c.h.b16 %v3050
      %v4584 = vunpack.c.l.b16 %v3051
      %v4585 = vunpack.c.h.b16 %v3051
      %v4586 = vunpack.c.l.b16 %v3052
      %v4587 = vunpack.c.h.b16 %v3052
      %v4588 = vunpack.c.l.b16 %v3053
      %v4589 = vunpack.c.h.b16 %v3053
      %v4590 = vunpack.c.l.b16 %v3054
      %v4591 = vunpack.c.h.b16 %v3054
      %v4592 = vunpack.c.l.b16 %v3055
      %v4593 = vunpack.c.h.b16 %v3055
      %v4594 = vunpack.c.l.b16 %v3056
      %v4595 = vunpack.c.h.b16 %v3056
      %v4596 = vunpack.c.l.b16 %v3057
      %v4597 = vunpack.c.h.b16 %v3057
      %v4598 = vunpack.c.l.b16 %v3058
      %v4599 = vunpack.c.h.b16 %v3058
      %v4600 = vunpack.c.l.b16 %v3059
      %v4601 = vunpack.c.h.b16 %v3059
      %v4602 = vunpack.c.l.b16 %v3060
      %v4603 = vunpack.c.h.b16 %v3060
      %v4604 = vunpack.c.l.b16 %v3061
      %v4605 = vunpack.c.h.b16 %v3061
      %v4606 = vunpack.c.l.b16 %v3062
      %v4607 = vunpack.c.h.b16 %v3062
      %v4608 = vunpack.c.l.b16 %v3063
      %v4609 = vunpack.c.h.b16 %v3063
      %v4610 = vunpack.c.l.b16 %v3064
      %v4611 = vunpack.c.h.b16 %v3064
      %v4612 = vunpack.c.l.b16 %v3065
      %v4613 = vunpack.c.h.b16 %v3065
      %v4614 = vunpack.c.l.b16 %v3066
      %v4615 = vunpack.c.h.b16 %v3066
      %v4616 = vunpack.c.l.b16 %v3067
      %v4617 = vunpack.c.h.b16 %v3067
      %v4618 = vunpack.c.l.b16 %v3068
      %v4619 = vunpack.c.h.b16 %v3068
      %v4620 = vunpack.c.l.b16 %v3069
      %v4621 = vunpack.c.h.b16 %v3069
      %v4622 = vunpack.c.l.b16 %v3070
      %v4623 = vunpack.c.h.b16 %v3070
      %v4624 = vunpack.c.l.b16 %v3071
      %v4625 = vunpack.c.h.b16 %v3071
      %v4626 = vunpack.c.l.b16 %v3072
      %v4627 = vunpack.c.h.b16 %v3072
      %v4628 = vunpack.c.l.b16 %v3073
      %v4629 = vunpack.c.h.b16 %v3073
      %v4630 = vunpack.c.l.b16 %v3074
      %v4631 = vunpack.c.h.b16 %v3074
      %v4632 = vunpack.c.l.b16 %v3075
      %v4633 = vunpack.c.h.b16 %v3075
      %v4634 = vunpack.c.l.b16 %v3076
      %v4635 = vunpack.c.h.b16 %v3076
      %v4636 = vunpack.c.l.b16 %v3077
      %v4637 = vunpack.c.h.b16 %v3077
      %v4638 = vunpack.c.l.b16 %v3078
      %v4639 = vunpack.c.h.b16 %v3078
      %v4640 = vunpack.c.l.b16 %v3079
      %v4641 = vunpack.c.h.b16 %v3079
      %v4642 = vunpack.c.l.b16 %v3080
      %v4643 = vunpack.c.h.b16 %v3080
      %v4644 = vunpack.c.l.b16 %v3081
      %v4645 = vunpack.c.h.b16 %v3081
      %v4646 = vunpack.c.l.b16 %v3082
      %v4647 = vunpack.c.h.b16 %v3082
      %v4648 = vunpack.c.l.b16 %v3083
      %v4649 = vunpack.c.h.b16 %v3083
      %v4650 = vunpack.c.l.b16 %v3084
      %v4651 = vunpack.c.h.b16 %v3084
      %v4652 = vunpack.c.l.b16 %v3085
      %v4653 = vunpack.c.h.b16 %v3085
      %v4654 = vunpack.c.l.b16 %v3086
      %v4655 = vunpack.c.h.b16 %v3086
      %v4656 = vunpack.c.l.b16 %v3087
      %v4657 = vunpack.c.h.b16 %v3087
      %v4658 = vunpack.c.l.b16 %v3088
      %v4659 = vunpack.c.h.b16 %v3088
      %v4660 = vunpack.c.l.b16 %v3089
      %v4661 = vunpack.c.h.b16 %v3089
      %v4662 = vunpack.c.l.b16 %v3090
      %v4663 = vunpack.c.h.b16 %v3090
      %v4664 = vunpack.c.l.b16 %v3091
      %v4665 = vunpack.c.h.b16 %v3091
      %v4666 = vunpack.c.l.b16 %v3092
      %v4667 = vunpack.c.h.b16 %v3092
      %v4668 = vunpack.c.l.b16 %v3093
      %v4669 = vunpack.c.h.b16 %v3093
      %v4670 = vunpack.c.l.b16 %v3094
      %v4671 = vunpack.c.h.b16 %v3094
      %v4672 = vunpack.c.l.b16 %v3095
      %v4673 = vunpack.c.h.b16 %v3095
      %v4674 = vunpack.c.l.b16 %v3096
      %v4675 = vunpack.c.h.b16 %v3096
      %v4676 = vunpack.c.l.b16 %v3097
      %v4677 = vunpack.c.h.b16 %v3097
      %v4678 = vunpack.c.l.b16 %v3098
      %v4679 = vunpack.c.h.b16 %v3098
      %v4680 = vunpack.c.l.b16 %v3099
      %v4681 = vunpack.c.h.b16 %v3099
      %v4682 = vunpack.c.l.b16 %v3100
      %v4683 = vunpack.c.h.b16 %v3100
      %v4684 = vunpack.c.l.b16 %v3101
      %v4685 = vunpack.c.h.b16 %v3101
      %v4686 = vunpack.c.l.b16 %v3102
      %v4687 = vunpack.c.h.b16 %v3102
      %v4688 = vunpack.c.l.b16 %v3103
      %v4689 = vunpack.c.h.b16 %v3103
      %v4690 = vunpack.c.l.b16 %v3104
      %v4691 = vunpack.c.h.b16 %v3104
      %v4692 = vunpack.c.l.b16 %v3105
      %v4693 = vunpack.c.h.b16 %v3105
      %v4694 = vunpack.c.l.b16 %v3106
      %v4695 = vunpack.c.h.b16 %v3106
      %v4696 = vunpack.c.l.b16 %v3107
      %v4697 = vunpack.c.h.b16 %v3107
      %v4698 = vunpack.c.l.b16 %v3108
      %v4699 = vunpack.c.h.b16 %v3108
      %v4700 = vunpack.c.l.b16 %v3109
      %v4701 = vunpack.c.h.b16 %v3109
      %v4702 = vunpack.c.l.b16 %v3110
      %v4703 = vunpack.c.h.b16 %v3110
      %v4704 = vunpack.c.l.b16 %v3111
      %v4705 = vunpack.c.h.b16 %v3111
      %v4706 = vunpack.c.l.b16 %v3112
      %v4707 = vunpack.c.h.b16 %v3112
      %v4708 = vunpack.c.l.b16 %v3113
      %v4709 = vunpack.c.h.b16 %v3113
      %v4710 = vunpack.c.l.b16 %v3114
      %v4711 = vunpack.c.h.b16 %v3114
      %v4712 = vunpack.c.l.b16 %v3115
      %v4713 = vunpack.c.h.b16 %v3115
      %v4714 = vunpack.c.l.b16 %v3116
      %v4715 = vunpack.c.h.b16 %v3116
      %v4716 = vunpack.c.l.b16 %v3117
      %v4717 = vunpack.c.h.b16 %v3117
      %v4718 = vunpack.c.l.b16 %v3118
      %v4719 = vunpack.c.h.b16 %v3118
      %v4720 = vunpack.c.l.b16 %v3119
      %v4721 = vunpack.c.h.b16 %v3119
      %v4722 = vunpack.c.l.b16 %v3120
      %v4723 = vunpack.c.h.b16 %v3120
      %v4724 = vunpack.c.l.b16 %v3121
      %v4725 = vunpack.c.h.b16 %v3121
      %v4726 = vunpack.c.l.b16 %v3122
      %v4727 = vunpack.c.h.b16 %v3122
      %v4728 = vunpack.c.l.b16 %v3123
      %v4729 = vunpack.c.h.b16 %v3123
      %v4730 = vunpack.c.l.b16 %v3124
      %v4731 = vunpack.c.h.b16 %v3124
      %v4732 = vunpack.c.l.b16 %v3125
      %v4733 = vunpack.c.h.b16 %v3125
      %v4734 = vunpack.c.l.b16 %v3126
      %v4735 = vunpack.c.h.b16 %v3126
      %v4736 = vunpack.c.l.b16 %v3127
      %v4737 = vunpack.c.h.b16 %v3127
      %v4738 = vunpack.c.l.b16 %v3128
      %v4739 = vunpack.c.h.b16 %v3128
      %v4740 = vunpack.c.l.b16 %v3129
      %v4741 = vunpack.c.h.b16 %v3129
      %v4742 = vunpack.c.l.b16 %v3130
      %v4743 = vunpack.c.h.b16 %v3130
      %v4744 = vunpack.c.l.b16 %v3131
      %v4745 = vunpack.c.h.b16 %v3131
      %v4746 = vunpack.c.l.b16 %v3132
      %v4747 = vunpack.c.h.b16 %v3132
      %v4748 = vunpack.c.l.b16 %v3133
      %v4749 = vunpack.c.h.b16 %v3133
      %v4750 = vunpack.c.l.b16 %v3134
      %v4751 = vunpack.c.h.b16 %v3134
      %v4752 = vunpack.c.l.b16 %v3135
      %v4753 = vunpack.c.h.b16 %v3135
      %v4754 = vunpack.c.l.b16 %v3136
      %v4755 = vunpack.c.h.b16 %v3136
      %v4756 = vunpack.c.l.b16 %v3137
      %v4757 = vunpack.c.h.b16 %v3137
      %v4758 = vunpack.c.l.b16 %v3138
      %v4759 = vunpack.c.h.b16 %v3138
      %v4760 = vunpack.c.l.b16 %v3139
      %v4761 = vunpack.c.h.b16 %v3139
      %v4762 = vunpack.c.l.b16 %v3140
      %v4763 = vunpack.c.h.b16 %v3140
      %v4764 = vunpack.c.l.b16 %v3141
      %v4765 = vunpack.c.h.b16 %v3141
      %v4766 = vunpack.c.l.b16 %v3142
      %v4767 = vunpack.c.h.b16 %v3142
      %v4768 = vunpack.c.l.b16 %v3143
      %v4769 = vunpack.c.h.b16 %v3143
      %v4770 = vunpack.c.l.b16 %v3144
      %v4771 = vunpack.c.h.b16 %v3144
      %v4772 = vunpack.c.l.b16 %v3145
      %v4773 = vunpack.c.h.b16 %v3145
      %v4774 = vunpack.c.l.b16 %v3146
      %v4775 = vunpack.c.h.b16 %v3146
      %v4776 = vunpack.c.l.b16 %v3147
      %v4777 = vunpack.c.h.b16 %v3147
      %v4778 = vunpack.c.l.b16 %v3148
      %v4779 = vunpack.c.h.b16 %v3148
      %v4780 = vunpack.c.l.b16 %v3149
      %v4781 = vunpack.c.h.b16 %v3149
      %v4782 = vunpack.c.l.b16 %v3150
      %v4783 = vunpack.c.h.b16 %v3150
      %v4784 = vunpack.c.l.b16 %v3151
      %v4785 = vunpack.c.h.b16 %v3151
      %v4786 = vunpack.c.l.b16 %v3152
      %v4787 = vunpack.c.h.b16 %v3152
      %v4788 = vunpack.c.l.b16 %v3153
      %v4789 = vunpack.c.h.b16 %v3153
      %v4790 = vunpack.c.l.b16 %v3154
      %v4791 = vunpack.c.h.b16 %v3154
      %v4792 = vunpack.c.l.b16 %v3155
      %v4793 = vunpack.c.h.b16 %v3155
      %v4794 = vunpack.c.l.b16 %v3156
      %v4795 = vunpack.c.h.b16 %v3156
      %v4796 = vunpack.c.l.b16 %v3157
      %v4797 = vunpack.c.h.b16 %v3157
      %v4798 = vunpack.c.l.b16 %v3158
      %v4799 = vunpack.c.h.b16 %v3158
      %v4800 = vunpack.c.l.b16 %v3159
      %v4801 = vunpack.c.h.b16 %v3159
      %v4802 = vunpack.c.l.b16 %v3160
      %v4803 = vunpack.c.h.b16 %v3160
      %v4804 = vunpack.c.l.b16 %v3161
      %v4805 = vunpack.c.h.b16 %v3161
      %v4806 = vunpack.c.l.b16 %v3162
      %v4807 = vunpack.c.h.b16 %v3162
      %v4808 = vunpack.c.l.b16 %v3163
      %v4809 = vunpack.c.h.b16 %v3163
      %v4810 = vunpack.c.l.b16 %v3164
      %v4811 = vunpack.c.h.b16 %v3164
      %v4812 = vunpack.c.l.b16 %v3165
      %v4813 = vunpack.c.h.b16 %v3165
      %v4814 = vunpack.c.l.b16 %v3166
      %v4815 = vunpack.c.h.b16 %v3166
      %v4816 = vunpack.c.l.b16 %v3167
      %v4817 = vunpack.c.h.b16 %v3167
      %v4818 = vunpack.c.l.b16 %v3168
      %v4819 = vunpack.c.h.b16 %v3168
      %v4820 = vunpack.c.l.b16 %v3169
      %v4821 = vunpack.c.h.b16 %v3169
      %v4822 = vunpack.c.l.b16 %v3170
      %v4823 = vunpack.c.h.b16 %v3170
      %v4824 = vunpack.c.l.b16 %v3171
      %v4825 = vunpack.c.h.b16 %v3171
      %v4826 = vunpack.c.l.b16 %v3172
      %v4827 = vunpack.c.h.b16 %v3172
      %v4828 = vunpack.c.l.b16 %v3173
      %v4829 = vunpack.c.h.b16 %v3173
      %v4830 = vunpack.c.l.b16 %v3174
      %v4831 = vunpack.c.h.b16 %v3174
      %v4832 = vunpack.c.l.b16 %v3175
      %v4833 = vunpack.c.h.b16 %v3175
      %v4834 = vunpack.c.l.b16 %v3176
      %v4835 = vunpack.c.h.b16 %v3176
      %v4836 = vunpack.c.l.b16 %v3177
      %v4837 = vunpack.c.h.b16 %v3177
      %v4838 = vunpack.c.l.b16 %v3178
      %v4839 = vunpack.c.h.b16 %v3178
      %v4840 = vunpack.c.l.b16 %v3179
      %v4841 = vunpack.c.h.b16 %v3179
      %v4842 = vunpack.c.l.b16 %v3180
      %v4843 = vunpack.c.h.b16 %v3180
      %v4844 = vunpack.c.l.b16 %v3181
      %v4845 = vunpack.c.h.b16 %v3181
      %v4846 = vunpack.c.l.b16 %v3182
      %v4847 = vunpack.c.h.b16 %v3182
      %v4848 = vunpack.c.l.b16 %v3183
      %v4849 = vunpack.c.h.b16 %v3183
      %v4850 = vunpack.c.l.b16 %v3184
      %v4851 = vunpack.c.h.b16 %v3184
      %v4852 = vunpack.c.l.b16 %v3185
      %v4853 = vunpack.c.h.b16 %v3185
      %v4854 = vunpack.c.l.b16 %v3186
      %v4855 = vunpack.c.h.b16 %v3186
      %v4856 = vunpack.c.l.b16 %v3187
      %v4857 = vunpack.c.h.b16 %v3187
      %v4858 = vunpack.c.l.b16 %v3188
      %v4859 = vunpack.c.h.b16 %v3188
      %v4860 = vunpack.c.l.b16 %v3189
      %v4861 = vunpack.c.h.b16 %v3189
      %v4862 = vunpack.c.l.b16 %v3190
      %v4863 = vunpack.c.h.b16 %v3190
      %v4864 = vunpack.c.l.b16 %v3191
      %v4865 = vunpack.c.h.b16 %v3191
      %v4866 = vunpack.c.l.b16 %v3192
      %v4867 = vunpack.c.h.b16 %v3192
      %v4868 = vunpack.c.l.b16 %v3193
      %v4869 = vunpack.c.h.b16 %v3193
      %v4870 = vunpack.c.l.b16 %v3194
      %v4871 = vunpack.c.h.b16 %v3194
      %v4872 = vunpack.c.l.b16 %v3195
      %v4873 = vunpack.c.h.b16 %v3195
      %v4874 = vunpack.c.l.b16 %v3196
      %v4875 = vunpack.c.h.b16 %v3196
      %v4876 = vunpack.c.l.b16 %v3197
      %v4877 = vunpack.c.h.b16 %v3197
      %v4878 = vunpack.c.l.b16 %v3198
      %v4879 = vunpack.c.h.b16 %v3198
      %v4880 = vunpack.c.l.b16 %v3199
      %v4881 = vunpack.c.h.b16 %v3199
      %v4882 = vunpack.c.l.b16 %v3200
      %v4883 = vunpack.c.h.b16 %v3200
      %v4884 = vunpack.c.l.b16 %v3201
      %v4885 = vunpack.c.h.b16 %v3201
      %v4886 = vunpack.c.l.b16 %v3202
      %v4887 = vunpack.c.h.b16 %v3202
      %v4888 = vunpack.c.l.b16 %v3203
      %v4889 = vunpack.c.h.b16 %v3203
      %v4890 = vunpack.c.l.b16 %v3204
      %v4891 = vunpack.c.h.b16 %v3204
      %v4892 = vunpack.c.l.b16 %v3205
      %v4893 = vunpack.c.h.b16 %v3205
      %v4894 = vunpack.c.l.b16 %v3206
      %v4895 = vunpack.c.h.b16 %v3206
      %v4896 = vunpack.c.l.b16 %v3207
      %v4897 = vunpack.c.h.b16 %v3207
      %v4898 = vunpack.c.l.b16 %v3208
      %v4899 = vunpack.c.h.b16 %v3208
      %v4900 = vunpack.c.l.b16 %v3209
      %v4901 = vunpack.c.h.b16 %v3209
      %v4902 = vunpack.c.l.b16 %v3210
      %v4903 = vunpack.c.h.b16 %v3210
      %v4904 = vunpack.c.l.b16 %v3211
      %v4905 = vunpack.c.h.b16 %v3211
      %v4906 = vunpack.c.l.b16 %v3212
      %v4907 = vunpack.c.h.b16 %v3212
      %v4908 = vunpack.c.l.b16 %v3213
      %v4909 = vunpack.c.h.b16 %v3213
      %v4910 = vunpack.c.l.b16 %v3214
      %v4911 = vunpack.c.h.b16 %v3214
      %v4912 = vunpack.c.l.b16 %v3215
      %v4913 = vunpack.c.h.b16 %v3215
      %v4914 = vunpack.c.l.b16 %v3216
      %v4915 = vunpack.c.h.b16 %v3216
      %v4916 = vunpack.c.l.b16 %v3217
      %v4917 = vunpack.c.h.b16 %v3217
      %v4918 = vunpack.c.l.b16 %v3218
      %v4919 = vunpack.c.h.b16 %v3218
      %v4920 = vunpack.c.l.b16 %v3219
      %v4921 = vunpack.c.h.b16 %v3219
      %v4922 = vunpack.c.l.b16 %v3220
      %v4923 = vunpack.c.h.b16 %v3220
      %v4924 = vunpack.c.l.b16 %v3221
      %v4925 = vunpack.c.h.b16 %v3221
      %v4926 = vunpack.c.l.b16 %v3222
      %v4927 = vunpack.c.h.b16 %v3222
      %v4928 = vunpack.c.l.b16 %v3223
      %v4929 = vunpack.c.h.b16 %v3223
      %v4930 = vunpack.c.l.b16 %v3224
      %v4931 = vunpack.c.h.b16 %v3224
      %v4932 = vunpack.c.l.b16 %v3225
      %v4933 = vunpack.c.h.b16 %v3225
      %v4934 = vunpack.c.l.b16 %v3226
      %v4935 = vunpack.c.h.b16 %v3226
      %v4936 = vunpack.c.l.b16 %v3227
      %v4937 = vunpack.c.h.b16 %v3227
      %v4938 = vunpack.c.l.b16 %v3228
      %v4939 = vunpack.c.h.b16 %v3228
      %v4940 = vunpack.c.l.b16 %v3229
      %v4941 = vunpack.c.h.b16 %v3229
      %v4942 = vunpack.c.l.b16 %v3230
      %v4943 = vunpack.c.h.b16 %v3230
      %v4944 = vunpack.c.l.b16 %v3231
      %v4945 = vunpack.c.h.b16 %v3231
      %v4946 = vunpack.c.l.b16 %v3232
      %v4947 = vunpack.c.h.b16 %v3232
      %v4948 = vunpack.c.l.b16 %v3233
      %v4949 = vunpack.c.h.b16 %v3233
      %v4950 = vunpack.c.l.b16 %v3234
      %v4951 = vunpack.c.h.b16 %v3234
      %v4952 = vunpack.c.l.b16 %v3235
      %v4953 = vunpack.c.h.b16 %v3235
      %v4954 = vunpack.c.l.b16 %v3236
      %v4955 = vunpack.c.h.b16 %v3236
      %v4956 = vunpack.c.l.b16 %v3237
      %v4957 = vunpack.c.h.b16 %v3237
      %v4958 = vunpack.c.l.b16 %v3238
      %v4959 = vunpack.c.h.b16 %v3238
      %v4960 = vunpack.c.l.b16 %v3239
      %v4961 = vunpack.c.h.b16 %v3239
      %v4962 = vunpack.c.l.b16 %v3240
      %v4963 = vunpack.c.h.b16 %v3240
      %v4964 = vunpack.c.l.b16 %v3241
      %v4965 = vunpack.c.h.b16 %v3241
      %v4966 = vunpack.c.l.b16 %v3242
      %v4967 = vunpack.c.h.b16 %v3242
      %v4968 = vunpack.c.l.b16 %v3243
      %v4969 = vunpack.c.h.b16 %v3243
      %v4970 = vunpack.c.l.b16 %v3244
      %v4971 = vunpack.c.h.b16 %v3244
      %v4972 = vunpack.c.l.b16 %v3245
      %v4973 = vunpack.c.h.b16 %v3245
      %v4974 = vunpack.c.l.b16 %v3246
      %v4975 = vunpack.c.h.b16 %v3246
      %v4976 = vunpack.c.l.b16 %v3247
      %v4977 = vunpack.c.h.b16 %v3247
      %v4978 = vunpack.c.l.b16 %v3248
      %v4979 = vunpack.c.h.b16 %v3248
      %v4980 = vunpack.c.l.b16 %v3249
      %v4981 = vunpack.c.h.b16 %v3249
      %v4982 = vunpack.c.l.b16 %v3250
      %v4983 = vunpack.c.h.b16 %v3250
      %v4984 = vunpack.c.l.b16 %v3251
      %v4985 = vunpack.c.h.b16 %v3251
      %v4986 = vunpack.c.l.b16 %v3252
      %v4987 = vunpack.c.h.b16 %v3252
      %v4988 = vunpack.c.l.b16 %v3253
      %v4989 = vunpack.c.h.b16 %v3253
      %v4990 = vunpack.c.l.b16 %v3254
      %v4991 = vunpack.c.h.b16 %v3254
      %v4992 = vunpack.c.l.b16 %v3255
      %v4993 = vunpack.c.h.b16 %v3255
      %v4994 = vunpack.c.l.b16 %v3256
      %v4995 = vunpack.c.h.b16 %v3256
      %v4996 = vunpack.c.l.b16 %v3257
      %v4997 = vunpack.c.h.b16 %v3257
      %v4998 = vunpack.c.l.b16 %v3258
      %v4999 = vunpack.c.h.b16 %v3258
      %v5000 = vunpack.c.l.b16 %v3259
      %v5001 = vunpack.c.h.b16 %v3259
      %v5002 = vunpack.c.l.b16 %v3260
      %v5003 = vunpack.c.h.b16 %v3260
      %v5004 = vunpack.c.l.b16 %v3261
      %v5005 = vunpack.c.h.b16 %v3261
      %v5006 = vunpack.c.l.b16 %v3262
      %v5007 = vunpack.c.h.b16 %v3262
      %v5008 = vunpack.c.l.b16 %v3263
      %v5009 = vunpack.c.h.b16 %v3263
      %v5010 = vunpack.c.l.b16 %v3264
      %v5011 = vunpack.c.h.b16 %v3264
      %v5012 = vunpack.c.l.b16 %v3265
      %v5013 = vunpack.c.h.b16 %v3265
      %v5014 = vunpack.c.l.b16 %v3266
      %v5015 = vunpack.c.h.b16 %v3266
      %v5016 = vunpack.c.l.b16 %v3267
      %v5017 = vunpack.c.h.b16 %v3267
      %v5018 = vunpack.c.l.b16 %v3268
      %v5019 = vunpack.c.h.b16 %v3268
      %v5020 = vunpack.c.l.b16 %v3269
      %v5021 = vunpack.c.h.b16 %v3269
      %v5022 = vunpack.c.l.b16 %v3270
      %v5023 = vunpack.c.h.b16 %v3270
      %v5024 = vunpack.c.l.b16 %v3271
      %v5025 = vunpack.c.h.b16 %v3271
      %v5026 = vunpack.c.l.b16 %v3272
      %v5027 = vunpack.c.h.b16 %v3272
      %v5028 = vunpack.c.l.b16 %v3273
      %v5029 = vunpack.c.h.b16 %v3273
      %v5030 = vunpack.c.l.b16 %v3274
      %v5031 = vunpack.c.h.b16 %v3274
      %v5032 = vunpack.c.l.b16 %v3275
      %v5033 = vunpack.c.h.b16 %v3275
      %v5034 = vunpack.c.l.b16 %v3276
      %v5035 = vunpack.c.h.b16 %v3276
      %v5036 = vunpack.c.l.b16 %v3277
      %v5037 = vunpack.c.h.b16 %v3277
      %v5038 = vunpack.c.l.b16 %v3278
      %v5039 = vunpack.c.h.b16 %v3278
      %v5040 = vunpack.c.l.b16 %v3279
      %v5041 = vunpack.c.h.b16 %v3279
      %v5042 = vunpack.c.l.b16 %v3280
      %v5043 = vunpack.c.h.b16 %v3280
      %v5044 = vunpack.c.l.b16 %v3281
      %v5045 = vunpack.c.h.b16 %v3281
      %v5046 = vunpack.c.l.b16 %v3282
      %v5047 = vunpack.c.h.b16 %v3282
      %v5048 = vunpack.c.l.b16 %v3283
      %v5049 = vunpack.c.h.b16 %v3283
      %v5050 = vunpack.c.l.b16 %v3284
      %v5051 = vunpack.c.h.b16 %v3284
      %v5052 = vunpack.c.l.b16 %v3285
      %v5053 = vunpack.c.h.b16 %v3285
      %v5054 = vunpack.c.l.b16 %v3286
      %v5055 = vunpack.c.h.b16 %v3286
      %v5056 = vunpack.c.l.b16 %v3287
      %v5057 = vunpack.c.h.b16 %v3287
      %v5058 = vunpack.c.l.b16 %v3288
      %v5059 = vunpack.c.h.b16 %v3288
      %v5060 = vunpack.c.l.b16 %v3289
      %v5061 = vunpack.c.h.b16 %v3289
      %v5062 = vunpack.c.l.b16 %v3290
      %v5063 = vunpack.c.h.b16 %v3290
      %v5064 = vunpack.c.l.b16 %v3291
      %v5065 = vunpack.c.h.b16 %v3291
      %v5066 = vunpack.c.l.b16 %v3292
      %v5067 = vunpack.c.h.b16 %v3292
      %v5068 = vunpack.c.l.b16 %v3293
      %v5069 = vunpack.c.h.b16 %v3293
      %v5070 = vunpack.c.l.b16 %v3294
      %v5071 = vunpack.c.h.b16 %v3294
      %v5072 = vunpack.c.l.b16 %v3295
      %v5073 = vunpack.c.h.b16 %v3295
      %v5074 = vunpack.c.l.b16 %v3296
      %v5075 = vunpack.c.h.b16 %v3296
      %v5076 = vunpack.c.l.b16 %v3297
      %v5077 = vunpack.c.h.b16 %v3297
      %v5078 = vunpack.c.l.b16 %v3298
      %v5079 = vunpack.c.h.b16 %v3298
      %v5080 = vunpack.c.l.b16 %v3299
      %v5081 = vunpack.c.h.b16 %v3299
      %v5082 = vunpack.c.l.b16 %v3300
      %v5083 = vunpack.c.h.b16 %v3300
      %v5084 = vunpack.c.l.b16 %v3301
      %v5085 = vunpack.c.h.b16 %v3301
      %v5086 = vunpack.c.l.b16 %v3302
      %v5087 = vunpack.c.h.b16 %v3302
      %v5088 = vunpack.c.l.b16 %v3303
      %v5089 = vunpack.c.h.b16 %v3303
      %v5090 = vunpack.c.l.b16 %v3304
      %v5091 = vunpack.c.h.b16 %v3304
      %v5092 = vunpack.c.l.b16 %v3305
      %v5093 = vunpack.c.h.b16 %v3305
      %v5094 = vunpack.c.l.b16 %v3306
      %v5095 = vunpack.c.h.b16 %v3306
      %v5096 = vunpack.c.l.b16 %v3307
      %v5097 = vunpack.c.h.b16 %v3307
      %v5098 = vunpack.c.l.b16 %v3308
      %v5099 = vunpack.c.h.b16 %v3308
      %v5100 = vunpack.c.l.b16 %v3309
      %v5101 = vunpack.c.h.b16 %v3309
      %v5102 = vunpack.c.l.b16 %v3310
      %v5103 = vunpack.c.h.b16 %v3310
      %v5104 = vunpack.c.l.b16 %v3311
      %v5105 = vunpack.c.h.b16 %v3311
      %v5106 = vunpack.c.l.b16 %v3312
      %v5107 = vunpack.c.h.b16 %v3312
      %v5108 = vunpack.c.l.b16 %v3313
      %v5109 = vunpack.c.h.b16 %v3313
      %v5110 = vunpack.c.l.b16 %v3314
      %v5111 = vunpack.c.h.b16 %v3314
      %v5112 = vunpack.c.l.b16 %v3315
      %v5113 = vunpack.c.h.b16 %v3315
      %v5114 = vunpack.c.l.b16 %v3316
      %v5115 = vunpack.c.h.b16 %v3316
      %v5116 = vunpack.c.l.b16 %v3317
      %v5117 = vunpack.c.h.b16 %v3317
      %v5118 = vunpack.c.l.b16 %v3318
      %v5119 = vunpack.c.h.b16 %v3318
      %v5120 = vunpack.c.l.b16 %v3319
      %v5121 = vunpack.c.h.b16 %v3319
      %v5122 = vunpack.c.l.b16 %v3320
      %v5123 = vunpack.c.h.b16 %v3320
      %v5124 = vunpack.c.l.b16 %v3321
      %v5125 = vunpack.c.h.b16 %v3321
      %v5126 = vunpack.c.l.b16 %v3322
      %v5127 = vunpack.c.h.b16 %v3322
      %v5128 = vunpack.c.l.b16 %v3323
      %v5129 = vunpack.c.h.b16 %v3323
      %v5130 = vunpack.c.l.b16 %v3324
      %v5131 = vunpack.c.h.b16 %v3324
      %v5132 = vunpack.c.l.b16 %v3325
      %v5133 = vunpack.c.h.b16 %v3325
      %v5134 = vunpack.c.l.b16 %v3326
      %v5135 = vunpack.c.h.b16 %v3326
      %v5136 = vunpack.c.l.b16 %v3327
      %v5137 = vunpack.c.h.b16 %v3327
      %v5138 = vunpack.c.l.b16 %v3328
      %v5139 = vunpack.c.h.b16 %v3328
      %v5140 = vunpack.c.l.b16 %v3329
      %v5141 = vunpack.c.h.b16 %v3329
      %v5142 = vunpack.c.l.b16 %v3330
      %v5143 = vunpack.c.h.b16 %v3330
      %v5144 = vunpack.c.l.b16 %v3331
      %v5145 = vunpack.c.h.b16 %v3331
      %v5146 = vunpack.c.l.b16 %v3332
      %v5147 = vunpack.c.h.b16 %v3332
      %v5148 = vunpack.c.l.b16 %v3333
      %v5149 = vunpack.c.h.b16 %v3333
      %v5150 = vunpack.c.l.b16 %v3334
      %v5151 = vunpack.c.h.b16 %v3334
      %v5152 = vunpack.c.l.b16 %v3335
      %v5153 = vunpack.c.h.b16 %v3335
      %v5154 = vunpack.c.l.b16 %v3336
      %v5155 = vunpack.c.h.b16 %v3336
      %v5156 = vunpack.c.l.b16 %v3337
      %v5157 = vunpack.c.h.b16 %v3337
      %v5158 = vunpack.c.l.b16 %v3338
      %v5159 = vunpack.c.h.b16 %v3338
      %v5160 = vunpack.c.l.b16 %v3339
      %v5161 = vunpack.c.h.b16 %v3339
      %v5162 = vunpack.c.l.b16 %v3340
      %v5163 = vunpack.c.h.b16 %v3340
      %v5164 = vunpack.c.l.b16 %v3341
      %v5165 = vunpack.c.h.b16 %v3341
      %v5166 = vunpack.c.l.b16 %v3342
      %v5167 = vunpack.c.h.b16 %v3342
      %v5168 = vunpack.c.l.b16 %v3343
      %v5169 = vunpack.c.h.b16 %v3343
      %v5170 = vunpack.c.l.b16 %v3344
      %v5171 = vunpack.c.h.b16 %v3344
      %v5172 = vunpack.c.l.b16 %v3345
      %v5173 = vunpack.c.h.b16 %v3345
      %v5174 = vunpack.c.l.b16 %v3346
      %v5175 = vunpack.c.h.b16 %v3346
      %v5176 = vunpack.c.l.b16 %v3347
      %v5177 = vunpack.c.h.b16 %v3347
      %v5178 = vunpack.c.l.b16 %v3348
      %v5179 = vunpack.c.h.b16 %v3348
      %v5180 = vunpack.c.l.b16 %v3349
      %v5181 = vunpack.c.h.b16 %v3349
      %v5182 = vunpack.c.l.b16 %v3350
      %v5183 = vunpack.c.h.b16 %v3350
      %v5184 = vunpack.c.l.b16 %v3351
      %v5185 = vunpack.c.h.b16 %v3351
      %v5186 = vunpack.c.l.b16 %v3352
      %v5187 = vunpack.c.h.b16 %v3352
      %v5188 = vunpack.c.l.b16 %v3353
      %v5189 = vunpack.c.h.b16 %v3353
      %v5190 = vunpack.c.l.b16 %v3354
      %v5191 = vunpack.c.h.b16 %v3354
      %v5192 = vunpack.c.l.b16 %v3355
      %v5193 = vunpack.c.h.b16 %v3355
      %v5194 = vunpack.c.l.b16 %v3356
      %v5195 = vunpack.c.h.b16 %v3356
      %v5196 = vunpack.c.l.b16 %v3357
      %v5197 = vunpack.c.h.b16 %v3357
      %v5198 = vunpack.c.l.b16 %v3358
      %v5199 = vunpack.c.h.b16 %v3358
      %v5200 = vunpack.c.l.b16 %v3359
      %v5201 = vunpack.c.h.b16 %v3359
      %v5202 = vunpack.c.l.b16 %v3360
      %v5203 = vunpack.c.h.b16 %v3360
      %v5204 = vunpack.c.l.b16 %v3361
      %v5205 = vunpack.c.h.b16 %v3361
      %v5206 = vunpack.c.l.b16 %v3362
      %v5207 = vunpack.c.h.b16 %v3362
      %v5208 = vunpack.c.l.b16 %v3363
      %v5209 = vunpack.c.h.b16 %v3363
      %v5210 = vunpack.c.l.b16 %v3364
      %v5211 = vunpack.c.h.b16 %v3364
      %v5212 = vunpack.c.l.b16 %v3365
      %v5213 = vunpack.c.h.b16 %v3365
      %v5214 = vunpack.c.l.b16 %v3366
      %v5215 = vunpack.c.h.b16 %v3366
      %v5216 = vunpack.c.l.b16 %v3367
      %v5217 = vunpack.c.h.b16 %v3367
      %v5218 = vunpack.c.l.b16 %v3368
      %v5219 = vunpack.c.h.b16 %v3368
      %v5220 = vunpack.c.l.b16 %v3369
      %v5221 = vunpack.c.h.b16 %v3369
      %v5222 = vunpack.c.l.b16 %v3370
      %v5223 = vunpack.c.h.b16 %v3370
      %v5224 = vunpack.c.l.b16 %v3371
      %v5225 = vunpack.c.h.b16 %v3371
      %v5226 = vunpack.c.l.b16 %v3372
      %v5227 = vunpack.c.h.b16 %v3372
      %v5228 = vunpack.c.l.b16 %v3373
      %v5229 = vunpack.c.h.b16 %v3373
      %v5230 = vunpack.c.l.b16 %v3374
      %v5231 = vunpack.c.h.b16 %v3374
      %v5232 = vunpack.c.l.b16 %v3375
      %v5233 = vunpack.c.h.b16 %v3375
      %v5234 = vunpack.c.l.b16 %v3376
      %v5235 = vunpack.c.h.b16 %v3376
      %v5236 = vunpack.c.l.b16 %v3377
      %v5237 = vunpack.c.h.b16 %v3377
      %v5238 = vunpack.c.l.b16 %v3378
      %v5239 = vunpack.c.h.b16 %v3378
      %v5240 = vunpack.c.l.b16 %v3379
      %v5241 = vunpack.c.h.b16 %v3379
      %v5242 = vunpack.c.l.b16 %v3380
      %v5243 = vunpack.c.h.b16 %v3380
      %v5244 = vunpack.c.l.b16 %v3381
      %v5245 = vunpack.c.h.b16 %v3381
      %v5246 = vunpack.c.l.b16 %v3382
      %v5247 = vunpack.c.h.b16 %v3382
      %v5248 = vunpack.c.l.b16 %v3383
      %v5249 = vunpack.c.h.b16 %v3383
      %v5250 = vunpack.c.l.b16 %v3384
      %v5251 = vunpack.c.h.b16 %v3384
      %v5252 = vunpack.c.l.b16 %v3385
      %v5253 = vunpack.c.h.b16 %v3385
      %v5254 = vunpack.c.l.b16 %v3386
      %v5255 = vunpack.c.h.b16 %v3386
      %v5256 = vunpack.c.l.b16 %v3387
      %v5257 = vunpack.c.h.b16 %v3387
      %v5258 = vunpack.c.l.b16 %v3388
      %v5259 = vunpack.c.h.b16 %v3388
      %v5260 = vunpack.c.l.b16 %v3389
      %v5261 = vunpack.c.h.b16 %v3389
      %v5262 = vunpack.c.l.b16 %v3390
      %v5263 = vunpack.c.h.b16 %v3390
      %v5264 = vunpack.c.l.b16 %v3391
      %v5265 = vunpack.c.h.b16 %v3391
      %v5266 = vunpack.c.l.b16 %v3392
      %v5267 = vunpack.c.h.b16 %v3392
      %v5268 = vunpack.c.l.b16 %v3393
      %v5269 = vunpack.c.h.b16 %v3393
      %v5270 = vpack.c.b16 %v4078, %v4070
      %v5271 = vpack.c.b16 %v4079, %v4071
      %v5272 = vpack.c.b16 %v4080, %v4072
      %v5273 = vpack.c.b16 %v4081, %v4073
      %v5274 = vpack.c.b16 %v4082, %v4074
      %v5275 = vpack.c.b16 %v4083, %v4075
      %v5276 = vpack.c.b16 %v4084, %v4076
      %v5277 = vpack.c.b16 %v4085, %v4077
      %v5278 = vpack.c.b16 %v4094, %v4086
      %v5279 = vpack.c.b16 %v4095, %v4087
      %v5280 = vpack.c.b16 %v4096, %v4088
      %v5281 = vpack.c.b16 %v4097, %v4089
      %v5282 = vpack.c.b16 %v4098, %v4090
      %v5283 = vpack.c.b16 %v4099, %v4091
      %v5284 = vpack.c.b16 %v4100, %v4092
      %v5285 = vpack.c.b16 %v4101, %v4093
      %v5286 = vpack.c.b16 %v4110, %v4102
      %v5287 = vpack.c.b16 %v4111, %v4103
      %v5288 = vpack.c.b16 %v4112, %v4104
      %v5289 = vpack.c.b16 %v4113, %v4105
      %v5290 = vpack.c.b16 %v4114, %v4106
      %v5291 = vpack.c.b16 %v4115, %v4107
      %v5292 = vpack.c.b16 %v4116, %v4108
      %v5293 = vpack.c.b16 %v4117, %v4109
      %v5294 = vpack.c.b16 %v4126, %v4118
      %v5295 = vpack.c.b16 %v4127, %v4119
      %v5296 = vpack.c.b16 %v4128, %v4120
      %v5297 = vpack.c.b16 %v4129, %v4121
      %v5298 = vpack.c.b16 %v4130, %v4122
      %v5299 = vpack.c.b16 %v4131, %v4123
      %v5300 = vpack.c.b16 %v4132, %v4124
      %v5301 = vpack.c.b16 %v4133, %v4125
      %v5302 = vpack.c.b16 %v4142, %v4134
      %v5303 = vpack.c.b16 %v4143, %v4135
      %v5304 = vpack.c.b16 %v4144, %v4136
      %v5305 = vpack.c.b16 %v4145, %v4137
      %v5306 = vpack.c.b16 %v4146, %v4138
      %v5307 = vpack.c.b16 %v4147, %v4139
      %v5308 = vpack.c.b16 %v4148, %v4140
      %v5309 = vpack.c.b16 %v4149, %v4141
      %v5310 = vpack.c.b16 %v4158, %v4150
      %v5311 = vpack.c.b16 %v4159, %v4151
      %v5312 = vpack.c.b16 %v4160, %v4152
      %v5313 = vpack.c.b16 %v4161, %v4153
      %v5314 = vpack.c.b16 %v4162, %v4154
      %v5315 = vpack.c.b16 %v4163, %v4155
      %v5316 = vpack.c.b16 %v4164, %v4156
      %v5317 = vpack.c.b16 %v4165, %v4157
      %v5318 = vpack.c.b16 %v4174, %v4166
      %v5319 = vpack.c.b16 %v4175, %v4167
      %v5320 = vpack.c.b16 %v4176, %v4168
      %v5321 = vpack.c.b16 %v4177, %v4169
      %v5322 = vpack.c.b16 %v4178, %v4170
      %v5323 = vpack.c.b16 %v4179, %v4171
      %v5324 = vpack.c.b16 %v4180, %v4172
      %v5325 = vpack.c.b16 %v4181, %v4173
      %v5326 = vpack.c.b16 %v4190, %v4182
      %v5327 = vpack.c.b16 %v4191, %v4183
      %v5328 = vpack.c.b16 %v4192, %v4184
      %v5329 = vpack.c.b16 %v4193, %v4185
      %v5330 = vpack.c.b16 %v4194, %v4186
      %v5331 = vpack.c.b16 %v4195, %v4187
      %v5332 = vpack.c.b16 %v4196, %v4188
      %v5333 = vpack.c.b16 %v4197, %v4189
      %v5334 = vpack.c.b16 %v4206, %v4198
      %v5335 = vpack.c.b16 %v4207, %v4199
      %v5336 = vpack.c.b16 %v4208, %v4200
      %v5337 = vpack.c.b16 %v4209, %v4201
      %v5338 = vpack.c.b16 %v4210, %v4202
      %v5339 = vpack.c.b16 %v4211, %v4203
      %v5340 = vpack.c.b16 %v4212, %v4204
      %v5341 = vpack.c.b16 %v4213, %v4205
      %v5342 = vpack.c.b16 %v4222, %v4214
      %v5343 = vpack.c.b16 %v4223, %v4215
      %v5344 = vpack.c.b16 %v4224, %v4216
      %v5345 = vpack.c.b16 %v4225, %v4217
      %v5346 = vpack.c.b16 %v4226, %v4218
      %v5347 = vpack.c.b16 %v4227, %v4219
      %v5348 = vpack.c.b16 %v4228, %v4220
      %v5349 = vpack.c.b16 %v4229, %v4221
      %v5350 = vpack.c.b16 %v4238, %v4230
      %v5351 = vpack.c.b16 %v4239, %v4231
      %v5352 = vpack.c.b16 %v4240, %v4232
      %v5353 = vpack.c.b16 %v4241, %v4233
      %v5354 = vpack.c.b16 %v4242, %v4234
      %v5355 = vpack.c.b16 %v4243, %v4235
      %v5356 = vpack.c.b16 %v4244, %v4236
      %v5357 = vpack.c.b16 %v4245, %v4237
      %v5358 = vpack.c.b16 %v4254, %v4246
      %v5359 = vpack.c.b16 %v4255, %v4247
      %v5360 = vpack.c.b16 %v4256, %v4248
      %v5361 = vpack.c.b16 %v4257, %v4249
      %v5362 = vpack.c.b16 %v4258, %v4250
      %v5363 = vpack.c.b16 %v4259, %v4251
      %v5364 = vpack.c.b16 %v4260, %v4252
      %v5365 = vpack.c.b16 %v4261, %v4253
      %v5366 = vpack.c.b16 %v4270, %v4262
      %v5367 = vpack.c.b16 %v4271, %v4263
      %v5368 = vpack.c.b16 %v4272, %v4264
      %v5369 = vpack.c.b16 %v4273, %v4265
      %v5370 = vpack.c.b16 %v4274, %v4266
      %v5371 = vpack.c.b16 %v4275, %v4267
      %v5372 = vpack.c.b16 %v4276, %v4268
      %v5373 = vpack.c.b16 %v4277, %v4269
      %v5374 = vpack.c.b16 %v4286, %v4278
      %v5375 = vpack.c.b16 %v4287, %v4279
      %v5376 = vpack.c.b16 %v4288, %v4280
      %v5377 = vpack.c.b16 %v4289, %v4281
      %v5378 = vpack.c.b16 %v4290, %v4282
      %v5379 = vpack.c.b16 %v4291, %v4283
      %v5380 = vpack.c.b16 %v4292, %v4284
      %v5381 = vpack.c.b16 %v4293, %v4285
      %v5382 = vpack.c.b16 %v4302, %v4294
      %v5383 = vpack.c.b16 %v4303, %v4295
      %v5384 = vpack.c.b16 %v4304, %v4296
      %v5385 = vpack.c.b16 %v4305, %v4297
      %v5386 = vpack.c.b16 %v4306, %v4298
      %v5387 = vpack.c.b16 %v4307, %v4299
      %v5388 = vpack.c.b16 %v4308, %v4300
      %v5389 = vpack.c.b16 %v4309, %v4301
      %v5390 = vpack.c.b16 %v4318, %v4310
      %v5391 = vpack.c.b16 %v4319, %v4311
      %v5392 = vpack.c.b16 %v4320, %v4312
      %v5393 = vpack.c.b16 %v4321, %v4313
      %v5394 = vpack.c.b16 %v4322, %v4314
      %v5395 = vpack.c.b16 %v4323, %v4315
      %v5396 = vpack.c.b16 %v4324, %v4316
      %v5397 = vpack.c.b16 %v4325, %v4317
      %v5398 = vpack.c.b16 %v4334, %v4326
      %v5399 = vpack.c.b16 %v4335, %v4327
      %v5400 = vpack.c.b16 %v4336, %v4328
      %v5401 = vpack.c.b16 %v4337, %v4329
      %v5402 = vpack.c.b16 %v4338, %v4330
      %v5403 = vpack.c.b16 %v4339, %v4331
      %v5404 = vpack.c.b16 %v4340, %v4332
      %v5405 = vpack.c.b16 %v4341, %v4333
      %v5406 = vpack.c.b16 %v4350, %v4342
      %v5407 = vpack.c.b16 %v4351, %v4343
      %v5408 = vpack.c.b16 %v4352, %v4344
      %v5409 = vpack.c.b16 %v4353, %v4345
      %v5410 = vpack.c.b16 %v4354, %v4346
      %v5411 = vpack.c.b16 %v4355, %v4347
      %v5412 = vpack.c.b16 %v4356, %v4348
      %v5413 = vpack.c.b16 %v4357, %v4349
      %v5414 = vpack.c.b16 %v4366, %v4358
      %v5415 = vpack.c.b16 %v4367, %v4359
      %v5416 = vpack.c.b16 %v4368, %v4360
      %v5417 = vpack.c.b16 %v4369, %v4361
      %v5418 = vpack.c.b16 %v4370, %v4362
      %v5419 = vpack.c.b16 %v4371, %v4363
      %v5420 = vpack.c.b16 %v4372, %v4364
      %v5421 = vpack.c.b16 %v4373, %v4365
      %v5422 = vpack.c.b16 %v4382, %v4374
      %v5423 = vpack.c.b16 %v4383, %v4375
      %v5424 = vpack.c.b16 %v4384, %v4376
      %v5425 = vpack.c.b16 %v4385, %v4377
      %v5426 = vpack.c.b16 %v4386, %v4378
      %v5427 = vpack.c.b16 %v4387, %v4379
      %v5428 = vpack.c.b16 %v4388, %v4380
      %v5429 = vpack.c.b16 %v4389, %v4381
      %v5430 = vpack.c.b16 %v4398, %v4390
      %v5431 = vpack.c.b16 %v4399, %v4391
      %v5432 = vpack.c.b16 %v4400, %v4392
      %v5433 = vpack.c.b16 %v4401, %v4393
      %v5434 = vpack.c.b16 %v4402, %v4394
      %v5435 = vpack.c.b16 %v4403, %v4395
      %v5436 = vpack.c.b16 %v4404, %v4396
      %v5437 = vpack.c.b16 %v4405, %v4397
      %v5438 = vpack.c.b16 %v4414, %v4406
      %v5439 = vpack.c.b16 %v4415, %v4407
      %v5440 = vpack.c.b16 %v4416, %v4408
      %v5441 = vpack.c.b16 %v4417, %v4409
      %v5442 = vpack.c.b16 %v4418, %v4410
      %v5443 = vpack.c.b16 %v4419, %v4411
      %v5444 = vpack.c.b16 %v4420, %v4412
      %v5445 = vpack.c.b16 %v4421, %v4413
      %v5446 = vpack.c.b16 %v4430, %v4422
      %v5447 = vpack.c.b16 %v4431, %v4423
      %v5448 = vpack.c.b16 %v4432, %v4424
      %v5449 = vpack.c.b16 %v4433, %v4425
      %v5450 = vpack.c.b16 %v4434, %v4426
      %v5451 = vpack.c.b16 %v4435, %v4427
      %v5452 = vpack.c.b16 %v4436, %v4428
      %v5453 = vpack.c.b16 %v4437, %v4429
      %v5454 = vpack.c.b16 %v4446, %v4438
      %v5455 = vpack.c.b16 %v4447, %v4439
      %v5456 = vpack.c.b16 %v4448, %v4440
      %v5457 = vpack.c.b16 %v4449, %v4441
      %v5458 = vpack.c.b16 %v4450, %v4442
      %v5459 = vpack.c.b16 %v4451, %v4443
      %v5460 = vpack.c.b16 %v4452, %v4444
      %v5461 = vpack.c.b16 %v4453, %v4445
      %v5462 = vpack.c.b16 %v4462, %v4454
      %v5463 = vpack.c.b16 %v4463, %v4455
      %v5464 = vpack.c.b16 %v4464, %v4456
      %v5465 = vpack.c.b16 %v4465, %v4457
      %v5466 = vpack.c.b16 %v4466, %v4458
      %v5467 = vpack.c.b16 %v4467, %v4459
      %v5468 = vpack.c.b16 %v4468, %v4460
      %v5469 = vpack.c.b16 %v4469, %v4461
      %v5470 = vpack.c.b16 %v4478, %v4470
      %v5471 = vpack.c.b16 %v4479, %v4471
      %v5472 = vpack.c.b16 %v4480, %v4472
      %v5473 = vpack.c.b16 %v4481, %v4473
      %v5474 = vpack.c.b16 %v4482, %v4474
      %v5475 = vpack.c.b16 %v4483, %v4475
      %v5476 = vpack.c.b16 %v4484, %v4476
      %v5477 = vpack.c.b16 %v4485, %v4477
      %v5478 = vpack.c.b16 %v4494, %v4486
      %v5479 = vpack.c.b16 %v4495, %v4487
      %v5480 = vpack.c.b16 %v4496, %v4488
      %v5481 = vpack.c.b16 %v4497, %v4489
      %v5482 = vpack.c.b16 %v4498, %v4490
      %v5483 = vpack.c.b16 %v4499, %v4491
      %v5484 = vpack.c.b16 %v4500, %v4492
      %v5485 = vpack.c.b16 %v4501, %v4493
      %v5486 = vpack.c.b16 %v4510, %v4502
      %v5487 = vpack.c.b16 %v4511, %v4503
      %v5488 = vpack.c.b16 %v4512, %v4504
      %v5489 = vpack.c.b16 %v4513, %v4505
      %v5490 = vpack.c.b16 %v4514, %v4506
      %v5491 = vpack.c.b16 %v4515, %v4507
      %v5492 = vpack.c.b16 %v4516, %v4508
      %v5493 = vpack.c.b16 %v4517, %v4509
      %v5494 = vpack.c.b16 %v4526, %v4518
      %v5495 = vpack.c.b16 %v4527, %v4519
      %v5496 = vpack.c.b16 %v4528, %v4520
      %v5497 = vpack.c.b16 %v4529, %v4521
      %v5498 = vpack.c.b16 %v4530, %v4522
      %v5499 = vpack.c.b16 %v4531, %v4523
      %v5500 = vpack.c.b16 %v4532, %v4524
      %v5501 = vpack.c.b16 %v4533, %v4525
      %v5502 = vpack.c.b16 %v4542, %v4534
      %v5503 = vpack.c.b16 %v4543, %v4535
      %v5504 = vpack.c.b16 %v4544, %v4536
      %v5505 = vpack.c.b16 %v4545, %v4537
      %v5506 = vpack.c.b16 %v4546, %v4538
      %v5507 = vpack.c.b16 %v4547, %v4539
      %v5508 = vpack.c.b16 %v4548, %v4540
      %v5509 = vpack.c.b16 %v4549, %v4541
      %v5510 = vpack.c.b16 %v4558, %v4550
      %v5511 = vpack.c.b16 %v4559, %v4551
      %v5512 = vpack.c.b16 %v4560, %v4552
      %v5513 = vpack.c.b16 %v4561, %v4553
      %v5514 = vpack.c.b16 %v4562, %v4554
      %v5515 = vpack.c.b16 %v4563, %v4555
      %v5516 = vpack.c.b16 %v4564, %v4556
      %v5517 = vpack.c.b16 %v4565, %v4557
      %v5518 = vpack.c.b16 %v4574, %v4566
      %v5519 = vpack.c.b16 %v4575, %v4567
      %v5520 = vpack.c.b16 %v4576, %v4568
      %v5521 = vpack.c.b16 %v4577, %v4569
      %v5522 = vpack.c.b16 %v4578, %v4570
      %v5523 = vpack.c.b16 %v4579, %v4571
      %v5524 = vpack.c.b16 %v4580, %v4572
      %v5525 = vpack.c.b16 %v4581, %v4573
      %v5526 = vpack.c.b16 %v4590, %v4582
      %v5527 = vpack.c.b16 %v4591, %v4583
      %v5528 = vpack.c.b16 %v4592, %v4584
      %v5529 = vpack.c.b16 %v4593, %v4585
      %v5530 = vpack.c.b16 %v4594, %v4586
      %v5531 = vpack.c.b16 %v4595, %v4587
      %v5532 = vpack.c.b16 %v4596, %v4588
      %v5533 = vpack.c.b16 %v4597, %v4589
      %v5534 = vpack.c.b16 %v4606, %v4598
      %v5535 = vpack.c.b16 %v4607, %v4599
      %v5536 = vpack.c.b16 %v4608, %v4600
      %v5537 = vpack.c.b16 %v4609, %v4601
      %v5538 = vpack.c.b16 %v4610, %v4602
      %v5539 = vpack.c.b16 %v4611, %v4603
      %v5540 = vpack.c.b16 %v4612, %v4604
      %v5541 = vpack.c.b16 %v4613, %v4605
      %v5542 = vpack.c.b16 %v4622, %v4614
      %v5543 = vpack.c.b16 %v4623, %v4615
      %v5544 = vpack.c.b16 %v4624, %v4616
      %v5545 = vpack.c.b16 %v4625, %v4617
      %v5546 = vpack.c.b16 %v4626, %v4618
      %v5547 = vpack.c.b16 %v4627, %v4619
      %v5548 = vpack.c.b16 %v4628, %v4620
      %v5549 = vpack.c.b16 %v4629, %v4621
      %v5550 = vpack.c.b16 %v4638, %v4630
      %v5551 = vpack.c.b16 %v4639, %v4631
      %v5552 = vpack.c.b16 %v4640, %v4632
      %v5553 = vpack.c.b16 %v4641, %v4633
      %v5554 = vpack.c.b16 %v4642, %v4634
      %v5555 = vpack.c.b16 %v4643, %v4635
      %v5556 = vpack.c.b16 %v4644, %v4636
      %v5557 = vpack.c.b16 %v4645, %v4637
      %v5558 = vpack.c.b16 %v4654, %v4646
      %v5559 = vpack.c.b16 %v4655, %v4647
      %v5560 = vpack.c.b16 %v4656, %v4648
      %v5561 = vpack.c.b16 %v4657, %v4649
      %v5562 = vpack.c.b16 %v4658, %v4650
      %v5563 = vpack.c.b16 %v4659, %v4651
      %v5564 = vpack.c.b16 %v4660, %v4652
      %v5565 = vpack.c.b16 %v4661, %v4653
      %v5566 = vpack.c.b16 %v4670, %v4662
      %v5567 = vpack.c.b16 %v4671, %v4663
      %v5568 = vpack.c.b16 %v4672, %v4664
      %v5569 = vpack.c.b16 %v4673, %v4665
      %v5570 = vpack.c.b16 %v4674, %v4666
      %v5571 = vpack.c.b16 %v4675, %v4667
      %v5572 = vpack.c.b16 %v4676, %v4668
      %v5573 = vpack.c.b16 %v4677, %v4669
      %v5574 = vpack.c.b16 %v4686, %v4678
      %v5575 = vpack.c.b16 %v4687, %v4679
      %v5576 = vpack.c.b16 %v4688, %v4680
      %v5577 = vpack.c.b16 %v4689, %v4681
      %v5578 = vpack.c.b16 %v4690, %v4682
      %v5579 = vpack.c.b16 %v4691, %v4683
      %v5580 = vpack.c.b16 %v4692, %v4684
      %v5581 = vpack.c.b16 %v4693, %v4685
      %v5582 = vpack.c.b16 %v4702, %v4694
      %v5583 = vpack.c.b16 %v4703, %v4695
      %v5584 = vpack.c.b16 %v4704, %v4696
      %v5585 = vpack.c.b16 %v4705, %v4697
      %v5586 = vpack.c.b16 %v4706, %v4698
      %v5587 = vpack.c.b16 %v4707, %v4699
      %v5588 = vpack.c.b16 %v4708, %v4700
      %v5589 = vpack.c.b16 %v4709, %v4701
      %v5590 = vpack.c.b16 %v4718, %v4710
      %v5591 = vpack.c.b16 %v4719, %v4711
      %v5592 = vpack.c.b16 %v4720, %v4712
      %v5593 = vpack.c.b16 %v4721, %v4713
      %v5594 = vpack.c.b16 %v4722, %v4714
      %v5595 = vpack.c.b16 %v4723, %v4715
      %v5596 = vpack.c.b16 %v4724, %v4716
      %v5597 = vpack.c.b16 %v4725, %v4717
      %v5598 = vpack.c.b16 %v4734, %v4726
      %v5599 = vpack.c.b16 %v4735, %v4727
      %v5600 = vpack.c.b16 %v4736, %v4728
      %v5601 = vpack.c.b16 %v4737, %v4729
      %v5602 = vpack.c.b16 %v4738, %v4730
      %v5603 = vpack.c.b16 %v4739, %v4731
      %v5604 = vpack.c.b16 %v4740, %v4732
      %v5605 = vpack.c.b16 %v4741, %v4733
      %v5606 = vpack.c.b16 %v4750, %v4742
      %v5607 = vpack.c.b16 %v4751, %v4743
      %v5608 = vpack.c.b16 %v4752, %v4744
      %v5609 = vpack.c.b16 %v4753, %v4745
      %v5610 = vpack.c.b16 %v4754, %v4746
      %v5611 = vpack.c.b16 %v4755, %v4747
      %v5612 = vpack.c.b16 %v4756, %v4748
      %v5613 = vpack.c.b16 %v4757, %v4749
      %v5614 = vpack.c.b16 %v4766, %v4758
      %v5615 = vpack.c.b16 %v4767, %v4759
      %v5616 = vpack.c.b16 %v4768, %v4760
      %v5617 = vpack.c.b16 %v4769, %v4761
      %v5618 = vpack.c.b16 %v4770, %v4762
      %v5619 = vpack.c.b16 %v4771, %v4763
      %v5620 = vpack.c.b16 %v4772, %v4764
      %v5621 = vpack.c.b16 %v4773, %v4765
      %v5622 = vpack.c.b16 %v4782, %v4774
      %v5623 = vpack.c.b16 %v4783, %v4775
      %v5624 = vpack.c.b16 %v4784, %v4776
      %v5625 = vpack.c.b16 %v4785, %v4777
      %v5626 = vpack.c.b16 %v4786, %v4778
      %v5627 = vpack.c.b16 %v4787, %v4779
      %v5628 = vpack.c.b16 %v4788, %v4780
      %v5629 = vpack.c.b16 %v4789, %v4781
      %v5630 = vpack.c.b16 %v4798, %v4790
      %v5631 = vpack.c.b16 %v4799, %v4791
      %v5632 = vpack.c.b16 %v4800, %v4792
      %v5633 = vpack.c.b16 %v4801, %v4793
      %v5634 = vpack.c.b16 %v4802, %v4794
      %v5635 = vpack.c.b16 %v4803, %v4795
      %v5636 = vpack.c.b16 %v4804, %v4796
      %v5637 = vpack.c.b16 %v4805, %v4797
      %v5638 = vpack.c.b16 %v4814, %v4806
      %v5639 = vpack.c.b16 %v4815, %v4807
      %v5640 = vpack.c.b16 %v4816, %v4808
      %v5641 = vpack.c.b16 %v4817, %v4809
      %v5642 = vpack.c.b16 %v4818, %v4810
      %v5643 = vpack.c.b16 %v4819, %v4811
      %v5644 = vpack.c.b16 %v4820, %v4812
      %v5645 = vpack.c.b16 %v4821, %v4813
      %v5646 = vpack.c.b16 %v4830, %v4822
      %v5647 = vpack.c.b16 %v4831, %v4823
      %v5648 = vpack.c.b16 %v4832, %v4824
      %v5649 = vpack.c.b16 %v4833, %v4825
      %v5650 = vpack.c.b16 %v4834, %v4826
      %v5651 = vpack.c.b16 %v4835, %v4827
      %v5652 = vpack.c.b16 %v4836, %v4828
      %v5653 = vpack.c.b16 %v4837, %v4829
      %v5654 = vpack.c.b16 %v4846, %v4838
      %v5655 = vpack.c.b16 %v4847, %v4839
      %v5656 = vpack.c.b16 %v4848, %v4840
      %v5657 = vpack.c.b16 %v4849, %v4841
      %v5658 = vpack.c.b16 %v4850, %v4842
      %v5659 = vpack.c.b16 %v4851, %v4843
      %v5660 = vpack.c.b16 %v4852, %v4844
      %v5661 = vpack.c.b16 %v4853, %v4845
      %v5662 = vpack.c.b16 %v4862, %v4854
      %v5663 = vpack.c.b16 %v4863, %v4855
      %v5664 = vpack.c.b16 %v4864, %v4856
      %v5665 = vpack.c.b16 %v4865, %v4857
      %v5666 = vpack.c.b16 %v4866, %v4858
      %v5667 = vpack.c.b16 %v4867, %v4859
      %v5668 = vpack.c.b16 %v4868, %v4860
      %v5669 = vpack.c.b16 %v4869, %v4861
      %v5670 = vpack.c.b16 %v4878, %v4870
      %v5671 = vpack.c.b16 %v4879, %v4871
      %v5672 = vpack.c.b16 %v4880, %v4872
      %v5673 = vpack.c.b16 %v4881, %v4873
      %v5674 = vpack.c.b16 %v4882, %v4874
      %v5675 = vpack.c.b16 %v4883, %v4875
      %v5676 = vpack.c.b16 %v4884, %v4876
      %v5677 = vpack.c.b16 %v4885, %v4877
      %v5678 = vpack.c.b16 %v4894, %v4886
      %v5679 = vpack.c.b16 %v4895, %v4887
      %v5680 = vpack.c.b16 %v4896, %v4888
      %v5681 = vpack.c.b16 %v4897, %v4889
      %v5682 = vpack.c.b16 %v4898, %v4890
      %v5683 = vpack.c.b16 %v4899, %v4891
      %v5684 = vpack.c.b16 %v4900, %v4892
      %v5685 = vpack.c.b16 %v4901, %v4893
      %v5686 = vpack.c.b16 %v4910, %v4902
      %v5687 = vpack.c.b16 %v4911, %v4903
      %v5688 = vpack.c.b16 %v4912, %v4904
      %v5689 = vpack.c.b16 %v4913, %v4905
      %v5690 = vpack.c.b16 %v4914, %v4906
      %v5691 = vpack.c.b16 %v4915, %v4907
      %v5692 = vpack.c.b16 %v4916, %v4908
      %v5693 = vpack.c.b16 %v4917, %v4909
      %v5694 = vpack.c.b16 %v4926, %v4918
      %v5695 = vpack.c.b16 %v4927, %v4919
      %v5696 = vpack.c.b16 %v4928, %v4920
      %v5697 = vpack.c.b16 %v4929, %v4921
      %v5698 = vpack.c.b16 %v4930, %v4922
      %v5699 = vpack.c.b16 %v4931, %v4923
      %v5700 = vpack.c.b16 %v4932, %v4924
      %v5701 = vpack.c.b16 %v4933, %v4925
      %v5702 = vpack.c.b16 %v4942, %v4934
      %v5703 = vpack.c.b16 %v4943, %v4935
      %v5704 = vpack.c.b16 %v4944, %v4936
      %v5705 = vpack.c.b16 %v4945, %v4937
      %v5706 = vpack.c.b16 %v4946, %v4938
      %v5707 = vpack.c.b16 %v4947, %v4939
      %v5708 = vpack.c.b16 %v4948, %v4940
      %v5709 = vpack.c.b16 %v4949, %v4941
      %v5710 = vpack.c.b16 %v4958, %v4950
      %v5711 = vpack.c.b16 %v4959, %v4951
      %v5712 = vpack.c.b16 %v4960, %v4952
      %v5713 = vpack.c.b16 %v4961, %v4953
      %v5714 = vpack.c.b16 %v4962, %v4954
      %v5715 = vpack.c.b16 %v4963, %v4955
      %v5716 = vpack.c.b16 %v4964, %v4956
      %v5717 = vpack.c.b16 %v4965, %v4957
      %v5718 = vpack.c.b16 %v4974, %v4966
      %v5719 = vpack.c.b16 %v4975, %v4967
      %v5720 = vpack.c.b16 %v4976, %v4968
      %v5721 = vpack.c.b16 %v4977, %v4969
      %v5722 = vpack.c.b16 %v4978, %v4970
      %v5723 = vpack.c.b16 %v4979, %v4971
      %v5724 = vpack.c.b16 %v4980, %v4972
      %v5725 = vpack.c.b16 %v4981, %v4973
      %v5726 = vpack.c.b16 %v4990, %v4982
      %v5727 = vpack.c.b16 %v4991, %v4983
      %v5728 = vpack.c.b16 %v4992, %v4984
      %v5729 = vpack.c.b16 %v4993, %v4985
      %v5730 = vpack.c.b16 %v4994, %v4986
      %v5731 = vpack.c.b16 %v4995, %v4987
      %v5732 = vpack.c.b16 %v4996, %v4988
      %v5733 = vpack.c.b16 %v4997, %v4989
      %v5734 = vpack.c.b16 %v5006, %v4998
      %v5735 = vpack.c.b16 %v5007, %v4999
      %v5736 = vpack.c.b16 %v5008, %v5000
      %v5737 = vpack.c.b16 %v5009, %v5001
      %v5738 = vpack.c.b16 %v5010, %v5002
      %v5739 = vpack.c.b16 %v5011, %v5003
      %v5740 = vpack.c.b16 %v5012, %v5004
      %v5741 = vpack.c.b16 %v5013, %v5005
      %v5742 = vpack.c.b16 %v5022, %v5014
      %v5743 = vpack.c.b16 %v5023, %v5015
      %v5744 = vpack.c.b16 %v5024, %v5016
      %v5745 = vpack.c.b16 %v5025, %v5017
      %v5746 = vpack.c.b16 %v5026, %v5018
      %v5747 = vpack.c.b16 %v5027, %v5019
      %v5748 = vpack.c.b16 %v5028, %v5020
      %v5749 = vpack.c.b16 %v5029, %v5021
      %v5750 = vpack.c.b16 %v5038, %v5030
      %v5751 = vpack.c.b16 %v5039, %v5031
      %v5752 = vpack.c.b16 %v5040, %v5032
      %v5753 = vpack.c.b16 %v5041, %v5033
      %v5754 = vpack.c.b16 %v5042, %v5034
      %v5755 = vpack.c.b16 %v5043, %v5035
      %v5756 = vpack.c.b16 %v5044, %v5036
      %v5757 = vpack.c.b16 %v5045, %v5037
      %v5758 = vpack.c.b16 %v5054, %v5046
      %v5759 = vpack.c.b16 %v5055, %v5047
      %v5760 = vpack.c.b16 %v5056, %v5048
      %v5761 = vpack.c.b16 %v5057, %v5049
      %v5762 = vpack.c.b16 %v5058, %v5050
      %v5763 = vpack.c.b16 %v5059, %v5051
      %v5764 = vpack.c.b16 %v5060, %v5052
      %v5765 = vpack.c.b16 %v5061, %v5053
      %v5766 = vpack.c.b16 %v5070, %v5062
      %v5767 = vpack.c.b16 %v5071, %v5063
      %v5768 = vpack.c.b16 %v5072, %v5064
      %v5769 = vpack.c.b16 %v5073, %v5065
      %v5770 = vpack.c.b16 %v5074, %v5066
      %v5771 = vpack.c.b16 %v5075, %v5067
      %v5772 = vpack.c.b16 %v5076, %v5068
      %v5773 = vpack.c.b16 %v5077, %v5069
      %v5774 = vpack.c.b16 %v5086, %v5078
      %v5775 = vpack.c.b16 %v5087, %v5079
      %v5776 = vpack.c.b16 %v5088, %v5080
      %v5777 = vpack.c.b16 %v5089, %v5081
      %v5778 = vpack.c.b16 %v5090, %v5082
      %v5779 = vpack.c.b16 %v5091, %v5083
      %v5780 = vpack.c.b16 %v5092, %v5084
      %v5781 = vpack.c.b16 %v5093, %v5085
      %v5782 = vpack.c.b16 %v5102, %v5094
      %v5783 = vpack.c.b16 %v5103, %v5095
      %v5784 = vpack.c.b16 %v5104, %v5096
      %v5785 = vpack.c.b16 %v5105, %v5097
      %v5786 = vpack.c.b16 %v5106, %v5098
      %v5787 = vpack.c.b16 %v5107, %v5099
      %v5788 = vpack.c.b16 %v5108, %v5100
      %v5789 = vpack.c.b16 %v5109, %v5101
      %v5790 = vpack.c.b16 %v5118, %v5110
      %v5791 = vpack.c.b16 %v5119, %v5111
      %v5792 = vpack.c.b16 %v5120, %v5112
      %v5793 = vpack.c.b16 %v5121, %v5113
      %v5794 = vpack.c.b16 %v5122, %v5114
      %v5795 = vpack.c.b16 %v5123, %v5115
      %v5796 = vpack.c.b16 %v5124, %v5116
      %v5797 = vpack.c.b16 %v5125, %v5117
      %v5798 = vpack.c.b16 %v5134, %v5126
      %v5799 = vpack.c.b16 %v5135, %v5127
      %v5800 = vpack.c.b16 %v5136, %v5128
      %v5801 = vpack.c.b16 %v5137, %v5129
      %v5802 = vpack.c.b16 %v5138, %v5130
      %v5803 = vpack.c.b16 %v5139, %v5131
      %v5804 = vpack.c.b16 %v5140, %v5132
      %v5805 = vpack.c.b16 %v5141, %v5133
      %v5806 = vpack.c.b16 %v5150, %v5142
      %v5807 = vpack.c.b16 %v5151, %v5143
      %v5808 = vpack.c.b16 %v5152, %v5144
      %v5809 = vpack.c.b16 %v5153, %v5145
      %v5810 = vpack.c.b16 %v5154, %v5146
      %v5811 = vpack.c.b16 %v5155, %v5147
      %v5812 = vpack.c.b16 %v5156, %v5148
      %v5813 = vpack.c.b16 %v5157, %v5149
      %v5814 = vpack.c.b16 %v5166, %v5158
      %v5815 = vpack.c.b16 %v5167, %v5159
      %v5816 = vpack.c.b16 %v5168, %v5160
      %v5817 = vpack.c.b16 %v5169, %v5161
      %v5818 = vpack.c.b16 %v5170, %v5162
      %v5819 = vpack.c.b16 %v5171, %v5163
      %v5820 = vpack.c.b16 %v5172, %v5164
      %v5821 = vpack.c.b16 %v5173, %v5165
      %v5822 = vpack.c.b16 %v5182, %v5174
      %v5823 = vpack.c.b16 %v5183, %v5175
      %v5824 = vpack.c.b16 %v5184, %v5176
      %v5825 = vpack.c.b16 %v5185, %v5177
      %v5826 = vpack.c.b16 %v5186, %v5178
      %v5827 = vpack.c.b16 %v5187, %v5179
      %v5828 = vpack.c.b16 %v5188, %v5180
      %v5829 = vpack.c.b16 %v5189, %v5181
      %v5830 = vpack.c.b16 %v5198, %v5190
      %v5831 = vpack.c.b16 %v5199, %v5191
      %v5832 = vpack.c.b16 %v5200, %v5192
      %v5833 = vpack.c.b16 %v5201, %v5193
      %v5834 = vpack.c.b16 %v5202, %v5194
      %v5835 = vpack.c.b16 %v5203, %v5195
      %v5836 = vpack.c.b16 %v5204, %v5196
      %v5837 = vpack.c.b16 %v5205, %v5197
      %v5838 = vpack.c.b16 %v5214, %v5206
      %v5839 = vpack.c.b16 %v5215, %v5207
      %v5840 = vpack.c.b16 %v5216, %v5208
      %v5841 = vpack.c.b16 %v5217, %v5209
      %v5842 = vpack.c.b16 %v5218, %v5210
      %v5843 = vpack.c.b16 %v5219, %v5211
      %v5844 = vpack.c.b16 %v5220, %v5212
      %v5845 = vpack.c.b16 %v5221, %v5213
      %v5846 = vpack.c.b16 %v5230, %v5222
      %v5847 = vpack.c.b16 %v5231, %v5223
      %v5848 = vpack.c.b16 %v5232, %v5224
      %v5849 = vpack.c.b16 %v5233, %v5225
      %v5850 = vpack.c.b16 %v5234, %v5226
      %v5851 = vpack.c.b16 %v5235, %v5227
      %v5852 = vpack.c.b16 %v5236, %v5228
      %v5853 = vpack.c.b16 %v5237, %v5229
      %v5854 = vpack.c.b16 %v5246, %v5238
      %v5855 = vpack.c.b16 %v5247, %v5239
      %v5856 = vpack.c.b16 %v5248, %v5240
      %v5857 = vpack.c.b16 %v5249, %v5241
      %v5858 = vpack.c.b16 %v5250, %v5242
      %v5859 = vpack.c.b16 %v5251, %v5243
      %v5860 = vpack.c.b16 %v5252, %v5244
      %v5861 = vpack.c.b16 %v5253, %v5245
      %v5862 = vpack.c.b16 %v5262, %v5254
      %v5863 = vpack.c.b16 %v5263, %v5255
      %v5864 = vpack.c.b16 %v5264, %v5256
      %v5865 = vpack.c.b16 %v5265, %v5257
      %v5866 = vpack.c.b16 %v5266, %v5258
      %v5867 = vpack.c.b16 %v5267, %v5259
      %v5868 = vpack.c.b16 %v5268, %v5260
      %v5869 = vpack.c.b16 %v5269, %v5261
      %v6471 = vsel %vm580, %v3403, 0
      %v6474 = vsel %vm580, %v3413, 0
      %v6477 = vsel %vm580, %v3423, 0
      %v6480 = vsel %vm580, %v3433, 0
      %6482 = vmatpush.bf16.msra.mxu0 %v5326
      %6483 = vmatpush.bf16.msra.mxu0 %v5318
      %6484 = vmatpush.bf16.msra.mxu0 %v5310
      %6485 = vmatpush.bf16.msra.mxu0 %v5302
      %6486 = vmatpush.bf16.msra.mxu0 %v5294
      %6487 = vmatpush.bf16.msra.mxu0 %v5286
      %6488 = vmatpush.bf16.msra.mxu0 %v5278
      %6489 = vmatpush.bf16.msra.mxu0 %v5270
      %6490 = vmatmul.bf16.gmra.mxu0 %v3394
      %v6491 = vpop.f32.mrf.mxu0
      %v6492 = vadd.f32 0.0, %v6491
      %v6493 = vpop.f32.mrf.mxu0
      %v6494 = vadd.f32 0.0, %v6493
      %6495 = vmatmul.bf16.gmra.mxu0 %v3404
      %v6496 = vpop.f32.mrf.mxu0
      %v6497 = vadd.f32 0.0, %v6496
      %v6498 = vpop.f32.mrf.mxu0
      %v6499 = vadd.f32 0.0, %v6498
      %6500 = vmatmul.bf16.gmra.mxu0 %v3414
      %v6501 = vpop.f32.mrf.mxu0
      %v6502 = vadd.f32 0.0, %v6501
      %v6503 = vpop.f32.mrf.mxu0
      %v6504 = vadd.f32 0.0, %v6503
      %6505 = vmatmul.bf16.gmra.mxu0 %v3424
      %v6506 = vpop.f32.mrf.mxu0
      %v6507 = vadd.f32 0.0, %v6506
      %v6508 = vpop.f32.mrf.mxu0
      %v6509 = vadd.f32 0.0, %v6508
      %6510 = vdwg.mxu0
      %6511 = vmatpush.bf16.msra.mxu0 %v5390
      %6512 = vmatpush.bf16.msra.mxu0 %v5382
      %6513 = vmatpush.bf16.msra.mxu0 %v5374
      %6514 = vmatpush.bf16.msra.mxu0 %v5366
      %6515 = vmatpush.bf16.msra.mxu0 %v5358
      %6516 = vmatpush.bf16.msra.mxu0 %v5350
      %6517 = vmatpush.bf16.msra.mxu0 %v5342
      %6518 = vmatpush.bf16.msra.mxu0 %v5334
      %6519 = vmatmul.bf16.gmra.mxu0 %v3395
      %v6520 = vpop.f32.mrf.mxu0
      %v6521 = vadd.f32 %v6492, %v6520
      %v6522 = vpop.f32.mrf.mxu0
      %v6523 = vadd.f32 %v6494, %v6522
      %6524 = vmatmul.bf16.gmra.mxu0 %v3405
      %v6525 = vpop.f32.mrf.mxu0
      %v6526 = vadd.f32 %v6497, %v6525
      %v6527 = vpop.f32.mrf.mxu0
      %v6528 = vadd.f32 %v6499, %v6527
      %6529 = vmatmul.bf16.gmra.mxu0 %v3415
      %v6530 = vpop.f32.mrf.mxu0
      %v6531 = vadd.f32 %v6502, %v6530
      %v6532 = vpop.f32.mrf.mxu0
      %v6533 = vadd.f32 %v6504, %v6532
      %6534 = vmatmul.bf16.gmra.mxu0 %v3425
      %v6535 = vpop.f32.mrf.mxu0
      %v6536 = vadd.f32 %v6507, %v6535
      %v6537 = vpop.f32.mrf.mxu0
      %v6538 = vadd.f32 %v6509, %v6537
      %6539 = vdwg.mxu0
      %6540 = vmatpush.bf16.msra.mxu0 %v5454
      %6541 = vmatpush.bf16.msra.mxu0 %v5446
      %6542 = vmatpush.bf16.msra.mxu0 %v5438
      %6543 = vmatpush.bf16.msra.mxu0 %v5430
      %6544 = vmatpush.bf16.msra.mxu0 %v5422
      %6545 = vmatpush.bf16.msra.mxu0 %v5414
      %6546 = vmatpush.bf16.msra.mxu0 %v5406
      %6547 = vmatpush.bf16.msra.mxu0 %v5398
      %6548 = vmatmul.bf16.gmra.mxu0 %v3396
      %v6549 = vpop.f32.mrf.mxu0
      %v6550 = vadd.f32 %v6521, %v6549
      %v6551 = vpop.f32.mrf.mxu0
      %v6552 = vadd.f32 %v6523, %v6551
      %6553 = vmatmul.bf16.gmra.mxu0 %v3406
      %v6554 = vpop.f32.mrf.mxu0
      %v6555 = vadd.f32 %v6526, %v6554
      %v6556 = vpop.f32.mrf.mxu0
      %v6557 = vadd.f32 %v6528, %v6556
      %6558 = vmatmul.bf16.gmra.mxu0 %v3416
      %v6559 = vpop.f32.mrf.mxu0
      %v6560 = vadd.f32 %v6531, %v6559
      %v6561 = vpop.f32.mrf.mxu0
      %v6562 = vadd.f32 %v6533, %v6561
      %6563 = vmatmul.bf16.gmra.mxu0 %v3426
      %v6564 = vpop.f32.mrf.mxu0
      %v6565 = vadd.f32 %v6536, %v6564
      %v6566 = vpop.f32.mrf.mxu0
      %v6567 = vadd.f32 %v6538, %v6566
      %6568 = vdwg.mxu0
      %6569 = vmatpush.bf16.msra.mxu0 %v5518
      %6570 = vmatpush.bf16.msra.mxu0 %v5510
      %6571 = vmatpush.bf16.msra.mxu0 %v5502
      %6572 = vmatpush.bf16.msra.mxu0 %v5494
      %6573 = vmatpush.bf16.msra.mxu0 %v5486
      %6574 = vmatpush.bf16.msra.mxu0 %v5478
      %6575 = vmatpush.bf16.msra.mxu0 %v5470
      %6576 = vmatpush.bf16.msra.mxu0 %v5462
      %6577 = vmatmul.bf16.gmra.mxu0 %v3397
      %v6578 = vpop.f32.mrf.mxu0
      %v6579 = vadd.f32 %v6550, %v6578
      %v6580 = vpop.f32.mrf.mxu0
      %v6581 = vadd.f32 %v6552, %v6580
      %6582 = vmatmul.bf16.gmra.mxu0 %v3407
      %v6583 = vpop.f32.mrf.mxu0
      %v6584 = vadd.f32 %v6555, %v6583
      %v6585 = vpop.f32.mrf.mxu0
      %v6586 = vadd.f32 %v6557, %v6585
      %6587 = vmatmul.bf16.gmra.mxu0 %v3417
      %v6588 = vpop.f32.mrf.mxu0
      %v6589 = vadd.f32 %v6560, %v6588
      %v6590 = vpop.f32.mrf.mxu0
      %v6591 = vadd.f32 %v6562, %v6590
      %6592 = vmatmul.bf16.gmra.mxu0 %v3427
      %v6593 = vpop.f32.mrf.mxu0
      %v6594 = vadd.f32 %v6565, %v6593
      %v6595 = vpop.f32.mrf.mxu0
      %v6596 = vadd.f32 %v6567, %v6595
      %6597 = vdwg.mxu0
      %6598 = vmatpush.bf16.msra.mxu0 %v5582
      %6599 = vmatpush.bf16.msra.mxu0 %v5574
      %6600 = vmatpush.bf16.msra.mxu0 %v5566
      %6601 = vmatpush.bf16.msra.mxu0 %v5558
      %6602 = vmatpush.bf16.msra.mxu0 %v5550
      %6603 = vmatpush.bf16.msra.mxu0 %v5542
      %6604 = vmatpush.bf16.msra.mxu0 %v5534
      %6605 = vmatpush.bf16.msra.mxu0 %v5526
      %6606 = vmatmul.bf16.gmra.mxu0 %v3398
      %v6607 = vpop.f32.mrf.mxu0
      %v6608 = vadd.f32 %v6579, %v6607
      %v6609 = vpop.f32.mrf.mxu0
      %v6610 = vadd.f32 %v6581, %v6609
      %6611 = vmatmul.bf16.gmra.mxu0 %v3408
      %v6612 = vpop.f32.mrf.mxu0
      %v6613 = vadd.f32 %v6584, %v6612
      %v6614 = vpop.f32.mrf.mxu0
      %v6615 = vadd.f32 %v6586, %v6614
      %6616 = vmatmul.bf16.gmra.mxu0 %v3418
      %v6617 = vpop.f32.mrf.mxu0
      %v6618 = vadd.f32 %v6589, %v6617
      %v6619 = vpop.f32.mrf.mxu0
      %v6620 = vadd.f32 %v6591, %v6619
      %6621 = vmatmul.bf16.gmra.mxu0 %v3428
      %v6622 = vpop.f32.mrf.mxu0
      %v6623 = vadd.f32 %v6594, %v6622
      %v6624 = vpop.f32.mrf.mxu0
      %v6625 = vadd.f32 %v6596, %v6624
      %6626 = vdwg.mxu0
      %6627 = vmatpush.bf16.msra.mxu0 %v5646
      %6628 = vmatpush.bf16.msra.mxu0 %v5638
      %6629 = vmatpush.bf16.msra.mxu0 %v5630
      %6630 = vmatpush.bf16.msra.mxu0 %v5622
      %6631 = vmatpush.bf16.msra.mxu0 %v5614
      %6632 = vmatpush.bf16.msra.mxu0 %v5606
      %6633 = vmatpush.bf16.msra.mxu0 %v5598
      %6634 = vmatpush.bf16.msra.mxu0 %v5590
      %6635 = vmatmul.bf16.gmra.mxu0 %v3399
      %v6636 = vpop.f32.mrf.mxu0
      %v6637 = vadd.f32 %v6608, %v6636
      %v6638 = vpop.f32.mrf.mxu0
      %v6639 = vadd.f32 %v6610, %v6638
      %6640 = vmatmul.bf16.gmra.mxu0 %v3409
      %v6641 = vpop.f32.mrf.mxu0
      %v6642 = vadd.f32 %v6613, %v6641
      %v6643 = vpop.f32.mrf.mxu0
      %v6644 = vadd.f32 %v6615, %v6643
      %6645 = vmatmul.bf16.gmra.mxu0 %v3419
      %v6646 = vpop.f32.mrf.mxu0
      %v6647 = vadd.f32 %v6618, %v6646
      %v6648 = vpop.f32.mrf.mxu0
      %v6649 = vadd.f32 %v6620, %v6648
      %6650 = vmatmul.bf16.gmra.mxu0 %v3429
      %v6651 = vpop.f32.mrf.mxu0
      %v6652 = vadd.f32 %v6623, %v6651
      %v6653 = vpop.f32.mrf.mxu0
      %v6654 = vadd.f32 %v6625, %v6653
      %6655 = vdwg.mxu0
      %6656 = vmatpush.bf16.msra.mxu0 %v5710
      %6657 = vmatpush.bf16.msra.mxu0 %v5702
      %6658 = vmatpush.bf16.msra.mxu0 %v5694
      %6659 = vmatpush.bf16.msra.mxu0 %v5686
      %6660 = vmatpush.bf16.msra.mxu0 %v5678
      %6661 = vmatpush.bf16.msra.mxu0 %v5670
      %6662 = vmatpush.bf16.msra.mxu0 %v5662
      %6663 = vmatpush.bf16.msra.mxu0 %v5654
      %6664 = vmatmul.bf16.gmra.mxu0 %v3400
      %v6665 = vpop.f32.mrf.mxu0
      %v6666 = vadd.f32 %v6637, %v6665
      %v6667 = vpop.f32.mrf.mxu0
      %v6668 = vadd.f32 %v6639, %v6667
      %6669 = vmatmul.bf16.gmra.mxu0 %v3410
      %v6670 = vpop.f32.mrf.mxu0
      %v6671 = vadd.f32 %v6642, %v6670
      %v6672 = vpop.f32.mrf.mxu0
      %v6673 = vadd.f32 %v6644, %v6672
      %6674 = vmatmul.bf16.gmra.mxu0 %v3420
      %v6675 = vpop.f32.mrf.mxu0
      %v6676 = vadd.f32 %v6647, %v6675
      %v6677 = vpop.f32.mrf.mxu0
      %v6678 = vadd.f32 %v6649, %v6677
      %6679 = vmatmul.bf16.gmra.mxu0 %v3430
      %v6680 = vpop.f32.mrf.mxu0
      %v6681 = vadd.f32 %v6652, %v6680
      %v6682 = vpop.f32.mrf.mxu0
      %v6683 = vadd.f32 %v6654, %v6682
      %6684 = vdwg.mxu0
      %6685 = vmatpush.bf16.msra.mxu0 %v5774
      %6686 = vmatpush.bf16.msra.mxu0 %v5766
      %6687 = vmatpush.bf16.msra.mxu0 %v5758
      %6688 = vmatpush.bf16.msra.mxu0 %v5750
      %6689 = vmatpush.bf16.msra.mxu0 %v5742
      %6690 = vmatpush.bf16.msra.mxu0 %v5734
      %6691 = vmatpush.bf16.msra.mxu0 %v5726
      %6692 = vmatpush.bf16.msra.mxu0 %v5718
      %6693 = vmatmul.bf16.gmra.mxu0 %v3401
      %v6694 = vpop.f32.mrf.mxu0
      %v6695 = vadd.f32 %v6666, %v6694
      %v6696 = vpop.f32.mrf.mxu0
      %v6697 = vadd.f32 %v6668, %v6696
      %6698 = vmatmul.bf16.gmra.mxu0 %v3411
      %v6699 = vpop.f32.mrf.mxu0
      %v6700 = vadd.f32 %v6671, %v6699
      %v6701 = vpop.f32.mrf.mxu0
      %v6702 = vadd.f32 %v6673, %v6701
      %6703 = vmatmul.bf16.gmra.mxu0 %v3421
      %v6704 = vpop.f32.mrf.mxu0
      %v6705 = vadd.f32 %v6676, %v6704
      %v6706 = vpop.f32.mrf.mxu0
      %v6707 = vadd.f32 %v6678, %v6706
      %6708 = vmatmul.bf16.gmra.mxu0 %v3431
      %v6709 = vpop.f32.mrf.mxu0
      %v6710 = vadd.f32 %v6681, %v6709
      %v6711 = vpop.f32.mrf.mxu0
      %v6712 = vadd.f32 %v6683, %v6711
      %6713 = vdwg.mxu0
      %6714 = vmatpush.bf16.msra.mxu0 %v5838
      %6715 = vmatpush.bf16.msra.mxu0 %v5830
      %6716 = vmatpush.bf16.msra.mxu0 %v5822
      %6717 = vmatpush.bf16.msra.mxu0 %v5814
      %6718 = vmatpush.bf16.msra.mxu0 %v5806
      %6719 = vmatpush.bf16.msra.mxu0 %v5798
      %6720 = vmatpush.bf16.msra.mxu0 %v5790
      %6721 = vmatpush.bf16.msra.mxu0 %v5782
      %6722 = vmatmul.bf16.gmra.mxu0 %v3402
      %v6723 = vpop.f32.mrf.mxu0
      %v6724 = vadd.f32 %v6695, %v6723
      %v6725 = vpop.f32.mrf.mxu0
      %v6726 = vadd.f32 %v6697, %v6725
      %6727 = vmatmul.bf16.gmra.mxu0 %v3412
      %v6728 = vpop.f32.mrf.mxu0
      %v6729 = vadd.f32 %v6700, %v6728
      %v6730 = vpop.f32.mrf.mxu0
      %v6731 = vadd.f32 %v6702, %v6730
      %6732 = vmatmul.bf16.gmra.mxu0 %v3422
      %v6733 = vpop.f32.mrf.mxu0
      %v6734 = vadd.f32 %v6705, %v6733
      %v6735 = vpop.f32.mrf.mxu0
      %v6736 = vadd.f32 %v6707, %v6735
      %6737 = vmatmul.bf16.gmra.mxu0 %v3432
      %v6738 = vpop.f32.mrf.mxu0
      %v6739 = vadd.f32 %v6710, %v6738
      %v6740 = vpop.f32.mrf.mxu0
      %v6741 = vadd.f32 %v6712, %v6740
      %6742 = vdwg.mxu0
      %6743 = vmatpush.bf16.msra.mxu0 0
      %6744 = vmatpush.bf16.msra.mxu0 0
      %6745 = vmatpush.bf16.msra.mxu0 0
      %6746 = vmatpush.bf16.msra.mxu0 0
      %6747 = vmatpush.bf16.msra.mxu0 0
      %6748 = vmatpush.bf16.msra.mxu0 %v5862
      %6749 = vmatpush.bf16.msra.mxu0 %v5854
      %6750 = vmatpush.bf16.msra.mxu0 %v5846
      %6751 = vmatmul.bf16.gmra.mxu0 %v6471
      %v6752 = vpop.f32.mrf.mxu0
      %v6753 = vadd.f32 %v6724, %v6752
      %v6754 = vpop.f32.mrf.mxu0
      %v6755 = vadd.f32 %v6726, %v6754
      %6756 = vmatmul.bf16.gmra.mxu0 %v6474
      %v6757 = vpop.f32.mrf.mxu0
      %v6758 = vadd.f32 %v6729, %v6757
      %v6759 = vpop.f32.mrf.mxu0
      %v6760 = vadd.f32 %v6731, %v6759
      %6761 = vmatmul.bf16.gmra.mxu0 %v6477
      %v6762 = vpop.f32.mrf.mxu0
      %v6763 = vadd.f32 %v6734, %v6762
      %v6764 = vpop.f32.mrf.mxu0
      %v6765 = vadd.f32 %v6736, %v6764
      %6766 = vmatmul.bf16.gmra.mxu0 %v6480
      %v6767 = vpop.f32.mrf.mxu0
      %v6768 = vadd.f32 %v6739, %v6767
      %v6769 = vpop.f32.mrf.mxu0
      %v6770 = vadd.f32 %v6741, %v6769
      %6771 = vdwg.mxu0
      %6772 = vmatpush.bf16.msra.mxu0 %v5327
      %6773 = vmatpush.bf16.msra.mxu0 %v5319
      %6774 = vmatpush.bf16.msra.mxu0 %v5311
      %6775 = vmatpush.bf16.msra.mxu0 %v5303
      %6776 = vmatpush.bf16.msra.mxu0 %v5295
      %6777 = vmatpush.bf16.msra.mxu0 %v5287
      %6778 = vmatpush.bf16.msra.mxu0 %v5279
      %6779 = vmatpush.bf16.msra.mxu0 %v5271
      %6780 = vmatmul.bf16.gmra.mxu0 %v3394
      %v6781 = vpop.f32.mrf.mxu0
      %v6782 = vadd.f32 0.0, %v6781
      %v6783 = vpop.f32.mrf.mxu0
      %v6784 = vadd.f32 0.0, %v6783
      %6785 = vmatmul.bf16.gmra.mxu0 %v3404
      %v6786 = vpop.f32.mrf.mxu0
      %v6787 = vadd.f32 0.0, %v6786
      %v6788 = vpop.f32.mrf.mxu0
      %v6789 = vadd.f32 0.0, %v6788
      %6790 = vmatmul.bf16.gmra.mxu0 %v3414
      %v6791 = vpop.f32.mrf.mxu0
      %v6792 = vadd.f32 0.0, %v6791
      %v6793 = vpop.f32.mrf.mxu0
      %v6794 = vadd.f32 0.0, %v6793
      %6795 = vmatmul.bf16.gmra.mxu0 %v3424
      %v6796 = vpop.f32.mrf.mxu0
      %v6797 = vadd.f32 0.0, %v6796
      %v6798 = vpop.f32.mrf.mxu0
      %v6799 = vadd.f32 0.0, %v6798
      %6800 = vdwg.mxu0
      %6801 = vmatpush.bf16.msra.mxu0 %v5391
      %6802 = vmatpush.bf16.msra.mxu0 %v5383
      %6803 = vmatpush.bf16.msra.mxu0 %v5375
      %6804 = vmatpush.bf16.msra.mxu0 %v5367
      %6805 = vmatpush.bf16.msra.mxu0 %v5359
      %6806 = vmatpush.bf16.msra.mxu0 %v5351
      %6807 = vmatpush.bf16.msra.mxu0 %v5343
      %6808 = vmatpush.bf16.msra.mxu0 %v5335
      %6809 = vmatmul.bf16.gmra.mxu0 %v3395
      %v6810 = vpop.f32.mrf.mxu0
      %v6811 = vadd.f32 %v6782, %v6810
      %v6812 = vpop.f32.mrf.mxu0
      %v6813 = vadd.f32 %v6784, %v6812
      %6814 = vmatmul.bf16.gmra.mxu0 %v3405
      %v6815 = vpop.f32.mrf.mxu0
      %v6816 = vadd.f32 %v6787, %v6815
      %v6817 = vpop.f32.mrf.mxu0
      %v6818 = vadd.f32 %v6789, %v6817
      %6819 = vmatmul.bf16.gmra.mxu0 %v3415
      %v6820 = vpop.f32.mrf.mxu0
      %v6821 = vadd.f32 %v6792, %v6820
      %v6822 = vpop.f32.mrf.mxu0
      %v6823 = vadd.f32 %v6794, %v6822
      %6824 = vmatmul.bf16.gmra.mxu0 %v3425
      %v6825 = vpop.f32.mrf.mxu0
      %v6826 = vadd.f32 %v6797, %v6825
      %v6827 = vpop.f32.mrf.mxu0
      %v6828 = vadd.f32 %v6799, %v6827
      %6829 = vdwg.mxu0
      %6830 = vmatpush.bf16.msra.mxu0 %v5455
      %6831 = vmatpush.bf16.msra.mxu0 %v5447
      %6832 = vmatpush.bf16.msra.mxu0 %v5439
      %6833 = vmatpush.bf16.msra.mxu0 %v5431
      %6834 = vmatpush.bf16.msra.mxu0 %v5423
      %6835 = vmatpush.bf16.msra.mxu0 %v5415
      %6836 = vmatpush.bf16.msra.mxu0 %v5407
      %6837 = vmatpush.bf16.msra.mxu0 %v5399
      %6838 = vmatmul.bf16.gmra.mxu0 %v3396
      %v6839 = vpop.f32.mrf.mxu0
      %v6840 = vadd.f32 %v6811, %v6839
      %v6841 = vpop.f32.mrf.mxu0
      %v6842 = vadd.f32 %v6813, %v6841
      %6843 = vmatmul.bf16.gmra.mxu0 %v3406
      %v6844 = vpop.f32.mrf.mxu0
      %v6845 = vadd.f32 %v6816, %v6844
      %v6846 = vpop.f32.mrf.mxu0
      %v6847 = vadd.f32 %v6818, %v6846
      %6848 = vmatmul.bf16.gmra.mxu0 %v3416
      %v6849 = vpop.f32.mrf.mxu0
      %v6850 = vadd.f32 %v6821, %v6849
      %v6851 = vpop.f32.mrf.mxu0
      %v6852 = vadd.f32 %v6823, %v6851
      %6853 = vmatmul.bf16.gmra.mxu0 %v3426
      %v6854 = vpop.f32.mrf.mxu0
      %v6855 = vadd.f32 %v6826, %v6854
      %v6856 = vpop.f32.mrf.mxu0
      %v6857 = vadd.f32 %v6828, %v6856
      %6858 = vdwg.mxu0
      %6859 = vmatpush.bf16.msra.mxu0 %v5519
      %6860 = vmatpush.bf16.msra.mxu0 %v5511
      %6861 = vmatpush.bf16.msra.mxu0 %v5503
      %6862 = vmatpush.bf16.msra.mxu0 %v5495
      %6863 = vmatpush.bf16.msra.mxu0 %v5487
      %6864 = vmatpush.bf16.msra.mxu0 %v5479
      %6865 = vmatpush.bf16.msra.mxu0 %v5471
      %6866 = vmatpush.bf16.msra.mxu0 %v5463
      %6867 = vmatmul.bf16.gmra.mxu0 %v3397
      %v6868 = vpop.f32.mrf.mxu0
      %v6869 = vadd.f32 %v6840, %v6868
      %v6870 = vpop.f32.mrf.mxu0
      %v6871 = vadd.f32 %v6842, %v6870
      %6872 = vmatmul.bf16.gmra.mxu0 %v3407
      %v6873 = vpop.f32.mrf.mxu0
      %v6874 = vadd.f32 %v6845, %v6873
      %v6875 = vpop.f32.mrf.mxu0
      %v6876 = vadd.f32 %v6847, %v6875
      %6877 = vmatmul.bf16.gmra.mxu0 %v3417
      %v6878 = vpop.f32.mrf.mxu0
      %v6879 = vadd.f32 %v6850, %v6878
      %v6880 = vpop.f32.mrf.mxu0
      %v6881 = vadd.f32 %v6852, %v6880
      %6882 = vmatmul.bf16.gmra.mxu0 %v3427
      %v6883 = vpop.f32.mrf.mxu0
      %v6884 = vadd.f32 %v6855, %v6883
      %v6885 = vpop.f32.mrf.mxu0
      %v6886 = vadd.f32 %v6857, %v6885
      %6887 = vdwg.mxu0
      %6888 = vmatpush.bf16.msra.mxu0 %v5583
      %6889 = vmatpush.bf16.msra.mxu0 %v5575
      %6890 = vmatpush.bf16.msra.mxu0 %v5567
      %6891 = vmatpush.bf16.msra.mxu0 %v5559
      %6892 = vmatpush.bf16.msra.mxu0 %v5551
      %6893 = vmatpush.bf16.msra.mxu0 %v5543
      %6894 = vmatpush.bf16.msra.mxu0 %v5535
      %6895 = vmatpush.bf16.msra.mxu0 %v5527
      %6896 = vmatmul.bf16.gmra.mxu0 %v3398
      %v6897 = vpop.f32.mrf.mxu0
      %v6898 = vadd.f32 %v6869, %v6897
      %v6899 = vpop.f32.mrf.mxu0
      %v6900 = vadd.f32 %v6871, %v6899
      %6901 = vmatmul.bf16.gmra.mxu0 %v3408
      %v6902 = vpop.f32.mrf.mxu0
      %v6903 = vadd.f32 %v6874, %v6902
      %v6904 = vpop.f32.mrf.mxu0
      %v6905 = vadd.f32 %v6876, %v6904
      %6906 = vmatmul.bf16.gmra.mxu0 %v3418
      %v6907 = vpop.f32.mrf.mxu0
      %v6908 = vadd.f32 %v6879, %v6907
      %v6909 = vpop.f32.mrf.mxu0
      %v6910 = vadd.f32 %v6881, %v6909
      %6911 = vmatmul.bf16.gmra.mxu0 %v3428
      %v6912 = vpop.f32.mrf.mxu0
      %v6913 = vadd.f32 %v6884, %v6912
      %v6914 = vpop.f32.mrf.mxu0
      %v6915 = vadd.f32 %v6886, %v6914
      %6916 = vdwg.mxu0
      %6917 = vmatpush.bf16.msra.mxu0 %v5647
      %6918 = vmatpush.bf16.msra.mxu0 %v5639
      %6919 = vmatpush.bf16.msra.mxu0 %v5631
      %6920 = vmatpush.bf16.msra.mxu0 %v5623
      %6921 = vmatpush.bf16.msra.mxu0 %v5615
      %6922 = vmatpush.bf16.msra.mxu0 %v5607
      %6923 = vmatpush.bf16.msra.mxu0 %v5599
      %6924 = vmatpush.bf16.msra.mxu0 %v5591
      %6925 = vmatmul.bf16.gmra.mxu0 %v3399
      %v6926 = vpop.f32.mrf.mxu0
      %v6927 = vadd.f32 %v6898, %v6926
      %v6928 = vpop.f32.mrf.mxu0
      %v6929 = vadd.f32 %v6900, %v6928
      %6930 = vmatmul.bf16.gmra.mxu0 %v3409
      %v6931 = vpop.f32.mrf.mxu0
      %v6932 = vadd.f32 %v6903, %v6931
      %v6933 = vpop.f32.mrf.mxu0
      %v6934 = vadd.f32 %v6905, %v6933
      %6935 = vmatmul.bf16.gmra.mxu0 %v3419
      %v6936 = vpop.f32.mrf.mxu0
      %v6937 = vadd.f32 %v6908, %v6936
      %v6938 = vpop.f32.mrf.mxu0
      %v6939 = vadd.f32 %v6910, %v6938
      %6940 = vmatmul.bf16.gmra.mxu0 %v3429
      %v6941 = vpop.f32.mrf.mxu0
      %v6942 = vadd.f32 %v6913, %v6941
      %v6943 = vpop.f32.mrf.mxu0
      %v6944 = vadd.f32 %v6915, %v6943
      %6945 = vdwg.mxu0
      %6946 = vmatpush.bf16.msra.mxu0 %v5711
      %6947 = vmatpush.bf16.msra.mxu0 %v5703
      %6948 = vmatpush.bf16.msra.mxu0 %v5695
      %6949 = vmatpush.bf16.msra.mxu0 %v5687
      %6950 = vmatpush.bf16.msra.mxu0 %v5679
      %6951 = vmatpush.bf16.msra.mxu0 %v5671
      %6952 = vmatpush.bf16.msra.mxu0 %v5663
      %6953 = vmatpush.bf16.msra.mxu0 %v5655
      %6954 = vmatmul.bf16.gmra.mxu0 %v3400
      %v6955 = vpop.f32.mrf.mxu0
      %v6956 = vadd.f32 %v6927, %v6955
      %v6957 = vpop.f32.mrf.mxu0
      %v6958 = vadd.f32 %v6929, %v6957
      %6959 = vmatmul.bf16.gmra.mxu0 %v3410
      %v6960 = vpop.f32.mrf.mxu0
      %v6961 = vadd.f32 %v6932, %v6960
      %v6962 = vpop.f32.mrf.mxu0
      %v6963 = vadd.f32 %v6934, %v6962
      %6964 = vmatmul.bf16.gmra.mxu0 %v3420
      %v6965 = vpop.f32.mrf.mxu0
      %v6966 = vadd.f32 %v6937, %v6965
      %v6967 = vpop.f32.mrf.mxu0
      %v6968 = vadd.f32 %v6939, %v6967
      %6969 = vmatmul.bf16.gmra.mxu0 %v3430
      %v6970 = vpop.f32.mrf.mxu0
      %v6971 = vadd.f32 %v6942, %v6970
      %v6972 = vpop.f32.mrf.mxu0
      %v6973 = vadd.f32 %v6944, %v6972
      %6974 = vdwg.mxu0
      %6975 = vmatpush.bf16.msra.mxu0 %v5775
      %6976 = vmatpush.bf16.msra.mxu0 %v5767
      %6977 = vmatpush.bf16.msra.mxu0 %v5759
      %6978 = vmatpush.bf16.msra.mxu0 %v5751
      %6979 = vmatpush.bf16.msra.mxu0 %v5743
      %6980 = vmatpush.bf16.msra.mxu0 %v5735
      %6981 = vmatpush.bf16.msra.mxu0 %v5727
      %6982 = vmatpush.bf16.msra.mxu0 %v5719
      %6983 = vmatmul.bf16.gmra.mxu0 %v3401
      %v6984 = vpop.f32.mrf.mxu0
      %v6985 = vadd.f32 %v6956, %v6984
      %v6986 = vpop.f32.mrf.mxu0
      %v6987 = vadd.f32 %v6958, %v6986
      %6988 = vmatmul.bf16.gmra.mxu0 %v3411
      %v6989 = vpop.f32.mrf.mxu0
      %v6990 = vadd.f32 %v6961, %v6989
      %v6991 = vpop.f32.mrf.mxu0
      %v6992 = vadd.f32 %v6963, %v6991
      %6993 = vmatmul.bf16.gmra.mxu0 %v3421
      %v6994 = vpop.f32.mrf.mxu0
      %v6995 = vadd.f32 %v6966, %v6994
      %v6996 = vpop.f32.mrf.mxu0
      %v6997 = vadd.f32 %v6968, %v6996
      %6998 = vmatmul.bf16.gmra.mxu0 %v3431
      %v6999 = vpop.f32.mrf.mxu0
      %v7000 = vadd.f32 %v6971, %v6999
      %v7001 = vpop.f32.mrf.mxu0
      %v7002 = vadd.f32 %v6973, %v7001
      %7003 = vdwg.mxu0
      %7004 = vmatpush.bf16.msra.mxu0 %v5839
      %7005 = vmatpush.bf16.msra.mxu0 %v5831
      %7006 = vmatpush.bf16.msra.mxu0 %v5823
      %7007 = vmatpush.bf16.msra.mxu0 %v5815
      %7008 = vmatpush.bf16.msra.mxu0 %v5807
      %7009 = vmatpush.bf16.msra.mxu0 %v5799
      %7010 = vmatpush.bf16.msra.mxu0 %v5791
      %7011 = vmatpush.bf16.msra.mxu0 %v5783
      %7012 = vmatmul.bf16.gmra.mxu0 %v3402
      %v7013 = vpop.f32.mrf.mxu0
      %v7014 = vadd.f32 %v6985, %v7013
      %v7015 = vpop.f32.mrf.mxu0
      %v7016 = vadd.f32 %v6987, %v7015
      %7017 = vmatmul.bf16.gmra.mxu0 %v3412
      %v7018 = vpop.f32.mrf.mxu0
      %v7019 = vadd.f32 %v6990, %v7018
      %v7020 = vpop.f32.mrf.mxu0
      %v7021 = vadd.f32 %v6992, %v7020
      %7022 = vmatmul.bf16.gmra.mxu0 %v3422
      %v7023 = vpop.f32.mrf.mxu0
      %v7024 = vadd.f32 %v6995, %v7023
      %v7025 = vpop.f32.mrf.mxu0
      %v7026 = vadd.f32 %v6997, %v7025
      %7027 = vmatmul.bf16.gmra.mxu0 %v3432
      %v7028 = vpop.f32.mrf.mxu0
      %v7029 = vadd.f32 %v7000, %v7028
      %v7030 = vpop.f32.mrf.mxu0
      %v7031 = vadd.f32 %v7002, %v7030
      %7032 = vdwg.mxu0
      %7033 = vmatpush.bf16.msra.mxu0 0
      %7034 = vmatpush.bf16.msra.mxu0 0
      %7035 = vmatpush.bf16.msra.mxu0 0
      %7036 = vmatpush.bf16.msra.mxu0 0
      %7037 = vmatpush.bf16.msra.mxu0 0
      %7038 = vmatpush.bf16.msra.mxu0 %v5863
      %7039 = vmatpush.bf16.msra.mxu0 %v5855
      %7040 = vmatpush.bf16.msra.mxu0 %v5847
      %7041 = vmatmul.bf16.gmra.mxu0 %v6471
      %v7042 = vpop.f32.mrf.mxu0
      %v7043 = vadd.f32 %v7014, %v7042
      %v7044 = vpop.f32.mrf.mxu0
      %v7045 = vadd.f32 %v7016, %v7044
      %7046 = vmatmul.bf16.gmra.mxu0 %v6474
      %v7047 = vpop.f32.mrf.mxu0
      %v7048 = vadd.f32 %v7019, %v7047
      %v7049 = vpop.f32.mrf.mxu0
      %v7050 = vadd.f32 %v7021, %v7049
      %7051 = vmatmul.bf16.gmra.mxu0 %v6477
      %v7052 = vpop.f32.mrf.mxu0
      %v7053 = vadd.f32 %v7024, %v7052
      %v7054 = vpop.f32.mrf.mxu0
      %v7055 = vadd.f32 %v7026, %v7054
      %7056 = vmatmul.bf16.gmra.mxu0 %v6480
      %v7057 = vpop.f32.mrf.mxu0
      %v7058 = vadd.f32 %v7029, %v7057
      %v7059 = vpop.f32.mrf.mxu0
      %v7060 = vadd.f32 %v7031, %v7059
      %7061 = vdwg.mxu0
      %7062 = vmatpush.bf16.msra.mxu0 %v5328
      %7063 = vmatpush.bf16.msra.mxu0 %v5320
      %7064 = vmatpush.bf16.msra.mxu0 %v5312
      %7065 = vmatpush.bf16.msra.mxu0 %v5304
      %7066 = vmatpush.bf16.msra.mxu0 %v5296
      %7067 = vmatpush.bf16.msra.mxu0 %v5288
      %7068 = vmatpush.bf16.msra.mxu0 %v5280
      %7069 = vmatpush.bf16.msra.mxu0 %v5272
      %7070 = vmatmul.bf16.gmra.mxu0 %v3394
      %v7071 = vpop.f32.mrf.mxu0
      %v7072 = vadd.f32 0.0, %v7071
      %v7073 = vpop.f32.mrf.mxu0
      %v7074 = vadd.f32 0.0, %v7073
      %7075 = vmatmul.bf16.gmra.mxu0 %v3404
      %v7076 = vpop.f32.mrf.mxu0
      %v7077 = vadd.f32 0.0, %v7076
      %v7078 = vpop.f32.mrf.mxu0
      %v7079 = vadd.f32 0.0, %v7078
      %7080 = vmatmul.bf16.gmra.mxu0 %v3414
      %v7081 = vpop.f32.mrf.mxu0
      %v7082 = vadd.f32 0.0, %v7081
      %v7083 = vpop.f32.mrf.mxu0
      %v7084 = vadd.f32 0.0, %v7083
      %7085 = vmatmul.bf16.gmra.mxu0 %v3424
      %v7086 = vpop.f32.mrf.mxu0
      %v7087 = vadd.f32 0.0, %v7086
      %v7088 = vpop.f32.mrf.mxu0
      %v7089 = vadd.f32 0.0, %v7088
      %7090 = vdwg.mxu0
      %7091 = vmatpush.bf16.msra.mxu0 %v5392
      %7092 = vmatpush.bf16.msra.mxu0 %v5384
      %7093 = vmatpush.bf16.msra.mxu0 %v5376
      %7094 = vmatpush.bf16.msra.mxu0 %v5368
      %7095 = vmatpush.bf16.msra.mxu0 %v5360
      %7096 = vmatpush.bf16.msra.mxu0 %v5352
      %7097 = vmatpush.bf16.msra.mxu0 %v5344
      %7098 = vmatpush.bf16.msra.mxu0 %v5336
      %7099 = vmatmul.bf16.gmra.mxu0 %v3395
      %v7100 = vpop.f32.mrf.mxu0
      %v7101 = vadd.f32 %v7072, %v7100
      %v7102 = vpop.f32.mrf.mxu0
      %v7103 = vadd.f32 %v7074, %v7102
      %7104 = vmatmul.bf16.gmra.mxu0 %v3405
      %v7105 = vpop.f32.mrf.mxu0
      %v7106 = vadd.f32 %v7077, %v7105
      %v7107 = vpop.f32.mrf.mxu0
      %v7108 = vadd.f32 %v7079, %v7107
      %7109 = vmatmul.bf16.gmra.mxu0 %v3415
      %v7110 = vpop.f32.mrf.mxu0
      %v7111 = vadd.f32 %v7082, %v7110
      %v7112 = vpop.f32.mrf.mxu0
      %v7113 = vadd.f32 %v7084, %v7112
      %7114 = vmatmul.bf16.gmra.mxu0 %v3425
      %v7115 = vpop.f32.mrf.mxu0
      %v7116 = vadd.f32 %v7087, %v7115
      %v7117 = vpop.f32.mrf.mxu0
      %v7118 = vadd.f32 %v7089, %v7117
      %7119 = vdwg.mxu0
      %7120 = vmatpush.bf16.msra.mxu0 %v5456
      %7121 = vmatpush.bf16.msra.mxu0 %v5448
      %7122 = vmatpush.bf16.msra.mxu0 %v5440
      %7123 = vmatpush.bf16.msra.mxu0 %v5432
      %7124 = vmatpush.bf16.msra.mxu0 %v5424
      %7125 = vmatpush.bf16.msra.mxu0 %v5416
      %7126 = vmatpush.bf16.msra.mxu0 %v5408
      %7127 = vmatpush.bf16.msra.mxu0 %v5400
      %7128 = vmatmul.bf16.gmra.mxu0 %v3396
      %v7129 = vpop.f32.mrf.mxu0
      %v7130 = vadd.f32 %v7101, %v7129
      %v7131 = vpop.f32.mrf.mxu0
      %v7132 = vadd.f32 %v7103, %v7131
      %7133 = vmatmul.bf16.gmra.mxu0 %v3406
      %v7134 = vpop.f32.mrf.mxu0
      %v7135 = vadd.f32 %v7106, %v7134
      %v7136 = vpop.f32.mrf.mxu0
      %v7137 = vadd.f32 %v7108, %v7136
      %7138 = vmatmul.bf16.gmra.mxu0 %v3416
      %v7139 = vpop.f32.mrf.mxu0
      %v7140 = vadd.f32 %v7111, %v7139
      %v7141 = vpop.f32.mrf.mxu0
      %v7142 = vadd.f32 %v7113, %v7141
      %7143 = vmatmul.bf16.gmra.mxu0 %v3426
      %v7144 = vpop.f32.mrf.mxu0
      %v7145 = vadd.f32 %v7116, %v7144
      %v7146 = vpop.f32.mrf.mxu0
      %v7147 = vadd.f32 %v7118, %v7146
      %7148 = vdwg.mxu0
      %7149 = vmatpush.bf16.msra.mxu0 %v5520
      %7150 = vmatpush.bf16.msra.mxu0 %v5512
      %7151 = vmatpush.bf16.msra.mxu0 %v5504
      %7152 = vmatpush.bf16.msra.mxu0 %v5496
      %7153 = vmatpush.bf16.msra.mxu0 %v5488
      %7154 = vmatpush.bf16.msra.mxu0 %v5480
      %7155 = vmatpush.bf16.msra.mxu0 %v5472
      %7156 = vmatpush.bf16.msra.mxu0 %v5464
      %7157 = vmatmul.bf16.gmra.mxu0 %v3397
      %v7158 = vpop.f32.mrf.mxu0
      %v7159 = vadd.f32 %v7130, %v7158
      %v7160 = vpop.f32.mrf.mxu0
      %v7161 = vadd.f32 %v7132, %v7160
      %7162 = vmatmul.bf16.gmra.mxu0 %v3407
      %v7163 = vpop.f32.mrf.mxu0
      %v7164 = vadd.f32 %v7135, %v7163
      %v7165 = vpop.f32.mrf.mxu0
      %v7166 = vadd.f32 %v7137, %v7165
      %7167 = vmatmul.bf16.gmra.mxu0 %v3417
      %v7168 = vpop.f32.mrf.mxu0
      %v7169 = vadd.f32 %v7140, %v7168
      %v7170 = vpop.f32.mrf.mxu0
      %v7171 = vadd.f32 %v7142, %v7170
      %7172 = vmatmul.bf16.gmra.mxu0 %v3427
      %v7173 = vpop.f32.mrf.mxu0
      %v7174 = vadd.f32 %v7145, %v7173
      %v7175 = vpop.f32.mrf.mxu0
      %v7176 = vadd.f32 %v7147, %v7175
      %7177 = vdwg.mxu0
      %7178 = vmatpush.bf16.msra.mxu0 %v5584
      %7179 = vmatpush.bf16.msra.mxu0 %v5576
      %7180 = vmatpush.bf16.msra.mxu0 %v5568
      %7181 = vmatpush.bf16.msra.mxu0 %v5560
      %7182 = vmatpush.bf16.msra.mxu0 %v5552
      %7183 = vmatpush.bf16.msra.mxu0 %v5544
      %7184 = vmatpush.bf16.msra.mxu0 %v5536
      %7185 = vmatpush.bf16.msra.mxu0 %v5528
      %7186 = vmatmul.bf16.gmra.mxu0 %v3398
      %v7187 = vpop.f32.mrf.mxu0
      %v7188 = vadd.f32 %v7159, %v7187
      %v7189 = vpop.f32.mrf.mxu0
      %v7190 = vadd.f32 %v7161, %v7189
      %7191 = vmatmul.bf16.gmra.mxu0 %v3408
      %v7192 = vpop.f32.mrf.mxu0
      %v7193 = vadd.f32 %v7164, %v7192
      %v7194 = vpop.f32.mrf.mxu0
      %v7195 = vadd.f32 %v7166, %v7194
      %7196 = vmatmul.bf16.gmra.mxu0 %v3418
      %v7197 = vpop.f32.mrf.mxu0
      %v7198 = vadd.f32 %v7169, %v7197
      %v7199 = vpop.f32.mrf.mxu0
      %v7200 = vadd.f32 %v7171, %v7199
      %7201 = vmatmul.bf16.gmra.mxu0 %v3428
      %v7202 = vpop.f32.mrf.mxu0
      %v7203 = vadd.f32 %v7174, %v7202
      %v7204 = vpop.f32.mrf.mxu0
      %v7205 = vadd.f32 %v7176, %v7204
      %7206 = vdwg.mxu0
      %7207 = vmatpush.bf16.msra.mxu0 %v5648
      %7208 = vmatpush.bf16.msra.mxu0 %v5640
      %7209 = vmatpush.bf16.msra.mxu0 %v5632
      %7210 = vmatpush.bf16.msra.mxu0 %v5624
      %7211 = vmatpush.bf16.msra.mxu0 %v5616
      %7212 = vmatpush.bf16.msra.mxu0 %v5608
      %7213 = vmatpush.bf16.msra.mxu0 %v5600
      %7214 = vmatpush.bf16.msra.mxu0 %v5592
      %7215 = vmatmul.bf16.gmra.mxu0 %v3399
      %v7216 = vpop.f32.mrf.mxu0
      %v7217 = vadd.f32 %v7188, %v7216
      %v7218 = vpop.f32.mrf.mxu0
      %v7219 = vadd.f32 %v7190, %v7218
      %7220 = vmatmul.bf16.gmra.mxu0 %v3409
      %v7221 = vpop.f32.mrf.mxu0
      %v7222 = vadd.f32 %v7193, %v7221
      %v7223 = vpop.f32.mrf.mxu0
      %v7224 = vadd.f32 %v7195, %v7223
      %7225 = vmatmul.bf16.gmra.mxu0 %v3419
      %v7226 = vpop.f32.mrf.mxu0
      %v7227 = vadd.f32 %v7198, %v7226
      %v7228 = vpop.f32.mrf.mxu0
      %v7229 = vadd.f32 %v7200, %v7228
      %7230 = vmatmul.bf16.gmra.mxu0 %v3429
      %v7231 = vpop.f32.mrf.mxu0
      %v7232 = vadd.f32 %v7203, %v7231
      %v7233 = vpop.f32.mrf.mxu0
      %v7234 = vadd.f32 %v7205, %v7233
      %7235 = vdwg.mxu0
      %7236 = vmatpush.bf16.msra.mxu0 %v5712
      %7237 = vmatpush.bf16.msra.mxu0 %v5704
      %7238 = vmatpush.bf16.msra.mxu0 %v5696
      %7239 = vmatpush.bf16.msra.mxu0 %v5688
      %7240 = vmatpush.bf16.msra.mxu0 %v5680
      %7241 = vmatpush.bf16.msra.mxu0 %v5672
      %7242 = vmatpush.bf16.msra.mxu0 %v5664
      %7243 = vmatpush.bf16.msra.mxu0 %v5656
      %7244 = vmatmul.bf16.gmra.mxu0 %v3400
      %v7245 = vpop.f32.mrf.mxu0
      %v7246 = vadd.f32 %v7217, %v7245
      %v7247 = vpop.f32.mrf.mxu0
      %v7248 = vadd.f32 %v7219, %v7247
      %7249 = vmatmul.bf16.gmra.mxu0 %v3410
      %v7250 = vpop.f32.mrf.mxu0
      %v7251 = vadd.f32 %v7222, %v7250
      %v7252 = vpop.f32.mrf.mxu0
      %v7253 = vadd.f32 %v7224, %v7252
      %7254 = vmatmul.bf16.gmra.mxu0 %v3420
      %v7255 = vpop.f32.mrf.mxu0
      %v7256 = vadd.f32 %v7227, %v7255
      %v7257 = vpop.f32.mrf.mxu0
      %v7258 = vadd.f32 %v7229, %v7257
      %7259 = vmatmul.bf16.gmra.mxu0 %v3430
      %v7260 = vpop.f32.mrf.mxu0
      %v7261 = vadd.f32 %v7232, %v7260
      %v7262 = vpop.f32.mrf.mxu0
      %v7263 = vadd.f32 %v7234, %v7262
      %7264 = vdwg.mxu0
      %7265 = vmatpush.bf16.msra.mxu0 %v5776
      %7266 = vmatpush.bf16.msra.mxu0 %v5768
      %7267 = vmatpush.bf16.msra.mxu0 %v5760
      %7268 = vmatpush.bf16.msra.mxu0 %v5752
      %7269 = vmatpush.bf16.msra.mxu0 %v5744
      %7270 = vmatpush.bf16.msra.mxu0 %v5736
      %7271 = vmatpush.bf16.msra.mxu0 %v5728
      %7272 = vmatpush.bf16.msra.mxu0 %v5720
      %7273 = vmatmul.bf16.gmra.mxu0 %v3401
      %v7274 = vpop.f32.mrf.mxu0
      %v7275 = vadd.f32 %v7246, %v7274
      %v7276 = vpop.f32.mrf.mxu0
      %v7277 = vadd.f32 %v7248, %v7276
      %7278 = vmatmul.bf16.gmra.mxu0 %v3411
      %v7279 = vpop.f32.mrf.mxu0
      %v7280 = vadd.f32 %v7251, %v7279
      %v7281 = vpop.f32.mrf.mxu0
      %v7282 = vadd.f32 %v7253, %v7281
      %7283 = vmatmul.bf16.gmra.mxu0 %v3421
      %v7284 = vpop.f32.mrf.mxu0
      %v7285 = vadd.f32 %v7256, %v7284
      %v7286 = vpop.f32.mrf.mxu0
      %v7287 = vadd.f32 %v7258, %v7286
      %7288 = vmatmul.bf16.gmra.mxu0 %v3431
      %v7289 = vpop.f32.mrf.mxu0
      %v7290 = vadd.f32 %v7261, %v7289
      %v7291 = vpop.f32.mrf.mxu0
      %v7292 = vadd.f32 %v7263, %v7291
      %7293 = vdwg.mxu0
      %7294 = vmatpush.bf16.msra.mxu0 %v5840
      %7295 = vmatpush.bf16.msra.mxu0 %v5832
      %7296 = vmatpush.bf16.msra.mxu0 %v5824
      %7297 = vmatpush.bf16.msra.mxu0 %v5816
      %7298 = vmatpush.bf16.msra.mxu0 %v5808
      %7299 = vmatpush.bf16.msra.mxu0 %v5800
      %7300 = vmatpush.bf16.msra.mxu0 %v5792
      %7301 = vmatpush.bf16.msra.mxu0 %v5784
      %7302 = vmatmul.bf16.gmra.mxu0 %v3402
      %v7303 = vpop.f32.mrf.mxu0
      %v7304 = vadd.f32 %v7275, %v7303
      %v7305 = vpop.f32.mrf.mxu0
      %v7306 = vadd.f32 %v7277, %v7305
      %7307 = vmatmul.bf16.gmra.mxu0 %v3412
      %v7308 = vpop.f32.mrf.mxu0
      %v7309 = vadd.f32 %v7280, %v7308
      %v7310 = vpop.f32.mrf.mxu0
      %v7311 = vadd.f32 %v7282, %v7310
      %7312 = vmatmul.bf16.gmra.mxu0 %v3422
      %v7313 = vpop.f32.mrf.mxu0
      %v7314 = vadd.f32 %v7285, %v7313
      %v7315 = vpop.f32.mrf.mxu0
      %v7316 = vadd.f32 %v7287, %v7315
      %7317 = vmatmul.bf16.gmra.mxu0 %v3432
      %v7318 = vpop.f32.mrf.mxu0
      %v7319 = vadd.f32 %v7290, %v7318
      %v7320 = vpop.f32.mrf.mxu0
      %v7321 = vadd.f32 %v7292, %v7320
      %7322 = vdwg.mxu0
      %7323 = vmatpush.bf16.msra.mxu0 0
      %7324 = vmatpush.bf16.msra.mxu0 0
      %7325 = vmatpush.bf16.msra.mxu0 0
      %7326 = vmatpush.bf16.msra.mxu0 0
      %7327 = vmatpush.bf16.msra.mxu0 0
      %7328 = vmatpush.bf16.msra.mxu0 %v5864
      %7329 = vmatpush.bf16.msra.mxu0 %v5856
      %7330 = vmatpush.bf16.msra.mxu0 %v5848
      %7331 = vmatmul.bf16.gmra.mxu0 %v6471
      %v7332 = vpop.f32.mrf.mxu0
      %v7333 = vadd.f32 %v7304, %v7332
      %v7334 = vpop.f32.mrf.mxu0
      %v7335 = vadd.f32 %v7306, %v7334
      %7336 = vmatmul.bf16.gmra.mxu0 %v6474
      %v7337 = vpop.f32.mrf.mxu0
      %v7338 = vadd.f32 %v7309, %v7337
      %v7339 = vpop.f32.mrf.mxu0
      %v7340 = vadd.f32 %v7311, %v7339
      %7341 = vmatmul.bf16.gmra.mxu0 %v6477
      %v7342 = vpop.f32.mrf.mxu0
      %v7343 = vadd.f32 %v7314, %v7342
      %v7344 = vpop.f32.mrf.mxu0
      %v7345 = vadd.f32 %v7316, %v7344
      %7346 = vmatmul.bf16.gmra.mxu0 %v6480
      %v7347 = vpop.f32.mrf.mxu0
      %v7348 = vadd.f32 %v7319, %v7347
      %v7349 = vpop.f32.mrf.mxu0
      %v7350 = vadd.f32 %v7321, %v7349
      %7351 = vdwg.mxu0
      %7352 = vmatpush.bf16.msra.mxu0 %v5329
      %7353 = vmatpush.bf16.msra.mxu0 %v5321
      %7354 = vmatpush.bf16.msra.mxu0 %v5313
      %7355 = vmatpush.bf16.msra.mxu0 %v5305
      %7356 = vmatpush.bf16.msra.mxu0 %v5297
      %7357 = vmatpush.bf16.msra.mxu0 %v5289
      %7358 = vmatpush.bf16.msra.mxu0 %v5281
      %7359 = vmatpush.bf16.msra.mxu0 %v5273
      %7360 = vmatmul.bf16.gmra.mxu0 %v3394
      %v7361 = vpop.f32.mrf.mxu0
      %v7362 = vadd.f32 0.0, %v7361
      %v7363 = vpop.f32.mrf.mxu0
      %v7364 = vadd.f32 0.0, %v7363
      %7365 = vmatmul.bf16.gmra.mxu0 %v3404
      %v7366 = vpop.f32.mrf.mxu0
      %v7367 = vadd.f32 0.0, %v7366
      %v7368 = vpop.f32.mrf.mxu0
      %v7369 = vadd.f32 0.0, %v7368
      %7370 = vmatmul.bf16.gmra.mxu0 %v3414
      %v7371 = vpop.f32.mrf.mxu0
      %v7372 = vadd.f32 0.0, %v7371
      %v7373 = vpop.f32.mrf.mxu0
      %v7374 = vadd.f32 0.0, %v7373
      %7375 = vmatmul.bf16.gmra.mxu0 %v3424
      %v7376 = vpop.f32.mrf.mxu0
      %v7377 = vadd.f32 0.0, %v7376
      %v7378 = vpop.f32.mrf.mxu0
      %v7379 = vadd.f32 0.0, %v7378
      %7380 = vdwg.mxu0
      %7381 = vmatpush.bf16.msra.mxu0 %v5393
      %7382 = vmatpush.bf16.msra.mxu0 %v5385
      %7383 = vmatpush.bf16.msra.mxu0 %v5377
      %7384 = vmatpush.bf16.msra.mxu0 %v5369
      %7385 = vmatpush.bf16.msra.mxu0 %v5361
      %7386 = vmatpush.bf16.msra.mxu0 %v5353
      %7387 = vmatpush.bf16.msra.mxu0 %v5345
      %7388 = vmatpush.bf16.msra.mxu0 %v5337
      %7389 = vmatmul.bf16.gmra.mxu0 %v3395
      %v7390 = vpop.f32.mrf.mxu0
      %v7391 = vadd.f32 %v7362, %v7390
      %v7392 = vpop.f32.mrf.mxu0
      %v7393 = vadd.f32 %v7364, %v7392
      %7394 = vmatmul.bf16.gmra.mxu0 %v3405
      %v7395 = vpop.f32.mrf.mxu0
      %v7396 = vadd.f32 %v7367, %v7395
      %v7397 = vpop.f32.mrf.mxu0
      %v7398 = vadd.f32 %v7369, %v7397
      %7399 = vmatmul.bf16.gmra.mxu0 %v3415
      %v7400 = vpop.f32.mrf.mxu0
      %v7401 = vadd.f32 %v7372, %v7400
      %v7402 = vpop.f32.mrf.mxu0
      %v7403 = vadd.f32 %v7374, %v7402
      %7404 = vmatmul.bf16.gmra.mxu0 %v3425
      %v7405 = vpop.f32.mrf.mxu0
      %v7406 = vadd.f32 %v7377, %v7405
      %v7407 = vpop.f32.mrf.mxu0
      %v7408 = vadd.f32 %v7379, %v7407
      %7409 = vdwg.mxu0
      %7410 = vmatpush.bf16.msra.mxu0 %v5457
      %7411 = vmatpush.bf16.msra.mxu0 %v5449
      %7412 = vmatpush.bf16.msra.mxu0 %v5441
      %7413 = vmatpush.bf16.msra.mxu0 %v5433
      %7414 = vmatpush.bf16.msra.mxu0 %v5425
      %7415 = vmatpush.bf16.msra.mxu0 %v5417
      %7416 = vmatpush.bf16.msra.mxu0 %v5409
      %7417 = vmatpush.bf16.msra.mxu0 %v5401
      %7418 = vmatmul.bf16.gmra.mxu0 %v3396
      %v7419 = vpop.f32.mrf.mxu0
      %v7420 = vadd.f32 %v7391, %v7419
      %v7421 = vpop.f32.mrf.mxu0
      %v7422 = vadd.f32 %v7393, %v7421
      %7423 = vmatmul.bf16.gmra.mxu0 %v3406
      %v7424 = vpop.f32.mrf.mxu0
      %v7425 = vadd.f32 %v7396, %v7424
      %v7426 = vpop.f32.mrf.mxu0
      %v7427 = vadd.f32 %v7398, %v7426
      %7428 = vmatmul.bf16.gmra.mxu0 %v3416
      %v7429 = vpop.f32.mrf.mxu0
      %v7430 = vadd.f32 %v7401, %v7429
      %v7431 = vpop.f32.mrf.mxu0
      %v7432 = vadd.f32 %v7403, %v7431
      %7433 = vmatmul.bf16.gmra.mxu0 %v3426
      %v7434 = vpop.f32.mrf.mxu0
      %v7435 = vadd.f32 %v7406, %v7434
      %v7436 = vpop.f32.mrf.mxu0
      %v7437 = vadd.f32 %v7408, %v7436
      %7438 = vdwg.mxu0
      %7439 = vmatpush.bf16.msra.mxu0 %v5521
      %7440 = vmatpush.bf16.msra.mxu0 %v5513
      %7441 = vmatpush.bf16.msra.mxu0 %v5505
      %7442 = vmatpush.bf16.msra.mxu0 %v5497
      %7443 = vmatpush.bf16.msra.mxu0 %v5489
      %7444 = vmatpush.bf16.msra.mxu0 %v5481
      %7445 = vmatpush.bf16.msra.mxu0 %v5473
      %7446 = vmatpush.bf16.msra.mxu0 %v5465
      %7447 = vmatmul.bf16.gmra.mxu0 %v3397
      %v7448 = vpop.f32.mrf.mxu0
      %v7449 = vadd.f32 %v7420, %v7448
      %v7450 = vpop.f32.mrf.mxu0
      %v7451 = vadd.f32 %v7422, %v7450
      %7452 = vmatmul.bf16.gmra.mxu0 %v3407
      %v7453 = vpop.f32.mrf.mxu0
      %v7454 = vadd.f32 %v7425, %v7453
      %v7455 = vpop.f32.mrf.mxu0
      %v7456 = vadd.f32 %v7427, %v7455
      %7457 = vmatmul.bf16.gmra.mxu0 %v3417
      %v7458 = vpop.f32.mrf.mxu0
      %v7459 = vadd.f32 %v7430, %v7458
      %v7460 = vpop.f32.mrf.mxu0
      %v7461 = vadd.f32 %v7432, %v7460
      %7462 = vmatmul.bf16.gmra.mxu0 %v3427
      %v7463 = vpop.f32.mrf.mxu0
      %v7464 = vadd.f32 %v7435, %v7463
      %v7465 = vpop.f32.mrf.mxu0
      %v7466 = vadd.f32 %v7437, %v7465
      %7467 = vdwg.mxu0
      %7468 = vmatpush.bf16.msra.mxu0 %v5585
      %7469 = vmatpush.bf16.msra.mxu0 %v5577
      %7470 = vmatpush.bf16.msra.mxu0 %v5569
      %7471 = vmatpush.bf16.msra.mxu0 %v5561
      %7472 = vmatpush.bf16.msra.mxu0 %v5553
      %7473 = vmatpush.bf16.msra.mxu0 %v5545
      %7474 = vmatpush.bf16.msra.mxu0 %v5537
      %7475 = vmatpush.bf16.msra.mxu0 %v5529
      %7476 = vmatmul.bf16.gmra.mxu0 %v3398
      %v7477 = vpop.f32.mrf.mxu0
      %v7478 = vadd.f32 %v7449, %v7477
      %v7479 = vpop.f32.mrf.mxu0
      %v7480 = vadd.f32 %v7451, %v7479
      %7481 = vmatmul.bf16.gmra.mxu0 %v3408
      %v7482 = vpop.f32.mrf.mxu0
      %v7483 = vadd.f32 %v7454, %v7482
      %v7484 = vpop.f32.mrf.mxu0
      %v7485 = vadd.f32 %v7456, %v7484
      %7486 = vmatmul.bf16.gmra.mxu0 %v3418
      %v7487 = vpop.f32.mrf.mxu0
      %v7488 = vadd.f32 %v7459, %v7487
      %v7489 = vpop.f32.mrf.mxu0
      %v7490 = vadd.f32 %v7461, %v7489
      %7491 = vmatmul.bf16.gmra.mxu0 %v3428
      %v7492 = vpop.f32.mrf.mxu0
      %v7493 = vadd.f32 %v7464, %v7492
      %v7494 = vpop.f32.mrf.mxu0
      %v7495 = vadd.f32 %v7466, %v7494
      %7496 = vdwg.mxu0
      %7497 = vmatpush.bf16.msra.mxu0 %v5649
      %7498 = vmatpush.bf16.msra.mxu0 %v5641
      %7499 = vmatpush.bf16.msra.mxu0 %v5633
      %7500 = vmatpush.bf16.msra.mxu0 %v5625
      %7501 = vmatpush.bf16.msra.mxu0 %v5617
      %7502 = vmatpush.bf16.msra.mxu0 %v5609
      %7503 = vmatpush.bf16.msra.mxu0 %v5601
      %7504 = vmatpush.bf16.msra.mxu0 %v5593
      %7505 = vmatmul.bf16.gmra.mxu0 %v3399
      %v7506 = vpop.f32.mrf.mxu0
      %v7507 = vadd.f32 %v7478, %v7506
      %v7508 = vpop.f32.mrf.mxu0
      %v7509 = vadd.f32 %v7480, %v7508
      %7510 = vmatmul.bf16.gmra.mxu0 %v3409
      %v7511 = vpop.f32.mrf.mxu0
      %v7512 = vadd.f32 %v7483, %v7511
      %v7513 = vpop.f32.mrf.mxu0
      %v7514 = vadd.f32 %v7485, %v7513
      %7515 = vmatmul.bf16.gmra.mxu0 %v3419
      %v7516 = vpop.f32.mrf.mxu0
      %v7517 = vadd.f32 %v7488, %v7516
      %v7518 = vpop.f32.mrf.mxu0
      %v7519 = vadd.f32 %v7490, %v7518
      %7520 = vmatmul.bf16.gmra.mxu0 %v3429
      %v7521 = vpop.f32.mrf.mxu0
      %v7522 = vadd.f32 %v7493, %v7521
      %v7523 = vpop.f32.mrf.mxu0
      %v7524 = vadd.f32 %v7495, %v7523
      %7525 = vdwg.mxu0
      %7526 = vmatpush.bf16.msra.mxu0 %v5713
      %7527 = vmatpush.bf16.msra.mxu0 %v5705
      %7528 = vmatpush.bf16.msra.mxu0 %v5697
      %7529 = vmatpush.bf16.msra.mxu0 %v5689
      %7530 = vmatpush.bf16.msra.mxu0 %v5681
      %7531 = vmatpush.bf16.msra.mxu0 %v5673
      %7532 = vmatpush.bf16.msra.mxu0 %v5665
      %7533 = vmatpush.bf16.msra.mxu0 %v5657
      %7534 = vmatmul.bf16.gmra.mxu0 %v3400
      %v7535 = vpop.f32.mrf.mxu0
      %v7536 = vadd.f32 %v7507, %v7535
      %v7537 = vpop.f32.mrf.mxu0
      %v7538 = vadd.f32 %v7509, %v7537
      %7539 = vmatmul.bf16.gmra.mxu0 %v3410
      %v7540 = vpop.f32.mrf.mxu0
      %v7541 = vadd.f32 %v7512, %v7540
      %v7542 = vpop.f32.mrf.mxu0
      %v7543 = vadd.f32 %v7514, %v7542
      %7544 = vmatmul.bf16.gmra.mxu0 %v3420
      %v7545 = vpop.f32.mrf.mxu0
      %v7546 = vadd.f32 %v7517, %v7545
      %v7547 = vpop.f32.mrf.mxu0
      %v7548 = vadd.f32 %v7519, %v7547
      %7549 = vmatmul.bf16.gmra.mxu0 %v3430
      %v7550 = vpop.f32.mrf.mxu0
      %v7551 = vadd.f32 %v7522, %v7550
      %v7552 = vpop.f32.mrf.mxu0
      %v7553 = vadd.f32 %v7524, %v7552
      %7554 = vdwg.mxu0
      %7555 = vmatpush.bf16.msra.mxu0 %v5777
      %7556 = vmatpush.bf16.msra.mxu0 %v5769
      %7557 = vmatpush.bf16.msra.mxu0 %v5761
      %7558 = vmatpush.bf16.msra.mxu0 %v5753
      %7559 = vmatpush.bf16.msra.mxu0 %v5745
      %7560 = vmatpush.bf16.msra.mxu0 %v5737
      %7561 = vmatpush.bf16.msra.mxu0 %v5729
      %7562 = vmatpush.bf16.msra.mxu0 %v5721
      %7563 = vmatmul.bf16.gmra.mxu0 %v3401
      %v7564 = vpop.f32.mrf.mxu0
      %v7565 = vadd.f32 %v7536, %v7564
      %v7566 = vpop.f32.mrf.mxu0
      %v7567 = vadd.f32 %v7538, %v7566
      %7568 = vmatmul.bf16.gmra.mxu0 %v3411
      %v7569 = vpop.f32.mrf.mxu0
      %v7570 = vadd.f32 %v7541, %v7569
      %v7571 = vpop.f32.mrf.mxu0
      %v7572 = vadd.f32 %v7543, %v7571
      %7573 = vmatmul.bf16.gmra.mxu0 %v3421
      %v7574 = vpop.f32.mrf.mxu0
      %v7575 = vadd.f32 %v7546, %v7574
      %v7576 = vpop.f32.mrf.mxu0
      %v7577 = vadd.f32 %v7548, %v7576
      %7578 = vmatmul.bf16.gmra.mxu0 %v3431
      %v7579 = vpop.f32.mrf.mxu0
      %v7580 = vadd.f32 %v7551, %v7579
      %v7581 = vpop.f32.mrf.mxu0
      %v7582 = vadd.f32 %v7553, %v7581
      %7583 = vdwg.mxu0
      %7584 = vmatpush.bf16.msra.mxu0 %v5841
      %7585 = vmatpush.bf16.msra.mxu0 %v5833
      %7586 = vmatpush.bf16.msra.mxu0 %v5825
      %7587 = vmatpush.bf16.msra.mxu0 %v5817
      %7588 = vmatpush.bf16.msra.mxu0 %v5809
      %7589 = vmatpush.bf16.msra.mxu0 %v5801
      %7590 = vmatpush.bf16.msra.mxu0 %v5793
      %7591 = vmatpush.bf16.msra.mxu0 %v5785
      %7592 = vmatmul.bf16.gmra.mxu0 %v3402
      %v7593 = vpop.f32.mrf.mxu0
      %v7594 = vadd.f32 %v7565, %v7593
      %v7595 = vpop.f32.mrf.mxu0
      %v7596 = vadd.f32 %v7567, %v7595
      %7597 = vmatmul.bf16.gmra.mxu0 %v3412
      %v7598 = vpop.f32.mrf.mxu0
      %v7599 = vadd.f32 %v7570, %v7598
      %v7600 = vpop.f32.mrf.mxu0
      %v7601 = vadd.f32 %v7572, %v7600
      %7602 = vmatmul.bf16.gmra.mxu0 %v3422
      %v7603 = vpop.f32.mrf.mxu0
      %v7604 = vadd.f32 %v7575, %v7603
      %v7605 = vpop.f32.mrf.mxu0
      %v7606 = vadd.f32 %v7577, %v7605
      %7607 = vmatmul.bf16.gmra.mxu0 %v3432
      %v7608 = vpop.f32.mrf.mxu0
      %v7609 = vadd.f32 %v7580, %v7608
      %v7610 = vpop.f32.mrf.mxu0
      %v7611 = vadd.f32 %v7582, %v7610
      %7612 = vdwg.mxu0
      %7613 = vmatpush.bf16.msra.mxu0 0
      %7614 = vmatpush.bf16.msra.mxu0 0
      %7615 = vmatpush.bf16.msra.mxu0 0
      %7616 = vmatpush.bf16.msra.mxu0 0
      %7617 = vmatpush.bf16.msra.mxu0 0
      %7618 = vmatpush.bf16.msra.mxu0 %v5865
      %7619 = vmatpush.bf16.msra.mxu0 %v5857
      %7620 = vmatpush.bf16.msra.mxu0 %v5849
      %7621 = vmatmul.bf16.gmra.mxu0 %v6471
      %v7622 = vpop.f32.mrf.mxu0
      %v7623 = vadd.f32 %v7594, %v7622
      %v7624 = vpop.f32.mrf.mxu0
      %v7625 = vadd.f32 %v7596, %v7624
      %7626 = vmatmul.bf16.gmra.mxu0 %v6474
      %v7627 = vpop.f32.mrf.mxu0
      %v7628 = vadd.f32 %v7599, %v7627
      %v7629 = vpop.f32.mrf.mxu0
      %v7630 = vadd.f32 %v7601, %v7629
      %7631 = vmatmul.bf16.gmra.mxu0 %v6477
      %v7632 = vpop.f32.mrf.mxu0
      %v7633 = vadd.f32 %v7604, %v7632
      %v7634 = vpop.f32.mrf.mxu0
      %v7635 = vadd.f32 %v7606, %v7634
      %7636 = vmatmul.bf16.gmra.mxu0 %v6480
      %v7637 = vpop.f32.mrf.mxu0
      %v7638 = vadd.f32 %v7609, %v7637
      %v7639 = vpop.f32.mrf.mxu0
      %v7640 = vadd.f32 %v7611, %v7639
      %7641 = vdwg.mxu0
      %7642 = vmatpush.bf16.msra.mxu0 %v5330
      %7643 = vmatpush.bf16.msra.mxu0 %v5322
      %7644 = vmatpush.bf16.msra.mxu0 %v5314
      %7645 = vmatpush.bf16.msra.mxu0 %v5306
      %7646 = vmatpush.bf16.msra.mxu0 %v5298
      %7647 = vmatpush.bf16.msra.mxu0 %v5290
      %7648 = vmatpush.bf16.msra.mxu0 %v5282
      %7649 = vmatpush.bf16.msra.mxu0 %v5274
      %7650 = vmatmul.bf16.gmra.mxu0 %v3394
      %v7651 = vpop.f32.mrf.mxu0
      %v7652 = vadd.f32 0.0, %v7651
      %v7653 = vpop.f32.mrf.mxu0
      %v7654 = vadd.f32 0.0, %v7653
      %7655 = vmatmul.bf16.gmra.mxu0 %v3404
      %v7656 = vpop.f32.mrf.mxu0
      %v7657 = vadd.f32 0.0, %v7656
      %v7658 = vpop.f32.mrf.mxu0
      %v7659 = vadd.f32 0.0, %v7658
      %7660 = vmatmul.bf16.gmra.mxu0 %v3414
      %v7661 = vpop.f32.mrf.mxu0
      %v7662 = vadd.f32 0.0, %v7661
      %v7663 = vpop.f32.mrf.mxu0
      %v7664 = vadd.f32 0.0, %v7663
      %7665 = vmatmul.bf16.gmra.mxu0 %v3424
      %v7666 = vpop.f32.mrf.mxu0
      %v7667 = vadd.f32 0.0, %v7666
      %v7668 = vpop.f32.mrf.mxu0
      %v7669 = vadd.f32 0.0, %v7668
      %7670 = vdwg.mxu0
      %7671 = vmatpush.bf16.msra.mxu0 %v5394
      %7672 = vmatpush.bf16.msra.mxu0 %v5386
      %7673 = vmatpush.bf16.msra.mxu0 %v5378
      %7674 = vmatpush.bf16.msra.mxu0 %v5370
      %7675 = vmatpush.bf16.msra.mxu0 %v5362
      %7676 = vmatpush.bf16.msra.mxu0 %v5354
      %7677 = vmatpush.bf16.msra.mxu0 %v5346
      %7678 = vmatpush.bf16.msra.mxu0 %v5338
      %7679 = vmatmul.bf16.gmra.mxu0 %v3395
      %v7680 = vpop.f32.mrf.mxu0
      %v7681 = vadd.f32 %v7652, %v7680
      %v7682 = vpop.f32.mrf.mxu0
      %v7683 = vadd.f32 %v7654, %v7682
      %7684 = vmatmul.bf16.gmra.mxu0 %v3405
      %v7685 = vpop.f32.mrf.mxu0
      %v7686 = vadd.f32 %v7657, %v7685
      %v7687 = vpop.f32.mrf.mxu0
      %v7688 = vadd.f32 %v7659, %v7687
      %7689 = vmatmul.bf16.gmra.mxu0 %v3415
      %v7690 = vpop.f32.mrf.mxu0
      %v7691 = vadd.f32 %v7662, %v7690
      %v7692 = vpop.f32.mrf.mxu0
      %v7693 = vadd.f32 %v7664, %v7692
      %7694 = vmatmul.bf16.gmra.mxu0 %v3425
      %v7695 = vpop.f32.mrf.mxu0
      %v7696 = vadd.f32 %v7667, %v7695
      %v7697 = vpop.f32.mrf.mxu0
      %v7698 = vadd.f32 %v7669, %v7697
      %7699 = vdwg.mxu0
      %7700 = vmatpush.bf16.msra.mxu0 %v5458
      %7701 = vmatpush.bf16.msra.mxu0 %v5450
      %7702 = vmatpush.bf16.msra.mxu0 %v5442
      %7703 = vmatpush.bf16.msra.mxu0 %v5434
      %7704 = vmatpush.bf16.msra.mxu0 %v5426
      %7705 = vmatpush.bf16.msra.mxu0 %v5418
      %7706 = vmatpush.bf16.msra.mxu0 %v5410
      %7707 = vmatpush.bf16.msra.mxu0 %v5402
      %7708 = vmatmul.bf16.gmra.mxu0 %v3396
      %v7709 = vpop.f32.mrf.mxu0
      %v7710 = vadd.f32 %v7681, %v7709
      %v7711 = vpop.f32.mrf.mxu0
      %v7712 = vadd.f32 %v7683, %v7711
      %7713 = vmatmul.bf16.gmra.mxu0 %v3406
      %v7714 = vpop.f32.mrf.mxu0
      %v7715 = vadd.f32 %v7686, %v7714
      %v7716 = vpop.f32.mrf.mxu0
      %v7717 = vadd.f32 %v7688, %v7716
      %7718 = vmatmul.bf16.gmra.mxu0 %v3416
      %v7719 = vpop.f32.mrf.mxu0
      %v7720 = vadd.f32 %v7691, %v7719
      %v7721 = vpop.f32.mrf.mxu0
      %v7722 = vadd.f32 %v7693, %v7721
      %7723 = vmatmul.bf16.gmra.mxu0 %v3426
      %v7724 = vpop.f32.mrf.mxu0
      %v7725 = vadd.f32 %v7696, %v7724
      %v7726 = vpop.f32.mrf.mxu0
      %v7727 = vadd.f32 %v7698, %v7726
      %7728 = vdwg.mxu0
      %7729 = vmatpush.bf16.msra.mxu0 %v5522
      %7730 = vmatpush.bf16.msra.mxu0 %v5514
      %7731 = vmatpush.bf16.msra.mxu0 %v5506
      %7732 = vmatpush.bf16.msra.mxu0 %v5498
      %7733 = vmatpush.bf16.msra.mxu0 %v5490
      %7734 = vmatpush.bf16.msra.mxu0 %v5482
      %7735 = vmatpush.bf16.msra.mxu0 %v5474
      %7736 = vmatpush.bf16.msra.mxu0 %v5466
      %7737 = vmatmul.bf16.gmra.mxu0 %v3397
      %v7738 = vpop.f32.mrf.mxu0
      %v7739 = vadd.f32 %v7710, %v7738
      %v7740 = vpop.f32.mrf.mxu0
      %v7741 = vadd.f32 %v7712, %v7740
      %7742 = vmatmul.bf16.gmra.mxu0 %v3407
      %v7743 = vpop.f32.mrf.mxu0
      %v7744 = vadd.f32 %v7715, %v7743
      %v7745 = vpop.f32.mrf.mxu0
      %v7746 = vadd.f32 %v7717, %v7745
      %7747 = vmatmul.bf16.gmra.mxu0 %v3417
      %v7748 = vpop.f32.mrf.mxu0
      %v7749 = vadd.f32 %v7720, %v7748
      %v7750 = vpop.f32.mrf.mxu0
      %v7751 = vadd.f32 %v7722, %v7750
      %7752 = vmatmul.bf16.gmra.mxu0 %v3427
      %v7753 = vpop.f32.mrf.mxu0
      %v7754 = vadd.f32 %v7725, %v7753
      %v7755 = vpop.f32.mrf.mxu0
      %v7756 = vadd.f32 %v7727, %v7755
      %7757 = vdwg.mxu0
      %7758 = vmatpush.bf16.msra.mxu0 %v5586
      %7759 = vmatpush.bf16.msra.mxu0 %v5578
      %7760 = vmatpush.bf16.msra.mxu0 %v5570
      %7761 = vmatpush.bf16.msra.mxu0 %v5562
      %7762 = vmatpush.bf16.msra.mxu0 %v5554
      %7763 = vmatpush.bf16.msra.mxu0 %v5546
      %7764 = vmatpush.bf16.msra.mxu0 %v5538
      %7765 = vmatpush.bf16.msra.mxu0 %v5530
      %7766 = vmatmul.bf16.gmra.mxu0 %v3398
      %v7767 = vpop.f32.mrf.mxu0
      %v7768 = vadd.f32 %v7739, %v7767
      %v7769 = vpop.f32.mrf.mxu0
      %v7770 = vadd.f32 %v7741, %v7769
      %7771 = vmatmul.bf16.gmra.mxu0 %v3408
      %v7772 = vpop.f32.mrf.mxu0
      %v7773 = vadd.f32 %v7744, %v7772
      %v7774 = vpop.f32.mrf.mxu0
      %v7775 = vadd.f32 %v7746, %v7774
      %7776 = vmatmul.bf16.gmra.mxu0 %v3418
      %v7777 = vpop.f32.mrf.mxu0
      %v7778 = vadd.f32 %v7749, %v7777
      %v7779 = vpop.f32.mrf.mxu0
      %v7780 = vadd.f32 %v7751, %v7779
      %7781 = vmatmul.bf16.gmra.mxu0 %v3428
      %v7782 = vpop.f32.mrf.mxu0
      %v7783 = vadd.f32 %v7754, %v7782
      %v7784 = vpop.f32.mrf.mxu0
      %v7785 = vadd.f32 %v7756, %v7784
      %7786 = vdwg.mxu0
      %7787 = vmatpush.bf16.msra.mxu0 %v5650
      %7788 = vmatpush.bf16.msra.mxu0 %v5642
      %7789 = vmatpush.bf16.msra.mxu0 %v5634
      %7790 = vmatpush.bf16.msra.mxu0 %v5626
      %7791 = vmatpush.bf16.msra.mxu0 %v5618
      %7792 = vmatpush.bf16.msra.mxu0 %v5610
      %7793 = vmatpush.bf16.msra.mxu0 %v5602
      %7794 = vmatpush.bf16.msra.mxu0 %v5594
      %7795 = vmatmul.bf16.gmra.mxu0 %v3399
      %v7796 = vpop.f32.mrf.mxu0
      %v7797 = vadd.f32 %v7768, %v7796
      %v7798 = vpop.f32.mrf.mxu0
      %v7799 = vadd.f32 %v7770, %v7798
      %7800 = vmatmul.bf16.gmra.mxu0 %v3409
      %v7801 = vpop.f32.mrf.mxu0
      %v7802 = vadd.f32 %v7773, %v7801
      %v7803 = vpop.f32.mrf.mxu0
      %v7804 = vadd.f32 %v7775, %v7803
      %7805 = vmatmul.bf16.gmra.mxu0 %v3419
      %v7806 = vpop.f32.mrf.mxu0
      %v7807 = vadd.f32 %v7778, %v7806
      %v7808 = vpop.f32.mrf.mxu0
      %v7809 = vadd.f32 %v7780, %v7808
      %7810 = vmatmul.bf16.gmra.mxu0 %v3429
      %v7811 = vpop.f32.mrf.mxu0
      %v7812 = vadd.f32 %v7783, %v7811
      %v7813 = vpop.f32.mrf.mxu0
      %v7814 = vadd.f32 %v7785, %v7813
      %7815 = vdwg.mxu0
      %7816 = vmatpush.bf16.msra.mxu0 %v5714
      %7817 = vmatpush.bf16.msra.mxu0 %v5706
      %7818 = vmatpush.bf16.msra.mxu0 %v5698
      %7819 = vmatpush.bf16.msra.mxu0 %v5690
      %7820 = vmatpush.bf16.msra.mxu0 %v5682
      %7821 = vmatpush.bf16.msra.mxu0 %v5674
      %7822 = vmatpush.bf16.msra.mxu0 %v5666
      %7823 = vmatpush.bf16.msra.mxu0 %v5658
      %7824 = vmatmul.bf16.gmra.mxu0 %v3400
      %v7825 = vpop.f32.mrf.mxu0
      %v7826 = vadd.f32 %v7797, %v7825
      %v7827 = vpop.f32.mrf.mxu0
      %v7828 = vadd.f32 %v7799, %v7827
      %7829 = vmatmul.bf16.gmra.mxu0 %v3410
      %v7830 = vpop.f32.mrf.mxu0
      %v7831 = vadd.f32 %v7802, %v7830
      %v7832 = vpop.f32.mrf.mxu0
      %v7833 = vadd.f32 %v7804, %v7832
      %7834 = vmatmul.bf16.gmra.mxu0 %v3420
      %v7835 = vpop.f32.mrf.mxu0
      %v7836 = vadd.f32 %v7807, %v7835
      %v7837 = vpop.f32.mrf.mxu0
      %v7838 = vadd.f32 %v7809, %v7837
      %7839 = vmatmul.bf16.gmra.mxu0 %v3430
      %v7840 = vpop.f32.mrf.mxu0
      %v7841 = vadd.f32 %v7812, %v7840
      %v7842 = vpop.f32.mrf.mxu0
      %v7843 = vadd.f32 %v7814, %v7842
      %7844 = vdwg.mxu0
      %7845 = vmatpush.bf16.msra.mxu0 %v5778
      %7846 = vmatpush.bf16.msra.mxu0 %v5770
      %7847 = vmatpush.bf16.msra.mxu0 %v5762
      %7848 = vmatpush.bf16.msra.mxu0 %v5754
      %7849 = vmatpush.bf16.msra.mxu0 %v5746
      %7850 = vmatpush.bf16.msra.mxu0 %v5738
      %7851 = vmatpush.bf16.msra.mxu0 %v5730
      %7852 = vmatpush.bf16.msra.mxu0 %v5722
      %7853 = vmatmul.bf16.gmra.mxu0 %v3401
      %v7854 = vpop.f32.mrf.mxu0
      %v7855 = vadd.f32 %v7826, %v7854
      %v7856 = vpop.f32.mrf.mxu0
      %v7857 = vadd.f32 %v7828, %v7856
      %7858 = vmatmul.bf16.gmra.mxu0 %v3411
      %v7859 = vpop.f32.mrf.mxu0
      %v7860 = vadd.f32 %v7831, %v7859
      %v7861 = vpop.f32.mrf.mxu0
      %v7862 = vadd.f32 %v7833, %v7861
      %7863 = vmatmul.bf16.gmra.mxu0 %v3421
      %v7864 = vpop.f32.mrf.mxu0
      %v7865 = vadd.f32 %v7836, %v7864
      %v7866 = vpop.f32.mrf.mxu0
      %v7867 = vadd.f32 %v7838, %v7866
      %7868 = vmatmul.bf16.gmra.mxu0 %v3431
      %v7869 = vpop.f32.mrf.mxu0
      %v7870 = vadd.f32 %v7841, %v7869
      %v7871 = vpop.f32.mrf.mxu0
      %v7872 = vadd.f32 %v7843, %v7871
      %7873 = vdwg.mxu0
      %7874 = vmatpush.bf16.msra.mxu0 %v5842
      %7875 = vmatpush.bf16.msra.mxu0 %v5834
      %7876 = vmatpush.bf16.msra.mxu0 %v5826
      %7877 = vmatpush.bf16.msra.mxu0 %v5818
      %7878 = vmatpush.bf16.msra.mxu0 %v5810
      %7879 = vmatpush.bf16.msra.mxu0 %v5802
      %7880 = vmatpush.bf16.msra.mxu0 %v5794
      %7881 = vmatpush.bf16.msra.mxu0 %v5786
      %7882 = vmatmul.bf16.gmra.mxu0 %v3402
      %v7883 = vpop.f32.mrf.mxu0
      %v7884 = vadd.f32 %v7855, %v7883
      %v7885 = vpop.f32.mrf.mxu0
      %v7886 = vadd.f32 %v7857, %v7885
      %7887 = vmatmul.bf16.gmra.mxu0 %v3412
      %v7888 = vpop.f32.mrf.mxu0
      %v7889 = vadd.f32 %v7860, %v7888
      %v7890 = vpop.f32.mrf.mxu0
      %v7891 = vadd.f32 %v7862, %v7890
      %7892 = vmatmul.bf16.gmra.mxu0 %v3422
      %v7893 = vpop.f32.mrf.mxu0
      %v7894 = vadd.f32 %v7865, %v7893
      %v7895 = vpop.f32.mrf.mxu0
      %v7896 = vadd.f32 %v7867, %v7895
      %7897 = vmatmul.bf16.gmra.mxu0 %v3432
      %v7898 = vpop.f32.mrf.mxu0
      %v7899 = vadd.f32 %v7870, %v7898
      %v7900 = vpop.f32.mrf.mxu0
      %v7901 = vadd.f32 %v7872, %v7900
      %7902 = vdwg.mxu0
      %7903 = vmatpush.bf16.msra.mxu0 0
      %7904 = vmatpush.bf16.msra.mxu0 0
      %7905 = vmatpush.bf16.msra.mxu0 0
      %7906 = vmatpush.bf16.msra.mxu0 0
      %7907 = vmatpush.bf16.msra.mxu0 0
      %7908 = vmatpush.bf16.msra.mxu0 %v5866
      %7909 = vmatpush.bf16.msra.mxu0 %v5858
      %7910 = vmatpush.bf16.msra.mxu0 %v5850
      %7911 = vmatmul.bf16.gmra.mxu0 %v6471
      %v7912 = vpop.f32.mrf.mxu0
      %v7913 = vadd.f32 %v7884, %v7912
      %v7914 = vpop.f32.mrf.mxu0
      %v7915 = vadd.f32 %v7886, %v7914
      %7916 = vmatmul.bf16.gmra.mxu0 %v6474
      %v7917 = vpop.f32.mrf.mxu0
      %v7918 = vadd.f32 %v7889, %v7917
      %v7919 = vpop.f32.mrf.mxu0
      %v7920 = vadd.f32 %v7891, %v7919
      %7921 = vmatmul.bf16.gmra.mxu0 %v6477
      %v7922 = vpop.f32.mrf.mxu0
      %v7923 = vadd.f32 %v7894, %v7922
      %v7924 = vpop.f32.mrf.mxu0
      %v7925 = vadd.f32 %v7896, %v7924
      %7926 = vmatmul.bf16.gmra.mxu0 %v6480
      %v7927 = vpop.f32.mrf.mxu0
      %v7928 = vadd.f32 %v7899, %v7927
      %v7929 = vpop.f32.mrf.mxu0
      %v7930 = vadd.f32 %v7901, %v7929
      %7931 = vdwg.mxu0
      %7932 = vmatpush.bf16.msra.mxu0 %v5331
      %7933 = vmatpush.bf16.msra.mxu0 %v5323
      %7934 = vmatpush.bf16.msra.mxu0 %v5315
      %7935 = vmatpush.bf16.msra.mxu0 %v5307
      %7936 = vmatpush.bf16.msra.mxu0 %v5299
      %7937 = vmatpush.bf16.msra.mxu0 %v5291
      %7938 = vmatpush.bf16.msra.mxu0 %v5283
      %7939 = vmatpush.bf16.msra.mxu0 %v5275
      %7940 = vmatmul.bf16.gmra.mxu0 %v3394
      %v7941 = vpop.f32.mrf.mxu0
      %v7942 = vadd.f32 0.0, %v7941
      %v7943 = vpop.f32.mrf.mxu0
      %v7944 = vadd.f32 0.0, %v7943
      %7945 = vmatmul.bf16.gmra.mxu0 %v3404
      %v7946 = vpop.f32.mrf.mxu0
      %v7947 = vadd.f32 0.0, %v7946
      %v7948 = vpop.f32.mrf.mxu0
      %v7949 = vadd.f32 0.0, %v7948
      %7950 = vmatmul.bf16.gmra.mxu0 %v3414
      %v7951 = vpop.f32.mrf.mxu0
      %v7952 = vadd.f32 0.0, %v7951
      %v7953 = vpop.f32.mrf.mxu0
      %v7954 = vadd.f32 0.0, %v7953
      %7955 = vmatmul.bf16.gmra.mxu0 %v3424
      %v7956 = vpop.f32.mrf.mxu0
      %v7957 = vadd.f32 0.0, %v7956
      %v7958 = vpop.f32.mrf.mxu0
      %v7959 = vadd.f32 0.0, %v7958
      %7960 = vdwg.mxu0
      %7961 = vmatpush.bf16.msra.mxu0 %v5395
      %7962 = vmatpush.bf16.msra.mxu0 %v5387
      %7963 = vmatpush.bf16.msra.mxu0 %v5379
      %7964 = vmatpush.bf16.msra.mxu0 %v5371
      %7965 = vmatpush.bf16.msra.mxu0 %v5363
      %7966 = vmatpush.bf16.msra.mxu0 %v5355
      %7967 = vmatpush.bf16.msra.mxu0 %v5347
      %7968 = vmatpush.bf16.msra.mxu0 %v5339
      %7969 = vmatmul.bf16.gmra.mxu0 %v3395
      %v7970 = vpop.f32.mrf.mxu0
      %v7971 = vadd.f32 %v7942, %v7970
      %v7972 = vpop.f32.mrf.mxu0
      %v7973 = vadd.f32 %v7944, %v7972
      %7974 = vmatmul.bf16.gmra.mxu0 %v3405
      %v7975 = vpop.f32.mrf.mxu0
      %v7976 = vadd.f32 %v7947, %v7975
      %v7977 = vpop.f32.mrf.mxu0
      %v7978 = vadd.f32 %v7949, %v7977
      %7979 = vmatmul.bf16.gmra.mxu0 %v3415
      %v7980 = vpop.f32.mrf.mxu0
      %v7981 = vadd.f32 %v7952, %v7980
      %v7982 = vpop.f32.mrf.mxu0
      %v7983 = vadd.f32 %v7954, %v7982
      %7984 = vmatmul.bf16.gmra.mxu0 %v3425
      %v7985 = vpop.f32.mrf.mxu0
      %v7986 = vadd.f32 %v7957, %v7985
      %v7987 = vpop.f32.mrf.mxu0
      %v7988 = vadd.f32 %v7959, %v7987
      %7989 = vdwg.mxu0
      %7990 = vmatpush.bf16.msra.mxu0 %v5459
      %7991 = vmatpush.bf16.msra.mxu0 %v5451
      %7992 = vmatpush.bf16.msra.mxu0 %v5443
      %7993 = vmatpush.bf16.msra.mxu0 %v5435
      %7994 = vmatpush.bf16.msra.mxu0 %v5427
      %7995 = vmatpush.bf16.msra.mxu0 %v5419
      %7996 = vmatpush.bf16.msra.mxu0 %v5411
      %7997 = vmatpush.bf16.msra.mxu0 %v5403
      %7998 = vmatmul.bf16.gmra.mxu0 %v3396
      %v7999 = vpop.f32.mrf.mxu0
      %v8000 = vadd.f32 %v7971, %v7999
      %v8001 = vpop.f32.mrf.mxu0
      %v8002 = vadd.f32 %v7973, %v8001
      %8003 = vmatmul.bf16.gmra.mxu0 %v3406
      %v8004 = vpop.f32.mrf.mxu0
      %v8005 = vadd.f32 %v7976, %v8004
      %v8006 = vpop.f32.mrf.mxu0
      %v8007 = vadd.f32 %v7978, %v8006
      %8008 = vmatmul.bf16.gmra.mxu0 %v3416
      %v8009 = vpop.f32.mrf.mxu0
      %v8010 = vadd.f32 %v7981, %v8009
      %v8011 = vpop.f32.mrf.mxu0
      %v8012 = vadd.f32 %v7983, %v8011
      %8013 = vmatmul.bf16.gmra.mxu0 %v3426
      %v8014 = vpop.f32.mrf.mxu0
      %v8015 = vadd.f32 %v7986, %v8014
      %v8016 = vpop.f32.mrf.mxu0
      %v8017 = vadd.f32 %v7988, %v8016
      %8018 = vdwg.mxu0
      %8019 = vmatpush.bf16.msra.mxu0 %v5523
      %8020 = vmatpush.bf16.msra.mxu0 %v5515
      %8021 = vmatpush.bf16.msra.mxu0 %v5507
      %8022 = vmatpush.bf16.msra.mxu0 %v5499
      %8023 = vmatpush.bf16.msra.mxu0 %v5491
      %8024 = vmatpush.bf16.msra.mxu0 %v5483
      %8025 = vmatpush.bf16.msra.mxu0 %v5475
      %8026 = vmatpush.bf16.msra.mxu0 %v5467
      %8027 = vmatmul.bf16.gmra.mxu0 %v3397
      %v8028 = vpop.f32.mrf.mxu0
      %v8029 = vadd.f32 %v8000, %v8028
      %v8030 = vpop.f32.mrf.mxu0
      %v8031 = vadd.f32 %v8002, %v8030
      %8032 = vmatmul.bf16.gmra.mxu0 %v3407
      %v8033 = vpop.f32.mrf.mxu0
      %v8034 = vadd.f32 %v8005, %v8033
      %v8035 = vpop.f32.mrf.mxu0
      %v8036 = vadd.f32 %v8007, %v8035
      %8037 = vmatmul.bf16.gmra.mxu0 %v3417
      %v8038 = vpop.f32.mrf.mxu0
      %v8039 = vadd.f32 %v8010, %v8038
      %v8040 = vpop.f32.mrf.mxu0
      %v8041 = vadd.f32 %v8012, %v8040
      %8042 = vmatmul.bf16.gmra.mxu0 %v3427
      %v8043 = vpop.f32.mrf.mxu0
      %v8044 = vadd.f32 %v8015, %v8043
      %v8045 = vpop.f32.mrf.mxu0
      %v8046 = vadd.f32 %v8017, %v8045
      %8047 = vdwg.mxu0
      %8048 = vmatpush.bf16.msra.mxu0 %v5587
      %8049 = vmatpush.bf16.msra.mxu0 %v5579
      %8050 = vmatpush.bf16.msra.mxu0 %v5571
      %8051 = vmatpush.bf16.msra.mxu0 %v5563
      %8052 = vmatpush.bf16.msra.mxu0 %v5555
      %8053 = vmatpush.bf16.msra.mxu0 %v5547
      %8054 = vmatpush.bf16.msra.mxu0 %v5539
      %8055 = vmatpush.bf16.msra.mxu0 %v5531
      %8056 = vmatmul.bf16.gmra.mxu0 %v3398
      %v8057 = vpop.f32.mrf.mxu0
      %v8058 = vadd.f32 %v8029, %v8057
      %v8059 = vpop.f32.mrf.mxu0
      %v8060 = vadd.f32 %v8031, %v8059
      %8061 = vmatmul.bf16.gmra.mxu0 %v3408
      %v8062 = vpop.f32.mrf.mxu0
      %v8063 = vadd.f32 %v8034, %v8062
      %v8064 = vpop.f32.mrf.mxu0
      %v8065 = vadd.f32 %v8036, %v8064
      %8066 = vmatmul.bf16.gmra.mxu0 %v3418
      %v8067 = vpop.f32.mrf.mxu0
      %v8068 = vadd.f32 %v8039, %v8067
      %v8069 = vpop.f32.mrf.mxu0
      %v8070 = vadd.f32 %v8041, %v8069
      %8071 = vmatmul.bf16.gmra.mxu0 %v3428
      %v8072 = vpop.f32.mrf.mxu0
      %v8073 = vadd.f32 %v8044, %v8072
      %v8074 = vpop.f32.mrf.mxu0
      %v8075 = vadd.f32 %v8046, %v8074
      %8076 = vdwg.mxu0
      %8077 = vmatpush.bf16.msra.mxu0 %v5651
      %8078 = vmatpush.bf16.msra.mxu0 %v5643
      %8079 = vmatpush.bf16.msra.mxu0 %v5635
      %8080 = vmatpush.bf16.msra.mxu0 %v5627
      %8081 = vmatpush.bf16.msra.mxu0 %v5619
      %8082 = vmatpush.bf16.msra.mxu0 %v5611
      %8083 = vmatpush.bf16.msra.mxu0 %v5603
      %8084 = vmatpush.bf16.msra.mxu0 %v5595
      %8085 = vmatmul.bf16.gmra.mxu0 %v3399
      %v8086 = vpop.f32.mrf.mxu0
      %v8087 = vadd.f32 %v8058, %v8086
      %v8088 = vpop.f32.mrf.mxu0
      %v8089 = vadd.f32 %v8060, %v8088
      %8090 = vmatmul.bf16.gmra.mxu0 %v3409
      %v8091 = vpop.f32.mrf.mxu0
      %v8092 = vadd.f32 %v8063, %v8091
      %v8093 = vpop.f32.mrf.mxu0
      %v8094 = vadd.f32 %v8065, %v8093
      %8095 = vmatmul.bf16.gmra.mxu0 %v3419
      %v8096 = vpop.f32.mrf.mxu0
      %v8097 = vadd.f32 %v8068, %v8096
      %v8098 = vpop.f32.mrf.mxu0
      %v8099 = vadd.f32 %v8070, %v8098
      %8100 = vmatmul.bf16.gmra.mxu0 %v3429
      %v8101 = vpop.f32.mrf.mxu0
      %v8102 = vadd.f32 %v8073, %v8101
      %v8103 = vpop.f32.mrf.mxu0
      %v8104 = vadd.f32 %v8075, %v8103
      %8105 = vdwg.mxu0
      %8106 = vmatpush.bf16.msra.mxu0 %v5715
      %8107 = vmatpush.bf16.msra.mxu0 %v5707
      %8108 = vmatpush.bf16.msra.mxu0 %v5699
      %8109 = vmatpush.bf16.msra.mxu0 %v5691
      %8110 = vmatpush.bf16.msra.mxu0 %v5683
      %8111 = vmatpush.bf16.msra.mxu0 %v5675
      %8112 = vmatpush.bf16.msra.mxu0 %v5667
      %8113 = vmatpush.bf16.msra.mxu0 %v5659
      %8114 = vmatmul.bf16.gmra.mxu0 %v3400
      %v8115 = vpop.f32.mrf.mxu0
      %v8116 = vadd.f32 %v8087, %v8115
      %v8117 = vpop.f32.mrf.mxu0
      %v8118 = vadd.f32 %v8089, %v8117
      %8119 = vmatmul.bf16.gmra.mxu0 %v3410
      %v8120 = vpop.f32.mrf.mxu0
      %v8121 = vadd.f32 %v8092, %v8120
      %v8122 = vpop.f32.mrf.mxu0
      %v8123 = vadd.f32 %v8094, %v8122
      %8124 = vmatmul.bf16.gmra.mxu0 %v3420
      %v8125 = vpop.f32.mrf.mxu0
      %v8126 = vadd.f32 %v8097, %v8125
      %v8127 = vpop.f32.mrf.mxu0
      %v8128 = vadd.f32 %v8099, %v8127
      %8129 = vmatmul.bf16.gmra.mxu0 %v3430
      %v8130 = vpop.f32.mrf.mxu0
      %v8131 = vadd.f32 %v8102, %v8130
      %v8132 = vpop.f32.mrf.mxu0
      %v8133 = vadd.f32 %v8104, %v8132
      %8134 = vdwg.mxu0
      %8135 = vmatpush.bf16.msra.mxu0 %v5779
      %8136 = vmatpush.bf16.msra.mxu0 %v5771
      %8137 = vmatpush.bf16.msra.mxu0 %v5763
      %8138 = vmatpush.bf16.msra.mxu0 %v5755
      %8139 = vmatpush.bf16.msra.mxu0 %v5747
      %8140 = vmatpush.bf16.msra.mxu0 %v5739
      %8141 = vmatpush.bf16.msra.mxu0 %v5731
      %8142 = vmatpush.bf16.msra.mxu0 %v5723
      %8143 = vmatmul.bf16.gmra.mxu0 %v3401
      %v8144 = vpop.f32.mrf.mxu0
      %v8145 = vadd.f32 %v8116, %v8144
      %v8146 = vpop.f32.mrf.mxu0
      %v8147 = vadd.f32 %v8118, %v8146
      %8148 = vmatmul.bf16.gmra.mxu0 %v3411
      %v8149 = vpop.f32.mrf.mxu0
      %v8150 = vadd.f32 %v8121, %v8149
      %v8151 = vpop.f32.mrf.mxu0
      %v8152 = vadd.f32 %v8123, %v8151
      %8153 = vmatmul.bf16.gmra.mxu0 %v3421
      %v8154 = vpop.f32.mrf.mxu0
      %v8155 = vadd.f32 %v8126, %v8154
      %v8156 = vpop.f32.mrf.mxu0
      %v8157 = vadd.f32 %v8128, %v8156
      %8158 = vmatmul.bf16.gmra.mxu0 %v3431
      %v8159 = vpop.f32.mrf.mxu0
      %v8160 = vadd.f32 %v8131, %v8159
      %v8161 = vpop.f32.mrf.mxu0
      %v8162 = vadd.f32 %v8133, %v8161
      %8163 = vdwg.mxu0
      %8164 = vmatpush.bf16.msra.mxu0 %v5843
      %8165 = vmatpush.bf16.msra.mxu0 %v5835
      %8166 = vmatpush.bf16.msra.mxu0 %v5827
      %8167 = vmatpush.bf16.msra.mxu0 %v5819
      %8168 = vmatpush.bf16.msra.mxu0 %v5811
      %8169 = vmatpush.bf16.msra.mxu0 %v5803
      %8170 = vmatpush.bf16.msra.mxu0 %v5795
      %8171 = vmatpush.bf16.msra.mxu0 %v5787
      %8172 = vmatmul.bf16.gmra.mxu0 %v3402
      %v8173 = vpop.f32.mrf.mxu0
      %v8174 = vadd.f32 %v8145, %v8173
      %v8175 = vpop.f32.mrf.mxu0
      %v8176 = vadd.f32 %v8147, %v8175
      %8177 = vmatmul.bf16.gmra.mxu0 %v3412
      %v8178 = vpop.f32.mrf.mxu0
      %v8179 = vadd.f32 %v8150, %v8178
      %v8180 = vpop.f32.mrf.mxu0
      %v8181 = vadd.f32 %v8152, %v8180
      %8182 = vmatmul.bf16.gmra.mxu0 %v3422
      %v8183 = vpop.f32.mrf.mxu0
      %v8184 = vadd.f32 %v8155, %v8183
      %v8185 = vpop.f32.mrf.mxu0
      %v8186 = vadd.f32 %v8157, %v8185
      %8187 = vmatmul.bf16.gmra.mxu0 %v3432
      %v8188 = vpop.f32.mrf.mxu0
      %v8189 = vadd.f32 %v8160, %v8188
      %v8190 = vpop.f32.mrf.mxu0
      %v8191 = vadd.f32 %v8162, %v8190
      %8192 = vdwg.mxu0
      %8193 = vmatpush.bf16.msra.mxu0 0
      %8194 = vmatpush.bf16.msra.mxu0 0
      %8195 = vmatpush.bf16.msra.mxu0 0
      %8196 = vmatpush.bf16.msra.mxu0 0
      %8197 = vmatpush.bf16.msra.mxu0 0
      %8198 = vmatpush.bf16.msra.mxu0 %v5867
      %8199 = vmatpush.bf16.msra.mxu0 %v5859
      %8200 = vmatpush.bf16.msra.mxu0 %v5851
      %8201 = vmatmul.bf16.gmra.mxu0 %v6471
      %v8202 = vpop.f32.mrf.mxu0
      %v8203 = vadd.f32 %v8174, %v8202
      %v8204 = vpop.f32.mrf.mxu0
      %v8205 = vadd.f32 %v8176, %v8204
      %8206 = vmatmul.bf16.gmra.mxu0 %v6474
      %v8207 = vpop.f32.mrf.mxu0
      %v8208 = vadd.f32 %v8179, %v8207
      %v8209 = vpop.f32.mrf.mxu0
      %v8210 = vadd.f32 %v8181, %v8209
      %8211 = vmatmul.bf16.gmra.mxu0 %v6477
      %v8212 = vpop.f32.mrf.mxu0
      %v8213 = vadd.f32 %v8184, %v8212
      %v8214 = vpop.f32.mrf.mxu0
      %v8215 = vadd.f32 %v8186, %v8214
      %8216 = vmatmul.bf16.gmra.mxu0 %v6480
      %v8217 = vpop.f32.mrf.mxu0
      %v8218 = vadd.f32 %v8189, %v8217
      %v8219 = vpop.f32.mrf.mxu0
      %v8220 = vadd.f32 %v8191, %v8219
      %8221 = vdwg.mxu0
      %8222 = vmatpush.bf16.msra.mxu0 %v5332
      %8223 = vmatpush.bf16.msra.mxu0 %v5324
      %8224 = vmatpush.bf16.msra.mxu0 %v5316
      %8225 = vmatpush.bf16.msra.mxu0 %v5308
      %8226 = vmatpush.bf16.msra.mxu0 %v5300
      %8227 = vmatpush.bf16.msra.mxu0 %v5292
      %8228 = vmatpush.bf16.msra.mxu0 %v5284
      %8229 = vmatpush.bf16.msra.mxu0 %v5276
      %8230 = vmatmul.bf16.gmra.mxu0 %v3394
      %v8231 = vpop.f32.mrf.mxu0
      %v8232 = vadd.f32 0.0, %v8231
      %v8233 = vpop.f32.mrf.mxu0
      %v8234 = vadd.f32 0.0, %v8233
      %8235 = vmatmul.bf16.gmra.mxu0 %v3404
      %v8236 = vpop.f32.mrf.mxu0
      %v8237 = vadd.f32 0.0, %v8236
      %v8238 = vpop.f32.mrf.mxu0
      %v8239 = vadd.f32 0.0, %v8238
      %8240 = vmatmul.bf16.gmra.mxu0 %v3414
      %v8241 = vpop.f32.mrf.mxu0
      %v8242 = vadd.f32 0.0, %v8241
      %v8243 = vpop.f32.mrf.mxu0
      %v8244 = vadd.f32 0.0, %v8243
      %8245 = vmatmul.bf16.gmra.mxu0 %v3424
      %v8246 = vpop.f32.mrf.mxu0
      %v8247 = vadd.f32 0.0, %v8246
      %v8248 = vpop.f32.mrf.mxu0
      %v8249 = vadd.f32 0.0, %v8248
      %8250 = vdwg.mxu0
      %8251 = vmatpush.bf16.msra.mxu0 %v5396
      %8252 = vmatpush.bf16.msra.mxu0 %v5388
      %8253 = vmatpush.bf16.msra.mxu0 %v5380
      %8254 = vmatpush.bf16.msra.mxu0 %v5372
      %8255 = vmatpush.bf16.msra.mxu0 %v5364
      %8256 = vmatpush.bf16.msra.mxu0 %v5356
      %8257 = vmatpush.bf16.msra.mxu0 %v5348
      %8258 = vmatpush.bf16.msra.mxu0 %v5340
      %8259 = vmatmul.bf16.gmra.mxu0 %v3395
      %v8260 = vpop.f32.mrf.mxu0
      %v8261 = vadd.f32 %v8232, %v8260
      %v8262 = vpop.f32.mrf.mxu0
      %v8263 = vadd.f32 %v8234, %v8262
      %8264 = vmatmul.bf16.gmra.mxu0 %v3405
      %v8265 = vpop.f32.mrf.mxu0
      %v8266 = vadd.f32 %v8237, %v8265
      %v8267 = vpop.f32.mrf.mxu0
      %v8268 = vadd.f32 %v8239, %v8267
      %8269 = vmatmul.bf16.gmra.mxu0 %v3415
      %v8270 = vpop.f32.mrf.mxu0
      %v8271 = vadd.f32 %v8242, %v8270
      %v8272 = vpop.f32.mrf.mxu0
      %v8273 = vadd.f32 %v8244, %v8272
      %8274 = vmatmul.bf16.gmra.mxu0 %v3425
      %v8275 = vpop.f32.mrf.mxu0
      %v8276 = vadd.f32 %v8247, %v8275
      %v8277 = vpop.f32.mrf.mxu0
      %v8278 = vadd.f32 %v8249, %v8277
      %8279 = vdwg.mxu0
      %8280 = vmatpush.bf16.msra.mxu0 %v5460
      %8281 = vmatpush.bf16.msra.mxu0 %v5452
      %8282 = vmatpush.bf16.msra.mxu0 %v5444
      %8283 = vmatpush.bf16.msra.mxu0 %v5436
      %8284 = vmatpush.bf16.msra.mxu0 %v5428
      %8285 = vmatpush.bf16.msra.mxu0 %v5420
      %8286 = vmatpush.bf16.msra.mxu0 %v5412
      %8287 = vmatpush.bf16.msra.mxu0 %v5404
      %8288 = vmatmul.bf16.gmra.mxu0 %v3396
      %v8289 = vpop.f32.mrf.mxu0
      %v8290 = vadd.f32 %v8261, %v8289
      %v8291 = vpop.f32.mrf.mxu0
      %v8292 = vadd.f32 %v8263, %v8291
      %8293 = vmatmul.bf16.gmra.mxu0 %v3406
      %v8294 = vpop.f32.mrf.mxu0
      %v8295 = vadd.f32 %v8266, %v8294
      %v8296 = vpop.f32.mrf.mxu0
      %v8297 = vadd.f32 %v8268, %v8296
      %8298 = vmatmul.bf16.gmra.mxu0 %v3416
      %v8299 = vpop.f32.mrf.mxu0
      %v8300 = vadd.f32 %v8271, %v8299
      %v8301 = vpop.f32.mrf.mxu0
      %v8302 = vadd.f32 %v8273, %v8301
      %8303 = vmatmul.bf16.gmra.mxu0 %v3426
      %v8304 = vpop.f32.mrf.mxu0
      %v8305 = vadd.f32 %v8276, %v8304
      %v8306 = vpop.f32.mrf.mxu0
      %v8307 = vadd.f32 %v8278, %v8306
      %8308 = vdwg.mxu0
      %8309 = vmatpush.bf16.msra.mxu0 %v5524
      %8310 = vmatpush.bf16.msra.mxu0 %v5516
      %8311 = vmatpush.bf16.msra.mxu0 %v5508
      %8312 = vmatpush.bf16.msra.mxu0 %v5500
      %8313 = vmatpush.bf16.msra.mxu0 %v5492
      %8314 = vmatpush.bf16.msra.mxu0 %v5484
      %8315 = vmatpush.bf16.msra.mxu0 %v5476
      %8316 = vmatpush.bf16.msra.mxu0 %v5468
      %8317 = vmatmul.bf16.gmra.mxu0 %v3397
      %v8318 = vpop.f32.mrf.mxu0
      %v8319 = vadd.f32 %v8290, %v8318
      %v8320 = vpop.f32.mrf.mxu0
      %v8321 = vadd.f32 %v8292, %v8320
      %8322 = vmatmul.bf16.gmra.mxu0 %v3407
      %v8323 = vpop.f32.mrf.mxu0
      %v8324 = vadd.f32 %v8295, %v8323
      %v8325 = vpop.f32.mrf.mxu0
      %v8326 = vadd.f32 %v8297, %v8325
      %8327 = vmatmul.bf16.gmra.mxu0 %v3417
      %v8328 = vpop.f32.mrf.mxu0
      %v8329 = vadd.f32 %v8300, %v8328
      %v8330 = vpop.f32.mrf.mxu0
      %v8331 = vadd.f32 %v8302, %v8330
      %8332 = vmatmul.bf16.gmra.mxu0 %v3427
      %v8333 = vpop.f32.mrf.mxu0
      %v8334 = vadd.f32 %v8305, %v8333
      %v8335 = vpop.f32.mrf.mxu0
      %v8336 = vadd.f32 %v8307, %v8335
      %8337 = vdwg.mxu0
      %8338 = vmatpush.bf16.msra.mxu0 %v5588
      %8339 = vmatpush.bf16.msra.mxu0 %v5580
      %8340 = vmatpush.bf16.msra.mxu0 %v5572
      %8341 = vmatpush.bf16.msra.mxu0 %v5564
      %8342 = vmatpush.bf16.msra.mxu0 %v5556
      %8343 = vmatpush.bf16.msra.mxu0 %v5548
      %8344 = vmatpush.bf16.msra.mxu0 %v5540
      %8345 = vmatpush.bf16.msra.mxu0 %v5532
      %8346 = vmatmul.bf16.gmra.mxu0 %v3398
      %v8347 = vpop.f32.mrf.mxu0
      %v8348 = vadd.f32 %v8319, %v8347
      %v8349 = vpop.f32.mrf.mxu0
      %v8350 = vadd.f32 %v8321, %v8349
      %8351 = vmatmul.bf16.gmra.mxu0 %v3408
      %v8352 = vpop.f32.mrf.mxu0
      %v8353 = vadd.f32 %v8324, %v8352
      %v8354 = vpop.f32.mrf.mxu0
      %v8355 = vadd.f32 %v8326, %v8354
      %8356 = vmatmul.bf16.gmra.mxu0 %v3418
      %v8357 = vpop.f32.mrf.mxu0
      %v8358 = vadd.f32 %v8329, %v8357
      %v8359 = vpop.f32.mrf.mxu0
      %v8360 = vadd.f32 %v8331, %v8359
      %8361 = vmatmul.bf16.gmra.mxu0 %v3428
      %v8362 = vpop.f32.mrf.mxu0
      %v8363 = vadd.f32 %v8334, %v8362
      %v8364 = vpop.f32.mrf.mxu0
      %v8365 = vadd.f32 %v8336, %v8364
      %8366 = vdwg.mxu0
      %8367 = vmatpush.bf16.msra.mxu0 %v5652
      %8368 = vmatpush.bf16.msra.mxu0 %v5644
      %8369 = vmatpush.bf16.msra.mxu0 %v5636
      %8370 = vmatpush.bf16.msra.mxu0 %v5628
      %8371 = vmatpush.bf16.msra.mxu0 %v5620
      %8372 = vmatpush.bf16.msra.mxu0 %v5612
      %8373 = vmatpush.bf16.msra.mxu0 %v5604
      %8374 = vmatpush.bf16.msra.mxu0 %v5596
      %8375 = vmatmul.bf16.gmra.mxu0 %v3399
      %v8376 = vpop.f32.mrf.mxu0
      %v8377 = vadd.f32 %v8348, %v8376
      %v8378 = vpop.f32.mrf.mxu0
      %v8379 = vadd.f32 %v8350, %v8378
      %8380 = vmatmul.bf16.gmra.mxu0 %v3409
      %v8381 = vpop.f32.mrf.mxu0
      %v8382 = vadd.f32 %v8353, %v8381
      %v8383 = vpop.f32.mrf.mxu0
      %v8384 = vadd.f32 %v8355, %v8383
      %8385 = vmatmul.bf16.gmra.mxu0 %v3419
      %v8386 = vpop.f32.mrf.mxu0
      %v8387 = vadd.f32 %v8358, %v8386
      %v8388 = vpop.f32.mrf.mxu0
      %v8389 = vadd.f32 %v8360, %v8388
      %8390 = vmatmul.bf16.gmra.mxu0 %v3429
      %v8391 = vpop.f32.mrf.mxu0
      %v8392 = vadd.f32 %v8363, %v8391
      %v8393 = vpop.f32.mrf.mxu0
      %v8394 = vadd.f32 %v8365, %v8393
      %8395 = vdwg.mxu0
      %8396 = vmatpush.bf16.msra.mxu0 %v5716
      %8397 = vmatpush.bf16.msra.mxu0 %v5708
      %8398 = vmatpush.bf16.msra.mxu0 %v5700
      %8399 = vmatpush.bf16.msra.mxu0 %v5692
      %8400 = vmatpush.bf16.msra.mxu0 %v5684
      %8401 = vmatpush.bf16.msra.mxu0 %v5676
      %8402 = vmatpush.bf16.msra.mxu0 %v5668
      %8403 = vmatpush.bf16.msra.mxu0 %v5660
      %8404 = vmatmul.bf16.gmra.mxu0 %v3400
      %v8405 = vpop.f32.mrf.mxu0
      %v8406 = vadd.f32 %v8377, %v8405
      %v8407 = vpop.f32.mrf.mxu0
      %v8408 = vadd.f32 %v8379, %v8407
      %8409 = vmatmul.bf16.gmra.mxu0 %v3410
      %v8410 = vpop.f32.mrf.mxu0
      %v8411 = vadd.f32 %v8382, %v8410
      %v8412 = vpop.f32.mrf.mxu0
      %v8413 = vadd.f32 %v8384, %v8412
      %8414 = vmatmul.bf16.gmra.mxu0 %v3420
      %v8415 = vpop.f32.mrf.mxu0
      %v8416 = vadd.f32 %v8387, %v8415
      %v8417 = vpop.f32.mrf.mxu0
      %v8418 = vadd.f32 %v8389, %v8417
      %8419 = vmatmul.bf16.gmra.mxu0 %v3430
      %v8420 = vpop.f32.mrf.mxu0
      %v8421 = vadd.f32 %v8392, %v8420
      %v8422 = vpop.f32.mrf.mxu0
      %v8423 = vadd.f32 %v8394, %v8422
      %8424 = vdwg.mxu0
      %8425 = vmatpush.bf16.msra.mxu0 %v5780
      %8426 = vmatpush.bf16.msra.mxu0 %v5772
      %8427 = vmatpush.bf16.msra.mxu0 %v5764
      %8428 = vmatpush.bf16.msra.mxu0 %v5756
      %8429 = vmatpush.bf16.msra.mxu0 %v5748
      %8430 = vmatpush.bf16.msra.mxu0 %v5740
      %8431 = vmatpush.bf16.msra.mxu0 %v5732
      %8432 = vmatpush.bf16.msra.mxu0 %v5724
      %8433 = vmatmul.bf16.gmra.mxu0 %v3401
      %v8434 = vpop.f32.mrf.mxu0
      %v8435 = vadd.f32 %v8406, %v8434
      %v8436 = vpop.f32.mrf.mxu0
      %v8437 = vadd.f32 %v8408, %v8436
      %8438 = vmatmul.bf16.gmra.mxu0 %v3411
      %v8439 = vpop.f32.mrf.mxu0
      %v8440 = vadd.f32 %v8411, %v8439
      %v8441 = vpop.f32.mrf.mxu0
      %v8442 = vadd.f32 %v8413, %v8441
      %8443 = vmatmul.bf16.gmra.mxu0 %v3421
      %v8444 = vpop.f32.mrf.mxu0
      %v8445 = vadd.f32 %v8416, %v8444
      %v8446 = vpop.f32.mrf.mxu0
      %v8447 = vadd.f32 %v8418, %v8446
      %8448 = vmatmul.bf16.gmra.mxu0 %v3431
      %v8449 = vpop.f32.mrf.mxu0
      %v8450 = vadd.f32 %v8421, %v8449
      %v8451 = vpop.f32.mrf.mxu0
      %v8452 = vadd.f32 %v8423, %v8451
      %8453 = vdwg.mxu0
      %8454 = vmatpush.bf16.msra.mxu0 %v5844
      %8455 = vmatpush.bf16.msra.mxu0 %v5836
      %8456 = vmatpush.bf16.msra.mxu0 %v5828
      %8457 = vmatpush.bf16.msra.mxu0 %v5820
      %8458 = vmatpush.bf16.msra.mxu0 %v5812
      %8459 = vmatpush.bf16.msra.mxu0 %v5804
      %8460 = vmatpush.bf16.msra.mxu0 %v5796
      %8461 = vmatpush.bf16.msra.mxu0 %v5788
      %8462 = vmatmul.bf16.gmra.mxu0 %v3402
      %v8463 = vpop.f32.mrf.mxu0
      %v8464 = vadd.f32 %v8435, %v8463
      %v8465 = vpop.f32.mrf.mxu0
      %v8466 = vadd.f32 %v8437, %v8465
      %8467 = vmatmul.bf16.gmra.mxu0 %v3412
      %v8468 = vpop.f32.mrf.mxu0
      %v8469 = vadd.f32 %v8440, %v8468
      %v8470 = vpop.f32.mrf.mxu0
      %v8471 = vadd.f32 %v8442, %v8470
      %8472 = vmatmul.bf16.gmra.mxu0 %v3422
      %v8473 = vpop.f32.mrf.mxu0
      %v8474 = vadd.f32 %v8445, %v8473
      %v8475 = vpop.f32.mrf.mxu0
      %v8476 = vadd.f32 %v8447, %v8475
      %8477 = vmatmul.bf16.gmra.mxu0 %v3432
      %v8478 = vpop.f32.mrf.mxu0
      %v8479 = vadd.f32 %v8450, %v8478
      %v8480 = vpop.f32.mrf.mxu0
      %v8481 = vadd.f32 %v8452, %v8480
      %8482 = vdwg.mxu0
      %8483 = vmatpush.bf16.msra.mxu0 0
      %8484 = vmatpush.bf16.msra.mxu0 0
      %8485 = vmatpush.bf16.msra.mxu0 0
      %8486 = vmatpush.bf16.msra.mxu0 0
      %8487 = vmatpush.bf16.msra.mxu0 0
      %8488 = vmatpush.bf16.msra.mxu0 %v5868
      %8489 = vmatpush.bf16.msra.mxu0 %v5860
      %8490 = vmatpush.bf16.msra.mxu0 %v5852
      %8491 = vmatmul.bf16.gmra.mxu0 %v6471
      %v8492 = vpop.f32.mrf.mxu0
      %v8493 = vadd.f32 %v8464, %v8492
      %v8494 = vpop.f32.mrf.mxu0
      %v8495 = vadd.f32 %v8466, %v8494
      %8496 = vmatmul.bf16.gmra.mxu0 %v6474
      %v8497 = vpop.f32.mrf.mxu0
      %v8498 = vadd.f32 %v8469, %v8497
      %v8499 = vpop.f32.mrf.mxu0
      %v8500 = vadd.f32 %v8471, %v8499
      %8501 = vmatmul.bf16.gmra.mxu0 %v6477
      %v8502 = vpop.f32.mrf.mxu0
      %v8503 = vadd.f32 %v8474, %v8502
      %v8504 = vpop.f32.mrf.mxu0
      %v8505 = vadd.f32 %v8476, %v8504
      %8506 = vmatmul.bf16.gmra.mxu0 %v6480
      %v8507 = vpop.f32.mrf.mxu0
      %v8508 = vadd.f32 %v8479, %v8507
      %v8509 = vpop.f32.mrf.mxu0
      %v8510 = vadd.f32 %v8481, %v8509
      %8511 = vdwg.mxu0
      %8512 = vmatpush.bf16.msra.mxu0 %v5333
      %8513 = vmatpush.bf16.msra.mxu0 %v5325
      %8514 = vmatpush.bf16.msra.mxu0 %v5317
      %8515 = vmatpush.bf16.msra.mxu0 %v5309
      %8516 = vmatpush.bf16.msra.mxu0 %v5301
      %8517 = vmatpush.bf16.msra.mxu0 %v5293
      %8518 = vmatpush.bf16.msra.mxu0 %v5285
      %8519 = vmatpush.bf16.msra.mxu0 %v5277
      %8520 = vmatmul.bf16.gmra.mxu0 %v3394
      %v8521 = vpop.f32.mrf.mxu0
      %v8522 = vadd.f32 0.0, %v8521
      %v8523 = vpop.f32.mrf.mxu0
      %v8524 = vadd.f32 0.0, %v8523
      %8525 = vmatmul.bf16.gmra.mxu0 %v3404
      %v8526 = vpop.f32.mrf.mxu0
      %v8527 = vadd.f32 0.0, %v8526
      %v8528 = vpop.f32.mrf.mxu0
      %v8529 = vadd.f32 0.0, %v8528
      %8530 = vmatmul.bf16.gmra.mxu0 %v3414
      %v8531 = vpop.f32.mrf.mxu0
      %v8532 = vadd.f32 0.0, %v8531
      %v8533 = vpop.f32.mrf.mxu0
      %v8534 = vadd.f32 0.0, %v8533
      %8535 = vmatmul.bf16.gmra.mxu0 %v3424
      %v8536 = vpop.f32.mrf.mxu0
      %v8537 = vadd.f32 0.0, %v8536
      %v8538 = vpop.f32.mrf.mxu0
      %v8539 = vadd.f32 0.0, %v8538
      %8540 = vdwg.mxu0
      %8541 = vmatpush.bf16.msra.mxu0 %v5397
      %8542 = vmatpush.bf16.msra.mxu0 %v5389
      %8543 = vmatpush.bf16.msra.mxu0 %v5381
      %8544 = vmatpush.bf16.msra.mxu0 %v5373
      %8545 = vmatpush.bf16.msra.mxu0 %v5365
      %8546 = vmatpush.bf16.msra.mxu0 %v5357
      %8547 = vmatpush.bf16.msra.mxu0 %v5349
      %8548 = vmatpush.bf16.msra.mxu0 %v5341
      %8549 = vmatmul.bf16.gmra.mxu0 %v3395
      %v8550 = vpop.f32.mrf.mxu0
      %v8551 = vadd.f32 %v8522, %v8550
      %v8552 = vpop.f32.mrf.mxu0
      %v8553 = vadd.f32 %v8524, %v8552
      %8554 = vmatmul.bf16.gmra.mxu0 %v3405
      %v8555 = vpop.f32.mrf.mxu0
      %v8556 = vadd.f32 %v8527, %v8555
      %v8557 = vpop.f32.mrf.mxu0
      %v8558 = vadd.f32 %v8529, %v8557
      %8559 = vmatmul.bf16.gmra.mxu0 %v3415
      %v8560 = vpop.f32.mrf.mxu0
      %v8561 = vadd.f32 %v8532, %v8560
      %v8562 = vpop.f32.mrf.mxu0
      %v8563 = vadd.f32 %v8534, %v8562
      %8564 = vmatmul.bf16.gmra.mxu0 %v3425
      %v8565 = vpop.f32.mrf.mxu0
      %v8566 = vadd.f32 %v8537, %v8565
      %v8567 = vpop.f32.mrf.mxu0
      %v8568 = vadd.f32 %v8539, %v8567
      %8569 = vdwg.mxu0
      %8570 = vmatpush.bf16.msra.mxu0 %v5461
      %8571 = vmatpush.bf16.msra.mxu0 %v5453
      %8572 = vmatpush.bf16.msra.mxu0 %v5445
      %8573 = vmatpush.bf16.msra.mxu0 %v5437
      %8574 = vmatpush.bf16.msra.mxu0 %v5429
      %8575 = vmatpush.bf16.msra.mxu0 %v5421
      %8576 = vmatpush.bf16.msra.mxu0 %v5413
      %8577 = vmatpush.bf16.msra.mxu0 %v5405
      %8578 = vmatmul.bf16.gmra.mxu0 %v3396
      %v8579 = vpop.f32.mrf.mxu0
      %v8580 = vadd.f32 %v8551, %v8579
      %v8581 = vpop.f32.mrf.mxu0
      %v8582 = vadd.f32 %v8553, %v8581
      %8583 = vmatmul.bf16.gmra.mxu0 %v3406
      %v8584 = vpop.f32.mrf.mxu0
      %v8585 = vadd.f32 %v8556, %v8584
      %v8586 = vpop.f32.mrf.mxu0
      %v8587 = vadd.f32 %v8558, %v8586
      %8588 = vmatmul.bf16.gmra.mxu0 %v3416
      %v8589 = vpop.f32.mrf.mxu0
      %v8590 = vadd.f32 %v8561, %v8589
      %v8591 = vpop.f32.mrf.mxu0
      %v8592 = vadd.f32 %v8563, %v8591
      %8593 = vmatmul.bf16.gmra.mxu0 %v3426
      %v8594 = vpop.f32.mrf.mxu0
      %v8595 = vadd.f32 %v8566, %v8594
      %v8596 = vpop.f32.mrf.mxu0
      %v8597 = vadd.f32 %v8568, %v8596
      %8598 = vdwg.mxu0
      %8599 = vmatpush.bf16.msra.mxu0 %v5525
      %8600 = vmatpush.bf16.msra.mxu0 %v5517
      %8601 = vmatpush.bf16.msra.mxu0 %v5509
      %8602 = vmatpush.bf16.msra.mxu0 %v5501
      %8603 = vmatpush.bf16.msra.mxu0 %v5493
      %8604 = vmatpush.bf16.msra.mxu0 %v5485
      %8605 = vmatpush.bf16.msra.mxu0 %v5477
      %8606 = vmatpush.bf16.msra.mxu0 %v5469
      %8607 = vmatmul.bf16.gmra.mxu0 %v3397
      %v8608 = vpop.f32.mrf.mxu0
      %v8609 = vadd.f32 %v8580, %v8608
      %v8610 = vpop.f32.mrf.mxu0
      %v8611 = vadd.f32 %v8582, %v8610
      %8612 = vmatmul.bf16.gmra.mxu0 %v3407
      %v8613 = vpop.f32.mrf.mxu0
      %v8614 = vadd.f32 %v8585, %v8613
      %v8615 = vpop.f32.mrf.mxu0
      %v8616 = vadd.f32 %v8587, %v8615
      %8617 = vmatmul.bf16.gmra.mxu0 %v3417
      %v8618 = vpop.f32.mrf.mxu0
      %v8619 = vadd.f32 %v8590, %v8618
      %v8620 = vpop.f32.mrf.mxu0
      %v8621 = vadd.f32 %v8592, %v8620
      %8622 = vmatmul.bf16.gmra.mxu0 %v3427
      %v8623 = vpop.f32.mrf.mxu0
      %v8624 = vadd.f32 %v8595, %v8623
      %v8625 = vpop.f32.mrf.mxu0
      %v8626 = vadd.f32 %v8597, %v8625
      %8627 = vdwg.mxu0
      %8628 = vmatpush.bf16.msra.mxu0 %v5589
      %8629 = vmatpush.bf16.msra.mxu0 %v5581
      %8630 = vmatpush.bf16.msra.mxu0 %v5573
      %8631 = vmatpush.bf16.msra.mxu0 %v5565
      %8632 = vmatpush.bf16.msra.mxu0 %v5557
      %8633 = vmatpush.bf16.msra.mxu0 %v5549
      %8634 = vmatpush.bf16.msra.mxu0 %v5541
      %8635 = vmatpush.bf16.msra.mxu0 %v5533
      %8636 = vmatmul.bf16.gmra.mxu0 %v3398
      %v8637 = vpop.f32.mrf.mxu0
      %v8638 = vadd.f32 %v8609, %v8637
      %v8639 = vpop.f32.mrf.mxu0
      %v8640 = vadd.f32 %v8611, %v8639
      %8641 = vmatmul.bf16.gmra.mxu0 %v3408
      %v8642 = vpop.f32.mrf.mxu0
      %v8643 = vadd.f32 %v8614, %v8642
      %v8644 = vpop.f32.mrf.mxu0
      %v8645 = vadd.f32 %v8616, %v8644
      %8646 = vmatmul.bf16.gmra.mxu0 %v3418
      %v8647 = vpop.f32.mrf.mxu0
      %v8648 = vadd.f32 %v8619, %v8647
      %v8649 = vpop.f32.mrf.mxu0
      %v8650 = vadd.f32 %v8621, %v8649
      %8651 = vmatmul.bf16.gmra.mxu0 %v3428
      %v8652 = vpop.f32.mrf.mxu0
      %v8653 = vadd.f32 %v8624, %v8652
      %v8654 = vpop.f32.mrf.mxu0
      %v8655 = vadd.f32 %v8626, %v8654
      %8656 = vdwg.mxu0
      %8657 = vmatpush.bf16.msra.mxu0 %v5653
      %8658 = vmatpush.bf16.msra.mxu0 %v5645
      %8659 = vmatpush.bf16.msra.mxu0 %v5637
      %8660 = vmatpush.bf16.msra.mxu0 %v5629
      %8661 = vmatpush.bf16.msra.mxu0 %v5621
      %8662 = vmatpush.bf16.msra.mxu0 %v5613
      %8663 = vmatpush.bf16.msra.mxu0 %v5605
      %8664 = vmatpush.bf16.msra.mxu0 %v5597
      %8665 = vmatmul.bf16.gmra.mxu0 %v3399
      %v8666 = vpop.f32.mrf.mxu0
      %v8667 = vadd.f32 %v8638, %v8666
      %v8668 = vpop.f32.mrf.mxu0
      %v8669 = vadd.f32 %v8640, %v8668
      %8670 = vmatmul.bf16.gmra.mxu0 %v3409
      %v8671 = vpop.f32.mrf.mxu0
      %v8672 = vadd.f32 %v8643, %v8671
      %v8673 = vpop.f32.mrf.mxu0
      %v8674 = vadd.f32 %v8645, %v8673
      %8675 = vmatmul.bf16.gmra.mxu0 %v3419
      %v8676 = vpop.f32.mrf.mxu0
      %v8677 = vadd.f32 %v8648, %v8676
      %v8678 = vpop.f32.mrf.mxu0
      %v8679 = vadd.f32 %v8650, %v8678
      %8680 = vmatmul.bf16.gmra.mxu0 %v3429
      %v8681 = vpop.f32.mrf.mxu0
      %v8682 = vadd.f32 %v8653, %v8681
      %v8683 = vpop.f32.mrf.mxu0
      %v8684 = vadd.f32 %v8655, %v8683
      %8685 = vdwg.mxu0
      %8686 = vmatpush.bf16.msra.mxu0 %v5717
      %8687 = vmatpush.bf16.msra.mxu0 %v5709
      %8688 = vmatpush.bf16.msra.mxu0 %v5701
      %8689 = vmatpush.bf16.msra.mxu0 %v5693
      %8690 = vmatpush.bf16.msra.mxu0 %v5685
      %8691 = vmatpush.bf16.msra.mxu0 %v5677
      %8692 = vmatpush.bf16.msra.mxu0 %v5669
      %8693 = vmatpush.bf16.msra.mxu0 %v5661
      %8694 = vmatmul.bf16.gmra.mxu0 %v3400
      %v8695 = vpop.f32.mrf.mxu0
      %v8696 = vadd.f32 %v8667, %v8695
      %v8697 = vpop.f32.mrf.mxu0
      %v8698 = vadd.f32 %v8669, %v8697
      %8699 = vmatmul.bf16.gmra.mxu0 %v3410
      %v8700 = vpop.f32.mrf.mxu0
      %v8701 = vadd.f32 %v8672, %v8700
      %v8702 = vpop.f32.mrf.mxu0
      %v8703 = vadd.f32 %v8674, %v8702
      %8704 = vmatmul.bf16.gmra.mxu0 %v3420
      %v8705 = vpop.f32.mrf.mxu0
      %v8706 = vadd.f32 %v8677, %v8705
      %v8707 = vpop.f32.mrf.mxu0
      %v8708 = vadd.f32 %v8679, %v8707
      %8709 = vmatmul.bf16.gmra.mxu0 %v3430
      %v8710 = vpop.f32.mrf.mxu0
      %v8711 = vadd.f32 %v8682, %v8710
      %v8712 = vpop.f32.mrf.mxu0
      %v8713 = vadd.f32 %v8684, %v8712
      %8714 = vdwg.mxu0
      %8715 = vmatpush.bf16.msra.mxu0 %v5781
      %8716 = vmatpush.bf16.msra.mxu0 %v5773
      %8717 = vmatpush.bf16.msra.mxu0 %v5765
      %8718 = vmatpush.bf16.msra.mxu0 %v5757
      %8719 = vmatpush.bf16.msra.mxu0 %v5749
      %8720 = vmatpush.bf16.msra.mxu0 %v5741
      %8721 = vmatpush.bf16.msra.mxu0 %v5733
      %8722 = vmatpush.bf16.msra.mxu0 %v5725
      %8723 = vmatmul.bf16.gmra.mxu0 %v3401
      %v8724 = vpop.f32.mrf.mxu0
      %v8725 = vadd.f32 %v8696, %v8724
      %v8726 = vpop.f32.mrf.mxu0
      %v8727 = vadd.f32 %v8698, %v8726
      %8728 = vmatmul.bf16.gmra.mxu0 %v3411
      %v8729 = vpop.f32.mrf.mxu0
      %v8730 = vadd.f32 %v8701, %v8729
      %v8731 = vpop.f32.mrf.mxu0
      %v8732 = vadd.f32 %v8703, %v8731
      %8733 = vmatmul.bf16.gmra.mxu0 %v3421
      %v8734 = vpop.f32.mrf.mxu0
      %v8735 = vadd.f32 %v8706, %v8734
      %v8736 = vpop.f32.mrf.mxu0
      %v8737 = vadd.f32 %v8708, %v8736
      %8738 = vmatmul.bf16.gmra.mxu0 %v3431
      %v8739 = vpop.f32.mrf.mxu0
      %v8740 = vadd.f32 %v8711, %v8739
      %v8741 = vpop.f32.mrf.mxu0
      %v8742 = vadd.f32 %v8713, %v8741
      %8743 = vdwg.mxu0
      %8744 = vmatpush.bf16.msra.mxu0 %v5845
      %8745 = vmatpush.bf16.msra.mxu0 %v5837
      %8746 = vmatpush.bf16.msra.mxu0 %v5829
      %8747 = vmatpush.bf16.msra.mxu0 %v5821
      %8748 = vmatpush.bf16.msra.mxu0 %v5813
      %8749 = vmatpush.bf16.msra.mxu0 %v5805
      %8750 = vmatpush.bf16.msra.mxu0 %v5797
      %8751 = vmatpush.bf16.msra.mxu0 %v5789
      %8752 = vmatmul.bf16.gmra.mxu0 %v3402
      %v8753 = vpop.f32.mrf.mxu0
      %v8754 = vadd.f32 %v8725, %v8753
      %v8755 = vpop.f32.mrf.mxu0
      %v8756 = vadd.f32 %v8727, %v8755
      %8757 = vmatmul.bf16.gmra.mxu0 %v3412
      %v8758 = vpop.f32.mrf.mxu0
      %v8759 = vadd.f32 %v8730, %v8758
      %v8760 = vpop.f32.mrf.mxu0
      %v8761 = vadd.f32 %v8732, %v8760
      %8762 = vmatmul.bf16.gmra.mxu0 %v3422
      %v8763 = vpop.f32.mrf.mxu0
      %v8764 = vadd.f32 %v8735, %v8763
      %v8765 = vpop.f32.mrf.mxu0
      %v8766 = vadd.f32 %v8737, %v8765
      %8767 = vmatmul.bf16.gmra.mxu0 %v3432
      %v8768 = vpop.f32.mrf.mxu0
      %v8769 = vadd.f32 %v8740, %v8768
      %v8770 = vpop.f32.mrf.mxu0
      %v8771 = vadd.f32 %v8742, %v8770
      %8772 = vdwg.mxu0
      %8773 = vmatpush.bf16.msra.mxu0 0
      %8774 = vmatpush.bf16.msra.mxu0 0
      %8775 = vmatpush.bf16.msra.mxu0 0
      %8776 = vmatpush.bf16.msra.mxu0 0
      %8777 = vmatpush.bf16.msra.mxu0 0
      %8778 = vmatpush.bf16.msra.mxu0 %v5869
      %8779 = vmatpush.bf16.msra.mxu0 %v5861
      %8780 = vmatpush.bf16.msra.mxu0 %v5853
      %8781 = vmatmul.bf16.gmra.mxu0 %v6471
      %v8782 = vpop.f32.mrf.mxu0
      %v8783 = vadd.f32 %v8754, %v8782
      %v8784 = vpop.f32.mrf.mxu0
      %v8785 = vadd.f32 %v8756, %v8784
      %8786 = vmatmul.bf16.gmra.mxu0 %v6474
      %v8787 = vpop.f32.mrf.mxu0
      %v8788 = vadd.f32 %v8759, %v8787
      %v8789 = vpop.f32.mrf.mxu0
      %v8790 = vadd.f32 %v8761, %v8789
      %8791 = vmatmul.bf16.gmra.mxu0 %v6477
      %v8792 = vpop.f32.mrf.mxu0
      %v8793 = vadd.f32 %v8764, %v8792
      %v8794 = vpop.f32.mrf.mxu0
      %v8795 = vadd.f32 %v8766, %v8794
      %8796 = vmatmul.bf16.gmra.mxu0 %v6480
      %v8797 = vpop.f32.mrf.mxu0
      %v8798 = vadd.f32 %v8769, %v8797
      %v8799 = vpop.f32.mrf.mxu0
      %v8800 = vadd.f32 %v8771, %v8799
      %8801 = vdwg.mxu0
      %v8802 = vadd.f32 %v6753, %v6755
      %v8803 = vadd.f32 %v8802, %v6758
      %v8804 = vadd.f32 %v8803, %v6760
      %v8805 = vadd.f32 %v8804, %v6763
      %v8806 = vadd.f32 %v8805, %v6765
      %v8807 = vadd.f32 %v8806, %v6768
      %v8808 = vadd.f32 %v8807, %v6770
      %v8809 = vrot.slane %v8808, 4
      %v8810 = vadd.f32 %v8808, %v8809
      %v8811 = vrot.slane %v8810, 2
      %v8812 = vadd.f32 %v8810, %v8811
      %v8813 = vrot.slane %v8812, 1
      %v8814 = vadd.f32 %v8812, %v8813
      %v8815 = vadd.f32 %v7043, %v7045
      %v8816 = vadd.f32 %v8815, %v7048
      %v8817 = vadd.f32 %v8816, %v7050
      %v8818 = vadd.f32 %v8817, %v7053
      %v8819 = vadd.f32 %v8818, %v7055
      %v8820 = vadd.f32 %v8819, %v7058
      %v8821 = vadd.f32 %v8820, %v7060
      %v8822 = vrot.slane %v8821, 4
      %v8823 = vadd.f32 %v8821, %v8822
      %v8824 = vrot.slane %v8823, 2
      %v8825 = vadd.f32 %v8823, %v8824
      %v8826 = vrot.slane %v8825, 1
      %v8827 = vadd.f32 %v8825, %v8826
      %v8828 = vadd.f32 %v7333, %v7335
      %v8829 = vadd.f32 %v8828, %v7338
      %v8830 = vadd.f32 %v8829, %v7340
      %v8831 = vadd.f32 %v8830, %v7343
      %v8832 = vadd.f32 %v8831, %v7345
      %v8833 = vadd.f32 %v8832, %v7348
      %v8834 = vadd.f32 %v8833, %v7350
      %v8835 = vrot.slane %v8834, 4
      %v8836 = vadd.f32 %v8834, %v8835
      %v8837 = vrot.slane %v8836, 2
      %v8838 = vadd.f32 %v8836, %v8837
      %v8839 = vrot.slane %v8838, 1
      %v8840 = vadd.f32 %v8838, %v8839
      %v8841 = vadd.f32 %v7623, %v7625
      %v8842 = vadd.f32 %v8841, %v7628
      %v8843 = vadd.f32 %v8842, %v7630
      %v8844 = vadd.f32 %v8843, %v7633
      %v8845 = vadd.f32 %v8844, %v7635
      %v8846 = vadd.f32 %v8845, %v7638
      %v8847 = vadd.f32 %v8846, %v7640
      %v8848 = vrot.slane %v8847, 4
      %v8849 = vadd.f32 %v8847, %v8848
      %v8850 = vrot.slane %v8849, 2
      %v8851 = vadd.f32 %v8849, %v8850
      %v8852 = vrot.slane %v8851, 1
      %v8853 = vadd.f32 %v8851, %v8852
      %v8854 = vadd.f32 %v7913, %v7915
      %v8855 = vadd.f32 %v8854, %v7918
      %v8856 = vadd.f32 %v8855, %v7920
      %v8857 = vadd.f32 %v8856, %v7923
      %v8858 = vadd.f32 %v8857, %v7925
      %v8859 = vadd.f32 %v8858, %v7928
      %v8860 = vadd.f32 %v8859, %v7930
      %v8861 = vrot.slane %v8860, 4
      %v8862 = vadd.f32 %v8860, %v8861
      %v8863 = vrot.slane %v8862, 2
      %v8864 = vadd.f32 %v8862, %v8863
      %v8865 = vrot.slane %v8864, 1
      %v8866 = vadd.f32 %v8864, %v8865
      %v8867 = vadd.f32 %v8203, %v8205
      %v8868 = vadd.f32 %v8867, %v8208
      %v8869 = vadd.f32 %v8868, %v8210
      %v8870 = vadd.f32 %v8869, %v8213
      %v8871 = vadd.f32 %v8870, %v8215
      %v8872 = vadd.f32 %v8871, %v8218
      %v8873 = vadd.f32 %v8872, %v8220
      %v8874 = vrot.slane %v8873, 4
      %v8875 = vadd.f32 %v8873, %v8874
      %v8876 = vrot.slane %v8875, 2
      %v8877 = vadd.f32 %v8875, %v8876
      %v8878 = vrot.slane %v8877, 1
      %v8879 = vadd.f32 %v8877, %v8878
      %v8880 = vadd.f32 %v8493, %v8495
      %v8881 = vadd.f32 %v8880, %v8498
      %v8882 = vadd.f32 %v8881, %v8500
      %v8883 = vadd.f32 %v8882, %v8503
      %v8884 = vadd.f32 %v8883, %v8505
      %v8885 = vadd.f32 %v8884, %v8508
      %v8886 = vadd.f32 %v8885, %v8510
      %v8887 = vrot.slane %v8886, 4
      %v8888 = vadd.f32 %v8886, %v8887
      %v8889 = vrot.slane %v8888, 2
      %v8890 = vadd.f32 %v8888, %v8889
      %v8891 = vrot.slane %v8890, 1
      %v8892 = vadd.f32 %v8890, %v8891
      %v8893 = vadd.f32 %v8783, %v8785
      %v8894 = vadd.f32 %v8893, %v8788
      %v8895 = vadd.f32 %v8894, %v8790
      %v8896 = vadd.f32 %v8895, %v8793
      %v8897 = vadd.f32 %v8896, %v8795
      %v8898 = vadd.f32 %v8897, %v8798
      %v8899 = vadd.f32 %v8898, %v8800
      %v8900 = vrot.slane %v8899, 4
      %v8901 = vadd.f32 %v8899, %v8900
      %v8902 = vrot.slane %v8901, 2
      %v8903 = vadd.f32 %v8901, %v8902
      %v8904 = vrot.slane %v8903, 1
      %v8905 = vadd.f32 %v8903, %v8904
      %v8906 = vmul.f32 %v6753, %v6753
      %v8907 = vmul.f32 %v7043, %v7043
      %v8908 = vmul.f32 %v7333, %v7333
      %v8909 = vmul.f32 %v7623, %v7623
      %v8910 = vmul.f32 %v7913, %v7913
      %v8911 = vmul.f32 %v8203, %v8203
      %v8912 = vmul.f32 %v8493, %v8493
      %v8913 = vmul.f32 %v8783, %v8783
      %v8914 = vmul.f32 %v6755, %v6755
      %v8915 = vmul.f32 %v7045, %v7045
      %v8916 = vmul.f32 %v7335, %v7335
      %v8917 = vmul.f32 %v7625, %v7625
      %v8918 = vmul.f32 %v7915, %v7915
      %v8919 = vmul.f32 %v8205, %v8205
      %v8920 = vmul.f32 %v8495, %v8495
      %v8921 = vmul.f32 %v8785, %v8785
      %v8922 = vmul.f32 %v6758, %v6758
      %v8923 = vmul.f32 %v7048, %v7048
      %v8924 = vmul.f32 %v7338, %v7338
      %v8925 = vmul.f32 %v7628, %v7628
      %v8926 = vmul.f32 %v7918, %v7918
      %v8927 = vmul.f32 %v8208, %v8208
      %v8928 = vmul.f32 %v8498, %v8498
      %v8929 = vmul.f32 %v8788, %v8788
      %v8930 = vmul.f32 %v6760, %v6760
      %v8931 = vmul.f32 %v7050, %v7050
      %v8932 = vmul.f32 %v7340, %v7340
      %v8933 = vmul.f32 %v7630, %v7630
      %v8934 = vmul.f32 %v7920, %v7920
      %v8935 = vmul.f32 %v8210, %v8210
      %v8936 = vmul.f32 %v8500, %v8500
      %v8937 = vmul.f32 %v8790, %v8790
      %v8938 = vmul.f32 %v6763, %v6763
      %v8939 = vmul.f32 %v7053, %v7053
      %v8940 = vmul.f32 %v7343, %v7343
      %v8941 = vmul.f32 %v7633, %v7633
      %v8942 = vmul.f32 %v7923, %v7923
      %v8943 = vmul.f32 %v8213, %v8213
      %v8944 = vmul.f32 %v8503, %v8503
      %v8945 = vmul.f32 %v8793, %v8793
      %v8946 = vmul.f32 %v6765, %v6765
      %v8947 = vmul.f32 %v7055, %v7055
      %v8948 = vmul.f32 %v7345, %v7345
      %v8949 = vmul.f32 %v7635, %v7635
      %v8950 = vmul.f32 %v7925, %v7925
      %v8951 = vmul.f32 %v8215, %v8215
      %v8952 = vmul.f32 %v8505, %v8505
      %v8953 = vmul.f32 %v8795, %v8795
      %v8954 = vmul.f32 %v6768, %v6768
      %v8955 = vmul.f32 %v7058, %v7058
      %v8956 = vmul.f32 %v7348, %v7348
      %v8957 = vmul.f32 %v7638, %v7638
      %v8958 = vmul.f32 %v7928, %v7928
      %v8959 = vmul.f32 %v8218, %v8218
      %v8960 = vmul.f32 %v8508, %v8508
      %v8961 = vmul.f32 %v8798, %v8798
      %v8962 = vmul.f32 %v6770, %v6770
      %v8963 = vmul.f32 %v7060, %v7060
      %v8964 = vmul.f32 %v7350, %v7350
      %v8965 = vmul.f32 %v7640, %v7640
      %v8966 = vmul.f32 %v7930, %v7930
      %v8967 = vmul.f32 %v8220, %v8220
      %v8968 = vmul.f32 %v8510, %v8510
      %v8969 = vmul.f32 %v8800, %v8800
      %v8970 = vadd.f32 %v8906, %v8914
      %v8971 = vadd.f32 %v8970, %v8922
      %v8972 = vadd.f32 %v8971, %v8930
      %v8973 = vadd.f32 %v8972, %v8938
      %v8974 = vadd.f32 %v8973, %v8946
      %v8975 = vadd.f32 %v8974, %v8954
      %v8976 = vadd.f32 %v8975, %v8962
      %v8977 = vrot.slane %v8976, 4
      %v8978 = vadd.f32 %v8976, %v8977
      %v8979 = vrot.slane %v8978, 2
      %v8980 = vadd.f32 %v8978, %v8979
      %v8981 = vrot.slane %v8980, 1
      %v8982 = vadd.f32 %v8980, %v8981
      %v8983 = vadd.f32 %v8907, %v8915
      %v8984 = vadd.f32 %v8983, %v8923
      %v8985 = vadd.f32 %v8984, %v8931
      %v8986 = vadd.f32 %v8985, %v8939
      %v8987 = vadd.f32 %v8986, %v8947
      %v8988 = vadd.f32 %v8987, %v8955
      %v8989 = vadd.f32 %v8988, %v8963
      %v8990 = vrot.slane %v8989, 4
      %v8991 = vadd.f32 %v8989, %v8990
      %v8992 = vrot.slane %v8991, 2
      %v8993 = vadd.f32 %v8991, %v8992
      %v8994 = vrot.slane %v8993, 1
      %v8995 = vadd.f32 %v8993, %v8994
      %v8996 = vadd.f32 %v8908, %v8916
      %v8997 = vadd.f32 %v8996, %v8924
      %v8998 = vadd.f32 %v8997, %v8932
      %v8999 = vadd.f32 %v8998, %v8940
      %v9000 = vadd.f32 %v8999, %v8948
      %v9001 = vadd.f32 %v9000, %v8956
      %v9002 = vadd.f32 %v9001, %v8964
      %v9003 = vrot.slane %v9002, 4
      %v9004 = vadd.f32 %v9002, %v9003
      %v9005 = vrot.slane %v9004, 2
      %v9006 = vadd.f32 %v9004, %v9005
      %v9007 = vrot.slane %v9006, 1
      %v9008 = vadd.f32 %v9006, %v9007
      %v9009 = vadd.f32 %v8909, %v8917
      %v9010 = vadd.f32 %v9009, %v8925
      %v9011 = vadd.f32 %v9010, %v8933
      %v9012 = vadd.f32 %v9011, %v8941
      %v9013 = vadd.f32 %v9012, %v8949
      %v9014 = vadd.f32 %v9013, %v8957
      %v9015 = vadd.f32 %v9014, %v8965
      %v9016 = vrot.slane %v9015, 4
      %v9017 = vadd.f32 %v9015, %v9016
      %v9018 = vrot.slane %v9017, 2
      %v9019 = vadd.f32 %v9017, %v9018
      %v9020 = vrot.slane %v9019, 1
      %v9021 = vadd.f32 %v9019, %v9020
      %v9022 = vadd.f32 %v8910, %v8918
      %v9023 = vadd.f32 %v9022, %v8926
      %v9024 = vadd.f32 %v9023, %v8934
      %v9025 = vadd.f32 %v9024, %v8942
      %v9026 = vadd.f32 %v9025, %v8950
      %v9027 = vadd.f32 %v9026, %v8958
      %v9028 = vadd.f32 %v9027, %v8966
      %v9029 = vrot.slane %v9028, 4
      %v9030 = vadd.f32 %v9028, %v9029
      %v9031 = vrot.slane %v9030, 2
      %v9032 = vadd.f32 %v9030, %v9031
      %v9033 = vrot.slane %v9032, 1
      %v9034 = vadd.f32 %v9032, %v9033
      %v9035 = vadd.f32 %v8911, %v8919
      %v9036 = vadd.f32 %v9035, %v8927
      %v9037 = vadd.f32 %v9036, %v8935
      %v9038 = vadd.f32 %v9037, %v8943
      %v9039 = vadd.f32 %v9038, %v8951
      %v9040 = vadd.f32 %v9039, %v8959
      %v9041 = vadd.f32 %v9040, %v8967
      %v9042 = vrot.slane %v9041, 4
      %v9043 = vadd.f32 %v9041, %v9042
      %v9044 = vrot.slane %v9043, 2
      %v9045 = vadd.f32 %v9043, %v9044
      %v9046 = vrot.slane %v9045, 1
      %v9047 = vadd.f32 %v9045, %v9046
      %v9048 = vadd.f32 %v8912, %v8920
      %v9049 = vadd.f32 %v9048, %v8928
      %v9050 = vadd.f32 %v9049, %v8936
      %v9051 = vadd.f32 %v9050, %v8944
      %v9052 = vadd.f32 %v9051, %v8952
      %v9053 = vadd.f32 %v9052, %v8960
      %v9054 = vadd.f32 %v9053, %v8968
      %v9055 = vrot.slane %v9054, 4
      %v9056 = vadd.f32 %v9054, %v9055
      %v9057 = vrot.slane %v9056, 2
      %v9058 = vadd.f32 %v9056, %v9057
      %v9059 = vrot.slane %v9058, 1
      %v9060 = vadd.f32 %v9058, %v9059
      %v9061 = vadd.f32 %v8913, %v8921
      %v9062 = vadd.f32 %v9061, %v8929
      %v9063 = vadd.f32 %v9062, %v8937
      %v9064 = vadd.f32 %v9063, %v8945
      %v9065 = vadd.f32 %v9064, %v8953
      %v9066 = vadd.f32 %v9065, %v8961
      %v9067 = vadd.f32 %v9066, %v8969
      %v9068 = vrot.slane %v9067, 4
      %v9069 = vadd.f32 %v9067, %v9068
      %v9070 = vrot.slane %v9069, 2
      %v9071 = vadd.f32 %v9069, %v9070
      %v9072 = vrot.slane %v9071, 1
      %v9073 = vadd.f32 %v9071, %v9072
      %v9074 = vadd.f32 %v8814, %v8827
      %v9075 = vadd.f32 %v8982, %v8995
      %v9076 = vadd.f32 %v9074, %v8840
      %v9077 = vadd.f32 %v9075, %v9008
      %v9078 = vadd.f32 %v9076, %v8853
      %v9079 = vadd.f32 %v9077, %v9021
      %v9080 = vadd.f32 %v9078, %v8866
      %v9081 = vadd.f32 %v9079, %v9034
      %v9082 = vadd.f32 %v9080, %v8879
      %v9083 = vadd.f32 %v9081, %v9047
      %v9084 = vadd.f32 %v9082, %v8892
      %v9085 = vadd.f32 %v9083, %v9060
      %v9086 = vadd.f32 %v9084, %v8905
      %v9087 = vadd.f32 %v9085, %v9073
      %v9088 = vmul.f32 %v9086, 0.001953125
      %v9089 = vmul.f32 %v9087, 0.001953125
      %v9090 = vmul.f32 %v9088, %v9088
      %v9091 = vsub.f32 %v9089, %v9090
      %v9092 = vmax.f32 %v9091, 0.0
      %v9093 = vadd.f32 %v9092, 1e-05
      %v9094 = vrsqrt.pop %v9093
      %v9095 = vmul.f32 %v9094, %v9093
      %v9096 = vmul.f32 %v9095, %v9094
      %v9097 = vmul.f32 0.5, %v9096
      %v9098 = vsub.f32 1.5, %v9097
      %v9099 = vmul.f32 %v9094, %v9098
      %vm9100 = vweird.f32 %v9093
      %vm9101 = vweird.f32 %v9094
      %vm9102 = vmor %vm9100, %vm9101
      %v9103 = vsel %vm9102, %v9094, %v9099
      %v9104 = vld [vmem:[%s2] sm:$0x1]
      %v9105 = vmul.f32 %v9104, %v9103
      %v9106 = vld [vmem:[%s3] sm:$0x1]
      %v9107 = vmul.f32 %v9088, %v9105
      %v9108 = vsub.f32 %v9106, %v9107
      %v9109 = vperm.slane %v9105, 0
      %v9110 = vmul.f32 %v6753, %v9109
      %v9111 = vmul.f32 %v7043, %v9109
      %v9112 = vmul.f32 %v7333, %v9109
      %v9113 = vmul.f32 %v7623, %v9109
      %v9114 = vmul.f32 %v7913, %v9109
      %v9115 = vmul.f32 %v8203, %v9109
      %v9116 = vmul.f32 %v8493, %v9109
      %v9117 = vmul.f32 %v8783, %v9109
      %v9118 = vmul.f32 %v6755, %v9109
      %v9119 = vmul.f32 %v7045, %v9109
      %v9120 = vmul.f32 %v7335, %v9109
      %v9121 = vmul.f32 %v7625, %v9109
      %v9122 = vmul.f32 %v7915, %v9109
      %v9123 = vmul.f32 %v8205, %v9109
      %v9124 = vmul.f32 %v8495, %v9109
      %v9125 = vmul.f32 %v8785, %v9109
      %v9126 = vmul.f32 %v6758, %v9109
      %v9127 = vmul.f32 %v7048, %v9109
      %v9128 = vmul.f32 %v7338, %v9109
      %v9129 = vmul.f32 %v7628, %v9109
      %v9130 = vmul.f32 %v7918, %v9109
      %v9131 = vmul.f32 %v8208, %v9109
      %v9132 = vmul.f32 %v8498, %v9109
      %v9133 = vmul.f32 %v8788, %v9109
      %v9134 = vmul.f32 %v6760, %v9109
      %v9135 = vmul.f32 %v7050, %v9109
      %v9136 = vmul.f32 %v7340, %v9109
      %v9137 = vmul.f32 %v7630, %v9109
      %v9138 = vmul.f32 %v7920, %v9109
      %v9139 = vmul.f32 %v8210, %v9109
      %v9140 = vmul.f32 %v8500, %v9109
      %v9141 = vmul.f32 %v8790, %v9109
      %v9142 = vmul.f32 %v6763, %v9109
      %v9143 = vmul.f32 %v7053, %v9109
      %v9144 = vmul.f32 %v7343, %v9109
      %v9145 = vmul.f32 %v7633, %v9109
      %v9146 = vmul.f32 %v7923, %v9109
      %v9147 = vmul.f32 %v8213, %v9109
      %v9148 = vmul.f32 %v8503, %v9109
      %v9149 = vmul.f32 %v8793, %v9109
      %v9150 = vmul.f32 %v6765, %v9109
      %v9151 = vmul.f32 %v7055, %v9109
      %v9152 = vmul.f32 %v7345, %v9109
      %v9153 = vmul.f32 %v7635, %v9109
      %v9154 = vmul.f32 %v7925, %v9109
      %v9155 = vmul.f32 %v8215, %v9109
      %v9156 = vmul.f32 %v8505, %v9109
      %v9157 = vmul.f32 %v8795, %v9109
      %v9158 = vmul.f32 %v6768, %v9109
      %v9159 = vmul.f32 %v7058, %v9109
      %v9160 = vmul.f32 %v7348, %v9109
      %v9161 = vmul.f32 %v7638, %v9109
      %v9162 = vmul.f32 %v7928, %v9109
      %v9163 = vmul.f32 %v8218, %v9109
      %v9164 = vmul.f32 %v8508, %v9109
      %v9165 = vmul.f32 %v8798, %v9109
      %v9166 = vmul.f32 %v6770, %v9109
      %v9167 = vmul.f32 %v7060, %v9109
      %v9168 = vmul.f32 %v7350, %v9109
      %v9169 = vmul.f32 %v7640, %v9109
      %v9170 = vmul.f32 %v7930, %v9109
      %v9171 = vmul.f32 %v8220, %v9109
      %v9172 = vmul.f32 %v8510, %v9109
      %v9173 = vmul.f32 %v8800, %v9109
      %v9174 = vperm.slane %v9108, 0
      %v9175 = vadd.f32 %v9110, %v9174
      %v9176 = vadd.f32 %v9111, %v9174
      %v9177 = vadd.f32 %v9112, %v9174
      %v9178 = vadd.f32 %v9113, %v9174
      %v9179 = vadd.f32 %v9114, %v9174
      %v9180 = vadd.f32 %v9115, %v9174
      %v9181 = vadd.f32 %v9116, %v9174
      %v9182 = vadd.f32 %v9117, %v9174
      %v9183 = vadd.f32 %v9118, %v9174
      %v9184 = vadd.f32 %v9119, %v9174
      %v9185 = vadd.f32 %v9120, %v9174
      %v9186 = vadd.f32 %v9121, %v9174
      %v9187 = vadd.f32 %v9122, %v9174
      %v9188 = vadd.f32 %v9123, %v9174
      %v9189 = vadd.f32 %v9124, %v9174
      %v9190 = vadd.f32 %v9125, %v9174
      %v9191 = vadd.f32 %v9126, %v9174
      %v9192 = vadd.f32 %v9127, %v9174
      %v9193 = vadd.f32 %v9128, %v9174
      %v9194 = vadd.f32 %v9129, %v9174
      %v9195 = vadd.f32 %v9130, %v9174
      %v9196 = vadd.f32 %v9131, %v9174
      %v9197 = vadd.f32 %v9132, %v9174
      %v9198 = vadd.f32 %v9133, %v9174
      %v9199 = vadd.f32 %v9134, %v9174
      %v9200 = vadd.f32 %v9135, %v9174
      %v9201 = vadd.f32 %v9136, %v9174
      %v9202 = vadd.f32 %v9137, %v9174
      %v9203 = vadd.f32 %v9138, %v9174
      %v9204 = vadd.f32 %v9139, %v9174
      %v9205 = vadd.f32 %v9140, %v9174
      %v9206 = vadd.f32 %v9141, %v9174
      %v9207 = vadd.f32 %v9142, %v9174
      %v9208 = vadd.f32 %v9143, %v9174
      %v9209 = vadd.f32 %v9144, %v9174
      %v9210 = vadd.f32 %v9145, %v9174
      %v9211 = vadd.f32 %v9146, %v9174
      %v9212 = vadd.f32 %v9147, %v9174
      %v9213 = vadd.f32 %v9148, %v9174
      %v9214 = vadd.f32 %v9149, %v9174
      %v9215 = vadd.f32 %v9150, %v9174
      %v9216 = vadd.f32 %v9151, %v9174
      %v9217 = vadd.f32 %v9152, %v9174
      %v9218 = vadd.f32 %v9153, %v9174
      %v9219 = vadd.f32 %v9154, %v9174
      %v9220 = vadd.f32 %v9155, %v9174
      %v9221 = vadd.f32 %v9156, %v9174
      %v9222 = vadd.f32 %v9157, %v9174
      %v9223 = vadd.f32 %v9158, %v9174
      %v9224 = vadd.f32 %v9159, %v9174
      %v9225 = vadd.f32 %v9160, %v9174
      %v9226 = vadd.f32 %v9161, %v9174
      %v9227 = vadd.f32 %v9162, %v9174
      %v9228 = vadd.f32 %v9163, %v9174
      %v9229 = vadd.f32 %v9164, %v9174
      %v9230 = vadd.f32 %v9165, %v9174
      %v9231 = vadd.f32 %v9166, %v9174
      %v9232 = vadd.f32 %v9167, %v9174
      %v9233 = vadd.f32 %v9168, %v9174
      %v9234 = vadd.f32 %v9169, %v9174
      %v9235 = vadd.f32 %v9170, %v9174
      %v9236 = vadd.f32 %v9171, %v9174
      %v9237 = vadd.f32 %v9172, %v9174
      %v9238 = vadd.f32 %v9173, %v9174
      %v9239 = vld [vmem:[#allocation2] sm:$0x1]
      %vm9240 = vcmp.ge.f32.partialorder %v9175, 0.0
      %vm9241 = vcmp.ge.f32.partialorder %v9176, 0.0
      %vm9242 = vcmp.ge.f32.partialorder %v9177, 0.0
      %vm9243 = vcmp.ge.f32.partialorder %v9178, 0.0
      %vm9244 = vcmp.ge.f32.partialorder %v9179, 0.0
      %vm9245 = vcmp.ge.f32.partialorder %v9180, 0.0
      %vm9246 = vcmp.ge.f32.partialorder %v9181, 0.0
      %vm9247 = vcmp.ge.f32.partialorder %v9182, 0.0
      %vm9248 = vcmp.ge.f32.partialorder %v9183, 0.0
      %vm9249 = vcmp.ge.f32.partialorder %v9184, 0.0
      %vm9250 = vcmp.ge.f32.partialorder %v9185, 0.0
      %vm9251 = vcmp.ge.f32.partialorder %v9186, 0.0
      %vm9252 = vcmp.ge.f32.partialorder %v9187, 0.0
      %vm9253 = vcmp.ge.f32.partialorder %v9188, 0.0
      %vm9254 = vcmp.ge.f32.partialorder %v9189, 0.0
      %vm9255 = vcmp.ge.f32.partialorder %v9190, 0.0
      %vm9256 = vcmp.ge.f32.partialorder %v9191, 0.0
      %vm9257 = vcmp.ge.f32.partialorder %v9192, 0.0
      %vm9258 = vcmp.ge.f32.partialorder %v9193, 0.0
      %vm9259 = vcmp.ge.f32.partialorder %v9194, 0.0
      %vm9260 = vcmp.ge.f32.partialorder %v9195, 0.0
      %vm9261 = vcmp.ge.f32.partialorder %v9196, 0.0
      %vm9262 = vcmp.ge.f32.partialorder %v9197, 0.0
      %vm9263 = vcmp.ge.f32.partialorder %v9198, 0.0
      %vm9264 = vcmp.ge.f32.partialorder %v9199, 0.0
      %vm9265 = vcmp.ge.f32.partialorder %v9200, 0.0
      %vm9266 = vcmp.ge.f32.partialorder %v9201, 0.0
      %vm9267 = vcmp.ge.f32.partialorder %v9202, 0.0
      %vm9268 = vcmp.ge.f32.partialorder %v9203, 0.0
      %vm9269 = vcmp.ge.f32.partialorder %v9204, 0.0
      %vm9270 = vcmp.ge.f32.partialorder %v9205, 0.0
      %vm9271 = vcmp.ge.f32.partialorder %v9206, 0.0
      %vm9272 = vcmp.ge.f32.partialorder %v9207, 0.0
      %vm9273 = vcmp.ge.f32.partialorder %v9208, 0.0
      %vm9274 = vcmp.ge.f32.partialorder %v9209, 0.0
      %vm9275 = vcmp.ge.f32.partialorder %v9210, 0.0
      %vm9276 = vcmp.ge.f32.partialorder %v9211, 0.0
      %vm9277 = vcmp.ge.f32.partialorder %v9212, 0.0
      %vm9278 = vcmp.ge.f32.partialorder %v9213, 0.0
      %vm9279 = vcmp.ge.f32.partialorder %v9214, 0.0
      %vm9280 = vcmp.ge.f32.partialorder %v9215, 0.0
      %vm9281 = vcmp.ge.f32.partialorder %v9216, 0.0
      %vm9282 = vcmp.ge.f32.partialorder %v9217, 0.0
      %vm9283 = vcmp.ge.f32.partialorder %v9218, 0.0
      %vm9284 = vcmp.ge.f32.partialorder %v9219, 0.0
      %vm9285 = vcmp.ge.f32.partialorder %v9220, 0.0
      %vm9286 = vcmp.ge.f32.partialorder %v9221, 0.0
      %vm9287 = vcmp.ge.f32.partialorder %v9222, 0.0
      %vm9288 = vcmp.ge.f32.partialorder %v9223, 0.0
      %vm9289 = vcmp.ge.f32.partialorder %v9224, 0.0
      %vm9290 = vcmp.ge.f32.partialorder %v9225, 0.0
      %vm9291 = vcmp.ge.f32.partialorder %v9226, 0.0
      %vm9292 = vcmp.ge.f32.partialorder %v9227, 0.0
      %vm9293 = vcmp.ge.f32.partialorder %v9228, 0.0
      %vm9294 = vcmp.ge.f32.partialorder %v9229, 0.0
      %vm9295 = vcmp.ge.f32.partialorder %v9230, 0.0
      %vm9296 = vcmp.ge.f32.partialorder %v9231, 0.0
      %vm9297 = vcmp.ge.f32.partialorder %v9232, 0.0
      %vm9298 = vcmp.ge.f32.partialorder %v9233, 0.0
      %vm9299 = vcmp.ge.f32.partialorder %v9234, 0.0
      %vm9300 = vcmp.ge.f32.partialorder %v9235, 0.0
      %vm9301 = vcmp.ge.f32.partialorder %v9236, 0.0
      %vm9302 = vcmp.ge.f32.partialorder %v9237, 0.0
      %vm9303 = vcmp.ge.f32.partialorder %v9238, 0.0
      %v9305 = vperm.slane %v9239, 0
      %9306 = vset.pattern.permute.xlu0 0
      %9307 = vperm.xlu0 %9306, %v9305
      %v9308 = vpop.permute.xlu0 %9307
      %v9310 = vmul.f32 %v9308, %v9175
      %v9311 = vmul.f32 %v9308, %v9176
      %v9312 = vmul.f32 %v9308, %v9177
      %v9313 = vmul.f32 %v9308, %v9178
      %v9314 = vmul.f32 %v9308, %v9179
      %v9315 = vmul.f32 %v9308, %v9180
      %v9316 = vmul.f32 %v9308, %v9181
      %v9317 = vmul.f32 %v9308, %v9182
      %v9318 = vmul.f32 %v9308, %v9183
      %v9319 = vmul.f32 %v9308, %v9184
      %v9320 = vmul.f32 %v9308, %v9185
      %v9321 = vmul.f32 %v9308, %v9186
      %v9322 = vmul.f32 %v9308, %v9187
      %v9323 = vmul.f32 %v9308, %v9188
      %v9324 = vmul.f32 %v9308, %v9189
      %v9325 = vmul.f32 %v9308, %v9190
      %v9326 = vmul.f32 %v9308, %v9191
      %v9327 = vmul.f32 %v9308, %v9192
      %v9328 = vmul.f32 %v9308, %v9193
      %v9329 = vmul.f32 %v9308, %v9194
      %v9330 = vmul.f32 %v9308, %v9195
      %v9331 = vmul.f32 %v9308, %v9196
      %v9332 = vmul.f32 %v9308, %v9197
      %v9333 = vmul.f32 %v9308, %v9198
      %v9334 = vmul.f32 %v9308, %v9199
      %v9335 = vmul.f32 %v9308, %v9200
      %v9336 = vmul.f32 %v9308, %v9201
      %v9337 = vmul.f32 %v9308, %v9202
      %v9338 = vmul.f32 %v9308, %v9203
      %v9339 = vmul.f32 %v9308, %v9204
      %v9340 = vmul.f32 %v9308, %v9205
      %v9341 = vmul.f32 %v9308, %v9206
      %v9342 = vmul.f32 %v9308, %v9207
      %v9343 = vmul.f32 %v9308, %v9208
      %v9344 = vmul.f32 %v9308, %v9209
      %v9345 = vmul.f32 %v9308, %v9210
      %v9346 = vmul.f32 %v9308, %v9211
      %v9347 = vmul.f32 %v9308, %v9212
      %v9348 = vmul.f32 %v9308, %v9213
      %v9349 = vmul.f32 %v9308, %v9214
      %v9350 = vmul.f32 %v9308, %v9215
      %v9351 = vmul.f32 %v9308, %v9216
      %v9352 = vmul.f32 %v9308, %v9217
      %v9353 = vmul.f32 %v9308, %v9218
      %v9354 = vmul.f32 %v9308, %v9219
      %v9355 = vmul.f32 %v9308, %v9220
      %v9356 = vmul.f32 %v9308, %v9221
      %v9357 = vmul.f32 %v9308, %v9222
      %v9358 = vmul.f32 %v9308, %v9223
      %v9359 = vmul.f32 %v9308, %v9224
      %v9360 = vmul.f32 %v9308, %v9225
      %v9361 = vmul.f32 %v9308, %v9226
      %v9362 = vmul.f32 %v9308, %v9227
      %v9363 = vmul.f32 %v9308, %v9228
      %v9364 = vmul.f32 %v9308, %v9229
      %v9365 = vmul.f32 %v9308, %v9230
      %v9366 = vmul.f32 %v9308, %v9231
      %v9367 = vmul.f32 %v9308, %v9232
      %v9368 = vmul.f32 %v9308, %v9233
      %v9369 = vmul.f32 %v9308, %v9234
      %v9370 = vmul.f32 %v9308, %v9235
      %v9371 = vmul.f32 %v9308, %v9236
      %v9372 = vmul.f32 %v9308, %v9237
      %v9373 = vmul.f32 %v9308, %v9238
      %v9374 = vsel %vm9240, %v9175, %v9310
      %v9375 = vsel %vm9241, %v9176, %v9311
      %v9376 = vsel %vm9242, %v9177, %v9312
      %v9377 = vsel %vm9243, %v9178, %v9313
      %v9378 = vsel %vm9244, %v9179, %v9314
      %v9379 = vsel %vm9245, %v9180, %v9315
      %v9380 = vsel %vm9246, %v9181, %v9316
      %v9381 = vsel %vm9247, %v9182, %v9317
      %v9382 = vsel %vm9248, %v9183, %v9318
      %v9383 = vsel %vm9249, %v9184, %v9319
      %v9384 = vsel %vm9250, %v9185, %v9320
      %v9385 = vsel %vm9251, %v9186, %v9321
      %v9386 = vsel %vm9252, %v9187, %v9322
      %v9387 = vsel %vm9253, %v9188, %v9323
      %v9388 = vsel %vm9254, %v9189, %v9324
      %v9389 = vsel %vm9255, %v9190, %v9325
      %v9390 = vsel %vm9256, %v9191, %v9326
      %v9391 = vsel %vm9257, %v9192, %v9327
      %v9392 = vsel %vm9258, %v9193, %v9328
      %v9393 = vsel %vm9259, %v9194, %v9329
      %v9394 = vsel %vm9260, %v9195, %v9330
      %v9395 = vsel %vm9261, %v9196, %v9331
      %v9396 = vsel %vm9262, %v9197, %v9332
      %v9397 = vsel %vm9263, %v9198, %v9333
      %v9398 = vsel %vm9264, %v9199, %v9334
      %v9399 = vsel %vm9265, %v9200, %v9335
      %v9400 = vsel %vm9266, %v9201, %v9336
      %v9401 = vsel %vm9267, %v9202, %v9337
      %v9402 = vsel %vm9268, %v9203, %v9338
      %v9403 = vsel %vm9269, %v9204, %v9339
      %v9404 = vsel %vm9270, %v9205, %v9340
      %v9405 = vsel %vm9271, %v9206, %v9341
      %v9406 = vsel %vm9272, %v9207, %v9342
      %v9407 = vsel %vm9273, %v9208, %v9343
      %v9408 = vsel %vm9274, %v9209, %v9344
      %v9409 = vsel %vm9275, %v9210, %v9345
      %v9410 = vsel %vm9276, %v9211, %v9346
      %v9411 = vsel %vm9277, %v9212, %v9347
      %v9412 = vsel %vm9278, %v9213, %v9348
      %v9413 = vsel %vm9279, %v9214, %v9349
      %v9414 = vsel %vm9280, %v9215, %v9350
      %v9415 = vsel %vm9281, %v9216, %v9351
      %v9416 = vsel %vm9282, %v9217, %v9352
      %v9417 = vsel %vm9283, %v9218, %v9353
      %v9418 = vsel %vm9284, %v9219, %v9354
      %v9419 = vsel %vm9285, %v9220, %v9355
      %v9420 = vsel %vm9286, %v9221, %v9356
      %v9421 = vsel %vm9287, %v9222, %v9357
      %v9422 = vsel %vm9288, %v9223, %v9358
      %v9423 = vsel %vm9289, %v9224, %v9359
      %v9424 = vsel %vm9290, %v9225, %v9360
      %v9425 = vsel %vm9291, %v9226, %v9361
      %v9426 = vsel %vm9292, %v9227, %v9362
      %v9427 = vsel %vm9293, %v9228, %v9363
      %v9428 = vsel %vm9294, %v9229, %v9364
      %v9429 = vsel %vm9295, %v9230, %v9365
      %v9430 = vsel %vm9296, %v9231, %v9366
      %v9431 = vsel %vm9297, %v9232, %v9367
      %v9432 = vsel %vm9298, %v9233, %v9368
      %v9433 = vsel %vm9299, %v9234, %v9369
      %v9434 = vsel %vm9300, %v9235, %v9370
      %v9435 = vsel %vm9301, %v9236, %v9371
      %v9436 = vsel %vm9302, %v9237, %v9372
      %v9437 = vsel %vm9303, %v9238, %v9373
      %9438 = vst [vmem:[%s226] sm:$0xff] %v9374
      %9439 = vst [vmem:[%s226 + $0x8] sm:$0xff] %v9375
      %9440 = vst [vmem:[%s226 + $0x10] sm:$0xff] %v9376
      %9441 = vst [vmem:[%s226 + $0x18] sm:$0xff] %v9377
      %9442 = vst [vmem:[%s226 + $0x20] sm:$0xff] %v9378
      %9443 = vst [vmem:[%s226 + $0x28] sm:$0xff] %v9379
      %9444 = vst [vmem:[%s226 + $0x30] sm:$0xff] %v9380
      %9445 = vst [vmem:[%s226 + $0x38] sm:$0xff] %v9381
      %9446 = vst [vmem:[%s226 + $0x40] sm:$0xff] %v9382
      %9447 = vst [vmem:[%s226 + $0x48] sm:$0xff] %v9383
      %9448 = vst [vmem:[%s226 + $0x50] sm:$0xff] %v9384
      %9449 = vst [vmem:[%s226 + $0x58] sm:$0xff] %v9385
      %9450 = vst [vmem:[%s226 + $0x60] sm:$0xff] %v9386
      %9451 = vst [vmem:[%s226 + $0x68] sm:$0xff] %v9387
      %9452 = vst [vmem:[%s226 + $0x70] sm:$0xff] %v9388
      %9453 = vst [vmem:[%s226 + $0x78] sm:$0xff] %v9389
      %9454 = vst [vmem:[%s226 + $0x80] sm:$0xff] %v9390
      %9455 = vst [vmem:[%s226 + $0x88] sm:$0xff] %v9391
      %9456 = vst [vmem:[%s226 + $0x90] sm:$0xff] %v9392
      %9457 = vst [vmem:[%s226 + $0x98] sm:$0xff] %v9393
      %9458 = vst [vmem:[%s226 + $0xa0] sm:$0xff] %v9394
      %9459 = vst [vmem:[%s226 + $0xa8] sm:$0xff] %v9395
      %9460 = vst [vmem:[%s226 + $0xb0] sm:$0xff] %v9396
      %9461 = vst [vmem:[%s226 + $0xb8] sm:$0xff] %v9397
      %9462 = vst [vmem:[%s226 + $0xc0] sm:$0xff] %v9398
      %9463 = vst [vmem:[%s226 + $0xc8] sm:$0xff] %v9399
      %9464 = vst [vmem:[%s226 + $0xd0] sm:$0xff] %v9400
      %9465 = vst [vmem:[%s226 + $0xd8] sm:$0xff] %v9401
      %9466 = vst [vmem:[%s226 + $0xe0] sm:$0xff] %v9402
      %9467 = vst [vmem:[%s226 + $0xe8] sm:$0xff] %v9403
      %9468 = vst [vmem:[%s226 + $0xf0] sm:$0xff] %v9404
      %9469 = vst [vmem:[%s226 + $0xf8] sm:$0xff] %v9405
      %9470 = vst [vmem:[%s226 + $0x100] sm:$0xff] %v9406
      %9471 = vst [vmem:[%s226 + $0x108] sm:$0xff] %v9407
      %9472 = vst [vmem:[%s226 + $0x110] sm:$0xff] %v9408
      %9473 = vst [vmem:[%s226 + $0x118] sm:$0xff] %v9409
      %9474 = vst [vmem:[%s226 + $0x120] sm:$0xff] %v9410
      %9475 = vst [vmem:[%s226 + $0x128] sm:$0xff] %v9411
      %9476 = vst [vmem:[%s226 + $0x130] sm:$0xff] %v9412
      %9477 = vst [vmem:[%s226 + $0x138] sm:$0xff] %v9413
      %9478 = vst [vmem:[%s226 + $0x140] sm:$0xff] %v9414
      %9479 = vst [vmem:[%s226 + $0x148] sm:$0xff] %v9415
      %9480 = vst [vmem:[%s226 + $0x150] sm:$0xff] %v9416
      %9481 = vst [vmem:[%s226 + $0x158] sm:$0xff] %v9417
      %9482 = vst [vmem:[%s226 + $0x160] sm:$0xff] %v9418
      %9483 = vst [vmem:[%s226 + $0x168] sm:$0xff] %v9419
      %9484 = vst [vmem:[%s226 + $0x170] sm:$0xff] %v9420
      %9485 = vst [vmem:[%s226 + $0x178] sm:$0xff] %v9421
      %9486 = vst [vmem:[%s226 + $0x180] sm:$0xff] %v9422
      %9487 = vst [vmem:[%s226 + $0x188] sm:$0xff] %v9423
      %9488 = vst [vmem:[%s226 + $0x190] sm:$0xff] %v9424
      %9489 = vst [vmem:[%s226 + $0x198] sm:$0xff] %v9425
      %9490 = vst [vmem:[%s226 + $0x1a0] sm:$0xff] %v9426
      %9491 = vst [vmem:[%s226 + $0x1a8] sm:$0xff] %v9427
      %9492 = vst [vmem:[%s226 + $0x1b0] sm:$0xff] %v9428
      %9493 = vst [vmem:[%s226 + $0x1b8] sm:$0xff] %v9429
      %9494 = vst [vmem:[%s226 + $0x1c0] sm:$0xff] %v9430
      %9495 = vst [vmem:[%s226 + $0x1c8] sm:$0xff] %v9431
      %9496 = vst [vmem:[%s226 + $0x1d0] sm:$0xff] %v9432
      %9497 = vst [vmem:[%s226 + $0x1d8] sm:$0xff] %v9433
      %9498 = vst [vmem:[%s226 + $0x1e0] sm:$0xff] %v9434
      %9499 = vst [vmem:[%s226 + $0x1e8] sm:$0xff] %v9435
      %9500 = vst [vmem:[%s226 + $0x1f0] sm:$0xff] %v9436
      %9501 = vst [vmem:[%s226 + $0x1f8] sm:$0xff] %v9437
      %p9502 = scmp.lt.s32.totalorder %s18, 1
      %s9503 = scalar_select %p9502, %s18, 1
      %s9504 = smul.addr %s9503, 64
      %s9505 = smul.addr %s9504, 8
      %s9506 = scalar_lea.vmem %s5, %s9505
      // Predicated region
      $region41: #{conv3d_block.1} parent=39 // pred_check
        %p9507 = pneg %p146
      $region42: #{conv3d_block.1} parent=39 // pred_check_branch
        %9509 = sbr.rel (%p9507) target = $region44
      $region43: #{conv3d_block.1} parent=39 // pred_region
        _
      $region44: #{conv3d_block.1} parent=39 // pred_fallthru
        _
    $region40: #{conv3d_block.1} parent=5 // pred_fallthru
      _
    %p9510 = scmp.le.s32.totalorder 2, %s13
    // Predicated region
    $region45: #{conv3d_block.1} parent=5 // pred_check
      %p9511 = pneg %p9510
    $region46: #{conv3d_block.1} parent=5 // pred_check_branch
      %9513 = sbr.rel (%p9511) target = $region48
    $region47: #{conv3d_block.1} parent=5 // pred_region
      %s9514 = ssub.s32 %s13, 2
      // Predicated region
      $region49: #{conv3d_block.1} parent=47 // pred_check
        %p9515 = pneg %p152
      $region50: #{conv3d_block.1} parent=47 // pred_check_branch
        %9517 = sbr.rel (%p9515) target = $region52
      $region51: #{conv3d_block.1} parent=47 // pred_region
        %p9518 = scmp.lt.s32.totalorder %s19, 1
        %s9519 = scalar_select %p9518, %s19, 1
        %s9520 = smul.addr %s9519, 64
        %s9521 = smul.addr %s9520, 8
        %s9522 = scalar_lea.vmem %s5, %s9521
      $region52: #{conv3d_block.1} parent=47 // pred_fallthru
        _
    $region48: #{conv3d_block.1} parent=5 // pred_fallthru
      _
  $region6: #{conv3d_block.1} parent=0 // loop_footer
    %s17 = sadd.s32 1, %s13
  $region7: #{conv3d_block.1} parent=0 // loop_footer_branch
    %12 = sbr.rel target = $region3
  $region8: #{conv3d_block.1} parent=0 // loop_exit
    _

</llo_original>
